<compile_context>
chip_gen: v5e
topology: v5e:2x2
jax: 0.10.0
libtpu: 0.0.40
codegen_flags: <defaults>
</compile_context>

<pallas_src>
import jax
import jax.numpy as jnp
from jax.experimental import pallas as pl
from jax.experimental.pallas import tpu as pltpu

EPS = 1e-5            # F.batch_norm default eps
LEAKY_SLOPE = 0.2

# Static shapes implied by CONFIG with a (N, 4, 16, 16) input.
H1 = W1 = 16          # conv1 spatial
C_IN = 4
C1 = 8                # conv1 out channels
H2 = W2 = 8           # after pool1
C2 = 16               # conv2 out channels
H3 = W3 = 4           # after pool2
F_IN = C2 * H3 * W3   # 256
F_OUT = 10


# ------------------------------ fused kernel --------------------------------

def _fused_forward_kernel(x_ref, w1_ref, t1_ref, w2_ref, b2_ref, wl_ref, bl_ref,
                          o_ref, xp1_ref, xp2_ref, flat_ref):
    """Whole batch end-to-end, entirely in VMEM."""
    f32 = jnp.float32
    n = x_ref.shape[0]

    # --- stage 1: conv1 (3x3, pad 1), BN folded into w1/t1, then ReLU -------
    xp1_ref[...] = jnp.zeros_like(xp1_ref)
    xp1_ref[:, 1:1 + H1, 1:1 + W1, :] = x_ref[...]
    acc1 = jnp.zeros((n * H1 * W1, C1), f32)
    for kh in range(3):                      # shifted-window MXU accumulation
        for kw in range(3):
            patch = xp1_ref[:, kh:kh + H1, kw:kw + W1, :]        # (n,16,16,4)
            acc1 += jnp.dot(patch.reshape(n * H1 * W1, C_IN), w1_ref[kh, kw],
                            preferred_element_type=f32)
    h1 = jnp.maximum(acc1 + t1_ref[...], 0.0)                    # (n*256, 8)

    # --- maxpool 2x2 stride 2 (pool W pairs, then H pairs, on flat rows) -----
    t1p = jnp.max(h1.reshape(n * H1 * W2, 2, C1), axis=1)        # (n*128, 8)
    p1 = jnp.max(t1p.reshape(n * H2, 2, W2, C1), axis=1)         # (n*8, 8, 8)

    # --- stage 2: conv2 (3x3, pad 1) + bias + leaky_relu(0.2) ----------------
    xp2_ref[...] = jnp.zeros_like(xp2_ref)
    xp2_ref[:, 1:1 + H2, 1:1 + W2, :] = p1.reshape(n, H2, W2, C1)
    acc2 = jnp.zeros((n * H2 * W2, C2), f32)
    for kh in range(3):
        for kw in range(3):
            patch = xp2_ref[:, kh:kh + H2, kw:kw + W2, :]        # (n,8,8,8)
            acc2 += jnp.dot(patch.reshape(n * H2 * W2, C1), w2_ref[kh, kw],
                            preferred_element_type=f32)
    z2 = acc2 + b2_ref[...]
    h2 = jnp.where(z2 >= 0, z2, LEAKY_SLOPE * z2)                # (n*64, 16)

    # --- maxpool 2x2 stride 2 ------------------------------------------------
    t2p = jnp.max(h2.reshape(n * H2 * W3, 2, C2), axis=1)        # (n*32, 16)
    p2 = jnp.max(t2p.reshape(n * H3, 2, W3, C2), axis=1)         # (n*4, 4, 16)
    p2 = p2.reshape(n, H3, W3, C2)                               # (n,4,4,16)

    # --- flatten in (h, w, c) order (linear weight pre-permuted to match) ----
    for h in range(H3):
        for w in range(W3):
            r = h * W3 + w
            flat_ref[:, r * C2:(r + 1) * C2] = p2[:, h, w, :]    # (n,16)

    # --- linear + sigmoid: one lane-dense MXU matmul for the whole batch -----
    z = jnp.dot(flat_ref[...], wl_ref[...],
                preferred_element_type=f32) + bl_ref[...]        # (n,10)
    o_ref[...] = (1.0 / (1.0 + jnp.exp(-z))).astype(o_ref.dtype)


# ------------------------------ host wrappers --------------------------------

def prepare_fused_params(weights, weights_bn):
    """One-time host-side fold/reshape of the module parameters."""
    w1, b1, gamma, beta, w2, b2, wl, bl = weights
    running_mean = weights_bn[0]
    # Reference quirk preserved: running_var := weights[bn_idx + 1] == weights[1]
    # (the first conv bias, zeros), NOT weights_bn[1].
    running_var = weights[1]
    scale = gamma * jax.lax.rsqrt(running_var + EPS)             # (C1,)
    w1_f = (w1 * scale).astype(jnp.float32)                      # fold BN into HWIO conv1
    t1 = ((b1 - running_mean) * scale + beta).reshape(1, C1)     # fused conv1 bias
    b2_r = b2.reshape(1, C2)
    # Linear weight rows are NCHW-flat (c*H3*W3 + h*W3 + w); regroup to
    # [(h*W3 + w)*C2 + c, o] so the kernel consumes its (h, w, c) flat layout.
    wl_r = (wl.reshape(C2, H3, W3, F_OUT)
              .transpose(1, 2, 0, 3)
              .reshape(F_IN, F_OUT))
    bl_r = bl.reshape(1, F_OUT)
    return (w1_f, t1, w2, b2_r, wl_r, bl_r)


@jax.jit
def network_forward(x_nchw, fused_params):
    """Replicates Network.forward for CONFIG.  Input is NCHW (PyTorch)."""
    w1_f, t1, w2, b2_r, wl_r, bl_r = fused_params
    n = x_nchw.shape[0]
    x = jnp.transpose(x_nchw, (0, 2, 3, 1)).astype(jnp.float32)  # NCHW -> NHWC
    vmem = pltpu.MemorySpace.VMEM
    out = pl.pallas_call(
        _fused_forward_kernel,
        out_shape=jax.ShapeDtypeStruct((n, F_OUT), jnp.float32),
        in_specs=[pl.BlockSpec(memory_space=vmem)] * 7,
        out_specs=pl.BlockSpec(memory_space=vmem),
        scratch_shapes=[
            pltpu.VMEM((n, H1 + 2, W1 + 2, C_IN), jnp.float32),  # padded conv1 input
            pltpu.VMEM((n, H2 + 2, W2 + 2, C1), jnp.float32),    # padded conv2 input
            pltpu.VMEM((n, F_IN), jnp.float32),                  # flattened features
        ],
    )(x, w1_f, t1, w2, b2_r, wl_r, bl_r)
    return out


# ------------------------- Network (config-driven) ---------------------------

CONFIG = [
    # name        param  (conv2d: (out, in, k, k, stride, pad); linear: (in, out))
    ('conv2d',     (8, 4, 3, 3, 1, 1)),
    ('bn',         (8, 8)),
    ('relu',       (True,)),
    ('max_pool2d', (2, 2, 0)),
    ('conv2d',     (16, 8, 3, 3, 1, 1)),
    ('leaky_relu', (0.2, True)),
    ('max_pool2d', (2, 2, 0)),
    ('flatten',    ()),
    ('linear',     (256, 10)),
    ('sigmoid',    ()),
]


def kaiming_normal(key, shape, fan_in):
    # torch.nn.init.kaiming_normal_ defaults: gain = sqrt(2), mode='fan_in'
    std = jnp.sqrt(2.0 / fan_in)
    return (std * jax.random.normal(key, shape)).astype(jnp.float32)


def init_weights(key):
    """Mirrors Network.__init__ for CONFIG: flat weights list + weights_bn."""
    weights = []
    weights_bn = []
    for name, param in CONFIG:
        if name == 'conv2d':
            out_ch, in_ch, kh, kw = param[0], param[1], param[2], param[3]
            key, sub = jax.random.split(key)
            weights.append(kaiming_normal(sub, (kh, kw, in_ch, out_ch),
                                          fan_in=in_ch * kh * kw))   # HWIO
            weights.append(jnp.zeros((out_ch,), jnp.float32))
        elif name == 'linear':
            f_in, f_out = param
            key, sub = jax.random.split(key)
            weights.append(kaiming_normal(sub, (f_in, f_out), fan_in=f_in))
            weights.append(jnp.zeros((f_out,), jnp.float32))
        elif name == 'bn':
            c = param[0]
            weights.append(jnp.ones((c,), jnp.float32))          # gamma
            weights.append(jnp.zeros((param[1],), jnp.float32))  # beta
            weights_bn.append(jnp.zeros((c,), jnp.float32))      # running_mean
            weights_bn.append(jnp.ones((c,), jnp.float32))       # running_var
        else:
            continue
    return weights, weights_bn


if __name__ == "__main__":
    key = jax.random.PRNGKey(0)
    k_x, k_w = jax.random.split(key)
    x = jax.random.normal(k_x, (2, 4, 16, 16), dtype=jnp.float32)  # NCHW input
    weights, weights_bn = init_weights(k_w)
    fused = prepare_fused_params(weights, weights_bn)

    out = network_forward(x, fused)
    out = jax.block_until_ready(out)
    assert out.shape == (2, 10) and out.dtype == jnp.float32
    assert bool(jnp.all(jnp.isfinite(out)))
    print("KERNEL_OK")
</pallas_src>

<mosaic_0001>
module attributes {stable_mosaic.version = 11 : i64} {
  func.func @_fused_forward_kernel(%arg0: memref<2x16x16x4xf32, #tpu.memory_space<vmem>>, %arg1: memref<3x3x4x8xf32, #tpu.memory_space<vmem>>, %arg2: memref<1x8xf32, #tpu.memory_space<vmem>>, %arg3: memref<3x3x8x16xf32, #tpu.memory_space<vmem>>, %arg4: memref<1x16xf32, #tpu.memory_space<vmem>>, %arg5: memref<256x10xf32, #tpu.memory_space<vmem>>, %arg6: memref<1x10xf32, #tpu.memory_space<vmem>>, %arg7: memref<2x10xf32, #tpu.memory_space<vmem>>, %arg8: memref<2x18x18x4xf32, #tpu.memory_space<vmem>>, %arg9: memref<2x10x10x8xf32, #tpu.memory_space<vmem>>, %arg10: memref<2x256xf32, #tpu.memory_space<vmem>>) attributes {dimension_semantics = [], scalar_prefetch = 0 : i64, scratch_operands = 3 : i64, tpu.core_type = #tpu.core_type<tc>} {
    %cst = arith.constant 0.000000e+00 : f32
    %0 = vector.broadcast %cst : f32 to vector<2x18x18x4xf32>
    %c0 = arith.constant 0 : index
    %c0_0 = arith.constant 0 : index
    %c0_1 = arith.constant 0 : index
    %c0_2 = arith.constant 0 : index
    %1 = vector.load %arg8[%c0, %c0_0, %c0_1, %c0_2] : memref<2x18x18x4xf32, #tpu.memory_space<vmem>>, vector<2x18x18x4xf32>
    tpu.vector_store %arg8[%c0, %c0_0, %c0_1, %c0_2], %0 {strides = array<i32>} : memref<2x18x18x4xf32, #tpu.memory_space<vmem>>, vector<2x18x18x4xf32>,
    %c0_3 = arith.constant 0 : index
    %c0_4 = arith.constant 0 : index
    %c0_5 = arith.constant 0 : index
    %c0_6 = arith.constant 0 : index
    %2 = vector.load %arg0[%c0_3, %c0_4, %c0_5, %c0_6] : memref<2x16x16x4xf32, #tpu.memory_space<vmem>>, vector<2x16x16x4xf32>
    %c0_7 = arith.constant 0 : index
    %c1 = arith.constant 1 : index
    %c1_8 = arith.constant 1 : index
    %c0_9 = arith.constant 0 : index
    %3 = vector.load %arg8[%c0_7, %c1, %c1_8, %c0_9] : memref<2x18x18x4xf32, #tpu.memory_space<vmem>>, vector<2x16x16x4xf32>
    tpu.vector_store %arg8[%c0_7, %c1, %c1_8, %c0_9], %2 {strides = array<i32>} : memref<2x18x18x4xf32, #tpu.memory_space<vmem>>, vector<2x16x16x4xf32>,
    %cst_10 = arith.constant 0.000000e+00 : f32
    %4 = vector.broadcast %cst_10 : f32 to vector<512x8xf32>
    %c0_11 = arith.constant 0 : index
    %c0_12 = arith.constant 0 : index
    %c0_13 = arith.constant 0 : index
    %c0_14 = arith.constant 0 : index
    %5 = vector.load %arg8[%c0_11, %c0_12, %c0_13, %c0_14] : memref<2x18x18x4xf32, #tpu.memory_space<vmem>>, vector<2x16x16x4xf32>
    %6 = vector.shape_cast %5 : vector<2x16x16x4xf32> to vector<512x4xf32>
    %c0_15 = arith.constant 0 : index
    %c0_16 = arith.constant 0 : index
    %c0_17 = arith.constant 0 : index
    %c0_18 = arith.constant 0 : index
    %7 = vector.load %arg1[%c0_15, %c0_16, %c0_17, %c0_18] : memref<3x3x4x8xf32, #tpu.memory_space<vmem>>, vector<1x1x4x8xf32>
    %8 = vector.shape_cast %7 : vector<1x1x4x8xf32> to vector<4x8xf32>
    %cst_19 = arith.constant dense<0.000000e+00> : vector<512x8xf32>
    %9 = tpu.matmul %6, %8, %cst_19 {dimension_numbers = #tpu.dot_dimension_numbers<[1], [0], [0], [1], [0, 0, 1, 1], [], []>} : vector<512x4xf32>, vector<4x8xf32>, vector<512x8xf32> -> vector<512x8xf32>
    %10 = arith.addf %4, %9 : vector<512x8xf32>
    %c0_20 = arith.constant 0 : index
    %c0_21 = arith.constant 0 : index
    %c1_22 = arith.constant 1 : index
    %c0_23 = arith.constant 0 : index
    %11 = vector.load %arg8[%c0_20, %c0_21, %c1_22, %c0_23] : memref<2x18x18x4xf32, #tpu.memory_space<vmem>>, vector<2x16x16x4xf32>
    %12 = vector.shape_cast %11 : vector<2x16x16x4xf32> to vector<512x4xf32>
    %c0_24 = arith.constant 0 : index
    %c1_25 = arith.constant 1 : index
    %c0_26 = arith.constant 0 : index
    %c0_27 = arith.constant 0 : index
    %13 = vector.load %arg1[%c0_24, %c1_25, %c0_26, %c0_27] : memref<3x3x4x8xf32, #tpu.memory_space<vmem>>, vector<1x1x4x8xf32>
    %14 = vector.shape_cast %13 : vector<1x1x4x8xf32> to vector<4x8xf32>
    %cst_28 = arith.constant dense<0.000000e+00> : vector<512x8xf32>
    %15 = tpu.matmul %12, %14, %cst_28 {dimension_numbers = #tpu.dot_dimension_numbers<[1], [0], [0], [1], [0, 0, 1, 1], [], []>} : vector<512x4xf32>, vector<4x8xf32>, vector<512x8xf32> -> vector<512x8xf32>
    %16 = arith.addf %10, %15 : vector<512x8xf32>
    %c0_29 = arith.constant 0 : index
    %c0_30 = arith.constant 0 : index
    %c2 = arith.constant 2 : index
    %c0_31 = arith.constant 0 : index
    %17 = vector.load %arg8[%c0_29, %c0_30, %c2, %c0_31] : memref<2x18x18x4xf32, #tpu.memory_space<vmem>>, vector<2x16x16x4xf32>
    %18 = vector.shape_cast %17 : vector<2x16x16x4xf32> to vector<512x4xf32>
    %c0_32 = arith.constant 0 : index
    %c2_33 = arith.constant 2 : index
    %c0_34 = arith.constant 0 : index
    %c0_35 = arith.constant 0 : index
    %19 = vector.load %arg1[%c0_32, %c2_33, %c0_34, %c0_35] : memref<3x3x4x8xf32, #tpu.memory_space<vmem>>, vector<1x1x4x8xf32>
    %20 = vector.shape_cast %19 : vector<1x1x4x8xf32> to vector<4x8xf32>
    %cst_36 = arith.constant dense<0.000000e+00> : vector<512x8xf32>
    %21 = tpu.matmul %18, %20, %cst_36 {dimension_numbers = #tpu.dot_dimension_numbers<[1], [0], [0], [1], [0, 0, 1, 1], [], []>} : vector<512x4xf32>, vector<4x8xf32>, vector<512x8xf32> -> vector<512x8xf32>
    %22 = arith.addf %16, %21 : vector<512x8xf32>
    %c0_37 = arith.constant 0 : index
    %c1_38 = arith.constant 1 : index
    %c0_39 = arith.constant 0 : index
    %c0_40 = arith.constant 0 : index
    %23 = vector.load %arg8[%c0_37, %c1_38, %c0_39, %c0_40] : memref<2x18x18x4xf32, #tpu.memory_space<vmem>>, vector<2x16x16x4xf32>
    %24 = vector.shape_cast %23 : vector<2x16x16x4xf32> to vector<512x4xf32>
    %c1_41 = arith.constant 1 : index
    %c0_42 = arith.constant 0 : index
    %c0_43 = arith.constant 0 : index
    %c0_44 = arith.constant 0 : index
    %25 = vector.load %arg1[%c1_41, %c0_42, %c0_43, %c0_44] : memref<3x3x4x8xf32, #tpu.memory_space<vmem>>, vector<1x1x4x8xf32>
    %26 = vector.shape_cast %25 : vector<1x1x4x8xf32> to vector<4x8xf32>
    %cst_45 = arith.constant dense<0.000000e+00> : vector<512x8xf32>
    %27 = tpu.matmul %24, %26, %cst_45 {dimension_numbers = #tpu.dot_dimension_numbers<[1], [0], [0], [1], [0, 0, 1, 1], [], []>} : vector<512x4xf32>, vector<4x8xf32>, vector<512x8xf32> -> vector<512x8xf32>
    %28 = arith.addf %22, %27 : vector<512x8xf32>
    %c0_46 = arith.constant 0 : index
    %c1_47 = arith.constant 1 : index
    %c1_48 = arith.constant 1 : index
    %c0_49 = arith.constant 0 : index
    %29 = vector.load %arg8[%c0_46, %c1_47, %c1_48, %c0_49] : memref<2x18x18x4xf32, #tpu.memory_space<vmem>>, vector<2x16x16x4xf32>
    %30 = vector.shape_cast %29 : vector<2x16x16x4xf32> to vector<512x4xf32>
    %c1_50 = arith.constant 1 : index
    %c1_51 = arith.constant 1 : index
    %c0_52 = arith.constant 0 : index
    %c0_53 = arith.constant 0 : index
    %31 = vector.load %arg1[%c1_50, %c1_51, %c0_52, %c0_53] : memref<3x3x4x8xf32, #tpu.memory_space<vmem>>, vector<1x1x4x8xf32>
    %32 = vector.shape_cast %31 : vector<1x1x4x8xf32> to vector<4x8xf32>
    %cst_54 = arith.constant dense<0.000000e+00> : vector<512x8xf32>
    %33 = tpu.matmul %30, %32, %cst_54 {dimension_numbers = #tpu.dot_dimension_numbers<[1], [0], [0], [1], [0, 0, 1, 1], [], []>} : vector<512x4xf32>, vector<4x8xf32>, vector<512x8xf32> -> vector<512x8xf32>
    %34 = arith.addf %28, %33 : vector<512x8xf32>
    %c0_55 = arith.constant 0 : index
    %c1_56 = arith.constant 1 : index
    %c2_57 = arith.constant 2 : index
    %c0_58 = arith.constant 0 : index
    %35 = vector.load %arg8[%c0_55, %c1_56, %c2_57, %c0_58] : memref<2x18x18x4xf32, #tpu.memory_space<vmem>>, vector<2x16x16x4xf32>
    %36 = vector.shape_cast %35 : vector<2x16x16x4xf32> to vector<512x4xf32>
    %c1_59 = arith.constant 1 : index
    %c2_60 = arith.constant 2 : index
    %c0_61 = arith.constant 0 : index
    %c0_62 = arith.constant 0 : index
    %37 = vector.load %arg1[%c1_59, %c2_60, %c0_61, %c0_62] : memref<3x3x4x8xf32, #tpu.memory_space<vmem>>, vector<1x1x4x8xf32>
    %38 = vector.shape_cast %37 : vector<1x1x4x8xf32> to vector<4x8xf32>
    %cst_63 = arith.constant dense<0.000000e+00> : vector<512x8xf32>
    %39 = tpu.matmul %36, %38, %cst_63 {dimension_numbers = #tpu.dot_dimension_numbers<[1], [0], [0], [1], [0, 0, 1, 1], [], []>} : vector<512x4xf32>, vector<4x8xf32>, vector<512x8xf32> -> vector<512x8xf32>
    %40 = arith.addf %34, %39 : vector<512x8xf32>
    %c0_64 = arith.constant 0 : index
    %c2_65 = arith.constant 2 : index
    %c0_66 = arith.constant 0 : index
    %c0_67 = arith.constant 0 : index
    %41 = vector.load %arg8[%c0_64, %c2_65, %c0_66, %c0_67] : memref<2x18x18x4xf32, #tpu.memory_space<vmem>>, vector<2x16x16x4xf32>
    %42 = vector.shape_cast %41 : vector<2x16x16x4xf32> to vector<512x4xf32>
    %c2_68 = arith.constant 2 : index
    %c0_69 = arith.constant 0 : index
    %c0_70 = arith.constant 0 : index
    %c0_71 = arith.constant 0 : index
    %43 = vector.load %arg1[%c2_68, %c0_69, %c0_70, %c0_71] : memref<3x3x4x8xf32, #tpu.memory_space<vmem>>, vector<1x1x4x8xf32>
    %44 = vector.shape_cast %43 : vector<1x1x4x8xf32> to vector<4x8xf32>
    %cst_72 = arith.constant dense<0.000000e+00> : vector<512x8xf32>
    %45 = tpu.matmul %42, %44, %cst_72 {dimension_numbers = #tpu.dot_dimension_numbers<[1], [0], [0], [1], [0, 0, 1, 1], [], []>} : vector<512x4xf32>, vector<4x8xf32>, vector<512x8xf32> -> vector<512x8xf32>
    %46 = arith.addf %40, %45 : vector<512x8xf32>
    %c0_73 = arith.constant 0 : index
    %c2_74 = arith.constant 2 : index
    %c1_75 = arith.constant 1 : index
    %c0_76 = arith.constant 0 : index
    %47 = vector.load %arg8[%c0_73, %c2_74, %c1_75, %c0_76] : memref<2x18x18x4xf32, #tpu.memory_space<vmem>>, vector<2x16x16x4xf32>
    %48 = vector.shape_cast %47 : vector<2x16x16x4xf32> to vector<512x4xf32>
    %c2_77 = arith.constant 2 : index
    %c1_78 = arith.constant 1 : index
    %c0_79 = arith.constant 0 : index
    %c0_80 = arith.constant 0 : index
    %49 = vector.load %arg1[%c2_77, %c1_78, %c0_79, %c0_80] : memref<3x3x4x8xf32, #tpu.memory_space<vmem>>, vector<1x1x4x8xf32>
    %50 = vector.shape_cast %49 : vector<1x1x4x8xf32> to vector<4x8xf32>
    %cst_81 = arith.constant dense<0.000000e+00> : vector<512x8xf32>
    %51 = tpu.matmul %48, %50, %cst_81 {dimension_numbers = #tpu.dot_dimension_numbers<[1], [0], [0], [1], [0, 0, 1, 1], [], []>} : vector<512x4xf32>, vector<4x8xf32>, vector<512x8xf32> -> vector<512x8xf32>
    %52 = arith.addf %46, %51 : vector<512x8xf32>
    %c0_82 = arith.constant 0 : index
    %c2_83 = arith.constant 2 : index
    %c2_84 = arith.constant 2 : index
    %c0_85 = arith.constant 0 : index
    %53 = vector.load %arg8[%c0_82, %c2_83, %c2_84, %c0_85] : memref<2x18x18x4xf32, #tpu.memory_space<vmem>>, vector<2x16x16x4xf32>
    %54 = vector.shape_cast %53 : vector<2x16x16x4xf32> to vector<512x4xf32>
    %c2_86 = arith.constant 2 : index
    %c2_87 = arith.constant 2 : index
    %c0_88 = arith.constant 0 : index
    %c0_89 = arith.constant 0 : index
    %55 = vector.load %arg1[%c2_86, %c2_87, %c0_88, %c0_89] : memref<3x3x4x8xf32, #tpu.memory_space<vmem>>, vector<1x1x4x8xf32>
    %56 = vector.shape_cast %55 : vector<1x1x4x8xf32> to vector<4x8xf32>
    %cst_90 = arith.constant dense<0.000000e+00> : vector<512x8xf32>
    %57 = tpu.matmul %54, %56, %cst_90 {dimension_numbers = #tpu.dot_dimension_numbers<[1], [0], [0], [1], [0, 0, 1, 1], [], []>} : vector<512x4xf32>, vector<4x8xf32>, vector<512x8xf32> -> vector<512x8xf32>
    %58 = arith.addf %52, %57 : vector<512x8xf32>
    %c0_91 = arith.constant 0 : index
    %c0_92 = arith.constant 0 : index
    %59 = vector.load %arg2[%c0_91, %c0_92] : memref<1x8xf32, #tpu.memory_space<vmem>>, vector<1x8xf32>
    %60 = vector.broadcast %59 : vector<1x8xf32> to vector<512x8xf32>
    %61 = arith.addf %58, %60 : vector<512x8xf32>
    %cst_93 = arith.constant 0.000000e+00 : f32
    %62 = vector.broadcast %cst_93 : f32 to vector<512x8xf32>
    %63 = arith.maximumf %61, %62 : vector<512x8xf32>
    %64 = vector.shape_cast %63 : vector<512x8xf32> to vector<256x2x8xf32>
    %cst_94 = arith.constant dense<0xFF800000> : vector<256x8xf32>
    %65 = vector.multi_reduction <maximumf>, %64, %cst_94 [1] : vector<256x2x8xf32> to vector<256x8xf32>
    %66 = vector.shape_cast %65 : vector<256x8xf32> to vector<16x2x8x8xf32>
    %cst_95 = arith.constant dense<0xFF800000> : vector<16x8x8xf32>
    %67 = vector.multi_reduction <maximumf>, %66, %cst_95 [1] : vector<16x2x8x8xf32> to vector<16x8x8xf32>
    %cst_96 = arith.constant 0.000000e+00 : f32
    %68 = vector.broadcast %cst_96 : f32 to vector<2x10x10x8xf32>
    %c0_97 = arith.constant 0 : index
    %c0_98 = arith.constant 0 : index
    %c0_99 = arith.constant 0 : index
    %c0_100 = arith.constant 0 : index
    %69 = vector.load %arg9[%c0_97, %c0_98, %c0_99, %c0_100] : memref<2x10x10x8xf32, #tpu.memory_space<vmem>>, vector<2x10x10x8xf32>
    tpu.vector_store %arg9[%c0_97, %c0_98, %c0_99, %c0_100], %68 {strides = array<i32>} : memref<2x10x10x8xf32, #tpu.memory_space<vmem>>, vector<2x10x10x8xf32>,
    %70 = vector.shape_cast %67 : vector<16x8x8xf32> to vector<2x8x8x8xf32>
    %c0_101 = arith.constant 0 : index
    %c1_102 = arith.constant 1 : index
    %c1_103 = arith.constant 1 : index
    %c0_104 = arith.constant 0 : index
    %71 = vector.load %arg9[%c0_101, %c1_102, %c1_103, %c0_104] : memref<2x10x10x8xf32, #tpu.memory_space<vmem>>, vector<2x8x8x8xf32>
    tpu.vector_store %arg9[%c0_101, %c1_102, %c1_103, %c0_104], %70 {strides = array<i32>} : memref<2x10x10x8xf32, #tpu.memory_space<vmem>>, vector<2x8x8x8xf32>,
    %cst_105 = arith.constant 0.000000e+00 : f32
    %72 = vector.broadcast %cst_105 : f32 to vector<128x16xf32>
    %c0_106 = arith.constant 0 : index
    %c0_107 = arith.constant 0 : index
    %c0_108 = arith.constant 0 : index
    %c0_109 = arith.constant 0 : index
    %73 = vector.load %arg9[%c0_106, %c0_107, %c0_108, %c0_109] : memref<2x10x10x8xf32, #tpu.memory_space<vmem>>, vector<2x8x8x8xf32>
    %74 = vector.shape_cast %73 : vector<2x8x8x8xf32> to vector<128x8xf32>
    %c0_110 = arith.constant 0 : index
    %c0_111 = arith.constant 0 : index
    %c0_112 = arith.constant 0 : index
    %c0_113 = arith.constant 0 : index
    %75 = vector.load %arg3[%c0_110, %c0_111, %c0_112, %c0_113] : memref<3x3x8x16xf32, #tpu.memory_space<vmem>>, vector<1x1x8x16xf32>
    %76 = vector.shape_cast %75 : vector<1x1x8x16xf32> to vector<8x16xf32>
    %cst_114 = arith.constant dense<0.000000e+00> : vector<128x16xf32>
    %77 = tpu.matmul %74, %76, %cst_114 {dimension_numbers = #tpu.dot_dimension_numbers<[1], [0], [0], [1], [0, 0, 1, 1], [], []>} : vector<128x8xf32>, vector<8x16xf32>, vector<128x16xf32> -> vector<128x16xf32>
    %78 = arith.addf %72, %77 : vector<128x16xf32>
    %c0_115 = arith.constant 0 : index
    %c0_116 = arith.constant 0 : index
    %c1_117 = arith.constant 1 : index
    %c0_118 = arith.constant 0 : index
    %79 = vector.load %arg9[%c0_115, %c0_116, %c1_117, %c0_118] : memref<2x10x10x8xf32, #tpu.memory_space<vmem>>, vector<2x8x8x8xf32>
    %80 = vector.shape_cast %79 : vector<2x8x8x8xf32> to vector<128x8xf32>
    %c0_119 = arith.constant 0 : index
    %c1_120 = arith.constant 1 : index
    %c0_121 = arith.constant 0 : index
    %c0_122 = arith.constant 0 : index
    %81 = vector.load %arg3[%c0_119, %c1_120, %c0_121, %c0_122] : memref<3x3x8x16xf32, #tpu.memory_space<vmem>>, vector<1x1x8x16xf32>
    %82 = vector.shape_cast %81 : vector<1x1x8x16xf32> to vector<8x16xf32>
    %cst_123 = arith.constant dense<0.000000e+00> : vector<128x16xf32>
    %83 = tpu.matmul %80, %82, %cst_123 {dimension_numbers = #tpu.dot_dimension_numbers<[1], [0], [0], [1], [0, 0, 1, 1], [], []>} : vector<128x8xf32>, vector<8x16xf32>, vector<128x16xf32> -> vector<128x16xf32>
    %84 = arith.addf %78, %83 : vector<128x16xf32>
    %c0_124 = arith.constant 0 : index
    %c0_125 = arith.constant 0 : index
    %c2_126 = arith.constant 2 : index
    %c0_127 = arith.constant 0 : index
    %85 = vector.load %arg9[%c0_124, %c0_125, %c2_126, %c0_127] : memref<2x10x10x8xf32, #tpu.memory_space<vmem>>, vector<2x8x8x8xf32>
    %86 = vector.shape_cast %85 : vector<2x8x8x8xf32> to vector<128x8xf32>
    %c0_128 = arith.constant 0 : index
    %c2_129 = arith.constant 2 : index
    %c0_130 = arith.constant 0 : index
    %c0_131 = arith.constant 0 : index
    %87 = vector.load %arg3[%c0_128, %c2_129, %c0_130, %c0_131] : memref<3x3x8x16xf32, #tpu.memory_space<vmem>>, vector<1x1x8x16xf32>
    %88 = vector.shape_cast %87 : vector<1x1x8x16xf32> to vector<8x16xf32>
    %cst_132 = arith.constant dense<0.000000e+00> : vector<128x16xf32>
    %89 = tpu.matmul %86, %88, %cst_132 {dimension_numbers = #tpu.dot_dimension_numbers<[1], [0], [0], [1], [0, 0, 1, 1], [], []>} : vector<128x8xf32>, vector<8x16xf32>, vector<128x16xf32> -> vector<128x16xf32>
    %90 = arith.addf %84, %89 : vector<128x16xf32>
    %c0_133 = arith.constant 0 : index
    %c1_134 = arith.constant 1 : index
    %c0_135 = arith.constant 0 : index
    %c0_136 = arith.constant 0 : index
    %91 = vector.load %arg9[%c0_133, %c1_134, %c0_135, %c0_136] : memref<2x10x10x8xf32, #tpu.memory_space<vmem>>, vector<2x8x8x8xf32>
    %92 = vector.shape_cast %91 : vector<2x8x8x8xf32> to vector<128x8xf32>
    %c1_137 = arith.constant 1 : index
    %c0_138 = arith.constant 0 : index
    %c0_139 = arith.constant 0 : index
    %c0_140 = arith.constant 0 : index
    %93 = vector.load %arg3[%c1_137, %c0_138, %c0_139, %c0_140] : memref<3x3x8x16xf32, #tpu.memory_space<vmem>>, vector<1x1x8x16xf32>
    %94 = vector.shape_cast %93 : vector<1x1x8x16xf32> to vector<8x16xf32>
    %cst_141 = arith.constant dense<0.000000e+00> : vector<128x16xf32>
    %95 = tpu.matmul %92, %94, %cst_141 {dimension_numbers = #tpu.dot_dimension_numbers<[1], [0], [0], [1], [0, 0, 1, 1], [], []>} : vector<128x8xf32>, vector<8x16xf32>, vector<128x16xf32> -> vector<128x16xf32>
    %96 = arith.addf %90, %95 : vector<128x16xf32>
    %c0_142 = arith.constant 0 : index
    %c1_143 = arith.constant 1 : index
    %c1_144 = arith.constant 1 : index
    %c0_145 = arith.constant 0 : index
    %97 = vector.load %arg9[%c0_142, %c1_143, %c1_144, %c0_145] : memref<2x10x10x8xf32, #tpu.memory_space<vmem>>, vector<2x8x8x8xf32>
    %98 = vector.shape_cast %97 : vector<2x8x8x8xf32> to vector<128x8xf32>
    %c1_146 = arith.constant 1 : index
    %c1_147 = arith.constant 1 : index
    %c0_148 = arith.constant 0 : index
    %c0_149 = arith.constant 0 : index
    %99 = vector.load %arg3[%c1_146, %c1_147, %c0_148, %c0_149] : memref<3x3x8x16xf32, #tpu.memory_space<vmem>>, vector<1x1x8x16xf32>
    %100 = vector.shape_cast %99 : vector<1x1x8x16xf32> to vector<8x16xf32>
    %cst_150 = arith.constant dense<0.000000e+00> : vector<128x16xf32>
    %101 = tpu.matmul %98, %100, %cst_150 {dimension_numbers = #tpu.dot_dimension_numbers<[1], [0], [0], [1], [0, 0, 1, 1], [], []>} : vector<128x8xf32>, vector<8x16xf32>, vector<128x16xf32> -> vector<128x16xf32>
    %102 = arith.addf %96, %101 : vector<128x16xf32>
    %c0_151 = arith.constant 0 : index
    %c1_152 = arith.constant 1 : index
    %c2_153 = arith.constant 2 : index
    %c0_154 = arith.constant 0 : index
    %103 = vector.load %arg9[%c0_151, %c1_152, %c2_153, %c0_154] : memref<2x10x10x8xf32, #tpu.memory_space<vmem>>, vector<2x8x8x8xf32>
    %104 = vector.shape_cast %103 : vector<2x8x8x8xf32> to vector<128x8xf32>
    %c1_155 = arith.constant 1 : index
    %c2_156 = arith.constant 2 : index
    %c0_157 = arith.constant 0 : index
    %c0_158 = arith.constant 0 : index
    %105 = vector.load %arg3[%c1_155, %c2_156, %c0_157, %c0_158] : memref<3x3x8x16xf32, #tpu.memory_space<vmem>>, vector<1x1x8x16xf32>
    %106 = vector.shape_cast %105 : vector<1x1x8x16xf32> to vector<8x16xf32>
    %cst_159 = arith.constant dense<0.000000e+00> : vector<128x16xf32>
    %107 = tpu.matmul %104, %106, %cst_159 {dimension_numbers = #tpu.dot_dimension_numbers<[1], [0], [0], [1], [0, 0, 1, 1], [], []>} : vector<128x8xf32>, vector<8x16xf32>, vector<128x16xf32> -> vector<128x16xf32>
    %108 = arith.addf %102, %107 : vector<128x16xf32>
    %c0_160 = arith.constant 0 : index
    %c2_161 = arith.constant 2 : index
    %c0_162 = arith.constant 0 : index
    %c0_163 = arith.constant 0 : index
    %109 = vector.load %arg9[%c0_160, %c2_161, %c0_162, %c0_163] : memref<2x10x10x8xf32, #tpu.memory_space<vmem>>, vector<2x8x8x8xf32>
    %110 = vector.shape_cast %109 : vector<2x8x8x8xf32> to vector<128x8xf32>
    %c2_164 = arith.constant 2 : index
    %c0_165 = arith.constant 0 : index
    %c0_166 = arith.constant 0 : index
    %c0_167 = arith.constant 0 : index
    %111 = vector.load %arg3[%c2_164, %c0_165, %c0_166, %c0_167] : memref<3x3x8x16xf32, #tpu.memory_space<vmem>>, vector<1x1x8x16xf32>
    %112 = vector.shape_cast %111 : vector<1x1x8x16xf32> to vector<8x16xf32>
    %cst_168 = arith.constant dense<0.000000e+00> : vector<128x16xf32>
    %113 = tpu.matmul %110, %112, %cst_168 {dimension_numbers = #tpu.dot_dimension_numbers<[1], [0], [0], [1], [0, 0, 1, 1], [], []>} : vector<128x8xf32>, vector<8x16xf32>, vector<128x16xf32> -> vector<128x16xf32>
    %114 = arith.addf %108, %113 : vector<128x16xf32>
    %c0_169 = arith.constant 0 : index
    %c2_170 = arith.constant 2 : index
    %c1_171 = arith.constant 1 : index
    %c0_172 = arith.constant 0 : index
    %115 = vector.load %arg9[%c0_169, %c2_170, %c1_171, %c0_172] : memref<2x10x10x8xf32, #tpu.memory_space<vmem>>, vector<2x8x8x8xf32>
    %116 = vector.shape_cast %115 : vector<2x8x8x8xf32> to vector<128x8xf32>
    %c2_173 = arith.constant 2 : index
    %c1_174 = arith.constant 1 : index
    %c0_175 = arith.constant 0 : index
    %c0_176 = arith.constant 0 : index
    %117 = vector.load %arg3[%c2_173, %c1_174, %c0_175, %c0_176] : memref<3x3x8x16xf32, #tpu.memory_space<vmem>>, vector<1x1x8x16xf32>
    %118 = vector.shape_cast %117 : vector<1x1x8x16xf32> to vector<8x16xf32>
    %cst_177 = arith.constant dense<0.000000e+00> : vector<128x16xf32>
    %119 = tpu.matmul %116, %118, %cst_177 {dimension_numbers = #tpu.dot_dimension_numbers<[1], [0], [0], [1], [0, 0, 1, 1], [], []>} : vector<128x8xf32>, vector<8x16xf32>, vector<128x16xf32> -> vector<128x16xf32>
    %120 = arith.addf %114, %119 : vector<128x16xf32>
    %c0_178 = arith.constant 0 : index
    %c2_179 = arith.constant 2 : index
    %c2_180 = arith.constant 2 : index
    %c0_181 = arith.constant 0 : index
    %121 = vector.load %arg9[%c0_178, %c2_179, %c2_180, %c0_181] : memref<2x10x10x8xf32, #tpu.memory_space<vmem>>, vector<2x8x8x8xf32>
    %122 = vector.shape_cast %121 : vector<2x8x8x8xf32> to vector<128x8xf32>
    %c2_182 = arith.constant 2 : index
    %c2_183 = arith.constant 2 : index
    %c0_184 = arith.constant 0 : index
    %c0_185 = arith.constant 0 : index
    %123 = vector.load %arg3[%c2_182, %c2_183, %c0_184, %c0_185] : memref<3x3x8x16xf32, #tpu.memory_space<vmem>>, vector<1x1x8x16xf32>
    %124 = vector.shape_cast %123 : vector<1x1x8x16xf32> to vector<8x16xf32>
    %cst_186 = arith.constant dense<0.000000e+00> : vector<128x16xf32>
    %125 = tpu.matmul %122, %124, %cst_186 {dimension_numbers = #tpu.dot_dimension_numbers<[1], [0], [0], [1], [0, 0, 1, 1], [], []>} : vector<128x8xf32>, vector<8x16xf32>, vector<128x16xf32> -> vector<128x16xf32>
    %126 = arith.addf %120, %125 : vector<128x16xf32>
    %c0_187 = arith.constant 0 : index
    %c0_188 = arith.constant 0 : index
    %127 = vector.load %arg4[%c0_187, %c0_188] : memref<1x16xf32, #tpu.memory_space<vmem>>, vector<1x16xf32>
    %128 = vector.broadcast %127 : vector<1x16xf32> to vector<128x16xf32>
    %129 = arith.addf %126, %128 : vector<128x16xf32>
    %cst_189 = arith.constant 0.000000e+00 : f32
    %130 = vector.broadcast %cst_189 : f32 to vector<128x16xf32>
    %131 = arith.cmpf oge, %129, %130 : vector<128x16xf32>
    %cst_190 = arith.constant 2.000000e-01 : f32
    %132 = vector.broadcast %cst_190 : f32 to vector<128x16xf32>
    %133 = arith.mulf %132, %129 : vector<128x16xf32>
    %134 = arith.select %131, %129, %133 : vector<128x16xi1>, vector<128x16xf32>
    %135 = vector.shape_cast %134 : vector<128x16xf32> to vector<64x2x16xf32>
    %cst_191 = arith.constant dense<0xFF800000> : vector<64x16xf32>
    %136 = vector.multi_reduction <maximumf>, %135, %cst_191 [1] : vector<64x2x16xf32> to vector<64x16xf32>
    %137 = vector.shape_cast %136 : vector<64x16xf32> to vector<8x2x4x16xf32>
    %cst_192 = arith.constant dense<0xFF800000> : vector<8x4x16xf32>
    %138 = vector.multi_reduction <maximumf>, %137, %cst_192 [1] : vector<8x2x4x16xf32> to vector<8x4x16xf32>
    %139 = vector.shape_cast %138 : vector<8x4x16xf32> to vector<2x4x4x16xf32>
    %140 = vector.extract_strided_slice %139 {offsets = [0, 0, 0, 0], sizes = [2, 1, 1, 16], strides = [1, 1, 1, 1]} : vector<2x4x4x16xf32> to vector<2x1x1x16xf32>
    %141 = vector.shape_cast %140 : vector<2x1x1x16xf32> to vector<2x16xf32>
    %c0_193 = arith.constant 0 : index
    %c0_194 = arith.constant 0 : index
    %142 = vector.load %arg10[%c0_193, %c0_194] : memref<2x256xf32, #tpu.memory_space<vmem>>, vector<2x16xf32>
    tpu.vector_store %arg10[%c0_193, %c0_194], %141 {strides = array<i32>} : memref<2x256xf32, #tpu.memory_space<vmem>>, vector<2x16xf32>,
    %143 = vector.extract_strided_slice %139 {offsets = [0, 0, 1, 0], sizes = [2, 1, 1, 16], strides = [1, 1, 1, 1]} : vector<2x4x4x16xf32> to vector<2x1x1x16xf32>
    %144 = vector.shape_cast %143 : vector<2x1x1x16xf32> to vector<2x16xf32>
    %c0_195 = arith.constant 0 : index
    %c16 = arith.constant 16 : index
    %145 = vector.load %arg10[%c0_195, %c16] : memref<2x256xf32, #tpu.memory_space<vmem>>, vector<2x16xf32>
    tpu.vector_store %arg10[%c0_195, %c16], %144 {strides = array<i32>} : memref<2x256xf32, #tpu.memory_space<vmem>>, vector<2x16xf32>,
    %146 = vector.extract_strided_slice %139 {offsets = [0, 0, 2, 0], sizes = [2, 1, 1, 16], strides = [1, 1, 1, 1]} : vector<2x4x4x16xf32> to vector<2x1x1x16xf32>
    %147 = vector.shape_cast %146 : vector<2x1x1x16xf32> to vector<2x16xf32>
    %c0_196 = arith.constant 0 : index
    %c32 = arith.constant 32 : index
    %148 = vector.load %arg10[%c0_196, %c32] : memref<2x256xf32, #tpu.memory_space<vmem>>, vector<2x16xf32>
    tpu.vector_store %arg10[%c0_196, %c32], %147 {strides = array<i32>} : memref<2x256xf32, #tpu.memory_space<vmem>>, vector<2x16xf32>,
    %149 = vector.extract_strided_slice %139 {offsets = [0, 0, 3, 0], sizes = [2, 1, 1, 16], strides = [1, 1, 1, 1]} : vector<2x4x4x16xf32> to vector<2x1x1x16xf32>
    %150 = vector.shape_cast %149 : vector<2x1x1x16xf32> to vector<2x16xf32>
    %c0_197 = arith.constant 0 : index
    %c48 = arith.constant 48 : index
    %151 = vector.load %arg10[%c0_197, %c48] : memref<2x256xf32, #tpu.memory_space<vmem>>, vector<2x16xf32>
    tpu.vector_store %arg10[%c0_197, %c48], %150 {strides = array<i32>} : memref<2x256xf32, #tpu.memory_space<vmem>>, vector<2x16xf32>,
    %152 = vector.extract_strided_slice %139 {offsets = [0, 1, 0, 0], sizes = [2, 1, 1, 16], strides = [1, 1, 1, 1]} : vector<2x4x4x16xf32> to vector<2x1x1x16xf32>
    %153 = vector.shape_cast %152 : vector<2x1x1x16xf32> to vector<2x16xf32>
    %c0_198 = arith.constant 0 : index
    %c64 = arith.constant 64 : index
    %154 = vector.load %arg10[%c0_198, %c64] : memref<2x256xf32, #tpu.memory_space<vmem>>, vector<2x16xf32>
    tpu.vector_store %arg10[%c0_198, %c64], %153 {strides = array<i32>} : memref<2x256xf32, #tpu.memory_space<vmem>>, vector<2x16xf32>,
    %155 = vector.extract_strided_slice %139 {offsets = [0, 1, 1, 0], sizes = [2, 1, 1, 16], strides = [1, 1, 1, 1]} : vector<2x4x4x16xf32> to vector<2x1x1x16xf32>
    %156 = vector.shape_cast %155 : vector<2x1x1x16xf32> to vector<2x16xf32>
    %c0_199 = arith.constant 0 : index
    %c80 = arith.constant 80 : index
    %157 = vector.load %arg10[%c0_199, %c80] : memref<2x256xf32, #tpu.memory_space<vmem>>, vector<2x16xf32>
    tpu.vector_store %arg10[%c0_199, %c80], %156 {strides = array<i32>} : memref<2x256xf32, #tpu.memory_space<vmem>>, vector<2x16xf32>,
    %158 = vector.extract_strided_slice %139 {offsets = [0, 1, 2, 0], sizes = [2, 1, 1, 16], strides = [1, 1, 1, 1]} : vector<2x4x4x16xf32> to vector<2x1x1x16xf32>
    %159 = vector.shape_cast %158 : vector<2x1x1x16xf32> to vector<2x16xf32>
    %c0_200 = arith.constant 0 : index
    %c96 = arith.constant 96 : index
    %160 = vector.load %arg10[%c0_200, %c96] : memref<2x256xf32, #tpu.memory_space<vmem>>, vector<2x16xf32>
    tpu.vector_store %arg10[%c0_200, %c96], %159 {strides = array<i32>} : memref<2x256xf32, #tpu.memory_space<vmem>>, vector<2x16xf32>,
    %161 = vector.extract_strided_slice %139 {offsets = [0, 1, 3, 0], sizes = [2, 1, 1, 16], strides = [1, 1, 1, 1]} : vector<2x4x4x16xf32> to vector<2x1x1x16xf32>
    %162 = vector.shape_cast %161 : vector<2x1x1x16xf32> to vector<2x16xf32>
    %c0_201 = arith.constant 0 : index
    %c112 = arith.constant 112 : index
    %163 = vector.load %arg10[%c0_201, %c112] : memref<2x256xf32, #tpu.memory_space<vmem>>, vector<2x16xf32>
    tpu.vector_store %arg10[%c0_201, %c112], %162 {strides = array<i32>} : memref<2x256xf32, #tpu.memory_space<vmem>>, vector<2x16xf32>,
    %164 = vector.extract_strided_slice %139 {offsets = [0, 2, 0, 0], sizes = [2, 1, 1, 16], strides = [1, 1, 1, 1]} : vector<2x4x4x16xf32> to vector<2x1x1x16xf32>
    %165 = vector.shape_cast %164 : vector<2x1x1x16xf32> to vector<2x16xf32>
    %c0_202 = arith.constant 0 : index
    %c128 = arith.constant 128 : index
    %166 = vector.load %arg10[%c0_202, %c128] : memref<2x256xf32, #tpu.memory_space<vmem>>, vector<2x16xf32>
    tpu.vector_store %arg10[%c0_202, %c128], %165 {strides = array<i32>} : memref<2x256xf32, #tpu.memory_space<vmem>>, vector<2x16xf32>,
    %167 = vector.extract_strided_slice %139 {offsets = [0, 2, 1, 0], sizes = [2, 1, 1, 16], strides = [1, 1, 1, 1]} : vector<2x4x4x16xf32> to vector<2x1x1x16xf32>
    %168 = vector.shape_cast %167 : vector<2x1x1x16xf32> to vector<2x16xf32>
    %c0_203 = arith.constant 0 : index
    %c144 = arith.constant 144 : index
    %169 = vector.load %arg10[%c0_203, %c144] : memref<2x256xf32, #tpu.memory_space<vmem>>, vector<2x16xf32>
    tpu.vector_store %arg10[%c0_203, %c144], %168 {strides = array<i32>} : memref<2x256xf32, #tpu.memory_space<vmem>>, vector<2x16xf32>,
    %170 = vector.extract_strided_slice %139 {offsets = [0, 2, 2, 0], sizes = [2, 1, 1, 16], strides = [1, 1, 1, 1]} : vector<2x4x4x16xf32> to vector<2x1x1x16xf32>
    %171 = vector.shape_cast %170 : vector<2x1x1x16xf32> to vector<2x16xf32>
    %c0_204 = arith.constant 0 : index
    %c160 = arith.constant 160 : index
    %172 = vector.load %arg10[%c0_204, %c160] : memref<2x256xf32, #tpu.memory_space<vmem>>, vector<2x16xf32>
    tpu.vector_store %arg10[%c0_204, %c160], %171 {strides = array<i32>} : memref<2x256xf32, #tpu.memory_space<vmem>>, vector<2x16xf32>,
    %173 = vector.extract_strided_slice %139 {offsets = [0, 2, 3, 0], sizes = [2, 1, 1, 16], strides = [1, 1, 1, 1]} : vector<2x4x4x16xf32> to vector<2x1x1x16xf32>
    %174 = vector.shape_cast %173 : vector<2x1x1x16xf32> to vector<2x16xf32>
    %c0_205 = arith.constant 0 : index
    %c176 = arith.constant 176 : index
    %175 = vector.load %arg10[%c0_205, %c176] : memref<2x256xf32, #tpu.memory_space<vmem>>, vector<2x16xf32>
    tpu.vector_store %arg10[%c0_205, %c176], %174 {strides = array<i32>} : memref<2x256xf32, #tpu.memory_space<vmem>>, vector<2x16xf32>,
    %176 = vector.extract_strided_slice %139 {offsets = [0, 3, 0, 0], sizes = [2, 1, 1, 16], strides = [1, 1, 1, 1]} : vector<2x4x4x16xf32> to vector<2x1x1x16xf32>
    %177 = vector.shape_cast %176 : vector<2x1x1x16xf32> to vector<2x16xf32>
    %c0_206 = arith.constant 0 : index
    %c192 = arith.constant 192 : index
    %178 = vector.load %arg10[%c0_206, %c192] : memref<2x256xf32, #tpu.memory_space<vmem>>, vector<2x16xf32>
    tpu.vector_store %arg10[%c0_206, %c192], %177 {strides = array<i32>} : memref<2x256xf32, #tpu.memory_space<vmem>>, vector<2x16xf32>,
    %179 = vector.extract_strided_slice %139 {offsets = [0, 3, 1, 0], sizes = [2, 1, 1, 16], strides = [1, 1, 1, 1]} : vector<2x4x4x16xf32> to vector<2x1x1x16xf32>
    %180 = vector.shape_cast %179 : vector<2x1x1x16xf32> to vector<2x16xf32>
    %c0_207 = arith.constant 0 : index
    %c208 = arith.constant 208 : index
    %181 = vector.load %arg10[%c0_207, %c208] : memref<2x256xf32, #tpu.memory_space<vmem>>, vector<2x16xf32>
    tpu.vector_store %arg10[%c0_207, %c208], %180 {strides = array<i32>} : memref<2x256xf32, #tpu.memory_space<vmem>>, vector<2x16xf32>,
    %182 = vector.extract_strided_slice %139 {offsets = [0, 3, 2, 0], sizes = [2, 1, 1, 16], strides = [1, 1, 1, 1]} : vector<2x4x4x16xf32> to vector<2x1x1x16xf32>
    %183 = vector.shape_cast %182 : vector<2x1x1x16xf32> to vector<2x16xf32>
    %c0_208 = arith.constant 0 : index
    %c224 = arith.constant 224 : index
    %184 = vector.load %arg10[%c0_208, %c224] : memref<2x256xf32, #tpu.memory_space<vmem>>, vector<2x16xf32>
    tpu.vector_store %arg10[%c0_208, %c224], %183 {strides = array<i32>} : memref<2x256xf32, #tpu.memory_space<vmem>>, vector<2x16xf32>,
    %185 = vector.extract_strided_slice %139 {offsets = [0, 3, 3, 0], sizes = [2, 1, 1, 16], strides = [1, 1, 1, 1]} : vector<2x4x4x16xf32> to vector<2x1x1x16xf32>
    %186 = vector.shape_cast %185 : vector<2x1x1x16xf32> to vector<2x16xf32>
    %c0_209 = arith.constant 0 : index
    %c240 = arith.constant 240 : index
    %187 = vector.load %arg10[%c0_209, %c240] : memref<2x256xf32, #tpu.memory_space<vmem>>, vector<2x16xf32>
    tpu.vector_store %arg10[%c0_209, %c240], %186 {strides = array<i32>} : memref<2x256xf32, #tpu.memory_space<vmem>>, vector<2x16xf32>,
    %c0_210 = arith.constant 0 : index
    %c0_211 = arith.constant 0 : index
    %188 = vector.load %arg10[%c0_210, %c0_211] : memref<2x256xf32, #tpu.memory_space<vmem>>, vector<2x256xf32>
    %c0_212 = arith.constant 0 : index
    %c0_213 = arith.constant 0 : index
    %189 = vector.load %arg5[%c0_212, %c0_213] : memref<256x10xf32, #tpu.memory_space<vmem>>, vector<256x10xf32>
    %cst_214 = arith.constant dense<0.000000e+00> : vector<2x10xf32>
    %190 = tpu.matmul %188, %189, %cst_214 {dimension_numbers = #tpu.dot_dimension_numbers<[1], [0], [0], [1], [0, 0, 1, 1], [], []>} : vector<2x256xf32>, vector<256x10xf32>, vector<2x10xf32> -> vector<2x10xf32>
    %c0_215 = arith.constant 0 : index
    %c0_216 = arith.constant 0 : index
    %191 = vector.load %arg6[%c0_215, %c0_216] : memref<1x10xf32, #tpu.memory_space<vmem>>, vector<1x10xf32>
    %192 = vector.broadcast %191 : vector<1x10xf32> to vector<2x10xf32>
    %193 = arith.addf %190, %192 : vector<2x10xf32>
    %cst_217 = arith.constant 0.000000e+00 : f32
    %194 = vector.broadcast %cst_217 : f32 to vector<2x10xf32>
    %195 = arith.subf %194, %193 : vector<2x10xf32>
    %196 = math.exp %195 : vector<2x10xf32>
    %cst_218 = arith.constant 1.000000e+00 : f32
    %197 = vector.broadcast %cst_218 : f32 to vector<2x10xf32>
    %198 = arith.addf %197, %196 : vector<2x10xf32>
    %cst_219 = arith.constant 1.000000e+00 : f32
    %199 = vector.broadcast %cst_219 : f32 to vector<2x10xf32>
    %200 = arith.divf %199, %198 : vector<2x10xf32>
    %c0_220 = arith.constant 0 : index
    %c0_221 = arith.constant 0 : index
    %201 = vector.load %arg7[%c0_220, %c0_221] : memref<2x10xf32, #tpu.memory_space<vmem>>, vector<2x10xf32>
    tpu.vector_store %arg7[%c0_220, %c0_221], %200 {strides = array<i32>} : memref<2x10xf32, #tpu.memory_space<vmem>>, vector<2x10xf32>,
    return
  }
}

</mosaic_0001>

<llo_original>
// kernel: network_forward.1
$region0: #{network_forward.1}
  #allocation0 [shape = 'u32[]', space=smem, size = 0x4, offset = 0x4, fixed_abs, tag = 'smem constant byte address 0x4 - core index']
  #allocation1 [shape = 'u32[72,128]{1,0:T(1,128)}', space=vmem, size = 0x9000, scoped, tag = 'internal scratch']
  #allocation2 [shape = 'f32[2,18,18,4]{3,2,1,0:T(8,128)}', space=vmem, size = 0x6c000, scoped, tag = 'scratch operand']
  #allocation3 [shape = 'f32[2,10,10,8]{3,2,1,0:T(8,128)}', space=vmem, size = 0x28000, scoped, tag = 'scratch operand']
  #allocation4 [shape = 'f32[2,256]{1,0:T(2,128)}', space=vmem, size = 0x800, scoped, tag = 'scratch operand']
  %s0 = inlined_call_operand.vmem [shape: f32[2,16,16,4], index: 0, kind: input, shape index: {}]
  %s1 = inlined_call_operand.vmem [shape: f32[3,3,4,8], index: 1, kind: input, shape index: {}]
  %s2 = inlined_call_operand.vmem [shape: f32[1,8], index: 2, kind: input, shape index: {}]
  %s3 = inlined_call_operand.vmem [shape: f32[3,3,8,16], index: 3, kind: input, shape index: {}]
  %s4 = inlined_call_operand.vmem [shape: f32[1,16], index: 4, kind: input, shape index: {}]
  %s5 = inlined_call_operand.vmem [shape: f32[256,10], index: 5, kind: input, shape index: {}]
  %s6 = inlined_call_operand.vmem [shape: f32[1,10], index: 6, kind: input, shape index: {}]
  %s7 = inlined_call_operand.hbm [shape: f32[2,10], index: 7, kind: output, shape index: {}]
  %s8 = sld [smem:[#allocation0]]
  $region38: #{network_forward.1} parent=0
    _
  %s10 = ssub.s32 1, %s8
  %s11 = scalar_select 0, %s10, %s8
  $region1: #{network_forward.1} parent=0
    #allocation5 [shape = 'u8[1024]{0}', space=vmem, size = 0x400, scoped, tag = 'output window, operand 0, single buffered']
    #allocation6 [shape = 's32[1]{0}', space=sflag, size = 0x4, scoped, tag = 'scoped memory for network_forward.1']
    %12 = vsyncpa [#allocation6], 0
    // Predicated region
    $region2: #{network_forward.1} parent=1 // pred_check
      _
    $region3: #{network_forward.1} parent=1 // pred_check_branch
      %14 = sbr.rel (0) target = $region5
    $region4: #{network_forward.1} parent=1 // pred_region
      _
    $region5: #{network_forward.1} parent=1 // pred_fallthru
      _
    // Predicated region
    $region6: #{network_forward.1} parent=1 // pred_check
      _
    $region7: #{network_forward.1} parent=1 // pred_check_branch
      %16 = sbr.rel (0) target = $region9
    $region8: #{network_forward.1} parent=1 // pred_region
      _
    $region9: #{network_forward.1} parent=1 // pred_fallthru
      _
    // Predicated region
    $region10: #{network_forward.1} parent=1 // pred_check
      _
    $region11: #{network_forward.1} parent=1 // pred_check_branch
      %18 = sbr.rel (0) target = $region13
    $region12: #{network_forward.1} parent=1 // pred_region
      _
    $region13: #{network_forward.1} parent=1 // pred_fallthru
      _
    // Predicated region
    $region14: #{network_forward.1} parent=1 // pred_check
      _
    $region15: #{network_forward.1} parent=1 // pred_check_branch
      %20 = sbr.rel (0) target = $region17
    $region16: #{network_forward.1} parent=1 // pred_region
      _
    $region17: #{network_forward.1} parent=1 // pred_fallthru
      _
    // Predicated region
    $region18: #{network_forward.1} parent=1 // pred_check
      _
    $region19: #{network_forward.1} parent=1 // pred_check_branch
      %22 = sbr.rel (0) target = $region21
    $region20: #{network_forward.1} parent=1 // pred_region
      _
    $region21: #{network_forward.1} parent=1 // pred_fallthru
      _
    // Predicated region
    $region22: #{network_forward.1} parent=1 // pred_check
      _
    $region23: #{network_forward.1} parent=1 // pred_check_branch
      %24 = sbr.rel (0) target = $region25
    $region24: #{network_forward.1} parent=1 // pred_region
      _
    $region25: #{network_forward.1} parent=1 // pred_fallthru
      _
    // Predicated region
    $region26: #{network_forward.1} parent=1 // pred_check
      _
    $region27: #{network_forward.1} parent=1 // pred_check_branch
      %26 = sbr.rel (0) target = $region29
    $region28: #{network_forward.1} parent=1 // pred_region
      _
    $region29: #{network_forward.1} parent=1 // pred_fallthru
      _
    %vm27 = vcmask 31744
    %28 = vst.msk [vmem:[#allocation2] sm:$0xff] %vm27, 0.0
    %29 = vst.msk [vmem:[#allocation2 + $0x8] sm:$0xff] %vm27, 0.0
    %vm30 = vcmask 25600
    %31 = vst.msk [vmem:[#allocation2 + $0x10] sm:$0x3] %vm30, 0.0
    %32 = vst.msk [vmem:[#allocation2 + $0x18] sm:$0xff] %vm27, 0.0
    %33 = vst.msk [vmem:[#allocation2 + $0x20] sm:$0xff] %vm27, 0.0
    %34 = vst.msk [vmem:[#allocation2 + $0x28] sm:$0x3] %vm30, 0.0
    %35 = vst.msk [vmem:[#allocation2 + $0x30] sm:$0xff] %vm27, 0.0
    %36 = vst.msk [vmem:[#allocation2 + $0x38] sm:$0xff] %vm27, 0.0
    %37 = vst.msk [vmem:[#allocation2 + $0x40] sm:$0x3] %vm30, 0.0
    %38 = vst.msk [vmem:[#allocation2 + $0x48] sm:$0xff] %vm27, 0.0
    %39 = vst.msk [vmem:[#allocation2 + $0x50] sm:$0xff] %vm27, 0.0
    %40 = vst.msk [vmem:[#allocation2 + $0x58] sm:$0x3] %vm30, 0.0
    %41 = vst.msk [vmem:[#allocation2 + $0x60] sm:$0xff] %vm27, 0.0
    %42 = vst.msk [vmem:[#allocation2 + $0x68] sm:$0xff] %vm27, 0.0
    %43 = vst.msk [vmem:[#allocation2 + $0x70] sm:$0x3] %vm30, 0.0
    %44 = vst.msk [vmem:[#allocation2 + $0x78] sm:$0xff] %vm27, 0.0
    %45 = vst.msk [vmem:[#allocation2 + $0x80] sm:$0xff] %vm27, 0.0
    %46 = vst.msk [vmem:[#allocation2 + $0x88] sm:$0x3] %vm30, 0.0
    %47 = vst.msk [vmem:[#allocation2 + $0x90] sm:$0xff] %vm27, 0.0
    %48 = vst.msk [vmem:[#allocation2 + $0x98] sm:$0xff] %vm27, 0.0
    %49 = vst.msk [vmem:[#allocation2 + $0xa0] sm:$0x3] %vm30, 0.0
    %50 = vst.msk [vmem:[#allocation2 + $0xa8] sm:$0xff] %vm27, 0.0
    %51 = vst.msk [vmem:[#allocation2 + $0xb0] sm:$0xff] %vm27, 0.0
    %52 = vst.msk [vmem:[#allocation2 + $0xb8] sm:$0x3] %vm30, 0.0
    %53 = vst.msk [vmem:[#allocation2 + $0xc0] sm:$0xff] %vm27, 0.0
    %54 = vst.msk [vmem:[#allocation2 + $0xc8] sm:$0xff] %vm27, 0.0
    %55 = vst.msk [vmem:[#allocation2 + $0xd0] sm:$0x3] %vm30, 0.0
    %56 = vst.msk [vmem:[#allocation2 + $0xd8] sm:$0xff] %vm27, 0.0
    %57 = vst.msk [vmem:[#allocation2 + $0xe0] sm:$0xff] %vm27, 0.0
    %58 = vst.msk [vmem:[#allocation2 + $0xe8] sm:$0x3] %vm30, 0.0
    %59 = vst.msk [vmem:[#allocation2 + $0xf0] sm:$0xff] %vm27, 0.0
    %60 = vst.msk [vmem:[#allocation2 + $0xf8] sm:$0xff] %vm27, 0.0
    %61 = vst.msk [vmem:[#allocation2 + $0x100] sm:$0x3] %vm30, 0.0
    %62 = vst.msk [vmem:[#allocation2 + $0x108] sm:$0xff] %vm27, 0.0
    %63 = vst.msk [vmem:[#allocation2 + $0x110] sm:$0xff] %vm27, 0.0
    %64 = vst.msk [vmem:[#allocation2 + $0x118] sm:$0x3] %vm30, 0.0
    %65 = vst.msk [vmem:[#allocation2 + $0x120] sm:$0xff] %vm27, 0.0
    %66 = vst.msk [vmem:[#allocation2 + $0x128] sm:$0xff] %vm27, 0.0
    %67 = vst.msk [vmem:[#allocation2 + $0x130] sm:$0x3] %vm30, 0.0
    %68 = vst.msk [vmem:[#allocation2 + $0x138] sm:$0xff] %vm27, 0.0
    %69 = vst.msk [vmem:[#allocation2 + $0x140] sm:$0xff] %vm27, 0.0
    %70 = vst.msk [vmem:[#allocation2 + $0x148] sm:$0x3] %vm30, 0.0
    %71 = vst.msk [vmem:[#allocation2 + $0x150] sm:$0xff] %vm27, 0.0
    %72 = vst.msk [vmem:[#allocation2 + $0x158] sm:$0xff] %vm27, 0.0
    %73 = vst.msk [vmem:[#allocation2 + $0x160] sm:$0x3] %vm30, 0.0
    %74 = vst.msk [vmem:[#allocation2 + $0x168] sm:$0xff] %vm27, 0.0
    %75 = vst.msk [vmem:[#allocation2 + $0x170] sm:$0xff] %vm27, 0.0
    %76 = vst.msk [vmem:[#allocation2 + $0x178] sm:$0x3] %vm30, 0.0
    %77 = vst.msk [vmem:[#allocation2 + $0x180] sm:$0xff] %vm27, 0.0
    %78 = vst.msk [vmem:[#allocation2 + $0x188] sm:$0xff] %vm27, 0.0
    %79 = vst.msk [vmem:[#allocation2 + $0x190] sm:$0x3] %vm30, 0.0
    %80 = vst.msk [vmem:[#allocation2 + $0x198] sm:$0xff] %vm27, 0.0
    %81 = vst.msk [vmem:[#allocation2 + $0x1a0] sm:$0xff] %vm27, 0.0
    %82 = vst.msk [vmem:[#allocation2 + $0x1a8] sm:$0x3] %vm30, 0.0
    %83 = vst.msk [vmem:[#allocation2 + $0x1b0] sm:$0xff] %vm27, 0.0
    %84 = vst.msk [vmem:[#allocation2 + $0x1b8] sm:$0xff] %vm27, 0.0
    %85 = vst.msk [vmem:[#allocation2 + $0x1c0] sm:$0x3] %vm30, 0.0
    %86 = vst.msk [vmem:[#allocation2 + $0x1c8] sm:$0xff] %vm27, 0.0
    %87 = vst.msk [vmem:[#allocation2 + $0x1d0] sm:$0xff] %vm27, 0.0
    %88 = vst.msk [vmem:[#allocation2 + $0x1d8] sm:$0x3] %vm30, 0.0
    %89 = vst.msk [vmem:[#allocation2 + $0x1e0] sm:$0xff] %vm27, 0.0
    %90 = vst.msk [vmem:[#allocation2 + $0x1e8] sm:$0xff] %vm27, 0.0
    %91 = vst.msk [vmem:[#allocation2 + $0x1f0] sm:$0x3] %vm30, 0.0
    %92 = vst.msk [vmem:[#allocation2 + $0x1f8] sm:$0xff] %vm27, 0.0
    %93 = vst.msk [vmem:[#allocation2 + $0x200] sm:$0xff] %vm27, 0.0
    %94 = vst.msk [vmem:[#allocation2 + $0x208] sm:$0x3] %vm30, 0.0
    %95 = vst.msk [vmem:[#allocation2 + $0x210] sm:$0xff] %vm27, 0.0
    %96 = vst.msk [vmem:[#allocation2 + $0x218] sm:$0xff] %vm27, 0.0
    %97 = vst.msk [vmem:[#allocation2 + $0x220] sm:$0x3] %vm30, 0.0
    %98 = vst.msk [vmem:[#allocation2 + $0x228] sm:$0xff] %vm27, 0.0
    %99 = vst.msk [vmem:[#allocation2 + $0x230] sm:$0xff] %vm27, 0.0
    %100 = vst.msk [vmem:[#allocation2 + $0x238] sm:$0x3] %vm30, 0.0
    %101 = vst.msk [vmem:[#allocation2 + $0x240] sm:$0xff] %vm27, 0.0
    %102 = vst.msk [vmem:[#allocation2 + $0x248] sm:$0xff] %vm27, 0.0
    %103 = vst.msk [vmem:[#allocation2 + $0x250] sm:$0x3] %vm30, 0.0
    %104 = vst.msk [vmem:[#allocation2 + $0x258] sm:$0xff] %vm27, 0.0
    %105 = vst.msk [vmem:[#allocation2 + $0x260] sm:$0xff] %vm27, 0.0
    %106 = vst.msk [vmem:[#allocation2 + $0x268] sm:$0x3] %vm30, 0.0
    %107 = vst.msk [vmem:[#allocation2 + $0x270] sm:$0xff] %vm27, 0.0
    %108 = vst.msk [vmem:[#allocation2 + $0x278] sm:$0xff] %vm27, 0.0
    %109 = vst.msk [vmem:[#allocation2 + $0x280] sm:$0x3] %vm30, 0.0
    %110 = vst.msk [vmem:[#allocation2 + $0x288] sm:$0xff] %vm27, 0.0
    %111 = vst.msk [vmem:[#allocation2 + $0x290] sm:$0xff] %vm27, 0.0
    %112 = vst.msk [vmem:[#allocation2 + $0x298] sm:$0x3] %vm30, 0.0
    %113 = vst.msk [vmem:[#allocation2 + $0x2a0] sm:$0xff] %vm27, 0.0
    %114 = vst.msk [vmem:[#allocation2 + $0x2a8] sm:$0xff] %vm27, 0.0
    %115 = vst.msk [vmem:[#allocation2 + $0x2b0] sm:$0x3] %vm30, 0.0
    %116 = vst.msk [vmem:[#allocation2 + $0x2b8] sm:$0xff] %vm27, 0.0
    %117 = vst.msk [vmem:[#allocation2 + $0x2c0] sm:$0xff] %vm27, 0.0
    %118 = vst.msk [vmem:[#allocation2 + $0x2c8] sm:$0x3] %vm30, 0.0
    %119 = vst.msk [vmem:[#allocation2 + $0x2d0] sm:$0xff] %vm27, 0.0
    %120 = vst.msk [vmem:[#allocation2 + $0x2d8] sm:$0xff] %vm27, 0.0
    %121 = vst.msk [vmem:[#allocation2 + $0x2e0] sm:$0x3] %vm30, 0.0
    %122 = vst.msk [vmem:[#allocation2 + $0x2e8] sm:$0xff] %vm27, 0.0
    %123 = vst.msk [vmem:[#allocation2 + $0x2f0] sm:$0xff] %vm27, 0.0
    %124 = vst.msk [vmem:[#allocation2 + $0x2f8] sm:$0x3] %vm30, 0.0
    %125 = vst.msk [vmem:[#allocation2 + $0x300] sm:$0xff] %vm27, 0.0
    %126 = vst.msk [vmem:[#allocation2 + $0x308] sm:$0xff] %vm27, 0.0
    %127 = vst.msk [vmem:[#allocation2 + $0x310] sm:$0x3] %vm30, 0.0
    %128 = vst.msk [vmem:[#allocation2 + $0x318] sm:$0xff] %vm27, 0.0
    %129 = vst.msk [vmem:[#allocation2 + $0x320] sm:$0xff] %vm27, 0.0
    %130 = vst.msk [vmem:[#allocation2 + $0x328] sm:$0x3] %vm30, 0.0
    %131 = vst.msk [vmem:[#allocation2 + $0x330] sm:$0xff] %vm27, 0.0
    %132 = vst.msk [vmem:[#allocation2 + $0x338] sm:$0xff] %vm27, 0.0
    %133 = vst.msk [vmem:[#allocation2 + $0x340] sm:$0x3] %vm30, 0.0
    %134 = vst.msk [vmem:[#allocation2 + $0x348] sm:$0xff] %vm27, 0.0
    %135 = vst.msk [vmem:[#allocation2 + $0x350] sm:$0xff] %vm27, 0.0
    %136 = vst.msk [vmem:[#allocation2 + $0x358] sm:$0x3] %vm30, 0.0
    %v137 = vld [vmem:[%s0] sm:$0xff]
    %v138 = vld [vmem:[%s0 + $0x8] sm:$0xff]
    %v139 = vld [vmem:[%s0 + $0x10] sm:$0xff]
    %v140 = vld [vmem:[%s0 + $0x18] sm:$0xff]
    %v141 = vld [vmem:[%s0 + $0x20] sm:$0xff]
    %v142 = vld [vmem:[%s0 + $0x28] sm:$0xff]
    %v143 = vld [vmem:[%s0 + $0x30] sm:$0xff]
    %v144 = vld [vmem:[%s0 + $0x38] sm:$0xff]
    %v145 = vld [vmem:[%s0 + $0x40] sm:$0xff]
    %v146 = vld [vmem:[%s0 + $0x48] sm:$0xff]
    %v147 = vld [vmem:[%s0 + $0x50] sm:$0xff]
    %v148 = vld [vmem:[%s0 + $0x58] sm:$0xff]
    %v149 = vld [vmem:[%s0 + $0x60] sm:$0xff]
    %v150 = vld [vmem:[%s0 + $0x68] sm:$0xff]
    %v151 = vld [vmem:[%s0 + $0x70] sm:$0xff]
    %v152 = vld [vmem:[%s0 + $0x78] sm:$0xff]
    %v153 = vld [vmem:[%s0 + $0x80] sm:$0xff]
    %v154 = vld [vmem:[%s0 + $0x88] sm:$0xff]
    %v155 = vld [vmem:[%s0 + $0x90] sm:$0xff]
    %v156 = vld [vmem:[%s0 + $0x98] sm:$0xff]
    %v157 = vld [vmem:[%s0 + $0xa0] sm:$0xff]
    %v158 = vld [vmem:[%s0 + $0xa8] sm:$0xff]
    %v159 = vld [vmem:[%s0 + $0xb0] sm:$0xff]
    %v160 = vld [vmem:[%s0 + $0xb8] sm:$0xff]
    %v161 = vld [vmem:[%s0 + $0xc0] sm:$0xff]
    %v162 = vld [vmem:[%s0 + $0xc8] sm:$0xff]
    %v163 = vld [vmem:[%s0 + $0xd0] sm:$0xff]
    %v164 = vld [vmem:[%s0 + $0xd8] sm:$0xff]
    %v165 = vld [vmem:[%s0 + $0xe0] sm:$0xff]
    %v166 = vld [vmem:[%s0 + $0xe8] sm:$0xff]
    %v167 = vld [vmem:[%s0 + $0xf0] sm:$0xff]
    %v168 = vld [vmem:[%s0 + $0xf8] sm:$0xff]
    %v169 = vld [vmem:[%s0 + $0x100] sm:$0xff]
    %v170 = vld [vmem:[%s0 + $0x108] sm:$0xff]
    %v171 = vld [vmem:[%s0 + $0x110] sm:$0xff]
    %v172 = vld [vmem:[%s0 + $0x118] sm:$0xff]
    %v173 = vld [vmem:[%s0 + $0x120] sm:$0xff]
    %v174 = vld [vmem:[%s0 + $0x128] sm:$0xff]
    %v175 = vld [vmem:[%s0 + $0x130] sm:$0xff]
    %v176 = vld [vmem:[%s0 + $0x138] sm:$0xff]
    %v177 = vld [vmem:[%s0 + $0x140] sm:$0xff]
    %v178 = vld [vmem:[%s0 + $0x148] sm:$0xff]
    %v179 = vld [vmem:[%s0 + $0x150] sm:$0xff]
    %v180 = vld [vmem:[%s0 + $0x158] sm:$0xff]
    %v181 = vld [vmem:[%s0 + $0x160] sm:$0xff]
    %v182 = vld [vmem:[%s0 + $0x168] sm:$0xff]
    %v183 = vld [vmem:[%s0 + $0x170] sm:$0xff]
    %v184 = vld [vmem:[%s0 + $0x178] sm:$0xff]
    %v185 = vld [vmem:[%s0 + $0x180] sm:$0xff]
    %v186 = vld [vmem:[%s0 + $0x188] sm:$0xff]
    %v187 = vld [vmem:[%s0 + $0x190] sm:$0xff]
    %v188 = vld [vmem:[%s0 + $0x198] sm:$0xff]
    %v189 = vld [vmem:[%s0 + $0x1a0] sm:$0xff]
    %v190 = vld [vmem:[%s0 + $0x1a8] sm:$0xff]
    %v191 = vld [vmem:[%s0 + $0x1b0] sm:$0xff]
    %v192 = vld [vmem:[%s0 + $0x1b8] sm:$0xff]
    %v193 = vld [vmem:[%s0 + $0x1c0] sm:$0xff]
    %v194 = vld [vmem:[%s0 + $0x1c8] sm:$0xff]
    %v195 = vld [vmem:[%s0 + $0x1d0] sm:$0xff]
    %v196 = vld [vmem:[%s0 + $0x1d8] sm:$0xff]
    %v197 = vld [vmem:[%s0 + $0x1e0] sm:$0xff]
    %v198 = vld [vmem:[%s0 + $0x1e8] sm:$0xff]
    %v199 = vld [vmem:[%s0 + $0x1f0] sm:$0xff]
    %v200 = vld [vmem:[%s0 + $0x1f8] sm:$0xff]
    %s201 = scalar_lea.vmem [#allocation2], 24
    %202 = vst.msk [vmem:[%s201 + $0x1] sm:$0xff] %vm27, %v137
    %203 = vst.msk [vmem:[%s201 + $0x9] sm:$0xff] %vm27, %v138
    %204 = vst.msk [vmem:[%s201 + $0x19] sm:$0xff] %vm27, %v139
    %205 = vst.msk [vmem:[%s201 + $0x21] sm:$0xff] %vm27, %v140
    %206 = vst.msk [vmem:[%s201 + $0x31] sm:$0xff] %vm27, %v141
    %207 = vst.msk [vmem:[%s201 + $0x39] sm:$0xff] %vm27, %v142
    %208 = vst.msk [vmem:[%s201 + $0x49] sm:$0xff] %vm27, %v143
    %209 = vst.msk [vmem:[%s201 + $0x51] sm:$0xff] %vm27, %v144
    %210 = vst.msk [vmem:[%s201 + $0x61] sm:$0xff] %vm27, %v145
    %211 = vst.msk [vmem:[%s201 + $0x69] sm:$0xff] %vm27, %v146
    %212 = vst.msk [vmem:[%s201 + $0x79] sm:$0xff] %vm27, %v147
    %213 = vst.msk [vmem:[%s201 + $0x81] sm:$0xff] %vm27, %v148
    %214 = vst.msk [vmem:[%s201 + $0x91] sm:$0xff] %vm27, %v149
    %215 = vst.msk [vmem:[%s201 + $0x99] sm:$0xff] %vm27, %v150
    %216 = vst.msk [vmem:[%s201 + $0xa9] sm:$0xff] %vm27, %v151
    %217 = vst.msk [vmem:[%s201 + $0xb1] sm:$0xff] %vm27, %v152
    %218 = vst.msk [vmem:[%s201 + $0xc1] sm:$0xff] %vm27, %v153
    %219 = vst.msk [vmem:[%s201 + $0xc9] sm:$0xff] %vm27, %v154
    %220 = vst.msk [vmem:[%s201 + $0xd9] sm:$0xff] %vm27, %v155
    %221 = vst.msk [vmem:[%s201 + $0xe1] sm:$0xff] %vm27, %v156
    %222 = vst.msk [vmem:[%s201 + $0xf1] sm:$0xff] %vm27, %v157
    %223 = vst.msk [vmem:[%s201 + $0xf9] sm:$0xff] %vm27, %v158
    %224 = vst.msk [vmem:[%s201 + $0x109] sm:$0xff] %vm27, %v159
    %225 = vst.msk [vmem:[%s201 + $0x111] sm:$0xff] %vm27, %v160
    %226 = vst.msk [vmem:[%s201 + $0x121] sm:$0xff] %vm27, %v161
    %227 = vst.msk [vmem:[%s201 + $0x129] sm:$0xff] %vm27, %v162
    %228 = vst.msk [vmem:[%s201 + $0x139] sm:$0xff] %vm27, %v163
    %229 = vst.msk [vmem:[%s201 + $0x141] sm:$0xff] %vm27, %v164
    %230 = vst.msk [vmem:[%s201 + $0x151] sm:$0xff] %vm27, %v165
    %231 = vst.msk [vmem:[%s201 + $0x159] sm:$0xff] %vm27, %v166
    %232 = vst.msk [vmem:[%s201 + $0x169] sm:$0xff] %vm27, %v167
    %233 = vst.msk [vmem:[%s201 + $0x171] sm:$0xff] %vm27, %v168
    %234 = vst.msk [vmem:[%s201 + $0x1b1] sm:$0xff] %vm27, %v169
    %235 = vst.msk [vmem:[%s201 + $0x1b9] sm:$0xff] %vm27, %v170
    %236 = vst.msk [vmem:[%s201 + $0x1c9] sm:$0xff] %vm27, %v171
    %237 = vst.msk [vmem:[%s201 + $0x1d1] sm:$0xff] %vm27, %v172
    %238 = vst.msk [vmem:[%s201 + $0x1e1] sm:$0xff] %vm27, %v173
    %239 = vst.msk [vmem:[%s201 + $0x1e9] sm:$0xff] %vm27, %v174
    %240 = vst.msk [vmem:[%s201 + $0x1f9] sm:$0xff] %vm27, %v175
    %241 = vst.msk [vmem:[%s201 + $0x201] sm:$0xff] %vm27, %v176
    %242 = vst.msk [vmem:[%s201 + $0x211] sm:$0xff] %vm27, %v177
    %243 = vst.msk [vmem:[%s201 + $0x219] sm:$0xff] %vm27, %v178
    %244 = vst.msk [vmem:[%s201 + $0x229] sm:$0xff] %vm27, %v179
    %245 = vst.msk [vmem:[%s201 + $0x231] sm:$0xff] %vm27, %v180
    %246 = vst.msk [vmem:[%s201 + $0x241] sm:$0xff] %vm27, %v181
    %247 = vst.msk [vmem:[%s201 + $0x249] sm:$0xff] %vm27, %v182
    %248 = vst.msk [vmem:[%s201 + $0x259] sm:$0xff] %vm27, %v183
    %249 = vst.msk [vmem:[%s201 + $0x261] sm:$0xff] %vm27, %v184
    %250 = vst.msk [vmem:[%s201 + $0x271] sm:$0xff] %vm27, %v185
    %251 = vst.msk [vmem:[%s201 + $0x279] sm:$0xff] %vm27, %v186
    %252 = vst.msk [vmem:[%s201 + $0x289] sm:$0xff] %vm27, %v187
    %253 = vst.msk [vmem:[%s201 + $0x291] sm:$0xff] %vm27, %v188
    %254 = vst.msk [vmem:[%s201 + $0x2a1] sm:$0xff] %vm27, %v189
    %255 = vst.msk [vmem:[%s201 + $0x2a9] sm:$0xff] %vm27, %v190
    %256 = vst.msk [vmem:[%s201 + $0x2b9] sm:$0xff] %vm27, %v191
    %257 = vst.msk [vmem:[%s201 + $0x2c1] sm:$0xff] %vm27, %v192
    %258 = vst.msk [vmem:[%s201 + $0x2d1] sm:$0xff] %vm27, %v193
    %259 = vst.msk [vmem:[%s201 + $0x2d9] sm:$0xff] %vm27, %v194
    %260 = vst.msk [vmem:[%s201 + $0x2e9] sm:$0xff] %vm27, %v195
    %261 = vst.msk [vmem:[%s201 + $0x2f1] sm:$0xff] %vm27, %v196
    %262 = vst.msk [vmem:[%s201 + $0x301] sm:$0xff] %vm27, %v197
    %263 = vst.msk [vmem:[%s201 + $0x309] sm:$0xff] %vm27, %v198
    %264 = vst.msk [vmem:[%s201 + $0x319] sm:$0xff] %vm27, %v199
    %265 = vst.msk [vmem:[%s201 + $0x321] sm:$0xff] %vm27, %v200
    %v266 = vld [vmem:[#allocation2] sm:$0xff]
    %v267 = vld [vmem:[#allocation2 + $0x8] sm:$0xff]
    %v268 = vld [vmem:[#allocation2 + $0x18] sm:$0xff]
    %v269 = vld [vmem:[#allocation2 + $0x20] sm:$0xff]
    %v270 = vld [vmem:[#allocation2 + $0x30] sm:$0xff]
    %v271 = vld [vmem:[#allocation2 + $0x38] sm:$0xff]
    %v272 = vld [vmem:[#allocation2 + $0x48] sm:$0xff]
    %v273 = vld [vmem:[#allocation2 + $0x50] sm:$0xff]
    %v274 = vld [vmem:[#allocation2 + $0x60] sm:$0xff]
    %v275 = vld [vmem:[#allocation2 + $0x68] sm:$0xff]
    %v276 = vld [vmem:[#allocation2 + $0x78] sm:$0xff]
    %v277 = vld [vmem:[#allocation2 + $0x80] sm:$0xff]
    %v278 = vld [vmem:[#allocation2 + $0x90] sm:$0xff]
    %v279 = vld [vmem:[#allocation2 + $0x98] sm:$0xff]
    %v280 = vld [vmem:[#allocation2 + $0xa8] sm:$0xff]
    %v281 = vld [vmem:[#allocation2 + $0xb0] sm:$0xff]
    %v282 = vld [vmem:[#allocation2 + $0xc0] sm:$0xff]
    %v283 = vld [vmem:[#allocation2 + $0xc8] sm:$0xff]
    %v284 = vld [vmem:[#allocation2 + $0xd8] sm:$0xff]
    %v285 = vld [vmem:[#allocation2 + $0xe0] sm:$0xff]
    %v286 = vld [vmem:[#allocation2 + $0xf0] sm:$0xff]
    %v287 = vld [vmem:[#allocation2 + $0xf8] sm:$0xff]
    %v288 = vld [vmem:[#allocation2 + $0x108] sm:$0xff]
    %v289 = vld [vmem:[#allocation2 + $0x110] sm:$0xff]
    %v290 = vld [vmem:[#allocation2 + $0x120] sm:$0xff]
    %v291 = vld [vmem:[#allocation2 + $0x128] sm:$0xff]
    %v292 = vld [vmem:[#allocation2 + $0x138] sm:$0xff]
    %v293 = vld [vmem:[#allocation2 + $0x140] sm:$0xff]
    %v294 = vld [vmem:[#allocation2 + $0x150] sm:$0xff]
    %v295 = vld [vmem:[#allocation2 + $0x158] sm:$0xff]
    %v296 = vld [vmem:[#allocation2 + $0x168] sm:$0xff]
    %v297 = vld [vmem:[#allocation2 + $0x170] sm:$0xff]
    %v298 = vld [vmem:[#allocation2 + $0x1b0] sm:$0xff]
    %v299 = vld [vmem:[#allocation2 + $0x1b8] sm:$0xff]
    %v300 = vld [vmem:[#allocation2 + $0x1c8] sm:$0xff]
    %v301 = vld [vmem:[#allocation2 + $0x1d0] sm:$0xff]
    %v302 = vld [vmem:[#allocation2 + $0x1e0] sm:$0xff]
    %v303 = vld [vmem:[#allocation2 + $0x1e8] sm:$0xff]
    %v304 = vld [vmem:[#allocation2 + $0x1f8] sm:$0xff]
    %v305 = vld [vmem:[#allocation2 + $0x200] sm:$0xff]
    %v306 = vld [vmem:[#allocation2 + $0x210] sm:$0xff]
    %v307 = vld [vmem:[#allocation2 + $0x218] sm:$0xff]
    %v308 = vld [vmem:[#allocation2 + $0x228] sm:$0xff]
    %v309 = vld [vmem:[#allocation2 + $0x230] sm:$0xff]
    %v310 = vld [vmem:[#allocation2 + $0x240] sm:$0xff]
    %v311 = vld [vmem:[#allocation2 + $0x248] sm:$0xff]
    %v312 = vld [vmem:[#allocation2 + $0x258] sm:$0xff]
    %v313 = vld [vmem:[#allocation2 + $0x260] sm:$0xff]
    %v314 = vld [vmem:[#allocation2 + $0x270] sm:$0xff]
    %v315 = vld [vmem:[#allocation2 + $0x278] sm:$0xff]
    %v316 = vld [vmem:[#allocation2 + $0x288] sm:$0xff]
    %v317 = vld [vmem:[#allocation2 + $0x290] sm:$0xff]
    %v318 = vld [vmem:[#allocation2 + $0x2a0] sm:$0xff]
    %v319 = vld [vmem:[#allocation2 + $0x2a8] sm:$0xff]
    %v320 = vld [vmem:[#allocation2 + $0x2b8] sm:$0xff]
    %v321 = vld [vmem:[#allocation2 + $0x2c0] sm:$0xff]
    %v322 = vld [vmem:[#allocation2 + $0x2d0] sm:$0xff]
    %v323 = vld [vmem:[#allocation2 + $0x2d8] sm:$0xff]
    %v324 = vld [vmem:[#allocation2 + $0x2e8] sm:$0xff]
    %v325 = vld [vmem:[#allocation2 + $0x2f0] sm:$0xff]
    %v326 = vld [vmem:[#allocation2 + $0x300] sm:$0xff]
    %v327 = vld [vmem:[#allocation2 + $0x308] sm:$0xff]
    %v328 = vld [vmem:[#allocation2 + $0x318] sm:$0xff]
    %v329 = vld [vmem:[#allocation2 + $0x320] sm:$0xff]
    %v330 = vld [vmem:[%s1] sm:$0xf]
    %v331 = vld [vmem:[#allocation2 + $0x1] sm:$0xff]
    %v332 = vld [vmem:[#allocation2 + $0x9] sm:$0xff]
    %v333 = vld [vmem:[#allocation2 + $0x19] sm:$0xff]
    %v334 = vld [vmem:[#allocation2 + $0x21] sm:$0xff]
    %v335 = vld [vmem:[#allocation2 + $0x31] sm:$0xff]
    %v336 = vld [vmem:[#allocation2 + $0x39] sm:$0xff]
    %v337 = vld [vmem:[#allocation2 + $0x49] sm:$0xff]
    %v338 = vld [vmem:[#allocation2 + $0x51] sm:$0xff]
    %v339 = vld [vmem:[#allocation2 + $0x61] sm:$0xff]
    %v340 = vld [vmem:[#allocation2 + $0x69] sm:$0xff]
    %v341 = vld [vmem:[#allocation2 + $0x79] sm:$0xff]
    %v342 = vld [vmem:[#allocation2 + $0x81] sm:$0xff]
    %v343 = vld [vmem:[#allocation2 + $0x91] sm:$0xff]
    %v344 = vld [vmem:[#allocation2 + $0x99] sm:$0xff]
    %v345 = vld [vmem:[#allocation2 + $0xa9] sm:$0xff]
    %v346 = vld [vmem:[#allocation2 + $0xb1] sm:$0xff]
    %v347 = vld [vmem:[#allocation2 + $0xc1] sm:$0xff]
    %v348 = vld [vmem:[#allocation2 + $0xc9] sm:$0xff]
    %v349 = vld [vmem:[#allocation2 + $0xd9] sm:$0xff]
    %v350 = vld [vmem:[#allocation2 + $0xe1] sm:$0xff]
    %v351 = vld [vmem:[#allocation2 + $0xf1] sm:$0xff]
    %v352 = vld [vmem:[#allocation2 + $0xf9] sm:$0xff]
    %v353 = vld [vmem:[#allocation2 + $0x109] sm:$0xff]
    %v354 = vld [vmem:[#allocation2 + $0x111] sm:$0xff]
    %v355 = vld [vmem:[#allocation2 + $0x121] sm:$0xff]
    %v356 = vld [vmem:[#allocation2 + $0x129] sm:$0xff]
    %v357 = vld [vmem:[#allocation2 + $0x139] sm:$0xff]
    %v358 = vld [vmem:[#allocation2 + $0x141] sm:$0xff]
    %v359 = vld [vmem:[#allocation2 + $0x151] sm:$0xff]
    %v360 = vld [vmem:[#allocation2 + $0x159] sm:$0xff]
    %v361 = vld [vmem:[#allocation2 + $0x169] sm:$0xff]
    %v362 = vld [vmem:[#allocation2 + $0x171] sm:$0xff]
    %v363 = vld [vmem:[#allocation2 + $0x1b1] sm:$0xff]
    %v364 = vld [vmem:[#allocation2 + $0x1b9] sm:$0xff]
    %v365 = vld [vmem:[#allocation2 + $0x1c9] sm:$0xff]
    %v366 = vld [vmem:[#allocation2 + $0x1d1] sm:$0xff]
    %v367 = vld [vmem:[#allocation2 + $0x1e1] sm:$0xff]
    %v368 = vld [vmem:[#allocation2 + $0x1e9] sm:$0xff]
    %v369 = vld [vmem:[#allocation2 + $0x1f9] sm:$0xff]
    %v370 = vld [vmem:[#allocation2 + $0x201] sm:$0xff]
    %v371 = vld [vmem:[#allocation2 + $0x211] sm:$0xff]
    %v372 = vld [vmem:[#allocation2 + $0x219] sm:$0xff]
    %v373 = vld [vmem:[#allocation2 + $0x229] sm:$0xff]
    %v374 = vld [vmem:[#allocation2 + $0x231] sm:$0xff]
    %v375 = vld [vmem:[#allocation2 + $0x241] sm:$0xff]
    %v376 = vld [vmem:[#allocation2 + $0x249] sm:$0xff]
    %v377 = vld [vmem:[#allocation2 + $0x259] sm:$0xff]
    %v378 = vld [vmem:[#allocation2 + $0x261] sm:$0xff]
    %v379 = vld [vmem:[#allocation2 + $0x271] sm:$0xff]
    %v380 = vld [vmem:[#allocation2 + $0x279] sm:$0xff]
    %v381 = vld [vmem:[#allocation2 + $0x289] sm:$0xff]
    %v382 = vld [vmem:[#allocation2 + $0x291] sm:$0xff]
    %v383 = vld [vmem:[#allocation2 + $0x2a1] sm:$0xff]
    %v384 = vld [vmem:[#allocation2 + $0x2a9] sm:$0xff]
    %v385 = vld [vmem:[#allocation2 + $0x2b9] sm:$0xff]
    %v386 = vld [vmem:[#allocation2 + $0x2c1] sm:$0xff]
    %v387 = vld [vmem:[#allocation2 + $0x2d1] sm:$0xff]
    %v388 = vld [vmem:[#allocation2 + $0x2d9] sm:$0xff]
    %v389 = vld [vmem:[#allocation2 + $0x2e9] sm:$0xff]
    %v390 = vld [vmem:[#allocation2 + $0x2f1] sm:$0xff]
    %v391 = vld [vmem:[#allocation2 + $0x301] sm:$0xff]
    %v392 = vld [vmem:[#allocation2 + $0x309] sm:$0xff]
    %v393 = vld [vmem:[#allocation2 + $0x319] sm:$0xff]
    %v394 = vld [vmem:[#allocation2 + $0x321] sm:$0xff]
    %s395 = scalar_lea.vmem %s1, 4
    %v396 = vld [vmem:[%s395] sm:$0xf]
    %v398 = vsel %vm27, %v331, 0
    %v401 = vsel %vm27, %v332, 0
    %v404 = vsel %vm27, %v333, 0
    %v407 = vsel %vm27, %v334, 0
    %v410 = vsel %vm27, %v335, 0
    %v413 = vsel %vm27, %v336, 0
    %v416 = vsel %vm27, %v337, 0
    %v419 = vsel %vm27, %v338, 0
    %v422 = vsel %vm27, %v339, 0
    %v425 = vsel %vm27, %v340, 0
    %v428 = vsel %vm27, %v341, 0
    %v431 = vsel %vm27, %v342, 0
    %v434 = vsel %vm27, %v343, 0
    %v437 = vsel %vm27, %v344, 0
    %v440 = vsel %vm27, %v345, 0
    %v443 = vsel %vm27, %v346, 0
    %v446 = vsel %vm27, %v347, 0
    %v449 = vsel %vm27, %v348, 0
    %v452 = vsel %vm27, %v349, 0
    %v455 = vsel %vm27, %v350, 0
    %v458 = vsel %vm27, %v351, 0
    %v461 = vsel %vm27, %v352, 0
    %v464 = vsel %vm27, %v353, 0
    %v467 = vsel %vm27, %v354, 0
    %v470 = vsel %vm27, %v355, 0
    %v473 = vsel %vm27, %v356, 0
    %v476 = vsel %vm27, %v357, 0
    %v479 = vsel %vm27, %v358, 0
    %v482 = vsel %vm27, %v359, 0
    %v485 = vsel %vm27, %v360, 0
    %v488 = vsel %vm27, %v361, 0
    %v491 = vsel %vm27, %v362, 0
    %v494 = vsel %vm27, %v363, 0
    %v497 = vsel %vm27, %v364, 0
    %v500 = vsel %vm27, %v365, 0
    %v503 = vsel %vm27, %v366, 0
    %v506 = vsel %vm27, %v367, 0
    %v509 = vsel %vm27, %v368, 0
    %v512 = vsel %vm27, %v369, 0
    %v515 = vsel %vm27, %v370, 0
    %v518 = vsel %vm27, %v371, 0
    %v521 = vsel %vm27, %v372, 0
    %v524 = vsel %vm27, %v373, 0
    %v527 = vsel %vm27, %v374, 0
    %v530 = vsel %vm27, %v375, 0
    %v533 = vsel %vm27, %v376, 0
    %v536 = vsel %vm27, %v377, 0
    %v539 = vsel %vm27, %v378, 0
    %v542 = vsel %vm27, %v379, 0
    %v545 = vsel %vm27, %v380, 0
    %v548 = vsel %vm27, %v381, 0
    %v551 = vsel %vm27, %v382, 0
    %v554 = vsel %vm27, %v383, 0
    %v557 = vsel %vm27, %v384, 0
    %v560 = vsel %vm27, %v385, 0
    %v563 = vsel %vm27, %v386, 0
    %v566 = vsel %vm27, %v387, 0
    %v569 = vsel %vm27, %v388, 0
    %v572 = vsel %vm27, %v389, 0
    %v575 = vsel %vm27, %v390, 0
    %v578 = vsel %vm27, %v391, 0
    %v581 = vsel %vm27, %v392, 0
    %v584 = vsel %vm27, %v393, 0
    %v587 = vsel %vm27, %v394, 0
    %vm589 = vcmask 1043456
    %v591 = vsel %vm589, %v396, 0
    %593 = vmatpush.msra.mxu0 0.0
    %594 = vmatpush.msra.mxu0 0.0
    %595 = vmatpush.msra.mxu0 0.0
    %596 = vmatpush.msra.mxu0 0.0
    %597 = vmatpush.msra.mxu0 0.0
    %598 = vmatpush.msra.mxu0 0.0
    %599 = vmatpush.msra.mxu0 0.0
    %600 = vmatpush.msra.mxu0 0.0
    %601 = vmatpush.msra.mxu0 0.0
    %602 = vmatpush.msra.mxu0 0.0
    %603 = vmatpush.msra.mxu0 0.0
    %604 = vmatpush.msra.mxu0 0.0
    %605 = vmatpush.msra.mxu0 0.0
    %606 = vmatpush.msra.mxu0 0.0
    %607 = vmatpush.msra.mxu0 0.0
    %608 = vmatpush.msra.mxu0 %v591
    %609 = vmatmul.f32.gmra.mxu0 %v398
    %v610 = vpop.f32.mrf.mxu0
    %v611 = vadd.f32 0.0, %v610
    %612 = vmatmul.f32.gmra.mxu0 %v401
    %v613 = vpop.f32.mrf.mxu0
    %v614 = vadd.f32 0.0, %v613
    %615 = vmatmul.f32.gmra.mxu0 %v404
    %v616 = vpop.f32.mrf.mxu0
    %v617 = vadd.f32 0.0, %v616
    %618 = vmatmul.f32.gmra.mxu0 %v407
    %v619 = vpop.f32.mrf.mxu0
    %v620 = vadd.f32 0.0, %v619
    %621 = vmatmul.f32.gmra.mxu0 %v410
    %v622 = vpop.f32.mrf.mxu0
    %v623 = vadd.f32 0.0, %v622
    %624 = vmatmul.f32.gmra.mxu0 %v413
    %v625 = vpop.f32.mrf.mxu0
    %v626 = vadd.f32 0.0, %v625
    %627 = vmatmul.f32.gmra.mxu0 %v416
    %v628 = vpop.f32.mrf.mxu0
    %v629 = vadd.f32 0.0, %v628
    %630 = vmatmul.f32.gmra.mxu0 %v419
    %v631 = vpop.f32.mrf.mxu0
    %v632 = vadd.f32 0.0, %v631
    %633 = vmatmul.f32.gmra.mxu0 %v422
    %v634 = vpop.f32.mrf.mxu0
    %v635 = vadd.f32 0.0, %v634
    %636 = vmatmul.f32.gmra.mxu0 %v425
    %v637 = vpop.f32.mrf.mxu0
    %v638 = vadd.f32 0.0, %v637
    %639 = vmatmul.f32.gmra.mxu0 %v428
    %v640 = vpop.f32.mrf.mxu0
    %v641 = vadd.f32 0.0, %v640
    %642 = vmatmul.f32.gmra.mxu0 %v431
    %v643 = vpop.f32.mrf.mxu0
    %v644 = vadd.f32 0.0, %v643
    %645 = vmatmul.f32.gmra.mxu0 %v434
    %v646 = vpop.f32.mrf.mxu0
    %v647 = vadd.f32 0.0, %v646
    %648 = vmatmul.f32.gmra.mxu0 %v437
    %v649 = vpop.f32.mrf.mxu0
    %v650 = vadd.f32 0.0, %v649
    %651 = vmatmul.f32.gmra.mxu0 %v440
    %v652 = vpop.f32.mrf.mxu0
    %v653 = vadd.f32 0.0, %v652
    %654 = vmatmul.f32.gmra.mxu0 %v443
    %v655 = vpop.f32.mrf.mxu0
    %v656 = vadd.f32 0.0, %v655
    %657 = vmatmul.f32.gmra.mxu0 %v446
    %v658 = vpop.f32.mrf.mxu0
    %v659 = vadd.f32 0.0, %v658
    %660 = vmatmul.f32.gmra.mxu0 %v449
    %v661 = vpop.f32.mrf.mxu0
    %v662 = vadd.f32 0.0, %v661
    %663 = vmatmul.f32.gmra.mxu0 %v452
    %v664 = vpop.f32.mrf.mxu0
    %v665 = vadd.f32 0.0, %v664
    %666 = vmatmul.f32.gmra.mxu0 %v455
    %v667 = vpop.f32.mrf.mxu0
    %v668 = vadd.f32 0.0, %v667
    %669 = vmatmul.f32.gmra.mxu0 %v458
    %v670 = vpop.f32.mrf.mxu0
    %v671 = vadd.f32 0.0, %v670
    %672 = vmatmul.f32.gmra.mxu0 %v461
    %v673 = vpop.f32.mrf.mxu0
    %v674 = vadd.f32 0.0, %v673
    %675 = vmatmul.f32.gmra.mxu0 %v464
    %v676 = vpop.f32.mrf.mxu0
    %v677 = vadd.f32 0.0, %v676
    %678 = vmatmul.f32.gmra.mxu0 %v467
    %v679 = vpop.f32.mrf.mxu0
    %v680 = vadd.f32 0.0, %v679
    %681 = vmatmul.f32.gmra.mxu0 %v470
    %v682 = vpop.f32.mrf.mxu0
    %v683 = vadd.f32 0.0, %v682
    %684 = vmatmul.f32.gmra.mxu0 %v473
    %v685 = vpop.f32.mrf.mxu0
    %v686 = vadd.f32 0.0, %v685
    %687 = vmatmul.f32.gmra.mxu0 %v476
    %v688 = vpop.f32.mrf.mxu0
    %v689 = vadd.f32 0.0, %v688
    %690 = vmatmul.f32.gmra.mxu0 %v479
    %v691 = vpop.f32.mrf.mxu0
    %v692 = vadd.f32 0.0, %v691
    %693 = vmatmul.f32.gmra.mxu0 %v482
    %v694 = vpop.f32.mrf.mxu0
    %v695 = vadd.f32 0.0, %v694
    %696 = vmatmul.f32.gmra.mxu0 %v485
    %v697 = vpop.f32.mrf.mxu0
    %v698 = vadd.f32 0.0, %v697
    %699 = vmatmul.f32.gmra.mxu0 %v488
    %v700 = vpop.f32.mrf.mxu0
    %v701 = vadd.f32 0.0, %v700
    %702 = vmatmul.f32.gmra.mxu0 %v491
    %v703 = vpop.f32.mrf.mxu0
    %v704 = vadd.f32 0.0, %v703
    %705 = vmatmul.f32.gmra.mxu0 %v494
    %v706 = vpop.f32.mrf.mxu0
    %v707 = vadd.f32 0.0, %v706
    %708 = vmatmul.f32.gmra.mxu0 %v497
    %v709 = vpop.f32.mrf.mxu0
    %v710 = vadd.f32 0.0, %v709
    %711 = vmatmul.f32.gmra.mxu0 %v500
    %v712 = vpop.f32.mrf.mxu0
    %v713 = vadd.f32 0.0, %v712
    %714 = vmatmul.f32.gmra.mxu0 %v503
    %v715 = vpop.f32.mrf.mxu0
    %v716 = vadd.f32 0.0, %v715
    %717 = vmatmul.f32.gmra.mxu0 %v506
    %v718 = vpop.f32.mrf.mxu0
    %v719 = vadd.f32 0.0, %v718
    %720 = vmatmul.f32.gmra.mxu0 %v509
    %v721 = vpop.f32.mrf.mxu0
    %v722 = vadd.f32 0.0, %v721
    %723 = vmatmul.f32.gmra.mxu0 %v512
    %v724 = vpop.f32.mrf.mxu0
    %v725 = vadd.f32 0.0, %v724
    %726 = vmatmul.f32.gmra.mxu0 %v515
    %v727 = vpop.f32.mrf.mxu0
    %v728 = vadd.f32 0.0, %v727
    %729 = vmatmul.f32.gmra.mxu0 %v518
    %v730 = vpop.f32.mrf.mxu0
    %v731 = vadd.f32 0.0, %v730
    %732 = vmatmul.f32.gmra.mxu0 %v521
    %v733 = vpop.f32.mrf.mxu0
    %v734 = vadd.f32 0.0, %v733
    %735 = vmatmul.f32.gmra.mxu0 %v524
    %v736 = vpop.f32.mrf.mxu0
    %v737 = vadd.f32 0.0, %v736
    %738 = vmatmul.f32.gmra.mxu0 %v527
    %v739 = vpop.f32.mrf.mxu0
    %v740 = vadd.f32 0.0, %v739
    %741 = vmatmul.f32.gmra.mxu0 %v530
    %v742 = vpop.f32.mrf.mxu0
    %v743 = vadd.f32 0.0, %v742
    %744 = vmatmul.f32.gmra.mxu0 %v533
    %v745 = vpop.f32.mrf.mxu0
    %v746 = vadd.f32 0.0, %v745
    %747 = vmatmul.f32.gmra.mxu0 %v536
    %v748 = vpop.f32.mrf.mxu0
    %v749 = vadd.f32 0.0, %v748
    %750 = vmatmul.f32.gmra.mxu0 %v539
    %v751 = vpop.f32.mrf.mxu0
    %v752 = vadd.f32 0.0, %v751
    %753 = vmatmul.f32.gmra.mxu0 %v542
    %v754 = vpop.f32.mrf.mxu0
    %v755 = vadd.f32 0.0, %v754
    %756 = vmatmul.f32.gmra.mxu0 %v545
    %v757 = vpop.f32.mrf.mxu0
    %v758 = vadd.f32 0.0, %v757
    %759 = vmatmul.f32.gmra.mxu0 %v548
    %v760 = vpop.f32.mrf.mxu0
    %v761 = vadd.f32 0.0, %v760
    %762 = vmatmul.f32.gmra.mxu0 %v551
    %v763 = vpop.f32.mrf.mxu0
    %v764 = vadd.f32 0.0, %v763
    %765 = vmatmul.f32.gmra.mxu0 %v554
    %v766 = vpop.f32.mrf.mxu0
    %v767 = vadd.f32 0.0, %v766
    %768 = vmatmul.f32.gmra.mxu0 %v557
    %v769 = vpop.f32.mrf.mxu0
    %v770 = vadd.f32 0.0, %v769
    %771 = vmatmul.f32.gmra.mxu0 %v560
    %v772 = vpop.f32.mrf.mxu0
    %v773 = vadd.f32 0.0, %v772
    %774 = vmatmul.f32.gmra.mxu0 %v563
    %v775 = vpop.f32.mrf.mxu0
    %v776 = vadd.f32 0.0, %v775
    %777 = vmatmul.f32.gmra.mxu0 %v566
    %v778 = vpop.f32.mrf.mxu0
    %v779 = vadd.f32 0.0, %v778
    %780 = vmatmul.f32.gmra.mxu0 %v569
    %v781 = vpop.f32.mrf.mxu0
    %v782 = vadd.f32 0.0, %v781
    %783 = vmatmul.f32.gmra.mxu0 %v572
    %v784 = vpop.f32.mrf.mxu0
    %v785 = vadd.f32 0.0, %v784
    %786 = vmatmul.f32.gmra.mxu0 %v575
    %v787 = vpop.f32.mrf.mxu0
    %v788 = vadd.f32 0.0, %v787
    %789 = vmatmul.f32.gmra.mxu0 %v578
    %v790 = vpop.f32.mrf.mxu0
    %v791 = vadd.f32 0.0, %v790
    %792 = vmatmul.f32.gmra.mxu0 %v581
    %v793 = vpop.f32.mrf.mxu0
    %v794 = vadd.f32 0.0, %v793
    %795 = vmatmul.f32.gmra.mxu0 %v584
    %v796 = vpop.f32.mrf.mxu0
    %v797 = vadd.f32 0.0, %v796
    %798 = vmatmul.f32.gmra.mxu0 %v587
    %v799 = vpop.f32.mrf.mxu0
    %v800 = vadd.f32 0.0, %v799
    %801 = vdwg.mxu0
    %v803 = vsel %vm27, %v266, 0
    %v806 = vsel %vm27, %v267, 0
    %v809 = vsel %vm27, %v268, 0
    %v812 = vsel %vm27, %v269, 0
    %v815 = vsel %vm27, %v270, 0
    %v818 = vsel %vm27, %v271, 0
    %v821 = vsel %vm27, %v272, 0
    %v824 = vsel %vm27, %v273, 0
    %v827 = vsel %vm27, %v274, 0
    %v830 = vsel %vm27, %v275, 0
    %v833 = vsel %vm27, %v276, 0
    %v836 = vsel %vm27, %v277, 0
    %v839 = vsel %vm27, %v278, 0
    %v842 = vsel %vm27, %v279, 0
    %v845 = vsel %vm27, %v280, 0
    %v848 = vsel %vm27, %v281, 0
    %v851 = vsel %vm27, %v282, 0
    %v854 = vsel %vm27, %v283, 0
    %v857 = vsel %vm27, %v284, 0
    %v860 = vsel %vm27, %v285, 0
    %v863 = vsel %vm27, %v286, 0
    %v866 = vsel %vm27, %v287, 0
    %v869 = vsel %vm27, %v288, 0
    %v872 = vsel %vm27, %v289, 0
    %v875 = vsel %vm27, %v290, 0
    %v878 = vsel %vm27, %v291, 0
    %v881 = vsel %vm27, %v292, 0
    %v884 = vsel %vm27, %v293, 0
    %v887 = vsel %vm27, %v294, 0
    %v890 = vsel %vm27, %v295, 0
    %v893 = vsel %vm27, %v296, 0
    %v896 = vsel %vm27, %v297, 0
    %v899 = vsel %vm27, %v298, 0
    %v902 = vsel %vm27, %v299, 0
    %v905 = vsel %vm27, %v300, 0
    %v908 = vsel %vm27, %v301, 0
    %v911 = vsel %vm27, %v302, 0
    %v914 = vsel %vm27, %v303, 0
    %v917 = vsel %vm27, %v304, 0
    %v920 = vsel %vm27, %v305, 0
    %v923 = vsel %vm27, %v306, 0
    %v926 = vsel %vm27, %v307, 0
    %v929 = vsel %vm27, %v308, 0
    %v932 = vsel %vm27, %v309, 0
    %v935 = vsel %vm27, %v310, 0
    %v938 = vsel %vm27, %v311, 0
    %v941 = vsel %vm27, %v312, 0
    %v944 = vsel %vm27, %v313, 0
    %v947 = vsel %vm27, %v314, 0
    %v950 = vsel %vm27, %v315, 0
    %v953 = vsel %vm27, %v316, 0
    %v956 = vsel %vm27, %v317, 0
    %v959 = vsel %vm27, %v318, 0
    %v962 = vsel %vm27, %v319, 0
    %v965 = vsel %vm27, %v320, 0
    %v968 = vsel %vm27, %v321, 0
    %v971 = vsel %vm27, %v322, 0
    %v974 = vsel %vm27, %v323, 0
    %v977 = vsel %vm27, %v324, 0
    %v980 = vsel %vm27, %v325, 0
    %v983 = vsel %vm27, %v326, 0
    %v986 = vsel %vm27, %v327, 0
    %v989 = vsel %vm27, %v328, 0
    %v992 = vsel %vm27, %v329, 0
    %v995 = vsel %vm589, %v330, 0
    %997 = vmatpush.msra.mxu0 0.0
    %998 = vmatpush.msra.mxu0 0.0
    %999 = vmatpush.msra.mxu0 0.0
    %1000 = vmatpush.msra.mxu0 0.0
    %1001 = vmatpush.msra.mxu0 0.0
    %1002 = vmatpush.msra.mxu0 0.0
    %1003 = vmatpush.msra.mxu0 0.0
    %1004 = vmatpush.msra.mxu0 0.0
    %1005 = vmatpush.msra.mxu0 0.0
    %1006 = vmatpush.msra.mxu0 0.0
    %1007 = vmatpush.msra.mxu0 0.0
    %1008 = vmatpush.msra.mxu0 0.0
    %1009 = vmatpush.msra.mxu0 0.0
    %1010 = vmatpush.msra.mxu0 0.0
    %1011 = vmatpush.msra.mxu0 0.0
    %1012 = vmatpush.msra.mxu0 %v995
    %1013 = vmatmul.f32.gmra.mxu0 %v803
    %v1014 = vpop.f32.mrf.mxu0
    %v1015 = vadd.f32 %v611, %v1014
    %1016 = vmatmul.f32.gmra.mxu0 %v806
    %v1017 = vpop.f32.mrf.mxu0
    %v1018 = vadd.f32 %v614, %v1017
    %1019 = vmatmul.f32.gmra.mxu0 %v809
    %v1020 = vpop.f32.mrf.mxu0
    %v1021 = vadd.f32 %v617, %v1020
    %1022 = vmatmul.f32.gmra.mxu0 %v812
    %v1023 = vpop.f32.mrf.mxu0
    %v1024 = vadd.f32 %v620, %v1023
    %1025 = vmatmul.f32.gmra.mxu0 %v815
    %v1026 = vpop.f32.mrf.mxu0
    %v1027 = vadd.f32 %v623, %v1026
    %1028 = vmatmul.f32.gmra.mxu0 %v818
    %v1029 = vpop.f32.mrf.mxu0
    %v1030 = vadd.f32 %v626, %v1029
    %1031 = vmatmul.f32.gmra.mxu0 %v821
    %v1032 = vpop.f32.mrf.mxu0
    %v1033 = vadd.f32 %v629, %v1032
    %1034 = vmatmul.f32.gmra.mxu0 %v824
    %v1035 = vpop.f32.mrf.mxu0
    %v1036 = vadd.f32 %v632, %v1035
    %1037 = vmatmul.f32.gmra.mxu0 %v827
    %v1038 = vpop.f32.mrf.mxu0
    %v1039 = vadd.f32 %v635, %v1038
    %1040 = vmatmul.f32.gmra.mxu0 %v830
    %v1041 = vpop.f32.mrf.mxu0
    %v1042 = vadd.f32 %v638, %v1041
    %1043 = vmatmul.f32.gmra.mxu0 %v833
    %v1044 = vpop.f32.mrf.mxu0
    %v1045 = vadd.f32 %v641, %v1044
    %1046 = vmatmul.f32.gmra.mxu0 %v836
    %v1047 = vpop.f32.mrf.mxu0
    %v1048 = vadd.f32 %v644, %v1047
    %1049 = vmatmul.f32.gmra.mxu0 %v839
    %v1050 = vpop.f32.mrf.mxu0
    %v1051 = vadd.f32 %v647, %v1050
    %1052 = vmatmul.f32.gmra.mxu0 %v842
    %v1053 = vpop.f32.mrf.mxu0
    %v1054 = vadd.f32 %v650, %v1053
    %1055 = vmatmul.f32.gmra.mxu0 %v845
    %v1056 = vpop.f32.mrf.mxu0
    %v1057 = vadd.f32 %v653, %v1056
    %1058 = vmatmul.f32.gmra.mxu0 %v848
    %v1059 = vpop.f32.mrf.mxu0
    %v1060 = vadd.f32 %v656, %v1059
    %1061 = vmatmul.f32.gmra.mxu0 %v851
    %v1062 = vpop.f32.mrf.mxu0
    %v1063 = vadd.f32 %v659, %v1062
    %1064 = vmatmul.f32.gmra.mxu0 %v854
    %v1065 = vpop.f32.mrf.mxu0
    %v1066 = vadd.f32 %v662, %v1065
    %1067 = vmatmul.f32.gmra.mxu0 %v857
    %v1068 = vpop.f32.mrf.mxu0
    %v1069 = vadd.f32 %v665, %v1068
    %1070 = vmatmul.f32.gmra.mxu0 %v860
    %v1071 = vpop.f32.mrf.mxu0
    %v1072 = vadd.f32 %v668, %v1071
    %1073 = vmatmul.f32.gmra.mxu0 %v863
    %v1074 = vpop.f32.mrf.mxu0
    %v1075 = vadd.f32 %v671, %v1074
    %1076 = vmatmul.f32.gmra.mxu0 %v866
    %v1077 = vpop.f32.mrf.mxu0
    %v1078 = vadd.f32 %v674, %v1077
    %1079 = vmatmul.f32.gmra.mxu0 %v869
    %v1080 = vpop.f32.mrf.mxu0
    %v1081 = vadd.f32 %v677, %v1080
    %1082 = vmatmul.f32.gmra.mxu0 %v872
    %v1083 = vpop.f32.mrf.mxu0
    %v1084 = vadd.f32 %v680, %v1083
    %1085 = vmatmul.f32.gmra.mxu0 %v875
    %v1086 = vpop.f32.mrf.mxu0
    %v1087 = vadd.f32 %v683, %v1086
    %1088 = vmatmul.f32.gmra.mxu0 %v878
    %v1089 = vpop.f32.mrf.mxu0
    %v1090 = vadd.f32 %v686, %v1089
    %1091 = vmatmul.f32.gmra.mxu0 %v881
    %v1092 = vpop.f32.mrf.mxu0
    %v1093 = vadd.f32 %v689, %v1092
    %1094 = vmatmul.f32.gmra.mxu0 %v884
    %v1095 = vpop.f32.mrf.mxu0
    %v1096 = vadd.f32 %v692, %v1095
    %1097 = vmatmul.f32.gmra.mxu0 %v887
    %v1098 = vpop.f32.mrf.mxu0
    %v1099 = vadd.f32 %v695, %v1098
    %1100 = vmatmul.f32.gmra.mxu0 %v890
    %v1101 = vpop.f32.mrf.mxu0
    %v1102 = vadd.f32 %v698, %v1101
    %1103 = vmatmul.f32.gmra.mxu0 %v893
    %v1104 = vpop.f32.mrf.mxu0
    %v1105 = vadd.f32 %v701, %v1104
    %1106 = vmatmul.f32.gmra.mxu0 %v896
    %v1107 = vpop.f32.mrf.mxu0
    %v1108 = vadd.f32 %v704, %v1107
    %1109 = vmatmul.f32.gmra.mxu0 %v899
    %v1110 = vpop.f32.mrf.mxu0
    %v1111 = vadd.f32 %v707, %v1110
    %1112 = vmatmul.f32.gmra.mxu0 %v902
    %v1113 = vpop.f32.mrf.mxu0
    %v1114 = vadd.f32 %v710, %v1113
    %1115 = vmatmul.f32.gmra.mxu0 %v905
    %v1116 = vpop.f32.mrf.mxu0
    %v1117 = vadd.f32 %v713, %v1116
    %1118 = vmatmul.f32.gmra.mxu0 %v908
    %v1119 = vpop.f32.mrf.mxu0
    %v1120 = vadd.f32 %v716, %v1119
    %1121 = vmatmul.f32.gmra.mxu0 %v911
    %v1122 = vpop.f32.mrf.mxu0
    %v1123 = vadd.f32 %v719, %v1122
    %1124 = vmatmul.f32.gmra.mxu0 %v914
    %v1125 = vpop.f32.mrf.mxu0
    %v1126 = vadd.f32 %v722, %v1125
    %1127 = vmatmul.f32.gmra.mxu0 %v917
    %v1128 = vpop.f32.mrf.mxu0
    %v1129 = vadd.f32 %v725, %v1128
    %1130 = vmatmul.f32.gmra.mxu0 %v920
    %v1131 = vpop.f32.mrf.mxu0
    %v1132 = vadd.f32 %v728, %v1131
    %1133 = vmatmul.f32.gmra.mxu0 %v923
    %v1134 = vpop.f32.mrf.mxu0
    %v1135 = vadd.f32 %v731, %v1134
    %1136 = vmatmul.f32.gmra.mxu0 %v926
    %v1137 = vpop.f32.mrf.mxu0
    %v1138 = vadd.f32 %v734, %v1137
    %1139 = vmatmul.f32.gmra.mxu0 %v929
    %v1140 = vpop.f32.mrf.mxu0
    %v1141 = vadd.f32 %v737, %v1140
    %1142 = vmatmul.f32.gmra.mxu0 %v932
    %v1143 = vpop.f32.mrf.mxu0
    %v1144 = vadd.f32 %v740, %v1143
    %1145 = vmatmul.f32.gmra.mxu0 %v935
    %v1146 = vpop.f32.mrf.mxu0
    %v1147 = vadd.f32 %v743, %v1146
    %1148 = vmatmul.f32.gmra.mxu0 %v938
    %v1149 = vpop.f32.mrf.mxu0
    %v1150 = vadd.f32 %v746, %v1149
    %1151 = vmatmul.f32.gmra.mxu0 %v941
    %v1152 = vpop.f32.mrf.mxu0
    %v1153 = vadd.f32 %v749, %v1152
    %1154 = vmatmul.f32.gmra.mxu0 %v944
    %v1155 = vpop.f32.mrf.mxu0
    %v1156 = vadd.f32 %v752, %v1155
    %1157 = vmatmul.f32.gmra.mxu0 %v947
    %v1158 = vpop.f32.mrf.mxu0
    %v1159 = vadd.f32 %v755, %v1158
    %1160 = vmatmul.f32.gmra.mxu0 %v950
    %v1161 = vpop.f32.mrf.mxu0
    %v1162 = vadd.f32 %v758, %v1161
    %1163 = vmatmul.f32.gmra.mxu0 %v953
    %v1164 = vpop.f32.mrf.mxu0
    %v1165 = vadd.f32 %v761, %v1164
    %1166 = vmatmul.f32.gmra.mxu0 %v956
    %v1167 = vpop.f32.mrf.mxu0
    %v1168 = vadd.f32 %v764, %v1167
    %1169 = vmatmul.f32.gmra.mxu0 %v959
    %v1170 = vpop.f32.mrf.mxu0
    %v1171 = vadd.f32 %v767, %v1170
    %1172 = vmatmul.f32.gmra.mxu0 %v962
    %v1173 = vpop.f32.mrf.mxu0
    %v1174 = vadd.f32 %v770, %v1173
    %1175 = vmatmul.f32.gmra.mxu0 %v965
    %v1176 = vpop.f32.mrf.mxu0
    %v1177 = vadd.f32 %v773, %v1176
    %1178 = vmatmul.f32.gmra.mxu0 %v968
    %v1179 = vpop.f32.mrf.mxu0
    %v1180 = vadd.f32 %v776, %v1179
    %1181 = vmatmul.f32.gmra.mxu0 %v971
    %v1182 = vpop.f32.mrf.mxu0
    %v1183 = vadd.f32 %v779, %v1182
    %1184 = vmatmul.f32.gmra.mxu0 %v974
    %v1185 = vpop.f32.mrf.mxu0
    %v1186 = vadd.f32 %v782, %v1185
    %1187 = vmatmul.f32.gmra.mxu0 %v977
    %v1188 = vpop.f32.mrf.mxu0
    %v1189 = vadd.f32 %v785, %v1188
    %1190 = vmatmul.f32.gmra.mxu0 %v980
    %v1191 = vpop.f32.mrf.mxu0
    %v1192 = vadd.f32 %v788, %v1191
    %1193 = vmatmul.f32.gmra.mxu0 %v983
    %v1194 = vpop.f32.mrf.mxu0
    %v1195 = vadd.f32 %v791, %v1194
    %1196 = vmatmul.f32.gmra.mxu0 %v986
    %v1197 = vpop.f32.mrf.mxu0
    %v1198 = vadd.f32 %v794, %v1197
    %1199 = vmatmul.f32.gmra.mxu0 %v989
    %v1200 = vpop.f32.mrf.mxu0
    %v1201 = vadd.f32 %v797, %v1200
    %1202 = vmatmul.f32.gmra.mxu0 %v992
    %v1203 = vpop.f32.mrf.mxu0
    %v1204 = vadd.f32 %v800, %v1203
    %1205 = vdwg.mxu0
    %v1206 = vld [vmem:[#allocation2 + $0x2] sm:$0xff]
    %v1207 = vld [vmem:[#allocation2 + $0xa] sm:$0xff]
    %v1208 = vld [vmem:[#allocation2 + $0x1a] sm:$0xff]
    %v1209 = vld [vmem:[#allocation2 + $0x22] sm:$0xff]
    %v1210 = vld [vmem:[#allocation2 + $0x32] sm:$0xff]
    %v1211 = vld [vmem:[#allocation2 + $0x3a] sm:$0xff]
    %v1212 = vld [vmem:[#allocation2 + $0x4a] sm:$0xff]
    %v1213 = vld [vmem:[#allocation2 + $0x52] sm:$0xff]
    %v1214 = vld [vmem:[#allocation2 + $0x62] sm:$0xff]
    %v1215 = vld [vmem:[#allocation2 + $0x6a] sm:$0xff]
    %v1216 = vld [vmem:[#allocation2 + $0x7a] sm:$0xff]
    %v1217 = vld [vmem:[#allocation2 + $0x82] sm:$0xff]
    %v1218 = vld [vmem:[#allocation2 + $0x92] sm:$0xff]
    %v1219 = vld [vmem:[#allocation2 + $0x9a] sm:$0xff]
    %v1220 = vld [vmem:[#allocation2 + $0xaa] sm:$0xff]
    %v1221 = vld [vmem:[#allocation2 + $0xb2] sm:$0xff]
    %v1222 = vld [vmem:[#allocation2 + $0xc2] sm:$0xff]
    %v1223 = vld [vmem:[#allocation2 + $0xca] sm:$0xff]
    %v1224 = vld [vmem:[#allocation2 + $0xda] sm:$0xff]
    %v1225 = vld [vmem:[#allocation2 + $0xe2] sm:$0xff]
    %v1226 = vld [vmem:[#allocation2 + $0xf2] sm:$0xff]
    %v1227 = vld [vmem:[#allocation2 + $0xfa] sm:$0xff]
    %v1228 = vld [vmem:[#allocation2 + $0x10a] sm:$0xff]
    %v1229 = vld [vmem:[#allocation2 + $0x112] sm:$0xff]
    %v1230 = vld [vmem:[#allocation2 + $0x122] sm:$0xff]
    %v1231 = vld [vmem:[#allocation2 + $0x12a] sm:$0xff]
    %v1232 = vld [vmem:[#allocation2 + $0x13a] sm:$0xff]
    %v1233 = vld [vmem:[#allocation2 + $0x142] sm:$0xff]
    %v1234 = vld [vmem:[#allocation2 + $0x152] sm:$0xff]
    %v1235 = vld [vmem:[#allocation2 + $0x15a] sm:$0xff]
    %v1236 = vld [vmem:[#allocation2 + $0x16a] sm:$0xff]
    %v1237 = vld [vmem:[#allocation2 + $0x172] sm:$0xff]
    %v1238 = vld [vmem:[#allocation2 + $0x1b2] sm:$0xff]
    %v1239 = vld [vmem:[#allocation2 + $0x1ba] sm:$0xff]
    %v1240 = vld [vmem:[#allocation2 + $0x1ca] sm:$0xff]
    %v1241 = vld [vmem:[#allocation2 + $0x1d2] sm:$0xff]
    %v1242 = vld [vmem:[#allocation2 + $0x1e2] sm:$0xff]
    %v1243 = vld [vmem:[#allocation2 + $0x1ea] sm:$0xff]
    %v1244 = vld [vmem:[#allocation2 + $0x1fa] sm:$0xff]
    %v1245 = vld [vmem:[#allocation2 + $0x202] sm:$0xff]
    %v1246 = vld [vmem:[#allocation2 + $0x212] sm:$0xff]
    %v1247 = vld [vmem:[#allocation2 + $0x21a] sm:$0xff]
    %v1248 = vld [vmem:[#allocation2 + $0x22a] sm:$0xff]
    %v1249 = vld [vmem:[#allocation2 + $0x232] sm:$0xff]
    %v1250 = vld [vmem:[#allocation2 + $0x242] sm:$0xff]
    %v1251 = vld [vmem:[#allocation2 + $0x24a] sm:$0xff]
    %v1252 = vld [vmem:[#allocation2 + $0x25a] sm:$0xff]
    %v1253 = vld [vmem:[#allocation2 + $0x262] sm:$0xff]
    %v1254 = vld [vmem:[#allocation2 + $0x272] sm:$0xff]
    %v1255 = vld [vmem:[#allocation2 + $0x27a] sm:$0xff]
    %v1256 = vld [vmem:[#allocation2 + $0x28a] sm:$0xff]
    %v1257 = vld [vmem:[#allocation2 + $0x292] sm:$0xff]
    %v1258 = vld [vmem:[#allocation2 + $0x2a2] sm:$0xff]
    %v1259 = vld [vmem:[#allocation2 + $0x2aa] sm:$0xff]
    %v1260 = vld [vmem:[#allocation2 + $0x2ba] sm:$0xff]
    %v1261 = vld [vmem:[#allocation2 + $0x2c2] sm:$0xff]
    %v1262 = vld [vmem:[#allocation2 + $0x2d2] sm:$0xff]
    %v1263 = vld [vmem:[#allocation2 + $0x2da] sm:$0xff]
    %v1264 = vld [vmem:[#allocation2 + $0x2ea] sm:$0xff]
    %v1265 = vld [vmem:[#allocation2 + $0x2f2] sm:$0xff]
    %v1266 = vld [vmem:[#allocation2 + $0x302] sm:$0xff]
    %v1267 = vld [vmem:[#allocation2 + $0x30a] sm:$0xff]
    %v1268 = vld [vmem:[#allocation2 + $0x31a] sm:$0xff]
    %v1269 = vld [vmem:[#allocation2 + $0x322] sm:$0xff]
    %s1270 = scalar_lea.vmem %s1, 8
    %v1271 = vld [vmem:[%s1270] sm:$0xf]
    %v1273 = vsel %vm27, %v1206, 0
    %v1276 = vsel %vm27, %v1207, 0
    %v1279 = vsel %vm27, %v1208, 0
    %v1282 = vsel %vm27, %v1209, 0
    %v1285 = vsel %vm27, %v1210, 0
    %v1288 = vsel %vm27, %v1211, 0
    %v1291 = vsel %vm27, %v1212, 0
    %v1294 = vsel %vm27, %v1213, 0
    %v1297 = vsel %vm27, %v1214, 0
    %v1300 = vsel %vm27, %v1215, 0
    %v1303 = vsel %vm27, %v1216, 0
    %v1306 = vsel %vm27, %v1217, 0
    %v1309 = vsel %vm27, %v1218, 0
    %v1312 = vsel %vm27, %v1219, 0
    %v1315 = vsel %vm27, %v1220, 0
    %v1318 = vsel %vm27, %v1221, 0
    %v1321 = vsel %vm27, %v1222, 0
    %v1324 = vsel %vm27, %v1223, 0
    %v1327 = vsel %vm27, %v1224, 0
    %v1330 = vsel %vm27, %v1225, 0
    %v1333 = vsel %vm27, %v1226, 0
    %v1336 = vsel %vm27, %v1227, 0
    %v1339 = vsel %vm27, %v1228, 0
    %v1342 = vsel %vm27, %v1229, 0
    %v1345 = vsel %vm27, %v1230, 0
    %v1348 = vsel %vm27, %v1231, 0
    %v1351 = vsel %vm27, %v1232, 0
    %v1354 = vsel %vm27, %v1233, 0
    %v1357 = vsel %vm27, %v1234, 0
    %v1360 = vsel %vm27, %v1235, 0
    %v1363 = vsel %vm27, %v1236, 0
    %v1366 = vsel %vm27, %v1237, 0
    %v1369 = vsel %vm27, %v1238, 0
    %v1372 = vsel %vm27, %v1239, 0
    %v1375 = vsel %vm27, %v1240, 0
    %v1378 = vsel %vm27, %v1241, 0
    %v1381 = vsel %vm27, %v1242, 0
    %v1384 = vsel %vm27, %v1243, 0
    %v1387 = vsel %vm27, %v1244, 0
    %v1390 = vsel %vm27, %v1245, 0
    %v1393 = vsel %vm27, %v1246, 0
    %v1396 = vsel %vm27, %v1247, 0
    %v1399 = vsel %vm27, %v1248, 0
    %v1402 = vsel %vm27, %v1249, 0
    %v1405 = vsel %vm27, %v1250, 0
    %v1408 = vsel %vm27, %v1251, 0
    %v1411 = vsel %vm27, %v1252, 0
    %v1414 = vsel %vm27, %v1253, 0
    %v1417 = vsel %vm27, %v1254, 0
    %v1420 = vsel %vm27, %v1255, 0
    %v1423 = vsel %vm27, %v1256, 0
    %v1426 = vsel %vm27, %v1257, 0
    %v1429 = vsel %vm27, %v1258, 0
    %v1432 = vsel %vm27, %v1259, 0
    %v1435 = vsel %vm27, %v1260, 0
    %v1438 = vsel %vm27, %v1261, 0
    %v1441 = vsel %vm27, %v1262, 0
    %v1444 = vsel %vm27, %v1263, 0
    %v1447 = vsel %vm27, %v1264, 0
    %v1450 = vsel %vm27, %v1265, 0
    %v1453 = vsel %vm27, %v1266, 0
    %v1456 = vsel %vm27, %v1267, 0
    %v1459 = vsel %vm27, %v1268, 0
    %v1462 = vsel %vm27, %v1269, 0
    %v1465 = vsel %vm589, %v1271, 0
    %1467 = vmatpush.msra.mxu0 0.0
    %1468 = vmatpush.msra.mxu0 0.0
    %1469 = vmatpush.msra.mxu0 0.0
    %1470 = vmatpush.msra.mxu0 0.0
    %1471 = vmatpush.msra.mxu0 0.0
    %1472 = vmatpush.msra.mxu0 0.0
    %1473 = vmatpush.msra.mxu0 0.0
    %1474 = vmatpush.msra.mxu0 0.0
    %1475 = vmatpush.msra.mxu0 0.0
    %1476 = vmatpush.msra.mxu0 0.0
    %1477 = vmatpush.msra.mxu0 0.0
    %1478 = vmatpush.msra.mxu0 0.0
    %1479 = vmatpush.msra.mxu0 0.0
    %1480 = vmatpush.msra.mxu0 0.0
    %1481 = vmatpush.msra.mxu0 0.0
    %1482 = vmatpush.msra.mxu0 %v1465
    %1483 = vmatmul.f32.gmra.mxu0 %v1273
    %v1484 = vpop.f32.mrf.mxu0
    %v1485 = vadd.f32 0.0, %v1484
    %1486 = vmatmul.f32.gmra.mxu0 %v1276
    %v1487 = vpop.f32.mrf.mxu0
    %v1488 = vadd.f32 0.0, %v1487
    %1489 = vmatmul.f32.gmra.mxu0 %v1279
    %v1490 = vpop.f32.mrf.mxu0
    %v1491 = vadd.f32 0.0, %v1490
    %1492 = vmatmul.f32.gmra.mxu0 %v1282
    %v1493 = vpop.f32.mrf.mxu0
    %v1494 = vadd.f32 0.0, %v1493
    %1495 = vmatmul.f32.gmra.mxu0 %v1285
    %v1496 = vpop.f32.mrf.mxu0
    %v1497 = vadd.f32 0.0, %v1496
    %1498 = vmatmul.f32.gmra.mxu0 %v1288
    %v1499 = vpop.f32.mrf.mxu0
    %v1500 = vadd.f32 0.0, %v1499
    %1501 = vmatmul.f32.gmra.mxu0 %v1291
    %v1502 = vpop.f32.mrf.mxu0
    %v1503 = vadd.f32 0.0, %v1502
    %1504 = vmatmul.f32.gmra.mxu0 %v1294
    %v1505 = vpop.f32.mrf.mxu0
    %v1506 = vadd.f32 0.0, %v1505
    %1507 = vmatmul.f32.gmra.mxu0 %v1297
    %v1508 = vpop.f32.mrf.mxu0
    %v1509 = vadd.f32 0.0, %v1508
    %1510 = vmatmul.f32.gmra.mxu0 %v1300
    %v1511 = vpop.f32.mrf.mxu0
    %v1512 = vadd.f32 0.0, %v1511
    %1513 = vmatmul.f32.gmra.mxu0 %v1303
    %v1514 = vpop.f32.mrf.mxu0
    %v1515 = vadd.f32 0.0, %v1514
    %1516 = vmatmul.f32.gmra.mxu0 %v1306
    %v1517 = vpop.f32.mrf.mxu0
    %v1518 = vadd.f32 0.0, %v1517
    %1519 = vmatmul.f32.gmra.mxu0 %v1309
    %v1520 = vpop.f32.mrf.mxu0
    %v1521 = vadd.f32 0.0, %v1520
    %1522 = vmatmul.f32.gmra.mxu0 %v1312
    %v1523 = vpop.f32.mrf.mxu0
    %v1524 = vadd.f32 0.0, %v1523
    %1525 = vmatmul.f32.gmra.mxu0 %v1315
    %v1526 = vpop.f32.mrf.mxu0
    %v1527 = vadd.f32 0.0, %v1526
    %1528 = vmatmul.f32.gmra.mxu0 %v1318
    %v1529 = vpop.f32.mrf.mxu0
    %v1530 = vadd.f32 0.0, %v1529
    %1531 = vmatmul.f32.gmra.mxu0 %v1321
    %v1532 = vpop.f32.mrf.mxu0
    %v1533 = vadd.f32 0.0, %v1532
    %1534 = vmatmul.f32.gmra.mxu0 %v1324
    %v1535 = vpop.f32.mrf.mxu0
    %v1536 = vadd.f32 0.0, %v1535
    %1537 = vmatmul.f32.gmra.mxu0 %v1327
    %v1538 = vpop.f32.mrf.mxu0
    %v1539 = vadd.f32 0.0, %v1538
    %1540 = vmatmul.f32.gmra.mxu0 %v1330
    %v1541 = vpop.f32.mrf.mxu0
    %v1542 = vadd.f32 0.0, %v1541
    %1543 = vmatmul.f32.gmra.mxu0 %v1333
    %v1544 = vpop.f32.mrf.mxu0
    %v1545 = vadd.f32 0.0, %v1544
    %1546 = vmatmul.f32.gmra.mxu0 %v1336
    %v1547 = vpop.f32.mrf.mxu0
    %v1548 = vadd.f32 0.0, %v1547
    %1549 = vmatmul.f32.gmra.mxu0 %v1339
    %v1550 = vpop.f32.mrf.mxu0
    %v1551 = vadd.f32 0.0, %v1550
    %1552 = vmatmul.f32.gmra.mxu0 %v1342
    %v1553 = vpop.f32.mrf.mxu0
    %v1554 = vadd.f32 0.0, %v1553
    %1555 = vmatmul.f32.gmra.mxu0 %v1345
    %v1556 = vpop.f32.mrf.mxu0
    %v1557 = vadd.f32 0.0, %v1556
    %1558 = vmatmul.f32.gmra.mxu0 %v1348
    %v1559 = vpop.f32.mrf.mxu0
    %v1560 = vadd.f32 0.0, %v1559
    %1561 = vmatmul.f32.gmra.mxu0 %v1351
    %v1562 = vpop.f32.mrf.mxu0
    %v1563 = vadd.f32 0.0, %v1562
    %1564 = vmatmul.f32.gmra.mxu0 %v1354
    %v1565 = vpop.f32.mrf.mxu0
    %v1566 = vadd.f32 0.0, %v1565
    %1567 = vmatmul.f32.gmra.mxu0 %v1357
    %v1568 = vpop.f32.mrf.mxu0
    %v1569 = vadd.f32 0.0, %v1568
    %1570 = vmatmul.f32.gmra.mxu0 %v1360
    %v1571 = vpop.f32.mrf.mxu0
    %v1572 = vadd.f32 0.0, %v1571
    %1573 = vmatmul.f32.gmra.mxu0 %v1363
    %v1574 = vpop.f32.mrf.mxu0
    %v1575 = vadd.f32 0.0, %v1574
    %1576 = vmatmul.f32.gmra.mxu0 %v1366
    %v1577 = vpop.f32.mrf.mxu0
    %v1578 = vadd.f32 0.0, %v1577
    %1579 = vmatmul.f32.gmra.mxu0 %v1369
    %v1580 = vpop.f32.mrf.mxu0
    %v1581 = vadd.f32 0.0, %v1580
    %1582 = vmatmul.f32.gmra.mxu0 %v1372
    %v1583 = vpop.f32.mrf.mxu0
    %v1584 = vadd.f32 0.0, %v1583
    %1585 = vmatmul.f32.gmra.mxu0 %v1375
    %v1586 = vpop.f32.mrf.mxu0
    %v1587 = vadd.f32 0.0, %v1586
    %1588 = vmatmul.f32.gmra.mxu0 %v1378
    %v1589 = vpop.f32.mrf.mxu0
    %v1590 = vadd.f32 0.0, %v1589
    %1591 = vmatmul.f32.gmra.mxu0 %v1381
    %v1592 = vpop.f32.mrf.mxu0
    %v1593 = vadd.f32 0.0, %v1592
    %1594 = vmatmul.f32.gmra.mxu0 %v1384
    %v1595 = vpop.f32.mrf.mxu0
    %v1596 = vadd.f32 0.0, %v1595
    %1597 = vmatmul.f32.gmra.mxu0 %v1387
    %v1598 = vpop.f32.mrf.mxu0
    %v1599 = vadd.f32 0.0, %v1598
    %1600 = vmatmul.f32.gmra.mxu0 %v1390
    %v1601 = vpop.f32.mrf.mxu0
    %v1602 = vadd.f32 0.0, %v1601
    %1603 = vmatmul.f32.gmra.mxu0 %v1393
    %v1604 = vpop.f32.mrf.mxu0
    %v1605 = vadd.f32 0.0, %v1604
    %1606 = vmatmul.f32.gmra.mxu0 %v1396
    %v1607 = vpop.f32.mrf.mxu0
    %v1608 = vadd.f32 0.0, %v1607
    %1609 = vmatmul.f32.gmra.mxu0 %v1399
    %v1610 = vpop.f32.mrf.mxu0
    %v1611 = vadd.f32 0.0, %v1610
    %1612 = vmatmul.f32.gmra.mxu0 %v1402
    %v1613 = vpop.f32.mrf.mxu0
    %v1614 = vadd.f32 0.0, %v1613
    %1615 = vmatmul.f32.gmra.mxu0 %v1405
    %v1616 = vpop.f32.mrf.mxu0
    %v1617 = vadd.f32 0.0, %v1616
    %1618 = vmatmul.f32.gmra.mxu0 %v1408
    %v1619 = vpop.f32.mrf.mxu0
    %v1620 = vadd.f32 0.0, %v1619
    %1621 = vmatmul.f32.gmra.mxu0 %v1411
    %v1622 = vpop.f32.mrf.mxu0
    %v1623 = vadd.f32 0.0, %v1622
    %1624 = vmatmul.f32.gmra.mxu0 %v1414
    %v1625 = vpop.f32.mrf.mxu0
    %v1626 = vadd.f32 0.0, %v1625
    %1627 = vmatmul.f32.gmra.mxu0 %v1417
    %v1628 = vpop.f32.mrf.mxu0
    %v1629 = vadd.f32 0.0, %v1628
    %1630 = vmatmul.f32.gmra.mxu0 %v1420
    %v1631 = vpop.f32.mrf.mxu0
    %v1632 = vadd.f32 0.0, %v1631
    %1633 = vmatmul.f32.gmra.mxu0 %v1423
    %v1634 = vpop.f32.mrf.mxu0
    %v1635 = vadd.f32 0.0, %v1634
    %1636 = vmatmul.f32.gmra.mxu0 %v1426
    %v1637 = vpop.f32.mrf.mxu0
    %v1638 = vadd.f32 0.0, %v1637
    %1639 = vmatmul.f32.gmra.mxu0 %v1429
    %v1640 = vpop.f32.mrf.mxu0
    %v1641 = vadd.f32 0.0, %v1640
    %1642 = vmatmul.f32.gmra.mxu0 %v1432
    %v1643 = vpop.f32.mrf.mxu0
    %v1644 = vadd.f32 0.0, %v1643
    %1645 = vmatmul.f32.gmra.mxu0 %v1435
    %v1646 = vpop.f32.mrf.mxu0
    %v1647 = vadd.f32 0.0, %v1646
    %1648 = vmatmul.f32.gmra.mxu0 %v1438
    %v1649 = vpop.f32.mrf.mxu0
    %v1650 = vadd.f32 0.0, %v1649
    %1651 = vmatmul.f32.gmra.mxu0 %v1441
    %v1652 = vpop.f32.mrf.mxu0
    %v1653 = vadd.f32 0.0, %v1652
    %1654 = vmatmul.f32.gmra.mxu0 %v1444
    %v1655 = vpop.f32.mrf.mxu0
    %v1656 = vadd.f32 0.0, %v1655
    %1657 = vmatmul.f32.gmra.mxu0 %v1447
    %v1658 = vpop.f32.mrf.mxu0
    %v1659 = vadd.f32 0.0, %v1658
    %1660 = vmatmul.f32.gmra.mxu0 %v1450
    %v1661 = vpop.f32.mrf.mxu0
    %v1662 = vadd.f32 0.0, %v1661
    %1663 = vmatmul.f32.gmra.mxu0 %v1453
    %v1664 = vpop.f32.mrf.mxu0
    %v1665 = vadd.f32 0.0, %v1664
    %1666 = vmatmul.f32.gmra.mxu0 %v1456
    %v1667 = vpop.f32.mrf.mxu0
    %v1668 = vadd.f32 0.0, %v1667
    %1669 = vmatmul.f32.gmra.mxu0 %v1459
    %v1670 = vpop.f32.mrf.mxu0
    %v1671 = vadd.f32 0.0, %v1670
    %1672 = vmatmul.f32.gmra.mxu0 %v1462
    %v1673 = vpop.f32.mrf.mxu0
    %v1674 = vadd.f32 0.0, %v1673
    %1675 = vdwg.mxu0
    %v1676 = vadd.f32 %v1015, %v1485
    %v1677 = vadd.f32 %v1018, %v1488
    %v1678 = vadd.f32 %v1021, %v1491
    %v1679 = vadd.f32 %v1024, %v1494
    %v1680 = vadd.f32 %v1027, %v1497
    %v1681 = vadd.f32 %v1030, %v1500
    %v1682 = vadd.f32 %v1033, %v1503
    %v1683 = vadd.f32 %v1036, %v1506
    %v1684 = vadd.f32 %v1039, %v1509
    %v1685 = vadd.f32 %v1042, %v1512
    %v1686 = vadd.f32 %v1045, %v1515
    %v1687 = vadd.f32 %v1048, %v1518
    %v1688 = vadd.f32 %v1051, %v1521
    %v1689 = vadd.f32 %v1054, %v1524
    %v1690 = vadd.f32 %v1057, %v1527
    %v1691 = vadd.f32 %v1060, %v1530
    %v1692 = vadd.f32 %v1063, %v1533
    %v1693 = vadd.f32 %v1066, %v1536
    %v1694 = vadd.f32 %v1069, %v1539
    %v1695 = vadd.f32 %v1072, %v1542
    %v1696 = vadd.f32 %v1075, %v1545
    %v1697 = vadd.f32 %v1078, %v1548
    %v1698 = vadd.f32 %v1081, %v1551
    %v1699 = vadd.f32 %v1084, %v1554
    %v1700 = vadd.f32 %v1087, %v1557
    %v1701 = vadd.f32 %v1090, %v1560
    %v1702 = vadd.f32 %v1093, %v1563
    %v1703 = vadd.f32 %v1096, %v1566
    %v1704 = vadd.f32 %v1099, %v1569
    %v1705 = vadd.f32 %v1102, %v1572
    %v1706 = vadd.f32 %v1105, %v1575
    %v1707 = vadd.f32 %v1108, %v1578
    %v1708 = vadd.f32 %v1111, %v1581
    %v1709 = vadd.f32 %v1114, %v1584
    %v1710 = vadd.f32 %v1117, %v1587
    %v1711 = vadd.f32 %v1120, %v1590
    %v1712 = vadd.f32 %v1123, %v1593
    %v1713 = vadd.f32 %v1126, %v1596
    %v1714 = vadd.f32 %v1129, %v1599
    %v1715 = vadd.f32 %v1132, %v1602
    %v1716 = vadd.f32 %v1135, %v1605
    %v1717 = vadd.f32 %v1138, %v1608
    %v1718 = vadd.f32 %v1141, %v1611
    %v1719 = vadd.f32 %v1144, %v1614
    %v1720 = vadd.f32 %v1147, %v1617
    %v1721 = vadd.f32 %v1150, %v1620
    %v1722 = vadd.f32 %v1153, %v1623
    %v1723 = vadd.f32 %v1156, %v1626
    %v1724 = vadd.f32 %v1159, %v1629
    %v1725 = vadd.f32 %v1162, %v1632
    %v1726 = vadd.f32 %v1165, %v1635
    %v1727 = vadd.f32 %v1168, %v1638
    %v1728 = vadd.f32 %v1171, %v1641
    %v1729 = vadd.f32 %v1174, %v1644
    %v1730 = vadd.f32 %v1177, %v1647
    %v1731 = vadd.f32 %v1180, %v1650
    %v1732 = vadd.f32 %v1183, %v1653
    %v1733 = vadd.f32 %v1186, %v1656
    %v1734 = vadd.f32 %v1189, %v1659
    %v1735 = vadd.f32 %v1192, %v1662
    %v1736 = vadd.f32 %v1195, %v1665
    %v1737 = vadd.f32 %v1198, %v1668
    %v1738 = vadd.f32 %v1201, %v1671
    %v1739 = vadd.f32 %v1204, %v1674
    %v1740 = vld [vmem:[%s201] sm:$0xff]
    %v1741 = vld [vmem:[%s201 + $0x8] sm:$0xff]
    %v1742 = vld [vmem:[%s201 + $0x18] sm:$0xff]
    %v1743 = vld [vmem:[%s201 + $0x20] sm:$0xff]
    %v1744 = vld [vmem:[%s201 + $0x30] sm:$0xff]
    %v1745 = vld [vmem:[%s201 + $0x38] sm:$0xff]
    %v1746 = vld [vmem:[%s201 + $0x48] sm:$0xff]
    %v1747 = vld [vmem:[%s201 + $0x50] sm:$0xff]
    %v1748 = vld [vmem:[%s201 + $0x60] sm:$0xff]
    %v1749 = vld [vmem:[%s201 + $0x68] sm:$0xff]
    %v1750 = vld [vmem:[%s201 + $0x78] sm:$0xff]
    %v1751 = vld [vmem:[%s201 + $0x80] sm:$0xff]
    %v1752 = vld [vmem:[%s201 + $0x90] sm:$0xff]
    %v1753 = vld [vmem:[%s201 + $0x98] sm:$0xff]
    %v1754 = vld [vmem:[%s201 + $0xa8] sm:$0xff]
    %v1755 = vld [vmem:[%s201 + $0xb0] sm:$0xff]
    %v1756 = vld [vmem:[%s201 + $0xc0] sm:$0xff]
    %v1757 = vld [vmem:[%s201 + $0xc8] sm:$0xff]
    %v1758 = vld [vmem:[%s201 + $0xd8] sm:$0xff]
    %v1759 = vld [vmem:[%s201 + $0xe0] sm:$0xff]
    %v1760 = vld [vmem:[%s201 + $0xf0] sm:$0xff]
    %v1761 = vld [vmem:[%s201 + $0xf8] sm:$0xff]
    %v1762 = vld [vmem:[%s201 + $0x108] sm:$0xff]
    %v1763 = vld [vmem:[%s201 + $0x110] sm:$0xff]
    %v1764 = vld [vmem:[%s201 + $0x120] sm:$0xff]
    %v1765 = vld [vmem:[%s201 + $0x128] sm:$0xff]
    %v1766 = vld [vmem:[%s201 + $0x138] sm:$0xff]
    %v1767 = vld [vmem:[%s201 + $0x140] sm:$0xff]
    %v1768 = vld [vmem:[%s201 + $0x150] sm:$0xff]
    %v1769 = vld [vmem:[%s201 + $0x158] sm:$0xff]
    %v1770 = vld [vmem:[%s201 + $0x168] sm:$0xff]
    %v1771 = vld [vmem:[%s201 + $0x170] sm:$0xff]
    %v1772 = vld [vmem:[%s201 + $0x1b0] sm:$0xff]
    %v1773 = vld [vmem:[%s201 + $0x1b8] sm:$0xff]
    %v1774 = vld [vmem:[%s201 + $0x1c8] sm:$0xff]
    %v1775 = vld [vmem:[%s201 + $0x1d0] sm:$0xff]
    %v1776 = vld [vmem:[%s201 + $0x1e0] sm:$0xff]
    %v1777 = vld [vmem:[%s201 + $0x1e8] sm:$0xff]
    %v1778 = vld [vmem:[%s201 + $0x1f8] sm:$0xff]
    %v1779 = vld [vmem:[%s201 + $0x200] sm:$0xff]
    %v1780 = vld [vmem:[%s201 + $0x210] sm:$0xff]
    %v1781 = vld [vmem:[%s201 + $0x218] sm:$0xff]
    %v1782 = vld [vmem:[%s201 + $0x228] sm:$0xff]
    %v1783 = vld [vmem:[%s201 + $0x230] sm:$0xff]
    %v1784 = vld [vmem:[%s201 + $0x240] sm:$0xff]
    %v1785 = vld [vmem:[%s201 + $0x248] sm:$0xff]
    %v1786 = vld [vmem:[%s201 + $0x258] sm:$0xff]
    %v1787 = vld [vmem:[%s201 + $0x260] sm:$0xff]
    %v1788 = vld [vmem:[%s201 + $0x270] sm:$0xff]
    %v1789 = vld [vmem:[%s201 + $0x278] sm:$0xff]
    %v1790 = vld [vmem:[%s201 + $0x288] sm:$0xff]
    %v1791 = vld [vmem:[%s201 + $0x290] sm:$0xff]
    %v1792 = vld [vmem:[%s201 + $0x2a0] sm:$0xff]
    %v1793 = vld [vmem:[%s201 + $0x2a8] sm:$0xff]
    %v1794 = vld [vmem:[%s201 + $0x2b8] sm:$0xff]
    %v1795 = vld [vmem:[%s201 + $0x2c0] sm:$0xff]
    %v1796 = vld [vmem:[%s201 + $0x2d0] sm:$0xff]
    %v1797 = vld [vmem:[%s201 + $0x2d8] sm:$0xff]
    %v1798 = vld [vmem:[%s201 + $0x2e8] sm:$0xff]
    %v1799 = vld [vmem:[%s201 + $0x2f0] sm:$0xff]
    %v1800 = vld [vmem:[%s201 + $0x300] sm:$0xff]
    %v1801 = vld [vmem:[%s201 + $0x308] sm:$0xff]
    %v1802 = vld [vmem:[%s201 + $0x318] sm:$0xff]
    %v1803 = vld [vmem:[%s201 + $0x320] sm:$0xff]
    %s1804 = scalar_lea.vmem %s1, 12
    %v1805 = vld [vmem:[%s1804] sm:$0xf]
    %v1807 = vsel %vm27, %v1740, 0
    %v1810 = vsel %vm27, %v1741, 0
    %v1813 = vsel %vm27, %v1742, 0
    %v1816 = vsel %vm27, %v1743, 0
    %v1819 = vsel %vm27, %v1744, 0
    %v1822 = vsel %vm27, %v1745, 0
    %v1825 = vsel %vm27, %v1746, 0
    %v1828 = vsel %vm27, %v1747, 0
    %v1831 = vsel %vm27, %v1748, 0
    %v1834 = vsel %vm27, %v1749, 0
    %v1837 = vsel %vm27, %v1750, 0
    %v1840 = vsel %vm27, %v1751, 0
    %v1843 = vsel %vm27, %v1752, 0
    %v1846 = vsel %vm27, %v1753, 0
    %v1849 = vsel %vm27, %v1754, 0
    %v1852 = vsel %vm27, %v1755, 0
    %v1855 = vsel %vm27, %v1756, 0
    %v1858 = vsel %vm27, %v1757, 0
    %v1861 = vsel %vm27, %v1758, 0
    %v1864 = vsel %vm27, %v1759, 0
    %v1867 = vsel %vm27, %v1760, 0
    %v1870 = vsel %vm27, %v1761, 0
    %v1873 = vsel %vm27, %v1762, 0
    %v1876 = vsel %vm27, %v1763, 0
    %v1879 = vsel %vm27, %v1764, 0
    %v1882 = vsel %vm27, %v1765, 0
    %v1885 = vsel %vm27, %v1766, 0
    %v1888 = vsel %vm27, %v1767, 0
    %v1891 = vsel %vm27, %v1768, 0
    %v1894 = vsel %vm27, %v1769, 0
    %v1897 = vsel %vm27, %v1770, 0
    %v1900 = vsel %vm27, %v1771, 0
    %v1903 = vsel %vm27, %v1772, 0
    %v1906 = vsel %vm27, %v1773, 0
    %v1909 = vsel %vm27, %v1774, 0
    %v1912 = vsel %vm27, %v1775, 0
    %v1915 = vsel %vm27, %v1776, 0
    %v1918 = vsel %vm27, %v1777, 0
    %v1921 = vsel %vm27, %v1778, 0
    %v1924 = vsel %vm27, %v1779, 0
    %v1927 = vsel %vm27, %v1780, 0
    %v1930 = vsel %vm27, %v1781, 0
    %v1933 = vsel %vm27, %v1782, 0
    %v1936 = vsel %vm27, %v1783, 0
    %v1939 = vsel %vm27, %v1784, 0
    %v1942 = vsel %vm27, %v1785, 0
    %v1945 = vsel %vm27, %v1786, 0
    %v1948 = vsel %vm27, %v1787, 0
    %v1951 = vsel %vm27, %v1788, 0
    %v1954 = vsel %vm27, %v1789, 0
    %v1957 = vsel %vm27, %v1790, 0
    %v1960 = vsel %vm27, %v1791, 0
    %v1963 = vsel %vm27, %v1792, 0
    %v1966 = vsel %vm27, %v1793, 0
    %v1969 = vsel %vm27, %v1794, 0
    %v1972 = vsel %vm27, %v1795, 0
    %v1975 = vsel %vm27, %v1796, 0
    %v1978 = vsel %vm27, %v1797, 0
    %v1981 = vsel %vm27, %v1798, 0
    %v1984 = vsel %vm27, %v1799, 0
    %v1987 = vsel %vm27, %v1800, 0
    %v1990 = vsel %vm27, %v1801, 0
    %v1993 = vsel %vm27, %v1802, 0
    %v1996 = vsel %vm27, %v1803, 0
    %v1999 = vsel %vm589, %v1805, 0
    %2001 = vmatpush.msra.mxu0 0.0
    %2002 = vmatpush.msra.mxu0 0.0
    %2003 = vmatpush.msra.mxu0 0.0
    %2004 = vmatpush.msra.mxu0 0.0
    %2005 = vmatpush.msra.mxu0 0.0
    %2006 = vmatpush.msra.mxu0 0.0
    %2007 = vmatpush.msra.mxu0 0.0
    %2008 = vmatpush.msra.mxu0 0.0
    %2009 = vmatpush.msra.mxu0 0.0
    %2010 = vmatpush.msra.mxu0 0.0
    %2011 = vmatpush.msra.mxu0 0.0
    %2012 = vmatpush.msra.mxu0 0.0
    %2013 = vmatpush.msra.mxu0 0.0
    %2014 = vmatpush.msra.mxu0 0.0
    %2015 = vmatpush.msra.mxu0 0.0
    %2016 = vmatpush.msra.mxu0 %v1999
    %2017 = vmatmul.f32.gmra.mxu0 %v1807
    %v2018 = vpop.f32.mrf.mxu0
    %v2019 = vadd.f32 0.0, %v2018
    %2020 = vmatmul.f32.gmra.mxu0 %v1810
    %v2021 = vpop.f32.mrf.mxu0
    %v2022 = vadd.f32 0.0, %v2021
    %2023 = vmatmul.f32.gmra.mxu0 %v1813
    %v2024 = vpop.f32.mrf.mxu0
    %v2025 = vadd.f32 0.0, %v2024
    %2026 = vmatmul.f32.gmra.mxu0 %v1816
    %v2027 = vpop.f32.mrf.mxu0
    %v2028 = vadd.f32 0.0, %v2027
    %2029 = vmatmul.f32.gmra.mxu0 %v1819
    %v2030 = vpop.f32.mrf.mxu0
    %v2031 = vadd.f32 0.0, %v2030
    %2032 = vmatmul.f32.gmra.mxu0 %v1822
    %v2033 = vpop.f32.mrf.mxu0
    %v2034 = vadd.f32 0.0, %v2033
    %2035 = vmatmul.f32.gmra.mxu0 %v1825
    %v2036 = vpop.f32.mrf.mxu0
    %v2037 = vadd.f32 0.0, %v2036
    %2038 = vmatmul.f32.gmra.mxu0 %v1828
    %v2039 = vpop.f32.mrf.mxu0
    %v2040 = vadd.f32 0.0, %v2039
    %2041 = vmatmul.f32.gmra.mxu0 %v1831
    %v2042 = vpop.f32.mrf.mxu0
    %v2043 = vadd.f32 0.0, %v2042
    %2044 = vmatmul.f32.gmra.mxu0 %v1834
    %v2045 = vpop.f32.mrf.mxu0
    %v2046 = vadd.f32 0.0, %v2045
    %2047 = vmatmul.f32.gmra.mxu0 %v1837
    %v2048 = vpop.f32.mrf.mxu0
    %v2049 = vadd.f32 0.0, %v2048
    %2050 = vmatmul.f32.gmra.mxu0 %v1840
    %v2051 = vpop.f32.mrf.mxu0
    %v2052 = vadd.f32 0.0, %v2051
    %2053 = vmatmul.f32.gmra.mxu0 %v1843
    %v2054 = vpop.f32.mrf.mxu0
    %v2055 = vadd.f32 0.0, %v2054
    %2056 = vmatmul.f32.gmra.mxu0 %v1846
    %v2057 = vpop.f32.mrf.mxu0
    %v2058 = vadd.f32 0.0, %v2057
    %2059 = vmatmul.f32.gmra.mxu0 %v1849
    %v2060 = vpop.f32.mrf.mxu0
    %v2061 = vadd.f32 0.0, %v2060
    %2062 = vmatmul.f32.gmra.mxu0 %v1852
    %v2063 = vpop.f32.mrf.mxu0
    %v2064 = vadd.f32 0.0, %v2063
    %2065 = vmatmul.f32.gmra.mxu0 %v1855
    %v2066 = vpop.f32.mrf.mxu0
    %v2067 = vadd.f32 0.0, %v2066
    %2068 = vmatmul.f32.gmra.mxu0 %v1858
    %v2069 = vpop.f32.mrf.mxu0
    %v2070 = vadd.f32 0.0, %v2069
    %2071 = vmatmul.f32.gmra.mxu0 %v1861
    %v2072 = vpop.f32.mrf.mxu0
    %v2073 = vadd.f32 0.0, %v2072
    %2074 = vmatmul.f32.gmra.mxu0 %v1864
    %v2075 = vpop.f32.mrf.mxu0
    %v2076 = vadd.f32 0.0, %v2075
    %2077 = vmatmul.f32.gmra.mxu0 %v1867
    %v2078 = vpop.f32.mrf.mxu0
    %v2079 = vadd.f32 0.0, %v2078
    %2080 = vmatmul.f32.gmra.mxu0 %v1870
    %v2081 = vpop.f32.mrf.mxu0
    %v2082 = vadd.f32 0.0, %v2081
    %2083 = vmatmul.f32.gmra.mxu0 %v1873
    %v2084 = vpop.f32.mrf.mxu0
    %v2085 = vadd.f32 0.0, %v2084
    %2086 = vmatmul.f32.gmra.mxu0 %v1876
    %v2087 = vpop.f32.mrf.mxu0
    %v2088 = vadd.f32 0.0, %v2087
    %2089 = vmatmul.f32.gmra.mxu0 %v1879
    %v2090 = vpop.f32.mrf.mxu0
    %v2091 = vadd.f32 0.0, %v2090
    %2092 = vmatmul.f32.gmra.mxu0 %v1882
    %v2093 = vpop.f32.mrf.mxu0
    %v2094 = vadd.f32 0.0, %v2093
    %2095 = vmatmul.f32.gmra.mxu0 %v1885
    %v2096 = vpop.f32.mrf.mxu0
    %v2097 = vadd.f32 0.0, %v2096
    %2098 = vmatmul.f32.gmra.mxu0 %v1888
    %v2099 = vpop.f32.mrf.mxu0
    %v2100 = vadd.f32 0.0, %v2099
    %2101 = vmatmul.f32.gmra.mxu0 %v1891
    %v2102 = vpop.f32.mrf.mxu0
    %v2103 = vadd.f32 0.0, %v2102
    %2104 = vmatmul.f32.gmra.mxu0 %v1894
    %v2105 = vpop.f32.mrf.mxu0
    %v2106 = vadd.f32 0.0, %v2105
    %2107 = vmatmul.f32.gmra.mxu0 %v1897
    %v2108 = vpop.f32.mrf.mxu0
    %v2109 = vadd.f32 0.0, %v2108
    %2110 = vmatmul.f32.gmra.mxu0 %v1900
    %v2111 = vpop.f32.mrf.mxu0
    %v2112 = vadd.f32 0.0, %v2111
    %2113 = vmatmul.f32.gmra.mxu0 %v1903
    %v2114 = vpop.f32.mrf.mxu0
    %v2115 = vadd.f32 0.0, %v2114
    %2116 = vmatmul.f32.gmra.mxu0 %v1906
    %v2117 = vpop.f32.mrf.mxu0
    %v2118 = vadd.f32 0.0, %v2117
    %2119 = vmatmul.f32.gmra.mxu0 %v1909
    %v2120 = vpop.f32.mrf.mxu0
    %v2121 = vadd.f32 0.0, %v2120
    %2122 = vmatmul.f32.gmra.mxu0 %v1912
    %v2123 = vpop.f32.mrf.mxu0
    %v2124 = vadd.f32 0.0, %v2123
    %2125 = vmatmul.f32.gmra.mxu0 %v1915
    %v2126 = vpop.f32.mrf.mxu0
    %v2127 = vadd.f32 0.0, %v2126
    %2128 = vmatmul.f32.gmra.mxu0 %v1918
    %v2129 = vpop.f32.mrf.mxu0
    %v2130 = vadd.f32 0.0, %v2129
    %2131 = vmatmul.f32.gmra.mxu0 %v1921
    %v2132 = vpop.f32.mrf.mxu0
    %v2133 = vadd.f32 0.0, %v2132
    %2134 = vmatmul.f32.gmra.mxu0 %v1924
    %v2135 = vpop.f32.mrf.mxu0
    %v2136 = vadd.f32 0.0, %v2135
    %2137 = vmatmul.f32.gmra.mxu0 %v1927
    %v2138 = vpop.f32.mrf.mxu0
    %v2139 = vadd.f32 0.0, %v2138
    %2140 = vmatmul.f32.gmra.mxu0 %v1930
    %v2141 = vpop.f32.mrf.mxu0
    %v2142 = vadd.f32 0.0, %v2141
    %2143 = vmatmul.f32.gmra.mxu0 %v1933
    %v2144 = vpop.f32.mrf.mxu0
    %v2145 = vadd.f32 0.0, %v2144
    %2146 = vmatmul.f32.gmra.mxu0 %v1936
    %v2147 = vpop.f32.mrf.mxu0
    %v2148 = vadd.f32 0.0, %v2147
    %2149 = vmatmul.f32.gmra.mxu0 %v1939
    %v2150 = vpop.f32.mrf.mxu0
    %v2151 = vadd.f32 0.0, %v2150
    %2152 = vmatmul.f32.gmra.mxu0 %v1942
    %v2153 = vpop.f32.mrf.mxu0
    %v2154 = vadd.f32 0.0, %v2153
    %2155 = vmatmul.f32.gmra.mxu0 %v1945
    %v2156 = vpop.f32.mrf.mxu0
    %v2157 = vadd.f32 0.0, %v2156
    %2158 = vmatmul.f32.gmra.mxu0 %v1948
    %v2159 = vpop.f32.mrf.mxu0
    %v2160 = vadd.f32 0.0, %v2159
    %2161 = vmatmul.f32.gmra.mxu0 %v1951
    %v2162 = vpop.f32.mrf.mxu0
    %v2163 = vadd.f32 0.0, %v2162
    %2164 = vmatmul.f32.gmra.mxu0 %v1954
    %v2165 = vpop.f32.mrf.mxu0
    %v2166 = vadd.f32 0.0, %v2165
    %2167 = vmatmul.f32.gmra.mxu0 %v1957
    %v2168 = vpop.f32.mrf.mxu0
    %v2169 = vadd.f32 0.0, %v2168
    %2170 = vmatmul.f32.gmra.mxu0 %v1960
    %v2171 = vpop.f32.mrf.mxu0
    %v2172 = vadd.f32 0.0, %v2171
    %2173 = vmatmul.f32.gmra.mxu0 %v1963
    %v2174 = vpop.f32.mrf.mxu0
    %v2175 = vadd.f32 0.0, %v2174
    %2176 = vmatmul.f32.gmra.mxu0 %v1966
    %v2177 = vpop.f32.mrf.mxu0
    %v2178 = vadd.f32 0.0, %v2177
    %2179 = vmatmul.f32.gmra.mxu0 %v1969
    %v2180 = vpop.f32.mrf.mxu0
    %v2181 = vadd.f32 0.0, %v2180
    %2182 = vmatmul.f32.gmra.mxu0 %v1972
    %v2183 = vpop.f32.mrf.mxu0
    %v2184 = vadd.f32 0.0, %v2183
    %2185 = vmatmul.f32.gmra.mxu0 %v1975
    %v2186 = vpop.f32.mrf.mxu0
    %v2187 = vadd.f32 0.0, %v2186
    %2188 = vmatmul.f32.gmra.mxu0 %v1978
    %v2189 = vpop.f32.mrf.mxu0
    %v2190 = vadd.f32 0.0, %v2189
    %2191 = vmatmul.f32.gmra.mxu0 %v1981
    %v2192 = vpop.f32.mrf.mxu0
    %v2193 = vadd.f32 0.0, %v2192
    %2194 = vmatmul.f32.gmra.mxu0 %v1984
    %v2195 = vpop.f32.mrf.mxu0
    %v2196 = vadd.f32 0.0, %v2195
    %2197 = vmatmul.f32.gmra.mxu0 %v1987
    %v2198 = vpop.f32.mrf.mxu0
    %v2199 = vadd.f32 0.0, %v2198
    %2200 = vmatmul.f32.gmra.mxu0 %v1990
    %v2201 = vpop.f32.mrf.mxu0
    %v2202 = vadd.f32 0.0, %v2201
    %2203 = vmatmul.f32.gmra.mxu0 %v1993
    %v2204 = vpop.f32.mrf.mxu0
    %v2205 = vadd.f32 0.0, %v2204
    %2206 = vmatmul.f32.gmra.mxu0 %v1996
    %v2207 = vpop.f32.mrf.mxu0
    %v2208 = vadd.f32 0.0, %v2207
    %2209 = vdwg.mxu0
    %v2210 = vadd.f32 %v1676, %v2019
    %v2211 = vadd.f32 %v1677, %v2022
    %v2212 = vadd.f32 %v1678, %v2025
    %v2213 = vadd.f32 %v1679, %v2028
    %v2214 = vadd.f32 %v1680, %v2031
    %v2215 = vadd.f32 %v1681, %v2034
    %v2216 = vadd.f32 %v1682, %v2037
    %v2217 = vadd.f32 %v1683, %v2040
    %v2218 = vadd.f32 %v1684, %v2043
    %v2219 = vadd.f32 %v1685, %v2046
    %v2220 = vadd.f32 %v1686, %v2049
    %v2221 = vadd.f32 %v1687, %v2052
    %v2222 = vadd.f32 %v1688, %v2055
    %v2223 = vadd.f32 %v1689, %v2058
    %v2224 = vadd.f32 %v1690, %v2061
    %v2225 = vadd.f32 %v1691, %v2064
    %v2226 = vadd.f32 %v1692, %v2067
    %v2227 = vadd.f32 %v1693, %v2070
    %v2228 = vadd.f32 %v1694, %v2073
    %v2229 = vadd.f32 %v1695, %v2076
    %v2230 = vadd.f32 %v1696, %v2079
    %v2231 = vadd.f32 %v1697, %v2082
    %v2232 = vadd.f32 %v1698, %v2085
    %v2233 = vadd.f32 %v1699, %v2088
    %v2234 = vadd.f32 %v1700, %v2091
    %v2235 = vadd.f32 %v1701, %v2094
    %v2236 = vadd.f32 %v1702, %v2097
    %v2237 = vadd.f32 %v1703, %v2100
    %v2238 = vadd.f32 %v1704, %v2103
    %v2239 = vadd.f32 %v1705, %v2106
    %v2240 = vadd.f32 %v1706, %v2109
    %v2241 = vadd.f32 %v1707, %v2112
    %v2242 = vadd.f32 %v1708, %v2115
    %v2243 = vadd.f32 %v1709, %v2118
    %v2244 = vadd.f32 %v1710, %v2121
    %v2245 = vadd.f32 %v1711, %v2124
    %v2246 = vadd.f32 %v1712, %v2127
    %v2247 = vadd.f32 %v1713, %v2130
    %v2248 = vadd.f32 %v1714, %v2133
    %v2249 = vadd.f32 %v1715, %v2136
    %v2250 = vadd.f32 %v1716, %v2139
    %v2251 = vadd.f32 %v1717, %v2142
    %v2252 = vadd.f32 %v1718, %v2145
    %v2253 = vadd.f32 %v1719, %v2148
    %v2254 = vadd.f32 %v1720, %v2151
    %v2255 = vadd.f32 %v1721, %v2154
    %v2256 = vadd.f32 %v1722, %v2157
    %v2257 = vadd.f32 %v1723, %v2160
    %v2258 = vadd.f32 %v1724, %v2163
    %v2259 = vadd.f32 %v1725, %v2166
    %v2260 = vadd.f32 %v1726, %v2169
    %v2261 = vadd.f32 %v1727, %v2172
    %v2262 = vadd.f32 %v1728, %v2175
    %v2263 = vadd.f32 %v1729, %v2178
    %v2264 = vadd.f32 %v1730, %v2181
    %v2265 = vadd.f32 %v1731, %v2184
    %v2266 = vadd.f32 %v1732, %v2187
    %v2267 = vadd.f32 %v1733, %v2190
    %v2268 = vadd.f32 %v1734, %v2193
    %v2269 = vadd.f32 %v1735, %v2196
    %v2270 = vadd.f32 %v1736, %v2199
    %v2271 = vadd.f32 %v1737, %v2202
    %v2272 = vadd.f32 %v1738, %v2205
    %v2273 = vadd.f32 %v1739, %v2208
    %v2274 = vld [vmem:[%s201 + $0x1] sm:$0xff]
    %v2275 = vld [vmem:[%s201 + $0x9] sm:$0xff]
    %v2276 = vld [vmem:[%s201 + $0x19] sm:$0xff]
    %v2277 = vld [vmem:[%s201 + $0x21] sm:$0xff]
    %v2278 = vld [vmem:[%s201 + $0x31] sm:$0xff]
    %v2279 = vld [vmem:[%s201 + $0x39] sm:$0xff]
    %v2280 = vld [vmem:[%s201 + $0x49] sm:$0xff]
    %v2281 = vld [vmem:[%s201 + $0x51] sm:$0xff]
    %v2282 = vld [vmem:[%s201 + $0x61] sm:$0xff]
    %v2283 = vld [vmem:[%s201 + $0x69] sm:$0xff]
    %v2284 = vld [vmem:[%s201 + $0x79] sm:$0xff]
    %v2285 = vld [vmem:[%s201 + $0x81] sm:$0xff]
    %v2286 = vld [vmem:[%s201 + $0x91] sm:$0xff]
    %v2287 = vld [vmem:[%s201 + $0x99] sm:$0xff]
    %v2288 = vld [vmem:[%s201 + $0xa9] sm:$0xff]
    %v2289 = vld [vmem:[%s201 + $0xb1] sm:$0xff]
    %v2290 = vld [vmem:[%s201 + $0xc1] sm:$0xff]
    %v2291 = vld [vmem:[%s201 + $0xc9] sm:$0xff]
    %v2292 = vld [vmem:[%s201 + $0xd9] sm:$0xff]
    %v2293 = vld [vmem:[%s201 + $0xe1] sm:$0xff]
    %v2294 = vld [vmem:[%s201 + $0xf1] sm:$0xff]
    %v2295 = vld [vmem:[%s201 + $0xf9] sm:$0xff]
    %v2296 = vld [vmem:[%s201 + $0x109] sm:$0xff]
    %v2297 = vld [vmem:[%s201 + $0x111] sm:$0xff]
    %v2298 = vld [vmem:[%s201 + $0x121] sm:$0xff]
    %v2299 = vld [vmem:[%s201 + $0x129] sm:$0xff]
    %v2300 = vld [vmem:[%s201 + $0x139] sm:$0xff]
    %v2301 = vld [vmem:[%s201 + $0x141] sm:$0xff]
    %v2302 = vld [vmem:[%s201 + $0x151] sm:$0xff]
    %v2303 = vld [vmem:[%s201 + $0x159] sm:$0xff]
    %v2304 = vld [vmem:[%s201 + $0x169] sm:$0xff]
    %v2305 = vld [vmem:[%s201 + $0x171] sm:$0xff]
    %v2306 = vld [vmem:[%s201 + $0x1b1] sm:$0xff]
    %v2307 = vld [vmem:[%s201 + $0x1b9] sm:$0xff]
    %v2308 = vld [vmem:[%s201 + $0x1c9] sm:$0xff]
    %v2309 = vld [vmem:[%s201 + $0x1d1] sm:$0xff]
    %v2310 = vld [vmem:[%s201 + $0x1e1] sm:$0xff]
    %v2311 = vld [vmem:[%s201 + $0x1e9] sm:$0xff]
    %v2312 = vld [vmem:[%s201 + $0x1f9] sm:$0xff]
    %v2313 = vld [vmem:[%s201 + $0x201] sm:$0xff]
    %v2314 = vld [vmem:[%s201 + $0x211] sm:$0xff]
    %v2315 = vld [vmem:[%s201 + $0x219] sm:$0xff]
    %v2316 = vld [vmem:[%s201 + $0x229] sm:$0xff]
    %v2317 = vld [vmem:[%s201 + $0x231] sm:$0xff]
    %v2318 = vld [vmem:[%s201 + $0x241] sm:$0xff]
    %v2319 = vld [vmem:[%s201 + $0x249] sm:$0xff]
    %v2320 = vld [vmem:[%s201 + $0x259] sm:$0xff]
    %v2321 = vld [vmem:[%s201 + $0x261] sm:$0xff]
    %v2322 = vld [vmem:[%s201 + $0x271] sm:$0xff]
    %v2323 = vld [vmem:[%s201 + $0x279] sm:$0xff]
    %v2324 = vld [vmem:[%s201 + $0x289] sm:$0xff]
    %v2325 = vld [vmem:[%s201 + $0x291] sm:$0xff]
    %v2326 = vld [vmem:[%s201 + $0x2a1] sm:$0xff]
    %v2327 = vld [vmem:[%s201 + $0x2a9] sm:$0xff]
    %v2328 = vld [vmem:[%s201 + $0x2b9] sm:$0xff]
    %v2329 = vld [vmem:[%s201 + $0x2c1] sm:$0xff]
    %v2330 = vld [vmem:[%s201 + $0x2d1] sm:$0xff]
    %v2331 = vld [vmem:[%s201 + $0x2d9] sm:$0xff]
    %v2332 = vld [vmem:[%s201 + $0x2e9] sm:$0xff]
    %v2333 = vld [vmem:[%s201 + $0x2f1] sm:$0xff]
    %v2334 = vld [vmem:[%s201 + $0x301] sm:$0xff]
    %v2335 = vld [vmem:[%s201 + $0x309] sm:$0xff]
    %v2336 = vld [vmem:[%s201 + $0x319] sm:$0xff]
    %v2337 = vld [vmem:[%s201 + $0x321] sm:$0xff]
    %s2338 = scalar_lea.vmem %s1, 16
    %v2339 = vld [vmem:[%s2338] sm:$0xf]
    %v2341 = vsel %vm27, %v2274, 0
    %v2344 = vsel %vm27, %v2275, 0
    %v2347 = vsel %vm27, %v2276, 0
    %v2350 = vsel %vm27, %v2277, 0
    %v2353 = vsel %vm27, %v2278, 0
    %v2356 = vsel %vm27, %v2279, 0
    %v2359 = vsel %vm27, %v2280, 0
    %v2362 = vsel %vm27, %v2281, 0
    %v2365 = vsel %vm27, %v2282, 0
    %v2368 = vsel %vm27, %v2283, 0
    %v2371 = vsel %vm27, %v2284, 0
    %v2374 = vsel %vm27, %v2285, 0
    %v2377 = vsel %vm27, %v2286, 0
    %v2380 = vsel %vm27, %v2287, 0
    %v2383 = vsel %vm27, %v2288, 0
    %v2386 = vsel %vm27, %v2289, 0
    %v2389 = vsel %vm27, %v2290, 0
    %v2392 = vsel %vm27, %v2291, 0
    %v2395 = vsel %vm27, %v2292, 0
    %v2398 = vsel %vm27, %v2293, 0
    %v2401 = vsel %vm27, %v2294, 0
    %v2404 = vsel %vm27, %v2295, 0
    %v2407 = vsel %vm27, %v2296, 0
    %v2410 = vsel %vm27, %v2297, 0
    %v2413 = vsel %vm27, %v2298, 0
    %v2416 = vsel %vm27, %v2299, 0
    %v2419 = vsel %vm27, %v2300, 0
    %v2422 = vsel %vm27, %v2301, 0
    %v2425 = vsel %vm27, %v2302, 0
    %v2428 = vsel %vm27, %v2303, 0
    %v2431 = vsel %vm27, %v2304, 0
    %v2434 = vsel %vm27, %v2305, 0
    %v2437 = vsel %vm27, %v2306, 0
    %v2440 = vsel %vm27, %v2307, 0
    %v2443 = vsel %vm27, %v2308, 0
    %v2446 = vsel %vm27, %v2309, 0
    %v2449 = vsel %vm27, %v2310, 0
    %v2452 = vsel %vm27, %v2311, 0
    %v2455 = vsel %vm27, %v2312, 0
    %v2458 = vsel %vm27, %v2313, 0
    %v2461 = vsel %vm27, %v2314, 0
    %v2464 = vsel %vm27, %v2315, 0
    %v2467 = vsel %vm27, %v2316, 0
    %v2470 = vsel %vm27, %v2317, 0
    %v2473 = vsel %vm27, %v2318, 0
    %v2476 = vsel %vm27, %v2319, 0
    %v2479 = vsel %vm27, %v2320, 0
    %v2482 = vsel %vm27, %v2321, 0
    %v2485 = vsel %vm27, %v2322, 0
    %v2488 = vsel %vm27, %v2323, 0
    %v2491 = vsel %vm27, %v2324, 0
    %v2494 = vsel %vm27, %v2325, 0
    %v2497 = vsel %vm27, %v2326, 0
    %v2500 = vsel %vm27, %v2327, 0
    %v2503 = vsel %vm27, %v2328, 0
    %v2506 = vsel %vm27, %v2329, 0
    %v2509 = vsel %vm27, %v2330, 0
    %v2512 = vsel %vm27, %v2331, 0
    %v2515 = vsel %vm27, %v2332, 0
    %v2518 = vsel %vm27, %v2333, 0
    %v2521 = vsel %vm27, %v2334, 0
    %v2524 = vsel %vm27, %v2335, 0
    %v2527 = vsel %vm27, %v2336, 0
    %v2530 = vsel %vm27, %v2337, 0
    %v2533 = vsel %vm589, %v2339, 0
    %2535 = vmatpush.msra.mxu0 0.0
    %2536 = vmatpush.msra.mxu0 0.0
    %2537 = vmatpush.msra.mxu0 0.0
    %2538 = vmatpush.msra.mxu0 0.0
    %2539 = vmatpush.msra.mxu0 0.0
    %2540 = vmatpush.msra.mxu0 0.0
    %2541 = vmatpush.msra.mxu0 0.0
    %2542 = vmatpush.msra.mxu0 0.0
    %2543 = vmatpush.msra.mxu0 0.0
    %2544 = vmatpush.msra.mxu0 0.0
    %2545 = vmatpush.msra.mxu0 0.0
    %2546 = vmatpush.msra.mxu0 0.0
    %2547 = vmatpush.msra.mxu0 0.0
    %2548 = vmatpush.msra.mxu0 0.0
    %2549 = vmatpush.msra.mxu0 0.0
    %2550 = vmatpush.msra.mxu0 %v2533
    %2551 = vmatmul.f32.gmra.mxu0 %v2341
    %v2552 = vpop.f32.mrf.mxu0
    %v2553 = vadd.f32 0.0, %v2552
    %2554 = vmatmul.f32.gmra.mxu0 %v2344
    %v2555 = vpop.f32.mrf.mxu0
    %v2556 = vadd.f32 0.0, %v2555
    %2557 = vmatmul.f32.gmra.mxu0 %v2347
    %v2558 = vpop.f32.mrf.mxu0
    %v2559 = vadd.f32 0.0, %v2558
    %2560 = vmatmul.f32.gmra.mxu0 %v2350
    %v2561 = vpop.f32.mrf.mxu0
    %v2562 = vadd.f32 0.0, %v2561
    %2563 = vmatmul.f32.gmra.mxu0 %v2353
    %v2564 = vpop.f32.mrf.mxu0
    %v2565 = vadd.f32 0.0, %v2564
    %2566 = vmatmul.f32.gmra.mxu0 %v2356
    %v2567 = vpop.f32.mrf.mxu0
    %v2568 = vadd.f32 0.0, %v2567
    %2569 = vmatmul.f32.gmra.mxu0 %v2359
    %v2570 = vpop.f32.mrf.mxu0
    %v2571 = vadd.f32 0.0, %v2570
    %2572 = vmatmul.f32.gmra.mxu0 %v2362
    %v2573 = vpop.f32.mrf.mxu0
    %v2574 = vadd.f32 0.0, %v2573
    %2575 = vmatmul.f32.gmra.mxu0 %v2365
    %v2576 = vpop.f32.mrf.mxu0
    %v2577 = vadd.f32 0.0, %v2576
    %2578 = vmatmul.f32.gmra.mxu0 %v2368
    %v2579 = vpop.f32.mrf.mxu0
    %v2580 = vadd.f32 0.0, %v2579
    %2581 = vmatmul.f32.gmra.mxu0 %v2371
    %v2582 = vpop.f32.mrf.mxu0
    %v2583 = vadd.f32 0.0, %v2582
    %2584 = vmatmul.f32.gmra.mxu0 %v2374
    %v2585 = vpop.f32.mrf.mxu0
    %v2586 = vadd.f32 0.0, %v2585
    %2587 = vmatmul.f32.gmra.mxu0 %v2377
    %v2588 = vpop.f32.mrf.mxu0
    %v2589 = vadd.f32 0.0, %v2588
    %2590 = vmatmul.f32.gmra.mxu0 %v2380
    %v2591 = vpop.f32.mrf.mxu0
    %v2592 = vadd.f32 0.0, %v2591
    %2593 = vmatmul.f32.gmra.mxu0 %v2383
    %v2594 = vpop.f32.mrf.mxu0
    %v2595 = vadd.f32 0.0, %v2594
    %2596 = vmatmul.f32.gmra.mxu0 %v2386
    %v2597 = vpop.f32.mrf.mxu0
    %v2598 = vadd.f32 0.0, %v2597
    %2599 = vmatmul.f32.gmra.mxu0 %v2389
    %v2600 = vpop.f32.mrf.mxu0
    %v2601 = vadd.f32 0.0, %v2600
    %2602 = vmatmul.f32.gmra.mxu0 %v2392
    %v2603 = vpop.f32.mrf.mxu0
    %v2604 = vadd.f32 0.0, %v2603
    %2605 = vmatmul.f32.gmra.mxu0 %v2395
    %v2606 = vpop.f32.mrf.mxu0
    %v2607 = vadd.f32 0.0, %v2606
    %2608 = vmatmul.f32.gmra.mxu0 %v2398
    %v2609 = vpop.f32.mrf.mxu0
    %v2610 = vadd.f32 0.0, %v2609
    %2611 = vmatmul.f32.gmra.mxu0 %v2401
    %v2612 = vpop.f32.mrf.mxu0
    %v2613 = vadd.f32 0.0, %v2612
    %2614 = vmatmul.f32.gmra.mxu0 %v2404
    %v2615 = vpop.f32.mrf.mxu0
    %v2616 = vadd.f32 0.0, %v2615
    %2617 = vmatmul.f32.gmra.mxu0 %v2407
    %v2618 = vpop.f32.mrf.mxu0
    %v2619 = vadd.f32 0.0, %v2618
    %2620 = vmatmul.f32.gmra.mxu0 %v2410
    %v2621 = vpop.f32.mrf.mxu0
    %v2622 = vadd.f32 0.0, %v2621
    %2623 = vmatmul.f32.gmra.mxu0 %v2413
    %v2624 = vpop.f32.mrf.mxu0
    %v2625 = vadd.f32 0.0, %v2624
    %2626 = vmatmul.f32.gmra.mxu0 %v2416
    %v2627 = vpop.f32.mrf.mxu0
    %v2628 = vadd.f32 0.0, %v2627
    %2629 = vmatmul.f32.gmra.mxu0 %v2419
    %v2630 = vpop.f32.mrf.mxu0
    %v2631 = vadd.f32 0.0, %v2630
    %2632 = vmatmul.f32.gmra.mxu0 %v2422
    %v2633 = vpop.f32.mrf.mxu0
    %v2634 = vadd.f32 0.0, %v2633
    %2635 = vmatmul.f32.gmra.mxu0 %v2425
    %v2636 = vpop.f32.mrf.mxu0
    %v2637 = vadd.f32 0.0, %v2636
    %2638 = vmatmul.f32.gmra.mxu0 %v2428
    %v2639 = vpop.f32.mrf.mxu0
    %v2640 = vadd.f32 0.0, %v2639
    %2641 = vmatmul.f32.gmra.mxu0 %v2431
    %v2642 = vpop.f32.mrf.mxu0
    %v2643 = vadd.f32 0.0, %v2642
    %2644 = vmatmul.f32.gmra.mxu0 %v2434
    %v2645 = vpop.f32.mrf.mxu0
    %v2646 = vadd.f32 0.0, %v2645
    %2647 = vmatmul.f32.gmra.mxu0 %v2437
    %v2648 = vpop.f32.mrf.mxu0
    %v2649 = vadd.f32 0.0, %v2648
    %2650 = vmatmul.f32.gmra.mxu0 %v2440
    %v2651 = vpop.f32.mrf.mxu0
    %v2652 = vadd.f32 0.0, %v2651
    %2653 = vmatmul.f32.gmra.mxu0 %v2443
    %v2654 = vpop.f32.mrf.mxu0
    %v2655 = vadd.f32 0.0, %v2654
    %2656 = vmatmul.f32.gmra.mxu0 %v2446
    %v2657 = vpop.f32.mrf.mxu0
    %v2658 = vadd.f32 0.0, %v2657
    %2659 = vmatmul.f32.gmra.mxu0 %v2449
    %v2660 = vpop.f32.mrf.mxu0
    %v2661 = vadd.f32 0.0, %v2660
    %2662 = vmatmul.f32.gmra.mxu0 %v2452
    %v2663 = vpop.f32.mrf.mxu0
    %v2664 = vadd.f32 0.0, %v2663
    %2665 = vmatmul.f32.gmra.mxu0 %v2455
    %v2666 = vpop.f32.mrf.mxu0
    %v2667 = vadd.f32 0.0, %v2666
    %2668 = vmatmul.f32.gmra.mxu0 %v2458
    %v2669 = vpop.f32.mrf.mxu0
    %v2670 = vadd.f32 0.0, %v2669
    %2671 = vmatmul.f32.gmra.mxu0 %v2461
    %v2672 = vpop.f32.mrf.mxu0
    %v2673 = vadd.f32 0.0, %v2672
    %2674 = vmatmul.f32.gmra.mxu0 %v2464
    %v2675 = vpop.f32.mrf.mxu0
    %v2676 = vadd.f32 0.0, %v2675
    %2677 = vmatmul.f32.gmra.mxu0 %v2467
    %v2678 = vpop.f32.mrf.mxu0
    %v2679 = vadd.f32 0.0, %v2678
    %2680 = vmatmul.f32.gmra.mxu0 %v2470
    %v2681 = vpop.f32.mrf.mxu0
    %v2682 = vadd.f32 0.0, %v2681
    %2683 = vmatmul.f32.gmra.mxu0 %v2473
    %v2684 = vpop.f32.mrf.mxu0
    %v2685 = vadd.f32 0.0, %v2684
    %2686 = vmatmul.f32.gmra.mxu0 %v2476
    %v2687 = vpop.f32.mrf.mxu0
    %v2688 = vadd.f32 0.0, %v2687
    %2689 = vmatmul.f32.gmra.mxu0 %v2479
    %v2690 = vpop.f32.mrf.mxu0
    %v2691 = vadd.f32 0.0, %v2690
    %2692 = vmatmul.f32.gmra.mxu0 %v2482
    %v2693 = vpop.f32.mrf.mxu0
    %v2694 = vadd.f32 0.0, %v2693
    %2695 = vmatmul.f32.gmra.mxu0 %v2485
    %v2696 = vpop.f32.mrf.mxu0
    %v2697 = vadd.f32 0.0, %v2696
    %2698 = vmatmul.f32.gmra.mxu0 %v2488
    %v2699 = vpop.f32.mrf.mxu0
    %v2700 = vadd.f32 0.0, %v2699
    %2701 = vmatmul.f32.gmra.mxu0 %v2491
    %v2702 = vpop.f32.mrf.mxu0
    %v2703 = vadd.f32 0.0, %v2702
    %2704 = vmatmul.f32.gmra.mxu0 %v2494
    %v2705 = vpop.f32.mrf.mxu0
    %v2706 = vadd.f32 0.0, %v2705
    %2707 = vmatmul.f32.gmra.mxu0 %v2497
    %v2708 = vpop.f32.mrf.mxu0
    %v2709 = vadd.f32 0.0, %v2708
    %2710 = vmatmul.f32.gmra.mxu0 %v2500
    %v2711 = vpop.f32.mrf.mxu0
    %v2712 = vadd.f32 0.0, %v2711
    %2713 = vmatmul.f32.gmra.mxu0 %v2503
    %v2714 = vpop.f32.mrf.mxu0
    %v2715 = vadd.f32 0.0, %v2714
    %2716 = vmatmul.f32.gmra.mxu0 %v2506
    %v2717 = vpop.f32.mrf.mxu0
    %v2718 = vadd.f32 0.0, %v2717
    %2719 = vmatmul.f32.gmra.mxu0 %v2509
    %v2720 = vpop.f32.mrf.mxu0
    %v2721 = vadd.f32 0.0, %v2720
    %2722 = vmatmul.f32.gmra.mxu0 %v2512
    %v2723 = vpop.f32.mrf.mxu0
    %v2724 = vadd.f32 0.0, %v2723
    %2725 = vmatmul.f32.gmra.mxu0 %v2515
    %v2726 = vpop.f32.mrf.mxu0
    %v2727 = vadd.f32 0.0, %v2726
    %2728 = vmatmul.f32.gmra.mxu0 %v2518
    %v2729 = vpop.f32.mrf.mxu0
    %v2730 = vadd.f32 0.0, %v2729
    %2731 = vmatmul.f32.gmra.mxu0 %v2521
    %v2732 = vpop.f32.mrf.mxu0
    %v2733 = vadd.f32 0.0, %v2732
    %2734 = vmatmul.f32.gmra.mxu0 %v2524
    %v2735 = vpop.f32.mrf.mxu0
    %v2736 = vadd.f32 0.0, %v2735
    %2737 = vmatmul.f32.gmra.mxu0 %v2527
    %v2738 = vpop.f32.mrf.mxu0
    %v2739 = vadd.f32 0.0, %v2738
    %2740 = vmatmul.f32.gmra.mxu0 %v2530
    %v2741 = vpop.f32.mrf.mxu0
    %v2742 = vadd.f32 0.0, %v2741
    %2743 = vdwg.mxu0
    %v2744 = vadd.f32 %v2210, %v2553
    %v2745 = vadd.f32 %v2211, %v2556
    %v2746 = vadd.f32 %v2212, %v2559
    %v2747 = vadd.f32 %v2213, %v2562
    %v2748 = vadd.f32 %v2214, %v2565
    %v2749 = vadd.f32 %v2215, %v2568
    %v2750 = vadd.f32 %v2216, %v2571
    %v2751 = vadd.f32 %v2217, %v2574
    %v2752 = vadd.f32 %v2218, %v2577
    %v2753 = vadd.f32 %v2219, %v2580
    %v2754 = vadd.f32 %v2220, %v2583
    %v2755 = vadd.f32 %v2221, %v2586
    %v2756 = vadd.f32 %v2222, %v2589
    %v2757 = vadd.f32 %v2223, %v2592
    %v2758 = vadd.f32 %v2224, %v2595
    %v2759 = vadd.f32 %v2225, %v2598
    %v2760 = vadd.f32 %v2226, %v2601
    %v2761 = vadd.f32 %v2227, %v2604
    %v2762 = vadd.f32 %v2228, %v2607
    %v2763 = vadd.f32 %v2229, %v2610
    %v2764 = vadd.f32 %v2230, %v2613
    %v2765 = vadd.f32 %v2231, %v2616
    %v2766 = vadd.f32 %v2232, %v2619
    %v2767 = vadd.f32 %v2233, %v2622
    %v2768 = vadd.f32 %v2234, %v2625
    %v2769 = vadd.f32 %v2235, %v2628
    %v2770 = vadd.f32 %v2236, %v2631
    %v2771 = vadd.f32 %v2237, %v2634
    %v2772 = vadd.f32 %v2238, %v2637
    %v2773 = vadd.f32 %v2239, %v2640
    %v2774 = vadd.f32 %v2240, %v2643
    %v2775 = vadd.f32 %v2241, %v2646
    %v2776 = vadd.f32 %v2242, %v2649
    %v2777 = vadd.f32 %v2243, %v2652
    %v2778 = vadd.f32 %v2244, %v2655
    %v2779 = vadd.f32 %v2245, %v2658
    %v2780 = vadd.f32 %v2246, %v2661
    %v2781 = vadd.f32 %v2247, %v2664
    %v2782 = vadd.f32 %v2248, %v2667
    %v2783 = vadd.f32 %v2249, %v2670
    %v2784 = vadd.f32 %v2250, %v2673
    %v2785 = vadd.f32 %v2251, %v2676
    %v2786 = vadd.f32 %v2252, %v2679
    %v2787 = vadd.f32 %v2253, %v2682
    %v2788 = vadd.f32 %v2254, %v2685
    %v2789 = vadd.f32 %v2255, %v2688
    %v2790 = vadd.f32 %v2256, %v2691
    %v2791 = vadd.f32 %v2257, %v2694
    %v2792 = vadd.f32 %v2258, %v2697
    %v2793 = vadd.f32 %v2259, %v2700
    %v2794 = vadd.f32 %v2260, %v2703
    %v2795 = vadd.f32 %v2261, %v2706
    %v2796 = vadd.f32 %v2262, %v2709
    %v2797 = vadd.f32 %v2263, %v2712
    %v2798 = vadd.f32 %v2264, %v2715
    %v2799 = vadd.f32 %v2265, %v2718
    %v2800 = vadd.f32 %v2266, %v2721
    %v2801 = vadd.f32 %v2267, %v2724
    %v2802 = vadd.f32 %v2268, %v2727
    %v2803 = vadd.f32 %v2269, %v2730
    %v2804 = vadd.f32 %v2270, %v2733
    %v2805 = vadd.f32 %v2271, %v2736
    %v2806 = vadd.f32 %v2272, %v2739
    %v2807 = vadd.f32 %v2273, %v2742
    %v2808 = vld [vmem:[%s201 + $0x2] sm:$0xff]
    %v2809 = vld [vmem:[%s201 + $0xa] sm:$0xff]
    %v2810 = vld [vmem:[%s201 + $0x1a] sm:$0xff]
    %v2811 = vld [vmem:[%s201 + $0x22] sm:$0xff]
    %v2812 = vld [vmem:[%s201 + $0x32] sm:$0xff]
    %v2813 = vld [vmem:[%s201 + $0x3a] sm:$0xff]
    %v2814 = vld [vmem:[%s201 + $0x4a] sm:$0xff]
    %v2815 = vld [vmem:[%s201 + $0x52] sm:$0xff]
    %v2816 = vld [vmem:[%s201 + $0x62] sm:$0xff]
    %v2817 = vld [vmem:[%s201 + $0x6a] sm:$0xff]
    %v2818 = vld [vmem:[%s201 + $0x7a] sm:$0xff]
    %v2819 = vld [vmem:[%s201 + $0x82] sm:$0xff]
    %v2820 = vld [vmem:[%s201 + $0x92] sm:$0xff]
    %v2821 = vld [vmem:[%s201 + $0x9a] sm:$0xff]
    %v2822 = vld [vmem:[%s201 + $0xaa] sm:$0xff]
    %v2823 = vld [vmem:[%s201 + $0xb2] sm:$0xff]
    %v2824 = vld [vmem:[%s201 + $0xc2] sm:$0xff]
    %v2825 = vld [vmem:[%s201 + $0xca] sm:$0xff]
    %v2826 = vld [vmem:[%s201 + $0xda] sm:$0xff]
    %v2827 = vld [vmem:[%s201 + $0xe2] sm:$0xff]
    %v2828 = vld [vmem:[%s201 + $0xf2] sm:$0xff]
    %v2829 = vld [vmem:[%s201 + $0xfa] sm:$0xff]
    %v2830 = vld [vmem:[%s201 + $0x10a] sm:$0xff]
    %v2831 = vld [vmem:[%s201 + $0x112] sm:$0xff]
    %v2832 = vld [vmem:[%s201 + $0x122] sm:$0xff]
    %v2833 = vld [vmem:[%s201 + $0x12a] sm:$0xff]
    %v2834 = vld [vmem:[%s201 + $0x13a] sm:$0xff]
    %v2835 = vld [vmem:[%s201 + $0x142] sm:$0xff]
    %v2836 = vld [vmem:[%s201 + $0x152] sm:$0xff]
    %v2837 = vld [vmem:[%s201 + $0x15a] sm:$0xff]
    %v2838 = vld [vmem:[%s201 + $0x16a] sm:$0xff]
    %v2839 = vld [vmem:[%s201 + $0x172] sm:$0xff]
    %v2840 = vld [vmem:[%s201 + $0x1b2] sm:$0xff]
    %v2841 = vld [vmem:[%s201 + $0x1ba] sm:$0xff]
    %v2842 = vld [vmem:[%s201 + $0x1ca] sm:$0xff]
    %v2843 = vld [vmem:[%s201 + $0x1d2] sm:$0xff]
    %v2844 = vld [vmem:[%s201 + $0x1e2] sm:$0xff]
    %v2845 = vld [vmem:[%s201 + $0x1ea] sm:$0xff]
    %v2846 = vld [vmem:[%s201 + $0x1fa] sm:$0xff]
    %v2847 = vld [vmem:[%s201 + $0x202] sm:$0xff]
    %v2848 = vld [vmem:[%s201 + $0x212] sm:$0xff]
    %v2849 = vld [vmem:[%s201 + $0x21a] sm:$0xff]
    %v2850 = vld [vmem:[%s201 + $0x22a] sm:$0xff]
    %v2851 = vld [vmem:[%s201 + $0x232] sm:$0xff]
    %v2852 = vld [vmem:[%s201 + $0x242] sm:$0xff]
    %v2853 = vld [vmem:[%s201 + $0x24a] sm:$0xff]
    %v2854 = vld [vmem:[%s201 + $0x25a] sm:$0xff]
    %v2855 = vld [vmem:[%s201 + $0x262] sm:$0xff]
    %v2856 = vld [vmem:[%s201 + $0x272] sm:$0xff]
    %v2857 = vld [vmem:[%s201 + $0x27a] sm:$0xff]
    %v2858 = vld [vmem:[%s201 + $0x28a] sm:$0xff]
    %v2859 = vld [vmem:[%s201 + $0x292] sm:$0xff]
    %v2860 = vld [vmem:[%s201 + $0x2a2] sm:$0xff]
    %v2861 = vld [vmem:[%s201 + $0x2aa] sm:$0xff]
    %v2862 = vld [vmem:[%s201 + $0x2ba] sm:$0xff]
    %v2863 = vld [vmem:[%s201 + $0x2c2] sm:$0xff]
    %v2864 = vld [vmem:[%s201 + $0x2d2] sm:$0xff]
    %v2865 = vld [vmem:[%s201 + $0x2da] sm:$0xff]
    %v2866 = vld [vmem:[%s201 + $0x2ea] sm:$0xff]
    %v2867 = vld [vmem:[%s201 + $0x2f2] sm:$0xff]
    %v2868 = vld [vmem:[%s201 + $0x302] sm:$0xff]
    %v2869 = vld [vmem:[%s201 + $0x30a] sm:$0xff]
    %v2870 = vld [vmem:[%s201 + $0x31a] sm:$0xff]
    %v2871 = vld [vmem:[%s201 + $0x322] sm:$0xff]
    %s2872 = scalar_lea.vmem %s1, 20
    %v2873 = vld [vmem:[%s2872] sm:$0xf]
    %v2875 = vsel %vm27, %v2808, 0
    %v2878 = vsel %vm27, %v2809, 0
    %v2881 = vsel %vm27, %v2810, 0
    %v2884 = vsel %vm27, %v2811, 0
    %v2887 = vsel %vm27, %v2812, 0
    %v2890 = vsel %vm27, %v2813, 0
    %v2893 = vsel %vm27, %v2814, 0
    %v2896 = vsel %vm27, %v2815, 0
    %v2899 = vsel %vm27, %v2816, 0
    %v2902 = vsel %vm27, %v2817, 0
    %v2905 = vsel %vm27, %v2818, 0
    %v2908 = vsel %vm27, %v2819, 0
    %v2911 = vsel %vm27, %v2820, 0
    %v2914 = vsel %vm27, %v2821, 0
    %v2917 = vsel %vm27, %v2822, 0
    %v2920 = vsel %vm27, %v2823, 0
    %v2923 = vsel %vm27, %v2824, 0
    %v2926 = vsel %vm27, %v2825, 0
    %v2929 = vsel %vm27, %v2826, 0
    %v2932 = vsel %vm27, %v2827, 0
    %v2935 = vsel %vm27, %v2828, 0
    %v2938 = vsel %vm27, %v2829, 0
    %v2941 = vsel %vm27, %v2830, 0
    %v2944 = vsel %vm27, %v2831, 0
    %v2947 = vsel %vm27, %v2832, 0
    %v2950 = vsel %vm27, %v2833, 0
    %v2953 = vsel %vm27, %v2834, 0
    %v2956 = vsel %vm27, %v2835, 0
    %v2959 = vsel %vm27, %v2836, 0
    %v2962 = vsel %vm27, %v2837, 0
    %v2965 = vsel %vm27, %v2838, 0
    %v2968 = vsel %vm27, %v2839, 0
    %v2971 = vsel %vm27, %v2840, 0
    %v2974 = vsel %vm27, %v2841, 0
    %v2977 = vsel %vm27, %v2842, 0
    %v2980 = vsel %vm27, %v2843, 0
    %v2983 = vsel %vm27, %v2844, 0
    %v2986 = vsel %vm27, %v2845, 0
    %v2989 = vsel %vm27, %v2846, 0
    %v2992 = vsel %vm27, %v2847, 0
    %v2995 = vsel %vm27, %v2848, 0
    %v2998 = vsel %vm27, %v2849, 0
    %v3001 = vsel %vm27, %v2850, 0
    %v3004 = vsel %vm27, %v2851, 0
    %v3007 = vsel %vm27, %v2852, 0
    %v3010 = vsel %vm27, %v2853, 0
    %v3013 = vsel %vm27, %v2854, 0
    %v3016 = vsel %vm27, %v2855, 0
    %v3019 = vsel %vm27, %v2856, 0
    %v3022 = vsel %vm27, %v2857, 0
    %v3025 = vsel %vm27, %v2858, 0
    %v3028 = vsel %vm27, %v2859, 0
    %v3031 = vsel %vm27, %v2860, 0
    %v3034 = vsel %vm27, %v2861, 0
    %v3037 = vsel %vm27, %v2862, 0
    %v3040 = vsel %vm27, %v2863, 0
    %v3043 = vsel %vm27, %v2864, 0
    %v3046 = vsel %vm27, %v2865, 0
    %v3049 = vsel %vm27, %v2866, 0
    %v3052 = vsel %vm27, %v2867, 0
    %v3055 = vsel %vm27, %v2868, 0
    %v3058 = vsel %vm27, %v2869, 0
    %v3061 = vsel %vm27, %v2870, 0
    %v3064 = vsel %vm27, %v2871, 0
    %v3067 = vsel %vm589, %v2873, 0
    %3069 = vmatpush.msra.mxu0 0.0
    %3070 = vmatpush.msra.mxu0 0.0
    %3071 = vmatpush.msra.mxu0 0.0
    %3072 = vmatpush.msra.mxu0 0.0
    %3073 = vmatpush.msra.mxu0 0.0
    %3074 = vmatpush.msra.mxu0 0.0
    %3075 = vmatpush.msra.mxu0 0.0
    %3076 = vmatpush.msra.mxu0 0.0
    %3077 = vmatpush.msra.mxu0 0.0
    %3078 = vmatpush.msra.mxu0 0.0
    %3079 = vmatpush.msra.mxu0 0.0
    %3080 = vmatpush.msra.mxu0 0.0
    %3081 = vmatpush.msra.mxu0 0.0
    %3082 = vmatpush.msra.mxu0 0.0
    %3083 = vmatpush.msra.mxu0 0.0
    %3084 = vmatpush.msra.mxu0 %v3067
    %3085 = vmatmul.f32.gmra.mxu0 %v2875
    %v3086 = vpop.f32.mrf.mxu0
    %v3087 = vadd.f32 0.0, %v3086
    %3088 = vmatmul.f32.gmra.mxu0 %v2878
    %v3089 = vpop.f32.mrf.mxu0
    %v3090 = vadd.f32 0.0, %v3089
    %3091 = vmatmul.f32.gmra.mxu0 %v2881
    %v3092 = vpop.f32.mrf.mxu0
    %v3093 = vadd.f32 0.0, %v3092
    %3094 = vmatmul.f32.gmra.mxu0 %v2884
    %v3095 = vpop.f32.mrf.mxu0
    %v3096 = vadd.f32 0.0, %v3095
    %3097 = vmatmul.f32.gmra.mxu0 %v2887
    %v3098 = vpop.f32.mrf.mxu0
    %v3099 = vadd.f32 0.0, %v3098
    %3100 = vmatmul.f32.gmra.mxu0 %v2890
    %v3101 = vpop.f32.mrf.mxu0
    %v3102 = vadd.f32 0.0, %v3101
    %3103 = vmatmul.f32.gmra.mxu0 %v2893
    %v3104 = vpop.f32.mrf.mxu0
    %v3105 = vadd.f32 0.0, %v3104
    %3106 = vmatmul.f32.gmra.mxu0 %v2896
    %v3107 = vpop.f32.mrf.mxu0
    %v3108 = vadd.f32 0.0, %v3107
    %3109 = vmatmul.f32.gmra.mxu0 %v2899
    %v3110 = vpop.f32.mrf.mxu0
    %v3111 = vadd.f32 0.0, %v3110
    %3112 = vmatmul.f32.gmra.mxu0 %v2902
    %v3113 = vpop.f32.mrf.mxu0
    %v3114 = vadd.f32 0.0, %v3113
    %3115 = vmatmul.f32.gmra.mxu0 %v2905
    %v3116 = vpop.f32.mrf.mxu0
    %v3117 = vadd.f32 0.0, %v3116
    %3118 = vmatmul.f32.gmra.mxu0 %v2908
    %v3119 = vpop.f32.mrf.mxu0
    %v3120 = vadd.f32 0.0, %v3119
    %3121 = vmatmul.f32.gmra.mxu0 %v2911
    %v3122 = vpop.f32.mrf.mxu0
    %v3123 = vadd.f32 0.0, %v3122
    %3124 = vmatmul.f32.gmra.mxu0 %v2914
    %v3125 = vpop.f32.mrf.mxu0
    %v3126 = vadd.f32 0.0, %v3125
    %3127 = vmatmul.f32.gmra.mxu0 %v2917
    %v3128 = vpop.f32.mrf.mxu0
    %v3129 = vadd.f32 0.0, %v3128
    %3130 = vmatmul.f32.gmra.mxu0 %v2920
    %v3131 = vpop.f32.mrf.mxu0
    %v3132 = vadd.f32 0.0, %v3131
    %3133 = vmatmul.f32.gmra.mxu0 %v2923
    %v3134 = vpop.f32.mrf.mxu0
    %v3135 = vadd.f32 0.0, %v3134
    %3136 = vmatmul.f32.gmra.mxu0 %v2926
    %v3137 = vpop.f32.mrf.mxu0
    %v3138 = vadd.f32 0.0, %v3137
    %3139 = vmatmul.f32.gmra.mxu0 %v2929
    %v3140 = vpop.f32.mrf.mxu0
    %v3141 = vadd.f32 0.0, %v3140
    %3142 = vmatmul.f32.gmra.mxu0 %v2932
    %v3143 = vpop.f32.mrf.mxu0
    %v3144 = vadd.f32 0.0, %v3143
    %3145 = vmatmul.f32.gmra.mxu0 %v2935
    %v3146 = vpop.f32.mrf.mxu0
    %v3147 = vadd.f32 0.0, %v3146
    %3148 = vmatmul.f32.gmra.mxu0 %v2938
    %v3149 = vpop.f32.mrf.mxu0
    %v3150 = vadd.f32 0.0, %v3149
    %3151 = vmatmul.f32.gmra.mxu0 %v2941
    %v3152 = vpop.f32.mrf.mxu0
    %v3153 = vadd.f32 0.0, %v3152
    %3154 = vmatmul.f32.gmra.mxu0 %v2944
    %v3155 = vpop.f32.mrf.mxu0
    %v3156 = vadd.f32 0.0, %v3155
    %3157 = vmatmul.f32.gmra.mxu0 %v2947
    %v3158 = vpop.f32.mrf.mxu0
    %v3159 = vadd.f32 0.0, %v3158
    %3160 = vmatmul.f32.gmra.mxu0 %v2950
    %v3161 = vpop.f32.mrf.mxu0
    %v3162 = vadd.f32 0.0, %v3161
    %3163 = vmatmul.f32.gmra.mxu0 %v2953
    %v3164 = vpop.f32.mrf.mxu0
    %v3165 = vadd.f32 0.0, %v3164
    %3166 = vmatmul.f32.gmra.mxu0 %v2956
    %v3167 = vpop.f32.mrf.mxu0
    %v3168 = vadd.f32 0.0, %v3167
    %3169 = vmatmul.f32.gmra.mxu0 %v2959
    %v3170 = vpop.f32.mrf.mxu0
    %v3171 = vadd.f32 0.0, %v3170
    %3172 = vmatmul.f32.gmra.mxu0 %v2962
    %v3173 = vpop.f32.mrf.mxu0
    %v3174 = vadd.f32 0.0, %v3173
    %3175 = vmatmul.f32.gmra.mxu0 %v2965
    %v3176 = vpop.f32.mrf.mxu0
    %v3177 = vadd.f32 0.0, %v3176
    %3178 = vmatmul.f32.gmra.mxu0 %v2968
    %v3179 = vpop.f32.mrf.mxu0
    %v3180 = vadd.f32 0.0, %v3179
    %3181 = vmatmul.f32.gmra.mxu0 %v2971
    %v3182 = vpop.f32.mrf.mxu0
    %v3183 = vadd.f32 0.0, %v3182
    %3184 = vmatmul.f32.gmra.mxu0 %v2974
    %v3185 = vpop.f32.mrf.mxu0
    %v3186 = vadd.f32 0.0, %v3185
    %3187 = vmatmul.f32.gmra.mxu0 %v2977
    %v3188 = vpop.f32.mrf.mxu0
    %v3189 = vadd.f32 0.0, %v3188
    %3190 = vmatmul.f32.gmra.mxu0 %v2980
    %v3191 = vpop.f32.mrf.mxu0
    %v3192 = vadd.f32 0.0, %v3191
    %3193 = vmatmul.f32.gmra.mxu0 %v2983
    %v3194 = vpop.f32.mrf.mxu0
    %v3195 = vadd.f32 0.0, %v3194
    %3196 = vmatmul.f32.gmra.mxu0 %v2986
    %v3197 = vpop.f32.mrf.mxu0
    %v3198 = vadd.f32 0.0, %v3197
    %3199 = vmatmul.f32.gmra.mxu0 %v2989
    %v3200 = vpop.f32.mrf.mxu0
    %v3201 = vadd.f32 0.0, %v3200
    %3202 = vmatmul.f32.gmra.mxu0 %v2992
    %v3203 = vpop.f32.mrf.mxu0
    %v3204 = vadd.f32 0.0, %v3203
    %3205 = vmatmul.f32.gmra.mxu0 %v2995
    %v3206 = vpop.f32.mrf.mxu0
    %v3207 = vadd.f32 0.0, %v3206
    %3208 = vmatmul.f32.gmra.mxu0 %v2998
    %v3209 = vpop.f32.mrf.mxu0
    %v3210 = vadd.f32 0.0, %v3209
    %3211 = vmatmul.f32.gmra.mxu0 %v3001
    %v3212 = vpop.f32.mrf.mxu0
    %v3213 = vadd.f32 0.0, %v3212
    %3214 = vmatmul.f32.gmra.mxu0 %v3004
    %v3215 = vpop.f32.mrf.mxu0
    %v3216 = vadd.f32 0.0, %v3215
    %3217 = vmatmul.f32.gmra.mxu0 %v3007
    %v3218 = vpop.f32.mrf.mxu0
    %v3219 = vadd.f32 0.0, %v3218
    %3220 = vmatmul.f32.gmra.mxu0 %v3010
    %v3221 = vpop.f32.mrf.mxu0
    %v3222 = vadd.f32 0.0, %v3221
    %3223 = vmatmul.f32.gmra.mxu0 %v3013
    %v3224 = vpop.f32.mrf.mxu0
    %v3225 = vadd.f32 0.0, %v3224
    %3226 = vmatmul.f32.gmra.mxu0 %v3016
    %v3227 = vpop.f32.mrf.mxu0
    %v3228 = vadd.f32 0.0, %v3227
    %3229 = vmatmul.f32.gmra.mxu0 %v3019
    %v3230 = vpop.f32.mrf.mxu0
    %v3231 = vadd.f32 0.0, %v3230
    %3232 = vmatmul.f32.gmra.mxu0 %v3022
    %v3233 = vpop.f32.mrf.mxu0
    %v3234 = vadd.f32 0.0, %v3233
    %3235 = vmatmul.f32.gmra.mxu0 %v3025
    %v3236 = vpop.f32.mrf.mxu0
    %v3237 = vadd.f32 0.0, %v3236
    %3238 = vmatmul.f32.gmra.mxu0 %v3028
    %v3239 = vpop.f32.mrf.mxu0
    %v3240 = vadd.f32 0.0, %v3239
    %3241 = vmatmul.f32.gmra.mxu0 %v3031
    %v3242 = vpop.f32.mrf.mxu0
    %v3243 = vadd.f32 0.0, %v3242
    %3244 = vmatmul.f32.gmra.mxu0 %v3034
    %v3245 = vpop.f32.mrf.mxu0
    %v3246 = vadd.f32 0.0, %v3245
    %3247 = vmatmul.f32.gmra.mxu0 %v3037
    %v3248 = vpop.f32.mrf.mxu0
    %v3249 = vadd.f32 0.0, %v3248
    %3250 = vmatmul.f32.gmra.mxu0 %v3040
    %v3251 = vpop.f32.mrf.mxu0
    %v3252 = vadd.f32 0.0, %v3251
    %3253 = vmatmul.f32.gmra.mxu0 %v3043
    %v3254 = vpop.f32.mrf.mxu0
    %v3255 = vadd.f32 0.0, %v3254
    %3256 = vmatmul.f32.gmra.mxu0 %v3046
    %v3257 = vpop.f32.mrf.mxu0
    %v3258 = vadd.f32 0.0, %v3257
    %3259 = vmatmul.f32.gmra.mxu0 %v3049
    %v3260 = vpop.f32.mrf.mxu0
    %v3261 = vadd.f32 0.0, %v3260
    %3262 = vmatmul.f32.gmra.mxu0 %v3052
    %v3263 = vpop.f32.mrf.mxu0
    %v3264 = vadd.f32 0.0, %v3263
    %3265 = vmatmul.f32.gmra.mxu0 %v3055
    %v3266 = vpop.f32.mrf.mxu0
    %v3267 = vadd.f32 0.0, %v3266
    %3268 = vmatmul.f32.gmra.mxu0 %v3058
    %v3269 = vpop.f32.mrf.mxu0
    %v3270 = vadd.f32 0.0, %v3269
    %3271 = vmatmul.f32.gmra.mxu0 %v3061
    %v3272 = vpop.f32.mrf.mxu0
    %v3273 = vadd.f32 0.0, %v3272
    %3274 = vmatmul.f32.gmra.mxu0 %v3064
    %v3275 = vpop.f32.mrf.mxu0
    %v3276 = vadd.f32 0.0, %v3275
    %3277 = vdwg.mxu0
    %v3278 = vadd.f32 %v2744, %v3087
    %v3279 = vadd.f32 %v2745, %v3090
    %v3280 = vadd.f32 %v2746, %v3093
    %v3281 = vadd.f32 %v2747, %v3096
    %v3282 = vadd.f32 %v2748, %v3099
    %v3283 = vadd.f32 %v2749, %v3102
    %v3284 = vadd.f32 %v2750, %v3105
    %v3285 = vadd.f32 %v2751, %v3108
    %v3286 = vadd.f32 %v2752, %v3111
    %v3287 = vadd.f32 %v2753, %v3114
    %v3288 = vadd.f32 %v2754, %v3117
    %v3289 = vadd.f32 %v2755, %v3120
    %v3290 = vadd.f32 %v2756, %v3123
    %v3291 = vadd.f32 %v2757, %v3126
    %v3292 = vadd.f32 %v2758, %v3129
    %v3293 = vadd.f32 %v2759, %v3132
    %v3294 = vadd.f32 %v2760, %v3135
    %v3295 = vadd.f32 %v2761, %v3138
    %v3296 = vadd.f32 %v2762, %v3141
    %v3297 = vadd.f32 %v2763, %v3144
    %v3298 = vadd.f32 %v2764, %v3147
    %v3299 = vadd.f32 %v2765, %v3150
    %v3300 = vadd.f32 %v2766, %v3153
    %v3301 = vadd.f32 %v2767, %v3156
    %v3302 = vadd.f32 %v2768, %v3159
    %v3303 = vadd.f32 %v2769, %v3162
    %v3304 = vadd.f32 %v2770, %v3165
    %v3305 = vadd.f32 %v2771, %v3168
    %v3306 = vadd.f32 %v2772, %v3171
    %v3307 = vadd.f32 %v2773, %v3174
    %v3308 = vadd.f32 %v2774, %v3177
    %v3309 = vadd.f32 %v2775, %v3180
    %v3310 = vadd.f32 %v2776, %v3183
    %v3311 = vadd.f32 %v2777, %v3186
    %v3312 = vadd.f32 %v2778, %v3189
    %v3313 = vadd.f32 %v2779, %v3192
    %v3314 = vadd.f32 %v2780, %v3195
    %v3315 = vadd.f32 %v2781, %v3198
    %v3316 = vadd.f32 %v2782, %v3201
    %v3317 = vadd.f32 %v2783, %v3204
    %v3318 = vadd.f32 %v2784, %v3207
    %v3319 = vadd.f32 %v2785, %v3210
    %v3320 = vadd.f32 %v2786, %v3213
    %v3321 = vadd.f32 %v2787, %v3216
    %v3322 = vadd.f32 %v2788, %v3219
    %v3323 = vadd.f32 %v2789, %v3222
    %v3324 = vadd.f32 %v2790, %v3225
    %v3325 = vadd.f32 %v2791, %v3228
    %v3326 = vadd.f32 %v2792, %v3231
    %v3327 = vadd.f32 %v2793, %v3234
    %v3328 = vadd.f32 %v2794, %v3237
    %v3329 = vadd.f32 %v2795, %v3240
    %v3330 = vadd.f32 %v2796, %v3243
    %v3331 = vadd.f32 %v2797, %v3246
    %v3332 = vadd.f32 %v2798, %v3249
    %v3333 = vadd.f32 %v2799, %v3252
    %v3334 = vadd.f32 %v2800, %v3255
    %v3335 = vadd.f32 %v2801, %v3258
    %v3336 = vadd.f32 %v2802, %v3261
    %v3337 = vadd.f32 %v2803, %v3264
    %v3338 = vadd.f32 %v2804, %v3267
    %v3339 = vadd.f32 %v2805, %v3270
    %v3340 = vadd.f32 %v2806, %v3273
    %v3341 = vadd.f32 %v2807, %v3276
    %s3342 = scalar_lea.vmem [#allocation2], 48
    %v3343 = vld [vmem:[%s3342] sm:$0xff]
    %v3344 = vld [vmem:[%s3342 + $0x8] sm:$0xff]
    %v3345 = vld [vmem:[%s3342 + $0x18] sm:$0xff]
    %v3346 = vld [vmem:[%s3342 + $0x20] sm:$0xff]
    %v3347 = vld [vmem:[%s3342 + $0x30] sm:$0xff]
    %v3348 = vld [vmem:[%s3342 + $0x38] sm:$0xff]
    %v3349 = vld [vmem:[%s3342 + $0x48] sm:$0xff]
    %v3350 = vld [vmem:[%s3342 + $0x50] sm:$0xff]
    %v3351 = vld [vmem:[%s3342 + $0x60] sm:$0xff]
    %v3352 = vld [vmem:[%s3342 + $0x68] sm:$0xff]
    %v3353 = vld [vmem:[%s3342 + $0x78] sm:$0xff]
    %v3354 = vld [vmem:[%s3342 + $0x80] sm:$0xff]
    %v3355 = vld [vmem:[%s3342 + $0x90] sm:$0xff]
    %v3356 = vld [vmem:[%s3342 + $0x98] sm:$0xff]
    %v3357 = vld [vmem:[%s3342 + $0xa8] sm:$0xff]
    %v3358 = vld [vmem:[%s3342 + $0xb0] sm:$0xff]
    %v3359 = vld [vmem:[%s3342 + $0xc0] sm:$0xff]
    %v3360 = vld [vmem:[%s3342 + $0xc8] sm:$0xff]
    %v3361 = vld [vmem:[%s3342 + $0xd8] sm:$0xff]
    %v3362 = vld [vmem:[%s3342 + $0xe0] sm:$0xff]
    %v3363 = vld [vmem:[%s3342 + $0xf0] sm:$0xff]
    %v3364 = vld [vmem:[%s3342 + $0xf8] sm:$0xff]
    %v3365 = vld [vmem:[%s3342 + $0x108] sm:$0xff]
    %v3366 = vld [vmem:[%s3342 + $0x110] sm:$0xff]
    %v3367 = vld [vmem:[%s3342 + $0x120] sm:$0xff]
    %v3368 = vld [vmem:[%s3342 + $0x128] sm:$0xff]
    %v3369 = vld [vmem:[%s3342 + $0x138] sm:$0xff]
    %v3370 = vld [vmem:[%s3342 + $0x140] sm:$0xff]
    %v3371 = vld [vmem:[%s3342 + $0x150] sm:$0xff]
    %v3372 = vld [vmem:[%s3342 + $0x158] sm:$0xff]
    %v3373 = vld [vmem:[%s3342 + $0x168] sm:$0xff]
    %v3374 = vld [vmem:[%s3342 + $0x170] sm:$0xff]
    %v3375 = vld [vmem:[%s3342 + $0x1b0] sm:$0xff]
    %v3376 = vld [vmem:[%s3342 + $0x1b8] sm:$0xff]
    %v3377 = vld [vmem:[%s3342 + $0x1c8] sm:$0xff]
    %v3378 = vld [vmem:[%s3342 + $0x1d0] sm:$0xff]
    %v3379 = vld [vmem:[%s3342 + $0x1e0] sm:$0xff]
    %v3380 = vld [vmem:[%s3342 + $0x1e8] sm:$0xff]
    %v3381 = vld [vmem:[%s3342 + $0x1f8] sm:$0xff]
    %v3382 = vld [vmem:[%s3342 + $0x200] sm:$0xff]
    %v3383 = vld [vmem:[%s3342 + $0x210] sm:$0xff]
    %v3384 = vld [vmem:[%s3342 + $0x218] sm:$0xff]
    %v3385 = vld [vmem:[%s3342 + $0x228] sm:$0xff]
    %v3386 = vld [vmem:[%s3342 + $0x230] sm:$0xff]
    %v3387 = vld [vmem:[%s3342 + $0x240] sm:$0xff]
    %v3388 = vld [vmem:[%s3342 + $0x248] sm:$0xff]
    %v3389 = vld [vmem:[%s3342 + $0x258] sm:$0xff]
    %v3390 = vld [vmem:[%s3342 + $0x260] sm:$0xff]
    %v3391 = vld [vmem:[%s3342 + $0x270] sm:$0xff]
    %v3392 = vld [vmem:[%s3342 + $0x278] sm:$0xff]
    %v3393 = vld [vmem:[%s3342 + $0x288] sm:$0xff]
    %v3394 = vld [vmem:[%s3342 + $0x290] sm:$0xff]
    %v3395 = vld [vmem:[%s3342 + $0x2a0] sm:$0xff]
    %v3396 = vld [vmem:[%s3342 + $0x2a8] sm:$0xff]
    %v3397 = vld [vmem:[%s3342 + $0x2b8] sm:$0xff]
    %v3398 = vld [vmem:[%s3342 + $0x2c0] sm:$0xff]
    %v3399 = vld [vmem:[%s3342 + $0x2d0] sm:$0xff]
    %v3400 = vld [vmem:[%s3342 + $0x2d8] sm:$0xff]
    %v3401 = vld [vmem:[%s3342 + $0x2e8] sm:$0xff]
    %v3402 = vld [vmem:[%s3342 + $0x2f0] sm:$0xff]
    %v3403 = vld [vmem:[%s3342 + $0x300] sm:$0xff]
    %v3404 = vld [vmem:[%s3342 + $0x308] sm:$0xff]
    %v3405 = vld [vmem:[%s3342 + $0x318] sm:$0xff]
    %v3406 = vld [vmem:[%s3342 + $0x320] sm:$0xff]
    %s3407 = scalar_lea.vmem %s1, 24
    %v3408 = vld [vmem:[%s3407] sm:$0xf]
    %v3410 = vsel %vm27, %v3343, 0
    %v3413 = vsel %vm27, %v3344, 0
    %v3416 = vsel %vm27, %v3345, 0
    %v3419 = vsel %vm27, %v3346, 0
    %v3422 = vsel %vm27, %v3347, 0
    %v3425 = vsel %vm27, %v3348, 0
    %v3428 = vsel %vm27, %v3349, 0
    %v3431 = vsel %vm27, %v3350, 0
    %v3434 = vsel %vm27, %v3351, 0
    %v3437 = vsel %vm27, %v3352, 0
    %v3440 = vsel %vm27, %v3353, 0
    %v3443 = vsel %vm27, %v3354, 0
    %v3446 = vsel %vm27, %v3355, 0
    %v3449 = vsel %vm27, %v3356, 0
    %v3452 = vsel %vm27, %v3357, 0
    %v3455 = vsel %vm27, %v3358, 0
    %v3458 = vsel %vm27, %v3359, 0
    %v3461 = vsel %vm27, %v3360, 0
    %v3464 = vsel %vm27, %v3361, 0
    %v3467 = vsel %vm27, %v3362, 0
    %v3470 = vsel %vm27, %v3363, 0
    %v3473 = vsel %vm27, %v3364, 0
    %v3476 = vsel %vm27, %v3365, 0
    %v3479 = vsel %vm27, %v3366, 0
    %v3482 = vsel %vm27, %v3367, 0
    %v3485 = vsel %vm27, %v3368, 0
    %v3488 = vsel %vm27, %v3369, 0
    %v3491 = vsel %vm27, %v3370, 0
    %v3494 = vsel %vm27, %v3371, 0
    %v3497 = vsel %vm27, %v3372, 0
    %v3500 = vsel %vm27, %v3373, 0
    %v3503 = vsel %vm27, %v3374, 0
    %v3506 = vsel %vm27, %v3375, 0
    %v3509 = vsel %vm27, %v3376, 0
    %v3512 = vsel %vm27, %v3377, 0
    %v3515 = vsel %vm27, %v3378, 0
    %v3518 = vsel %vm27, %v3379, 0
    %v3521 = vsel %vm27, %v3380, 0
    %v3524 = vsel %vm27, %v3381, 0
    %v3527 = vsel %vm27, %v3382, 0
    %v3530 = vsel %vm27, %v3383, 0
    %v3533 = vsel %vm27, %v3384, 0
    %v3536 = vsel %vm27, %v3385, 0
    %v3539 = vsel %vm27, %v3386, 0
    %v3542 = vsel %vm27, %v3387, 0
    %v3545 = vsel %vm27, %v3388, 0
    %v3548 = vsel %vm27, %v3389, 0
    %v3551 = vsel %vm27, %v3390, 0
    %v3554 = vsel %vm27, %v3391, 0
    %v3557 = vsel %vm27, %v3392, 0
    %v3560 = vsel %vm27, %v3393, 0
    %v3563 = vsel %vm27, %v3394, 0
    %v3566 = vsel %vm27, %v3395, 0
    %v3569 = vsel %vm27, %v3396, 0
    %v3572 = vsel %vm27, %v3397, 0
    %v3575 = vsel %vm27, %v3398, 0
    %v3578 = vsel %vm27, %v3399, 0
    %v3581 = vsel %vm27, %v3400, 0
    %v3584 = vsel %vm27, %v3401, 0
    %v3587 = vsel %vm27, %v3402, 0
    %v3590 = vsel %vm27, %v3403, 0
    %v3593 = vsel %vm27, %v3404, 0
    %v3596 = vsel %vm27, %v3405, 0
    %v3599 = vsel %vm27, %v3406, 0
    %v3602 = vsel %vm589, %v3408, 0
    %3604 = vmatpush.msra.mxu0 0.0
    %3605 = vmatpush.msra.mxu0 0.0
    %3606 = vmatpush.msra.mxu0 0.0
    %3607 = vmatpush.msra.mxu0 0.0
    %3608 = vmatpush.msra.mxu0 0.0
    %3609 = vmatpush.msra.mxu0 0.0
    %3610 = vmatpush.msra.mxu0 0.0
    %3611 = vmatpush.msra.mxu0 0.0
    %3612 = vmatpush.msra.mxu0 0.0
    %3613 = vmatpush.msra.mxu0 0.0
    %3614 = vmatpush.msra.mxu0 0.0
    %3615 = vmatpush.msra.mxu0 0.0
    %3616 = vmatpush.msra.mxu0 0.0
    %3617 = vmatpush.msra.mxu0 0.0
    %3618 = vmatpush.msra.mxu0 0.0
    %3619 = vmatpush.msra.mxu0 %v3602
    %3620 = vmatmul.f32.gmra.mxu0 %v3410
    %v3621 = vpop.f32.mrf.mxu0
    %v3622 = vadd.f32 0.0, %v3621
    %3623 = vmatmul.f32.gmra.mxu0 %v3413
    %v3624 = vpop.f32.mrf.mxu0
    %v3625 = vadd.f32 0.0, %v3624
    %3626 = vmatmul.f32.gmra.mxu0 %v3416
    %v3627 = vpop.f32.mrf.mxu0
    %v3628 = vadd.f32 0.0, %v3627
    %3629 = vmatmul.f32.gmra.mxu0 %v3419
    %v3630 = vpop.f32.mrf.mxu0
    %v3631 = vadd.f32 0.0, %v3630
    %3632 = vmatmul.f32.gmra.mxu0 %v3422
    %v3633 = vpop.f32.mrf.mxu0
    %v3634 = vadd.f32 0.0, %v3633
    %3635 = vmatmul.f32.gmra.mxu0 %v3425
    %v3636 = vpop.f32.mrf.mxu0
    %v3637 = vadd.f32 0.0, %v3636
    %3638 = vmatmul.f32.gmra.mxu0 %v3428
    %v3639 = vpop.f32.mrf.mxu0
    %v3640 = vadd.f32 0.0, %v3639
    %3641 = vmatmul.f32.gmra.mxu0 %v3431
    %v3642 = vpop.f32.mrf.mxu0
    %v3643 = vadd.f32 0.0, %v3642
    %3644 = vmatmul.f32.gmra.mxu0 %v3434
    %v3645 = vpop.f32.mrf.mxu0
    %v3646 = vadd.f32 0.0, %v3645
    %3647 = vmatmul.f32.gmra.mxu0 %v3437
    %v3648 = vpop.f32.mrf.mxu0
    %v3649 = vadd.f32 0.0, %v3648
    %3650 = vmatmul.f32.gmra.mxu0 %v3440
    %v3651 = vpop.f32.mrf.mxu0
    %v3652 = vadd.f32 0.0, %v3651
    %3653 = vmatmul.f32.gmra.mxu0 %v3443
    %v3654 = vpop.f32.mrf.mxu0
    %v3655 = vadd.f32 0.0, %v3654
    %3656 = vmatmul.f32.gmra.mxu0 %v3446
    %v3657 = vpop.f32.mrf.mxu0
    %v3658 = vadd.f32 0.0, %v3657
    %3659 = vmatmul.f32.gmra.mxu0 %v3449
    %v3660 = vpop.f32.mrf.mxu0
    %v3661 = vadd.f32 0.0, %v3660
    %3662 = vmatmul.f32.gmra.mxu0 %v3452
    %v3663 = vpop.f32.mrf.mxu0
    %v3664 = vadd.f32 0.0, %v3663
    %3665 = vmatmul.f32.gmra.mxu0 %v3455
    %v3666 = vpop.f32.mrf.mxu0
    %v3667 = vadd.f32 0.0, %v3666
    %3668 = vmatmul.f32.gmra.mxu0 %v3458
    %v3669 = vpop.f32.mrf.mxu0
    %v3670 = vadd.f32 0.0, %v3669
    %3671 = vmatmul.f32.gmra.mxu0 %v3461
    %v3672 = vpop.f32.mrf.mxu0
    %v3673 = vadd.f32 0.0, %v3672
    %3674 = vmatmul.f32.gmra.mxu0 %v3464
    %v3675 = vpop.f32.mrf.mxu0
    %v3676 = vadd.f32 0.0, %v3675
    %3677 = vmatmul.f32.gmra.mxu0 %v3467
    %v3678 = vpop.f32.mrf.mxu0
    %v3679 = vadd.f32 0.0, %v3678
    %3680 = vmatmul.f32.gmra.mxu0 %v3470
    %v3681 = vpop.f32.mrf.mxu0
    %v3682 = vadd.f32 0.0, %v3681
    %3683 = vmatmul.f32.gmra.mxu0 %v3473
    %v3684 = vpop.f32.mrf.mxu0
    %v3685 = vadd.f32 0.0, %v3684
    %3686 = vmatmul.f32.gmra.mxu0 %v3476
    %v3687 = vpop.f32.mrf.mxu0
    %v3688 = vadd.f32 0.0, %v3687
    %3689 = vmatmul.f32.gmra.mxu0 %v3479
    %v3690 = vpop.f32.mrf.mxu0
    %v3691 = vadd.f32 0.0, %v3690
    %3692 = vmatmul.f32.gmra.mxu0 %v3482
    %v3693 = vpop.f32.mrf.mxu0
    %v3694 = vadd.f32 0.0, %v3693
    %3695 = vmatmul.f32.gmra.mxu0 %v3485
    %v3696 = vpop.f32.mrf.mxu0
    %v3697 = vadd.f32 0.0, %v3696
    %3698 = vmatmul.f32.gmra.mxu0 %v3488
    %v3699 = vpop.f32.mrf.mxu0
    %v3700 = vadd.f32 0.0, %v3699
    %3701 = vmatmul.f32.gmra.mxu0 %v3491
    %v3702 = vpop.f32.mrf.mxu0
    %v3703 = vadd.f32 0.0, %v3702
    %3704 = vmatmul.f32.gmra.mxu0 %v3494
    %v3705 = vpop.f32.mrf.mxu0
    %v3706 = vadd.f32 0.0, %v3705
    %3707 = vmatmul.f32.gmra.mxu0 %v3497
    %v3708 = vpop.f32.mrf.mxu0
    %v3709 = vadd.f32 0.0, %v3708
    %3710 = vmatmul.f32.gmra.mxu0 %v3500
    %v3711 = vpop.f32.mrf.mxu0
    %v3712 = vadd.f32 0.0, %v3711
    %3713 = vmatmul.f32.gmra.mxu0 %v3503
    %v3714 = vpop.f32.mrf.mxu0
    %v3715 = vadd.f32 0.0, %v3714
    %3716 = vmatmul.f32.gmra.mxu0 %v3506
    %v3717 = vpop.f32.mrf.mxu0
    %v3718 = vadd.f32 0.0, %v3717
    %3719 = vmatmul.f32.gmra.mxu0 %v3509
    %v3720 = vpop.f32.mrf.mxu0
    %v3721 = vadd.f32 0.0, %v3720
    %3722 = vmatmul.f32.gmra.mxu0 %v3512
    %v3723 = vpop.f32.mrf.mxu0
    %v3724 = vadd.f32 0.0, %v3723
    %3725 = vmatmul.f32.gmra.mxu0 %v3515
    %v3726 = vpop.f32.mrf.mxu0
    %v3727 = vadd.f32 0.0, %v3726
    %3728 = vmatmul.f32.gmra.mxu0 %v3518
    %v3729 = vpop.f32.mrf.mxu0
    %v3730 = vadd.f32 0.0, %v3729
    %3731 = vmatmul.f32.gmra.mxu0 %v3521
    %v3732 = vpop.f32.mrf.mxu0
    %v3733 = vadd.f32 0.0, %v3732
    %3734 = vmatmul.f32.gmra.mxu0 %v3524
    %v3735 = vpop.f32.mrf.mxu0
    %v3736 = vadd.f32 0.0, %v3735
    %3737 = vmatmul.f32.gmra.mxu0 %v3527
    %v3738 = vpop.f32.mrf.mxu0
    %v3739 = vadd.f32 0.0, %v3738
    %3740 = vmatmul.f32.gmra.mxu0 %v3530
    %v3741 = vpop.f32.mrf.mxu0
    %v3742 = vadd.f32 0.0, %v3741
    %3743 = vmatmul.f32.gmra.mxu0 %v3533
    %v3744 = vpop.f32.mrf.mxu0
    %v3745 = vadd.f32 0.0, %v3744
    %3746 = vmatmul.f32.gmra.mxu0 %v3536
    %v3747 = vpop.f32.mrf.mxu0
    %v3748 = vadd.f32 0.0, %v3747
    %3749 = vmatmul.f32.gmra.mxu0 %v3539
    %v3750 = vpop.f32.mrf.mxu0
    %v3751 = vadd.f32 0.0, %v3750
    %3752 = vmatmul.f32.gmra.mxu0 %v3542
    %v3753 = vpop.f32.mrf.mxu0
    %v3754 = vadd.f32 0.0, %v3753
    %3755 = vmatmul.f32.gmra.mxu0 %v3545
    %v3756 = vpop.f32.mrf.mxu0
    %v3757 = vadd.f32 0.0, %v3756
    %3758 = vmatmul.f32.gmra.mxu0 %v3548
    %v3759 = vpop.f32.mrf.mxu0
    %v3760 = vadd.f32 0.0, %v3759
    %3761 = vmatmul.f32.gmra.mxu0 %v3551
    %v3762 = vpop.f32.mrf.mxu0
    %v3763 = vadd.f32 0.0, %v3762
    %3764 = vmatmul.f32.gmra.mxu0 %v3554
    %v3765 = vpop.f32.mrf.mxu0
    %v3766 = vadd.f32 0.0, %v3765
    %3767 = vmatmul.f32.gmra.mxu0 %v3557
    %v3768 = vpop.f32.mrf.mxu0
    %v3769 = vadd.f32 0.0, %v3768
    %3770 = vmatmul.f32.gmra.mxu0 %v3560
    %v3771 = vpop.f32.mrf.mxu0
    %v3772 = vadd.f32 0.0, %v3771
    %3773 = vmatmul.f32.gmra.mxu0 %v3563
    %v3774 = vpop.f32.mrf.mxu0
    %v3775 = vadd.f32 0.0, %v3774
    %3776 = vmatmul.f32.gmra.mxu0 %v3566
    %v3777 = vpop.f32.mrf.mxu0
    %v3778 = vadd.f32 0.0, %v3777
    %3779 = vmatmul.f32.gmra.mxu0 %v3569
    %v3780 = vpop.f32.mrf.mxu0
    %v3781 = vadd.f32 0.0, %v3780
    %3782 = vmatmul.f32.gmra.mxu0 %v3572
    %v3783 = vpop.f32.mrf.mxu0
    %v3784 = vadd.f32 0.0, %v3783
    %3785 = vmatmul.f32.gmra.mxu0 %v3575
    %v3786 = vpop.f32.mrf.mxu0
    %v3787 = vadd.f32 0.0, %v3786
    %3788 = vmatmul.f32.gmra.mxu0 %v3578
    %v3789 = vpop.f32.mrf.mxu0
    %v3790 = vadd.f32 0.0, %v3789
    %3791 = vmatmul.f32.gmra.mxu0 %v3581
    %v3792 = vpop.f32.mrf.mxu0
    %v3793 = vadd.f32 0.0, %v3792
    %3794 = vmatmul.f32.gmra.mxu0 %v3584
    %v3795 = vpop.f32.mrf.mxu0
    %v3796 = vadd.f32 0.0, %v3795
    %3797 = vmatmul.f32.gmra.mxu0 %v3587
    %v3798 = vpop.f32.mrf.mxu0
    %v3799 = vadd.f32 0.0, %v3798
    %3800 = vmatmul.f32.gmra.mxu0 %v3590
    %v3801 = vpop.f32.mrf.mxu0
    %v3802 = vadd.f32 0.0, %v3801
    %3803 = vmatmul.f32.gmra.mxu0 %v3593
    %v3804 = vpop.f32.mrf.mxu0
    %v3805 = vadd.f32 0.0, %v3804
    %3806 = vmatmul.f32.gmra.mxu0 %v3596
    %v3807 = vpop.f32.mrf.mxu0
    %v3808 = vadd.f32 0.0, %v3807
    %3809 = vmatmul.f32.gmra.mxu0 %v3599
    %v3810 = vpop.f32.mrf.mxu0
    %v3811 = vadd.f32 0.0, %v3810
    %3812 = vdwg.mxu0
    %v3813 = vadd.f32 %v3278, %v3622
    %v3814 = vadd.f32 %v3279, %v3625
    %v3815 = vadd.f32 %v3280, %v3628
    %v3816 = vadd.f32 %v3281, %v3631
    %v3817 = vadd.f32 %v3282, %v3634
    %v3818 = vadd.f32 %v3283, %v3637
    %v3819 = vadd.f32 %v3284, %v3640
    %v3820 = vadd.f32 %v3285, %v3643
    %v3821 = vadd.f32 %v3286, %v3646
    %v3822 = vadd.f32 %v3287, %v3649
    %v3823 = vadd.f32 %v3288, %v3652
    %v3824 = vadd.f32 %v3289, %v3655
    %v3825 = vadd.f32 %v3290, %v3658
    %v3826 = vadd.f32 %v3291, %v3661
    %v3827 = vadd.f32 %v3292, %v3664
    %v3828 = vadd.f32 %v3293, %v3667
    %v3829 = vadd.f32 %v3294, %v3670
    %v3830 = vadd.f32 %v3295, %v3673
    %v3831 = vadd.f32 %v3296, %v3676
    %v3832 = vadd.f32 %v3297, %v3679
    %v3833 = vadd.f32 %v3298, %v3682
    %v3834 = vadd.f32 %v3299, %v3685
    %v3835 = vadd.f32 %v3300, %v3688
    %v3836 = vadd.f32 %v3301, %v3691
    %v3837 = vadd.f32 %v3302, %v3694
    %v3838 = vadd.f32 %v3303, %v3697
    %v3839 = vadd.f32 %v3304, %v3700
    %v3840 = vadd.f32 %v3305, %v3703
    %v3841 = vadd.f32 %v3306, %v3706
    %v3842 = vadd.f32 %v3307, %v3709
    %v3843 = vadd.f32 %v3308, %v3712
    %v3844 = vadd.f32 %v3309, %v3715
    %v3845 = vadd.f32 %v3310, %v3718
    %v3846 = vadd.f32 %v3311, %v3721
    %v3847 = vadd.f32 %v3312, %v3724
    %v3848 = vadd.f32 %v3313, %v3727
    %v3849 = vadd.f32 %v3314, %v3730
    %v3850 = vadd.f32 %v3315, %v3733
    %v3851 = vadd.f32 %v3316, %v3736
    %v3852 = vadd.f32 %v3317, %v3739
    %v3853 = vadd.f32 %v3318, %v3742
    %v3854 = vadd.f32 %v3319, %v3745
    %v3855 = vadd.f32 %v3320, %v3748
    %v3856 = vadd.f32 %v3321, %v3751
    %v3857 = vadd.f32 %v3322, %v3754
    %v3858 = vadd.f32 %v3323, %v3757
    %v3859 = vadd.f32 %v3324, %v3760
    %v3860 = vadd.f32 %v3325, %v3763
    %v3861 = vadd.f32 %v3326, %v3766
    %v3862 = vadd.f32 %v3327, %v3769
    %v3863 = vadd.f32 %v3328, %v3772
    %v3864 = vadd.f32 %v3329, %v3775
    %v3865 = vadd.f32 %v3330, %v3778
    %v3866 = vadd.f32 %v3331, %v3781
    %v3867 = vadd.f32 %v3332, %v3784
    %v3868 = vadd.f32 %v3333, %v3787
    %v3869 = vadd.f32 %v3334, %v3790
    %v3870 = vadd.f32 %v3335, %v3793
    %v3871 = vadd.f32 %v3336, %v3796
    %v3872 = vadd.f32 %v3337, %v3799
    %v3873 = vadd.f32 %v3338, %v3802
    %v3874 = vadd.f32 %v3339, %v3805
    %v3875 = vadd.f32 %v3340, %v3808
    %v3876 = vadd.f32 %v3341, %v3811
    %v3877 = vld [vmem:[%s3342 + $0x1] sm:$0xff]
    %v3878 = vld [vmem:[%s3342 + $0x9] sm:$0xff]
    %v3879 = vld [vmem:[%s3342 + $0x19] sm:$0xff]
    %v3880 = vld [vmem:[%s3342 + $0x21] sm:$0xff]
    %v3881 = vld [vmem:[%s3342 + $0x31] sm:$0xff]
    %v3882 = vld [vmem:[%s3342 + $0x39] sm:$0xff]
    %v3883 = vld [vmem:[%s3342 + $0x49] sm:$0xff]
    %v3884 = vld [vmem:[%s3342 + $0x51] sm:$0xff]
    %v3885 = vld [vmem:[%s3342 + $0x61] sm:$0xff]
    %v3886 = vld [vmem:[%s3342 + $0x69] sm:$0xff]
    %v3887 = vld [vmem:[%s3342 + $0x79] sm:$0xff]
    %v3888 = vld [vmem:[%s3342 + $0x81] sm:$0xff]
    %v3889 = vld [vmem:[%s3342 + $0x91] sm:$0xff]
    %v3890 = vld [vmem:[%s3342 + $0x99] sm:$0xff]
    %v3891 = vld [vmem:[%s3342 + $0xa9] sm:$0xff]
    %v3892 = vld [vmem:[%s3342 + $0xb1] sm:$0xff]
    %v3893 = vld [vmem:[%s3342 + $0xc1] sm:$0xff]
    %v3894 = vld [vmem:[%s3342 + $0xc9] sm:$0xff]
    %v3895 = vld [vmem:[%s3342 + $0xd9] sm:$0xff]
    %v3896 = vld [vmem:[%s3342 + $0xe1] sm:$0xff]
    %v3897 = vld [vmem:[%s3342 + $0xf1] sm:$0xff]
    %v3898 = vld [vmem:[%s3342 + $0xf9] sm:$0xff]
    %v3899 = vld [vmem:[%s3342 + $0x109] sm:$0xff]
    %v3900 = vld [vmem:[%s3342 + $0x111] sm:$0xff]
    %v3901 = vld [vmem:[%s3342 + $0x121] sm:$0xff]
    %v3902 = vld [vmem:[%s3342 + $0x129] sm:$0xff]
    %v3903 = vld [vmem:[%s3342 + $0x139] sm:$0xff]
    %v3904 = vld [vmem:[%s3342 + $0x141] sm:$0xff]
    %v3905 = vld [vmem:[%s3342 + $0x151] sm:$0xff]
    %v3906 = vld [vmem:[%s3342 + $0x159] sm:$0xff]
    %v3907 = vld [vmem:[%s3342 + $0x169] sm:$0xff]
    %v3908 = vld [vmem:[%s3342 + $0x171] sm:$0xff]
    %v3909 = vld [vmem:[%s3342 + $0x1b1] sm:$0xff]
    %v3910 = vld [vmem:[%s3342 + $0x1b9] sm:$0xff]
    %v3911 = vld [vmem:[%s3342 + $0x1c9] sm:$0xff]
    %v3912 = vld [vmem:[%s3342 + $0x1d1] sm:$0xff]
    %v3913 = vld [vmem:[%s3342 + $0x1e1] sm:$0xff]
    %v3914 = vld [vmem:[%s3342 + $0x1e9] sm:$0xff]
    %v3915 = vld [vmem:[%s3342 + $0x1f9] sm:$0xff]
    %v3916 = vld [vmem:[%s3342 + $0x201] sm:$0xff]
    %v3917 = vld [vmem:[%s3342 + $0x211] sm:$0xff]
    %v3918 = vld [vmem:[%s3342 + $0x219] sm:$0xff]
    %v3919 = vld [vmem:[%s3342 + $0x229] sm:$0xff]
    %v3920 = vld [vmem:[%s3342 + $0x231] sm:$0xff]
    %v3921 = vld [vmem:[%s3342 + $0x241] sm:$0xff]
    %v3922 = vld [vmem:[%s3342 + $0x249] sm:$0xff]
    %v3923 = vld [vmem:[%s3342 + $0x259] sm:$0xff]
    %v3924 = vld [vmem:[%s3342 + $0x261] sm:$0xff]
    %v3925 = vld [vmem:[%s3342 + $0x271] sm:$0xff]
    %v3926 = vld [vmem:[%s3342 + $0x279] sm:$0xff]
    %v3927 = vld [vmem:[%s3342 + $0x289] sm:$0xff]
    %v3928 = vld [vmem:[%s3342 + $0x291] sm:$0xff]
    %v3929 = vld [vmem:[%s3342 + $0x2a1] sm:$0xff]
    %v3930 = vld [vmem:[%s3342 + $0x2a9] sm:$0xff]
    %v3931 = vld [vmem:[%s3342 + $0x2b9] sm:$0xff]
    %v3932 = vld [vmem:[%s3342 + $0x2c1] sm:$0xff]
    %v3933 = vld [vmem:[%s3342 + $0x2d1] sm:$0xff]
    %v3934 = vld [vmem:[%s3342 + $0x2d9] sm:$0xff]
    %v3935 = vld [vmem:[%s3342 + $0x2e9] sm:$0xff]
    %v3936 = vld [vmem:[%s3342 + $0x2f1] sm:$0xff]
    %v3937 = vld [vmem:[%s3342 + $0x301] sm:$0xff]
    %v3938 = vld [vmem:[%s3342 + $0x309] sm:$0xff]
    %v3939 = vld [vmem:[%s3342 + $0x319] sm:$0xff]
    %v3940 = vld [vmem:[%s3342 + $0x321] sm:$0xff]
    %s3941 = scalar_lea.vmem %s1, 28
    %v3942 = vld [vmem:[%s3941] sm:$0xf]
    %v3944 = vsel %vm27, %v3877, 0
    %v3947 = vsel %vm27, %v3878, 0
    %v3950 = vsel %vm27, %v3879, 0
    %v3953 = vsel %vm27, %v3880, 0
    %v3956 = vsel %vm27, %v3881, 0
    %v3959 = vsel %vm27, %v3882, 0
    %v3962 = vsel %vm27, %v3883, 0
    %v3965 = vsel %vm27, %v3884, 0
    %v3968 = vsel %vm27, %v3885, 0
    %v3971 = vsel %vm27, %v3886, 0
    %v3974 = vsel %vm27, %v3887, 0
    %v3977 = vsel %vm27, %v3888, 0
    %v3980 = vsel %vm27, %v3889, 0
    %v3983 = vsel %vm27, %v3890, 0
    %v3986 = vsel %vm27, %v3891, 0
    %v3989 = vsel %vm27, %v3892, 0
    %v3992 = vsel %vm27, %v3893, 0
    %v3995 = vsel %vm27, %v3894, 0
    %v3998 = vsel %vm27, %v3895, 0
    %v4001 = vsel %vm27, %v3896, 0
    %v4004 = vsel %vm27, %v3897, 0
    %v4007 = vsel %vm27, %v3898, 0
    %v4010 = vsel %vm27, %v3899, 0
    %v4013 = vsel %vm27, %v3900, 0
    %v4016 = vsel %vm27, %v3901, 0
    %v4019 = vsel %vm27, %v3902, 0
    %v4022 = vsel %vm27, %v3903, 0
    %v4025 = vsel %vm27, %v3904, 0
    %v4028 = vsel %vm27, %v3905, 0
    %v4031 = vsel %vm27, %v3906, 0
    %v4034 = vsel %vm27, %v3907, 0
    %v4037 = vsel %vm27, %v3908, 0
    %v4040 = vsel %vm27, %v3909, 0
    %v4043 = vsel %vm27, %v3910, 0
    %v4046 = vsel %vm27, %v3911, 0
    %v4049 = vsel %vm27, %v3912, 0
    %v4052 = vsel %vm27, %v3913, 0
    %v4055 = vsel %vm27, %v3914, 0
    %v4058 = vsel %vm27, %v3915, 0
    %v4061 = vsel %vm27, %v3916, 0
    %v4064 = vsel %vm27, %v3917, 0
    %v4067 = vsel %vm27, %v3918, 0
    %v4070 = vsel %vm27, %v3919, 0
    %v4073 = vsel %vm27, %v3920, 0
    %v4076 = vsel %vm27, %v3921, 0
    %v4079 = vsel %vm27, %v3922, 0
    %v4082 = vsel %vm27, %v3923, 0
    %v4085 = vsel %vm27, %v3924, 0
    %v4088 = vsel %vm27, %v3925, 0
    %v4091 = vsel %vm27, %v3926, 0
    %v4094 = vsel %vm27, %v3927, 0
    %v4097 = vsel %vm27, %v3928, 0
    %v4100 = vsel %vm27, %v3929, 0
    %v4103 = vsel %vm27, %v3930, 0
    %v4106 = vsel %vm27, %v3931, 0
    %v4109 = vsel %vm27, %v3932, 0
    %v4112 = vsel %vm27, %v3933, 0
    %v4115 = vsel %vm27, %v3934, 0
    %v4118 = vsel %vm27, %v3935, 0
    %v4121 = vsel %vm27, %v3936, 0
    %v4124 = vsel %vm27, %v3937, 0
    %v4127 = vsel %vm27, %v3938, 0
    %v4130 = vsel %vm27, %v3939, 0
    %v4133 = vsel %vm27, %v3940, 0
    %v4136 = vsel %vm589, %v3942, 0
    %4138 = vmatpush.msra.mxu0 0.0
    %4139 = vmatpush.msra.mxu0 0.0
    %4140 = vmatpush.msra.mxu0 0.0
    %4141 = vmatpush.msra.mxu0 0.0
    %4142 = vmatpush.msra.mxu0 0.0
    %4143 = vmatpush.msra.mxu0 0.0
    %4144 = vmatpush.msra.mxu0 0.0
    %4145 = vmatpush.msra.mxu0 0.0
    %4146 = vmatpush.msra.mxu0 0.0
    %4147 = vmatpush.msra.mxu0 0.0
    %4148 = vmatpush.msra.mxu0 0.0
    %4149 = vmatpush.msra.mxu0 0.0
    %4150 = vmatpush.msra.mxu0 0.0
    %4151 = vmatpush.msra.mxu0 0.0
    %4152 = vmatpush.msra.mxu0 0.0
    %4153 = vmatpush.msra.mxu0 %v4136
    %4154 = vmatmul.f32.gmra.mxu0 %v3944
    %v4155 = vpop.f32.mrf.mxu0
    %v4156 = vadd.f32 0.0, %v4155
    %4157 = vmatmul.f32.gmra.mxu0 %v3947
    %v4158 = vpop.f32.mrf.mxu0
    %v4159 = vadd.f32 0.0, %v4158
    %4160 = vmatmul.f32.gmra.mxu0 %v3950
    %v4161 = vpop.f32.mrf.mxu0
    %v4162 = vadd.f32 0.0, %v4161
    %4163 = vmatmul.f32.gmra.mxu0 %v3953
    %v4164 = vpop.f32.mrf.mxu0
    %v4165 = vadd.f32 0.0, %v4164
    %4166 = vmatmul.f32.gmra.mxu0 %v3956
    %v4167 = vpop.f32.mrf.mxu0
    %v4168 = vadd.f32 0.0, %v4167
    %4169 = vmatmul.f32.gmra.mxu0 %v3959
    %v4170 = vpop.f32.mrf.mxu0
    %v4171 = vadd.f32 0.0, %v4170
    %4172 = vmatmul.f32.gmra.mxu0 %v3962
    %v4173 = vpop.f32.mrf.mxu0
    %v4174 = vadd.f32 0.0, %v4173
    %4175 = vmatmul.f32.gmra.mxu0 %v3965
    %v4176 = vpop.f32.mrf.mxu0
    %v4177 = vadd.f32 0.0, %v4176
    %4178 = vmatmul.f32.gmra.mxu0 %v3968
    %v4179 = vpop.f32.mrf.mxu0
    %v4180 = vadd.f32 0.0, %v4179
    %4181 = vmatmul.f32.gmra.mxu0 %v3971
    %v4182 = vpop.f32.mrf.mxu0
    %v4183 = vadd.f32 0.0, %v4182
    %4184 = vmatmul.f32.gmra.mxu0 %v3974
    %v4185 = vpop.f32.mrf.mxu0
    %v4186 = vadd.f32 0.0, %v4185
    %4187 = vmatmul.f32.gmra.mxu0 %v3977
    %v4188 = vpop.f32.mrf.mxu0
    %v4189 = vadd.f32 0.0, %v4188
    %4190 = vmatmul.f32.gmra.mxu0 %v3980
    %v4191 = vpop.f32.mrf.mxu0
    %v4192 = vadd.f32 0.0, %v4191
    %4193 = vmatmul.f32.gmra.mxu0 %v3983
    %v4194 = vpop.f32.mrf.mxu0
    %v4195 = vadd.f32 0.0, %v4194
    %4196 = vmatmul.f32.gmra.mxu0 %v3986
    %v4197 = vpop.f32.mrf.mxu0
    %v4198 = vadd.f32 0.0, %v4197
    %4199 = vmatmul.f32.gmra.mxu0 %v3989
    %v4200 = vpop.f32.mrf.mxu0
    %v4201 = vadd.f32 0.0, %v4200
    %4202 = vmatmul.f32.gmra.mxu0 %v3992
    %v4203 = vpop.f32.mrf.mxu0
    %v4204 = vadd.f32 0.0, %v4203
    %4205 = vmatmul.f32.gmra.mxu0 %v3995
    %v4206 = vpop.f32.mrf.mxu0
    %v4207 = vadd.f32 0.0, %v4206
    %4208 = vmatmul.f32.gmra.mxu0 %v3998
    %v4209 = vpop.f32.mrf.mxu0
    %v4210 = vadd.f32 0.0, %v4209
    %4211 = vmatmul.f32.gmra.mxu0 %v4001
    %v4212 = vpop.f32.mrf.mxu0
    %v4213 = vadd.f32 0.0, %v4212
    %4214 = vmatmul.f32.gmra.mxu0 %v4004
    %v4215 = vpop.f32.mrf.mxu0
    %v4216 = vadd.f32 0.0, %v4215
    %4217 = vmatmul.f32.gmra.mxu0 %v4007
    %v4218 = vpop.f32.mrf.mxu0
    %v4219 = vadd.f32 0.0, %v4218
    %4220 = vmatmul.f32.gmra.mxu0 %v4010
    %v4221 = vpop.f32.mrf.mxu0
    %v4222 = vadd.f32 0.0, %v4221
    %4223 = vmatmul.f32.gmra.mxu0 %v4013
    %v4224 = vpop.f32.mrf.mxu0
    %v4225 = vadd.f32 0.0, %v4224
    %4226 = vmatmul.f32.gmra.mxu0 %v4016
    %v4227 = vpop.f32.mrf.mxu0
    %v4228 = vadd.f32 0.0, %v4227
    %4229 = vmatmul.f32.gmra.mxu0 %v4019
    %v4230 = vpop.f32.mrf.mxu0
    %v4231 = vadd.f32 0.0, %v4230
    %4232 = vmatmul.f32.gmra.mxu0 %v4022
    %v4233 = vpop.f32.mrf.mxu0
    %v4234 = vadd.f32 0.0, %v4233
    %4235 = vmatmul.f32.gmra.mxu0 %v4025
    %v4236 = vpop.f32.mrf.mxu0
    %v4237 = vadd.f32 0.0, %v4236
    %4238 = vmatmul.f32.gmra.mxu0 %v4028
    %v4239 = vpop.f32.mrf.mxu0
    %v4240 = vadd.f32 0.0, %v4239
    %4241 = vmatmul.f32.gmra.mxu0 %v4031
    %v4242 = vpop.f32.mrf.mxu0
    %v4243 = vadd.f32 0.0, %v4242
    %4244 = vmatmul.f32.gmra.mxu0 %v4034
    %v4245 = vpop.f32.mrf.mxu0
    %v4246 = vadd.f32 0.0, %v4245
    %4247 = vmatmul.f32.gmra.mxu0 %v4037
    %v4248 = vpop.f32.mrf.mxu0
    %v4249 = vadd.f32 0.0, %v4248
    %4250 = vmatmul.f32.gmra.mxu0 %v4040
    %v4251 = vpop.f32.mrf.mxu0
    %v4252 = vadd.f32 0.0, %v4251
    %4253 = vmatmul.f32.gmra.mxu0 %v4043
    %v4254 = vpop.f32.mrf.mxu0
    %v4255 = vadd.f32 0.0, %v4254
    %4256 = vmatmul.f32.gmra.mxu0 %v4046
    %v4257 = vpop.f32.mrf.mxu0
    %v4258 = vadd.f32 0.0, %v4257
    %4259 = vmatmul.f32.gmra.mxu0 %v4049
    %v4260 = vpop.f32.mrf.mxu0
    %v4261 = vadd.f32 0.0, %v4260
    %4262 = vmatmul.f32.gmra.mxu0 %v4052
    %v4263 = vpop.f32.mrf.mxu0
    %v4264 = vadd.f32 0.0, %v4263
    %4265 = vmatmul.f32.gmra.mxu0 %v4055
    %v4266 = vpop.f32.mrf.mxu0
    %v4267 = vadd.f32 0.0, %v4266
    %4268 = vmatmul.f32.gmra.mxu0 %v4058
    %v4269 = vpop.f32.mrf.mxu0
    %v4270 = vadd.f32 0.0, %v4269
    %4271 = vmatmul.f32.gmra.mxu0 %v4061
    %v4272 = vpop.f32.mrf.mxu0
    %v4273 = vadd.f32 0.0, %v4272
    %4274 = vmatmul.f32.gmra.mxu0 %v4064
    %v4275 = vpop.f32.mrf.mxu0
    %v4276 = vadd.f32 0.0, %v4275
    %4277 = vmatmul.f32.gmra.mxu0 %v4067
    %v4278 = vpop.f32.mrf.mxu0
    %v4279 = vadd.f32 0.0, %v4278
    %4280 = vmatmul.f32.gmra.mxu0 %v4070
    %v4281 = vpop.f32.mrf.mxu0
    %v4282 = vadd.f32 0.0, %v4281
    %4283 = vmatmul.f32.gmra.mxu0 %v4073
    %v4284 = vpop.f32.mrf.mxu0
    %v4285 = vadd.f32 0.0, %v4284
    %4286 = vmatmul.f32.gmra.mxu0 %v4076
    %v4287 = vpop.f32.mrf.mxu0
    %v4288 = vadd.f32 0.0, %v4287
    %4289 = vmatmul.f32.gmra.mxu0 %v4079
    %v4290 = vpop.f32.mrf.mxu0
    %v4291 = vadd.f32 0.0, %v4290
    %4292 = vmatmul.f32.gmra.mxu0 %v4082
    %v4293 = vpop.f32.mrf.mxu0
    %v4294 = vadd.f32 0.0, %v4293
    %4295 = vmatmul.f32.gmra.mxu0 %v4085
    %v4296 = vpop.f32.mrf.mxu0
    %v4297 = vadd.f32 0.0, %v4296
    %4298 = vmatmul.f32.gmra.mxu0 %v4088
    %v4299 = vpop.f32.mrf.mxu0
    %v4300 = vadd.f32 0.0, %v4299
    %4301 = vmatmul.f32.gmra.mxu0 %v4091
    %v4302 = vpop.f32.mrf.mxu0
    %v4303 = vadd.f32 0.0, %v4302
    %4304 = vmatmul.f32.gmra.mxu0 %v4094
    %v4305 = vpop.f32.mrf.mxu0
    %v4306 = vadd.f32 0.0, %v4305
    %4307 = vmatmul.f32.gmra.mxu0 %v4097
    %v4308 = vpop.f32.mrf.mxu0
    %v4309 = vadd.f32 0.0, %v4308
    %4310 = vmatmul.f32.gmra.mxu0 %v4100
    %v4311 = vpop.f32.mrf.mxu0
    %v4312 = vadd.f32 0.0, %v4311
    %4313 = vmatmul.f32.gmra.mxu0 %v4103
    %v4314 = vpop.f32.mrf.mxu0
    %v4315 = vadd.f32 0.0, %v4314
    %4316 = vmatmul.f32.gmra.mxu0 %v4106
    %v4317 = vpop.f32.mrf.mxu0
    %v4318 = vadd.f32 0.0, %v4317
    %4319 = vmatmul.f32.gmra.mxu0 %v4109
    %v4320 = vpop.f32.mrf.mxu0
    %v4321 = vadd.f32 0.0, %v4320
    %4322 = vmatmul.f32.gmra.mxu0 %v4112
    %v4323 = vpop.f32.mrf.mxu0
    %v4324 = vadd.f32 0.0, %v4323
    %4325 = vmatmul.f32.gmra.mxu0 %v4115
    %v4326 = vpop.f32.mrf.mxu0
    %v4327 = vadd.f32 0.0, %v4326
    %4328 = vmatmul.f32.gmra.mxu0 %v4118
    %v4329 = vpop.f32.mrf.mxu0
    %v4330 = vadd.f32 0.0, %v4329
    %4331 = vmatmul.f32.gmra.mxu0 %v4121
    %v4332 = vpop.f32.mrf.mxu0
    %v4333 = vadd.f32 0.0, %v4332
    %4334 = vmatmul.f32.gmra.mxu0 %v4124
    %v4335 = vpop.f32.mrf.mxu0
    %v4336 = vadd.f32 0.0, %v4335
    %4337 = vmatmul.f32.gmra.mxu0 %v4127
    %v4338 = vpop.f32.mrf.mxu0
    %v4339 = vadd.f32 0.0, %v4338
    %4340 = vmatmul.f32.gmra.mxu0 %v4130
    %v4341 = vpop.f32.mrf.mxu0
    %v4342 = vadd.f32 0.0, %v4341
    %4343 = vmatmul.f32.gmra.mxu0 %v4133
    %v4344 = vpop.f32.mrf.mxu0
    %v4345 = vadd.f32 0.0, %v4344
    %4346 = vdwg.mxu0
    %v4347 = vadd.f32 %v3813, %v4156
    %v4348 = vadd.f32 %v3814, %v4159
    %v4349 = vadd.f32 %v3815, %v4162
    %v4350 = vadd.f32 %v3816, %v4165
    %v4351 = vadd.f32 %v3817, %v4168
    %v4352 = vadd.f32 %v3818, %v4171
    %v4353 = vadd.f32 %v3819, %v4174
    %v4354 = vadd.f32 %v3820, %v4177
    %v4355 = vadd.f32 %v3821, %v4180
    %v4356 = vadd.f32 %v3822, %v4183
    %v4357 = vadd.f32 %v3823, %v4186
    %v4358 = vadd.f32 %v3824, %v4189
    %v4359 = vadd.f32 %v3825, %v4192
    %v4360 = vadd.f32 %v3826, %v4195
    %v4361 = vadd.f32 %v3827, %v4198
    %v4362 = vadd.f32 %v3828, %v4201
    %v4363 = vadd.f32 %v3829, %v4204
    %v4364 = vadd.f32 %v3830, %v4207
    %v4365 = vadd.f32 %v3831, %v4210
    %v4366 = vadd.f32 %v3832, %v4213
    %v4367 = vadd.f32 %v3833, %v4216
    %v4368 = vadd.f32 %v3834, %v4219
    %v4369 = vadd.f32 %v3835, %v4222
    %v4370 = vadd.f32 %v3836, %v4225
    %v4371 = vadd.f32 %v3837, %v4228
    %v4372 = vadd.f32 %v3838, %v4231
    %v4373 = vadd.f32 %v3839, %v4234
    %v4374 = vadd.f32 %v3840, %v4237
    %v4375 = vadd.f32 %v3841, %v4240
    %v4376 = vadd.f32 %v3842, %v4243
    %v4377 = vadd.f32 %v3843, %v4246
    %v4378 = vadd.f32 %v3844, %v4249
    %v4379 = vadd.f32 %v3845, %v4252
    %v4380 = vadd.f32 %v3846, %v4255
    %v4381 = vadd.f32 %v3847, %v4258
    %v4382 = vadd.f32 %v3848, %v4261
    %v4383 = vadd.f32 %v3849, %v4264
    %v4384 = vadd.f32 %v3850, %v4267
    %v4385 = vadd.f32 %v3851, %v4270
    %v4386 = vadd.f32 %v3852, %v4273
    %v4387 = vadd.f32 %v3853, %v4276
    %v4388 = vadd.f32 %v3854, %v4279
    %v4389 = vadd.f32 %v3855, %v4282
    %v4390 = vadd.f32 %v3856, %v4285
    %v4391 = vadd.f32 %v3857, %v4288
    %v4392 = vadd.f32 %v3858, %v4291
    %v4393 = vadd.f32 %v3859, %v4294
    %v4394 = vadd.f32 %v3860, %v4297
    %v4395 = vadd.f32 %v3861, %v4300
    %v4396 = vadd.f32 %v3862, %v4303
    %v4397 = vadd.f32 %v3863, %v4306
    %v4398 = vadd.f32 %v3864, %v4309
    %v4399 = vadd.f32 %v3865, %v4312
    %v4400 = vadd.f32 %v3866, %v4315
    %v4401 = vadd.f32 %v3867, %v4318
    %v4402 = vadd.f32 %v3868, %v4321
    %v4403 = vadd.f32 %v3869, %v4324
    %v4404 = vadd.f32 %v3870, %v4327
    %v4405 = vadd.f32 %v3871, %v4330
    %v4406 = vadd.f32 %v3872, %v4333
    %v4407 = vadd.f32 %v3873, %v4336
    %v4408 = vadd.f32 %v3874, %v4339
    %v4409 = vadd.f32 %v3875, %v4342
    %v4410 = vadd.f32 %v3876, %v4345
    %v4411 = vld [vmem:[%s3342 + $0x2] sm:$0xff]
    %v4412 = vld [vmem:[%s3342 + $0xa] sm:$0xff]
    %v4413 = vld [vmem:[%s3342 + $0x1a] sm:$0xff]
    %v4414 = vld [vmem:[%s3342 + $0x22] sm:$0xff]
    %v4415 = vld [vmem:[%s3342 + $0x32] sm:$0xff]
    %v4416 = vld [vmem:[%s3342 + $0x3a] sm:$0xff]
    %v4417 = vld [vmem:[%s3342 + $0x4a] sm:$0xff]
    %v4418 = vld [vmem:[%s3342 + $0x52] sm:$0xff]
    %v4419 = vld [vmem:[%s3342 + $0x62] sm:$0xff]
    %v4420 = vld [vmem:[%s3342 + $0x6a] sm:$0xff]
    %v4421 = vld [vmem:[%s3342 + $0x7a] sm:$0xff]
    %v4422 = vld [vmem:[%s3342 + $0x82] sm:$0xff]
    %v4423 = vld [vmem:[%s3342 + $0x92] sm:$0xff]
    %v4424 = vld [vmem:[%s3342 + $0x9a] sm:$0xff]
    %v4425 = vld [vmem:[%s3342 + $0xaa] sm:$0xff]
    %v4426 = vld [vmem:[%s3342 + $0xb2] sm:$0xff]
    %v4427 = vld [vmem:[%s3342 + $0xc2] sm:$0xff]
    %v4428 = vld [vmem:[%s3342 + $0xca] sm:$0xff]
    %v4429 = vld [vmem:[%s3342 + $0xda] sm:$0xff]
    %v4430 = vld [vmem:[%s3342 + $0xe2] sm:$0xff]
    %v4431 = vld [vmem:[%s3342 + $0xf2] sm:$0xff]
    %v4432 = vld [vmem:[%s3342 + $0xfa] sm:$0xff]
    %v4433 = vld [vmem:[%s3342 + $0x10a] sm:$0xff]
    %v4434 = vld [vmem:[%s3342 + $0x112] sm:$0xff]
    %v4435 = vld [vmem:[%s3342 + $0x122] sm:$0xff]
    %v4436 = vld [vmem:[%s3342 + $0x12a] sm:$0xff]
    %v4437 = vld [vmem:[%s3342 + $0x13a] sm:$0xff]
    %v4438 = vld [vmem:[%s3342 + $0x142] sm:$0xff]
    %v4439 = vld [vmem:[%s3342 + $0x152] sm:$0xff]
    %v4440 = vld [vmem:[%s3342 + $0x15a] sm:$0xff]
    %v4441 = vld [vmem:[%s3342 + $0x16a] sm:$0xff]
    %v4442 = vld [vmem:[%s3342 + $0x172] sm:$0xff]
    %v4443 = vld [vmem:[%s3342 + $0x1b2] sm:$0xff]
    %v4444 = vld [vmem:[%s3342 + $0x1ba] sm:$0xff]
    %v4445 = vld [vmem:[%s3342 + $0x1ca] sm:$0xff]
    %v4446 = vld [vmem:[%s3342 + $0x1d2] sm:$0xff]
    %v4447 = vld [vmem:[%s3342 + $0x1e2] sm:$0xff]
    %v4448 = vld [vmem:[%s3342 + $0x1ea] sm:$0xff]
    %v4449 = vld [vmem:[%s3342 + $0x1fa] sm:$0xff]
    %v4450 = vld [vmem:[%s3342 + $0x202] sm:$0xff]
    %v4451 = vld [vmem:[%s3342 + $0x212] sm:$0xff]
    %v4452 = vld [vmem:[%s3342 + $0x21a] sm:$0xff]
    %v4453 = vld [vmem:[%s3342 + $0x22a] sm:$0xff]
    %v4454 = vld [vmem:[%s3342 + $0x232] sm:$0xff]
    %v4455 = vld [vmem:[%s3342 + $0x242] sm:$0xff]
    %v4456 = vld [vmem:[%s3342 + $0x24a] sm:$0xff]
    %v4457 = vld [vmem:[%s3342 + $0x25a] sm:$0xff]
    %v4458 = vld [vmem:[%s3342 + $0x262] sm:$0xff]
    %v4459 = vld [vmem:[%s3342 + $0x272] sm:$0xff]
    %v4460 = vld [vmem:[%s3342 + $0x27a] sm:$0xff]
    %v4461 = vld [vmem:[%s3342 + $0x28a] sm:$0xff]
    %v4462 = vld [vmem:[%s3342 + $0x292] sm:$0xff]
    %v4463 = vld [vmem:[%s3342 + $0x2a2] sm:$0xff]
    %v4464 = vld [vmem:[%s3342 + $0x2aa] sm:$0xff]
    %v4465 = vld [vmem:[%s3342 + $0x2ba] sm:$0xff]
    %v4466 = vld [vmem:[%s3342 + $0x2c2] sm:$0xff]
    %v4467 = vld [vmem:[%s3342 + $0x2d2] sm:$0xff]
    %v4468 = vld [vmem:[%s3342 + $0x2da] sm:$0xff]
    %v4469 = vld [vmem:[%s3342 + $0x2ea] sm:$0xff]
    %v4470 = vld [vmem:[%s3342 + $0x2f2] sm:$0xff]
    %v4471 = vld [vmem:[%s3342 + $0x302] sm:$0xff]
    %v4472 = vld [vmem:[%s3342 + $0x30a] sm:$0xff]
    %v4473 = vld [vmem:[%s3342 + $0x31a] sm:$0xff]
    %v4474 = vld [vmem:[%s3342 + $0x322] sm:$0xff]
    %s4475 = scalar_lea.vmem %s1, 32
    %v4476 = vld [vmem:[%s4475] sm:$0xf]
    %v4478 = vsel %vm27, %v4411, 0
    %v4481 = vsel %vm27, %v4412, 0
    %v4484 = vsel %vm27, %v4413, 0
    %v4487 = vsel %vm27, %v4414, 0
    %v4490 = vsel %vm27, %v4415, 0
    %v4493 = vsel %vm27, %v4416, 0
    %v4496 = vsel %vm27, %v4417, 0
    %v4499 = vsel %vm27, %v4418, 0
    %v4502 = vsel %vm27, %v4419, 0
    %v4505 = vsel %vm27, %v4420, 0
    %v4508 = vsel %vm27, %v4421, 0
    %v4511 = vsel %vm27, %v4422, 0
    %v4514 = vsel %vm27, %v4423, 0
    %v4517 = vsel %vm27, %v4424, 0
    %v4520 = vsel %vm27, %v4425, 0
    %v4523 = vsel %vm27, %v4426, 0
    %v4526 = vsel %vm27, %v4427, 0
    %v4529 = vsel %vm27, %v4428, 0
    %v4532 = vsel %vm27, %v4429, 0
    %v4535 = vsel %vm27, %v4430, 0
    %v4538 = vsel %vm27, %v4431, 0
    %v4541 = vsel %vm27, %v4432, 0
    %v4544 = vsel %vm27, %v4433, 0
    %v4547 = vsel %vm27, %v4434, 0
    %v4550 = vsel %vm27, %v4435, 0
    %v4553 = vsel %vm27, %v4436, 0
    %v4556 = vsel %vm27, %v4437, 0
    %v4559 = vsel %vm27, %v4438, 0
    %v4562 = vsel %vm27, %v4439, 0
    %v4565 = vsel %vm27, %v4440, 0
    %v4568 = vsel %vm27, %v4441, 0
    %v4571 = vsel %vm27, %v4442, 0
    %v4574 = vsel %vm27, %v4443, 0
    %v4577 = vsel %vm27, %v4444, 0
    %v4580 = vsel %vm27, %v4445, 0
    %v4583 = vsel %vm27, %v4446, 0
    %v4586 = vsel %vm27, %v4447, 0
    %v4589 = vsel %vm27, %v4448, 0
    %v4592 = vsel %vm27, %v4449, 0
    %v4595 = vsel %vm27, %v4450, 0
    %v4598 = vsel %vm27, %v4451, 0
    %v4601 = vsel %vm27, %v4452, 0
    %v4604 = vsel %vm27, %v4453, 0
    %v4607 = vsel %vm27, %v4454, 0
    %v4610 = vsel %vm27, %v4455, 0
    %v4613 = vsel %vm27, %v4456, 0
    %v4616 = vsel %vm27, %v4457, 0
    %v4619 = vsel %vm27, %v4458, 0
    %v4622 = vsel %vm27, %v4459, 0
    %v4625 = vsel %vm27, %v4460, 0
    %v4628 = vsel %vm27, %v4461, 0
    %v4631 = vsel %vm27, %v4462, 0
    %v4634 = vsel %vm27, %v4463, 0
    %v4637 = vsel %vm27, %v4464, 0
    %v4640 = vsel %vm27, %v4465, 0
    %v4643 = vsel %vm27, %v4466, 0
    %v4646 = vsel %vm27, %v4467, 0
    %v4649 = vsel %vm27, %v4468, 0
    %v4652 = vsel %vm27, %v4469, 0
    %v4655 = vsel %vm27, %v4470, 0
    %v4658 = vsel %vm27, %v4471, 0
    %v4661 = vsel %vm27, %v4472, 0
    %v4664 = vsel %vm27, %v4473, 0
    %v4667 = vsel %vm27, %v4474, 0
    %v4670 = vsel %vm589, %v4476, 0
    %4672 = vmatpush.msra.mxu0 0.0
    %4673 = vmatpush.msra.mxu0 0.0
    %4674 = vmatpush.msra.mxu0 0.0
    %4675 = vmatpush.msra.mxu0 0.0
    %4676 = vmatpush.msra.mxu0 0.0
    %4677 = vmatpush.msra.mxu0 0.0
    %4678 = vmatpush.msra.mxu0 0.0
    %4679 = vmatpush.msra.mxu0 0.0
    %4680 = vmatpush.msra.mxu0 0.0
    %4681 = vmatpush.msra.mxu0 0.0
    %4682 = vmatpush.msra.mxu0 0.0
    %4683 = vmatpush.msra.mxu0 0.0
    %4684 = vmatpush.msra.mxu0 0.0
    %4685 = vmatpush.msra.mxu0 0.0
    %4686 = vmatpush.msra.mxu0 0.0
    %4687 = vmatpush.msra.mxu0 %v4670
    %4688 = vmatmul.f32.gmra.mxu0 %v4478
    %v4689 = vpop.f32.mrf.mxu0
    %v4690 = vadd.f32 0.0, %v4689
    %4691 = vmatmul.f32.gmra.mxu0 %v4481
    %v4692 = vpop.f32.mrf.mxu0
    %v4693 = vadd.f32 0.0, %v4692
    %4694 = vmatmul.f32.gmra.mxu0 %v4484
    %v4695 = vpop.f32.mrf.mxu0
    %v4696 = vadd.f32 0.0, %v4695
    %4697 = vmatmul.f32.gmra.mxu0 %v4487
    %v4698 = vpop.f32.mrf.mxu0
    %v4699 = vadd.f32 0.0, %v4698
    %4700 = vmatmul.f32.gmra.mxu0 %v4490
    %v4701 = vpop.f32.mrf.mxu0
    %v4702 = vadd.f32 0.0, %v4701
    %4703 = vmatmul.f32.gmra.mxu0 %v4493
    %v4704 = vpop.f32.mrf.mxu0
    %v4705 = vadd.f32 0.0, %v4704
    %4706 = vmatmul.f32.gmra.mxu0 %v4496
    %v4707 = vpop.f32.mrf.mxu0
    %v4708 = vadd.f32 0.0, %v4707
    %4709 = vmatmul.f32.gmra.mxu0 %v4499
    %v4710 = vpop.f32.mrf.mxu0
    %v4711 = vadd.f32 0.0, %v4710
    %4712 = vmatmul.f32.gmra.mxu0 %v4502
    %v4713 = vpop.f32.mrf.mxu0
    %v4714 = vadd.f32 0.0, %v4713
    %4715 = vmatmul.f32.gmra.mxu0 %v4505
    %v4716 = vpop.f32.mrf.mxu0
    %v4717 = vadd.f32 0.0, %v4716
    %4718 = vmatmul.f32.gmra.mxu0 %v4508
    %v4719 = vpop.f32.mrf.mxu0
    %v4720 = vadd.f32 0.0, %v4719
    %4721 = vmatmul.f32.gmra.mxu0 %v4511
    %v4722 = vpop.f32.mrf.mxu0
    %v4723 = vadd.f32 0.0, %v4722
    %4724 = vmatmul.f32.gmra.mxu0 %v4514
    %v4725 = vpop.f32.mrf.mxu0
    %v4726 = vadd.f32 0.0, %v4725
    %4727 = vmatmul.f32.gmra.mxu0 %v4517
    %v4728 = vpop.f32.mrf.mxu0
    %v4729 = vadd.f32 0.0, %v4728
    %4730 = vmatmul.f32.gmra.mxu0 %v4520
    %v4731 = vpop.f32.mrf.mxu0
    %v4732 = vadd.f32 0.0, %v4731
    %4733 = vmatmul.f32.gmra.mxu0 %v4523
    %v4734 = vpop.f32.mrf.mxu0
    %v4735 = vadd.f32 0.0, %v4734
    %4736 = vmatmul.f32.gmra.mxu0 %v4526
    %v4737 = vpop.f32.mrf.mxu0
    %v4738 = vadd.f32 0.0, %v4737
    %4739 = vmatmul.f32.gmra.mxu0 %v4529
    %v4740 = vpop.f32.mrf.mxu0
    %v4741 = vadd.f32 0.0, %v4740
    %4742 = vmatmul.f32.gmra.mxu0 %v4532
    %v4743 = vpop.f32.mrf.mxu0
    %v4744 = vadd.f32 0.0, %v4743
    %4745 = vmatmul.f32.gmra.mxu0 %v4535
    %v4746 = vpop.f32.mrf.mxu0
    %v4747 = vadd.f32 0.0, %v4746
    %4748 = vmatmul.f32.gmra.mxu0 %v4538
    %v4749 = vpop.f32.mrf.mxu0
    %v4750 = vadd.f32 0.0, %v4749
    %4751 = vmatmul.f32.gmra.mxu0 %v4541
    %v4752 = vpop.f32.mrf.mxu0
    %v4753 = vadd.f32 0.0, %v4752
    %4754 = vmatmul.f32.gmra.mxu0 %v4544
    %v4755 = vpop.f32.mrf.mxu0
    %v4756 = vadd.f32 0.0, %v4755
    %4757 = vmatmul.f32.gmra.mxu0 %v4547
    %v4758 = vpop.f32.mrf.mxu0
    %v4759 = vadd.f32 0.0, %v4758
    %4760 = vmatmul.f32.gmra.mxu0 %v4550
    %v4761 = vpop.f32.mrf.mxu0
    %v4762 = vadd.f32 0.0, %v4761
    %4763 = vmatmul.f32.gmra.mxu0 %v4553
    %v4764 = vpop.f32.mrf.mxu0
    %v4765 = vadd.f32 0.0, %v4764
    %4766 = vmatmul.f32.gmra.mxu0 %v4556
    %v4767 = vpop.f32.mrf.mxu0
    %v4768 = vadd.f32 0.0, %v4767
    %4769 = vmatmul.f32.gmra.mxu0 %v4559
    %v4770 = vpop.f32.mrf.mxu0
    %v4771 = vadd.f32 0.0, %v4770
    %4772 = vmatmul.f32.gmra.mxu0 %v4562
    %v4773 = vpop.f32.mrf.mxu0
    %v4774 = vadd.f32 0.0, %v4773
    %4775 = vmatmul.f32.gmra.mxu0 %v4565
    %v4776 = vpop.f32.mrf.mxu0
    %v4777 = vadd.f32 0.0, %v4776
    %4778 = vmatmul.f32.gmra.mxu0 %v4568
    %v4779 = vpop.f32.mrf.mxu0
    %v4780 = vadd.f32 0.0, %v4779
    %4781 = vmatmul.f32.gmra.mxu0 %v4571
    %v4782 = vpop.f32.mrf.mxu0
    %v4783 = vadd.f32 0.0, %v4782
    %4784 = vmatmul.f32.gmra.mxu0 %v4574
    %v4785 = vpop.f32.mrf.mxu0
    %v4786 = vadd.f32 0.0, %v4785
    %4787 = vmatmul.f32.gmra.mxu0 %v4577
    %v4788 = vpop.f32.mrf.mxu0
    %v4789 = vadd.f32 0.0, %v4788
    %4790 = vmatmul.f32.gmra.mxu0 %v4580
    %v4791 = vpop.f32.mrf.mxu0
    %v4792 = vadd.f32 0.0, %v4791
    %4793 = vmatmul.f32.gmra.mxu0 %v4583
    %v4794 = vpop.f32.mrf.mxu0
    %v4795 = vadd.f32 0.0, %v4794
    %4796 = vmatmul.f32.gmra.mxu0 %v4586
    %v4797 = vpop.f32.mrf.mxu0
    %v4798 = vadd.f32 0.0, %v4797
    %4799 = vmatmul.f32.gmra.mxu0 %v4589
    %v4800 = vpop.f32.mrf.mxu0
    %v4801 = vadd.f32 0.0, %v4800
    %4802 = vmatmul.f32.gmra.mxu0 %v4592
    %v4803 = vpop.f32.mrf.mxu0
    %v4804 = vadd.f32 0.0, %v4803
    %4805 = vmatmul.f32.gmra.mxu0 %v4595
    %v4806 = vpop.f32.mrf.mxu0
    %v4807 = vadd.f32 0.0, %v4806
    %4808 = vmatmul.f32.gmra.mxu0 %v4598
    %v4809 = vpop.f32.mrf.mxu0
    %v4810 = vadd.f32 0.0, %v4809
    %4811 = vmatmul.f32.gmra.mxu0 %v4601
    %v4812 = vpop.f32.mrf.mxu0
    %v4813 = vadd.f32 0.0, %v4812
    %4814 = vmatmul.f32.gmra.mxu0 %v4604
    %v4815 = vpop.f32.mrf.mxu0
    %v4816 = vadd.f32 0.0, %v4815
    %4817 = vmatmul.f32.gmra.mxu0 %v4607
    %v4818 = vpop.f32.mrf.mxu0
    %v4819 = vadd.f32 0.0, %v4818
    %4820 = vmatmul.f32.gmra.mxu0 %v4610
    %v4821 = vpop.f32.mrf.mxu0
    %v4822 = vadd.f32 0.0, %v4821
    %4823 = vmatmul.f32.gmra.mxu0 %v4613
    %v4824 = vpop.f32.mrf.mxu0
    %v4825 = vadd.f32 0.0, %v4824
    %4826 = vmatmul.f32.gmra.mxu0 %v4616
    %v4827 = vpop.f32.mrf.mxu0
    %v4828 = vadd.f32 0.0, %v4827
    %4829 = vmatmul.f32.gmra.mxu0 %v4619
    %v4830 = vpop.f32.mrf.mxu0
    %v4831 = vadd.f32 0.0, %v4830
    %4832 = vmatmul.f32.gmra.mxu0 %v4622
    %v4833 = vpop.f32.mrf.mxu0
    %v4834 = vadd.f32 0.0, %v4833
    %4835 = vmatmul.f32.gmra.mxu0 %v4625
    %v4836 = vpop.f32.mrf.mxu0
    %v4837 = vadd.f32 0.0, %v4836
    %4838 = vmatmul.f32.gmra.mxu0 %v4628
    %v4839 = vpop.f32.mrf.mxu0
    %v4840 = vadd.f32 0.0, %v4839
    %4841 = vmatmul.f32.gmra.mxu0 %v4631
    %v4842 = vpop.f32.mrf.mxu0
    %v4843 = vadd.f32 0.0, %v4842
    %4844 = vmatmul.f32.gmra.mxu0 %v4634
    %v4845 = vpop.f32.mrf.mxu0
    %v4846 = vadd.f32 0.0, %v4845
    %4847 = vmatmul.f32.gmra.mxu0 %v4637
    %v4848 = vpop.f32.mrf.mxu0
    %v4849 = vadd.f32 0.0, %v4848
    %4850 = vmatmul.f32.gmra.mxu0 %v4640
    %v4851 = vpop.f32.mrf.mxu0
    %v4852 = vadd.f32 0.0, %v4851
    %4853 = vmatmul.f32.gmra.mxu0 %v4643
    %v4854 = vpop.f32.mrf.mxu0
    %v4855 = vadd.f32 0.0, %v4854
    %4856 = vmatmul.f32.gmra.mxu0 %v4646
    %v4857 = vpop.f32.mrf.mxu0
    %v4858 = vadd.f32 0.0, %v4857
    %4859 = vmatmul.f32.gmra.mxu0 %v4649
    %v4860 = vpop.f32.mrf.mxu0
    %v4861 = vadd.f32 0.0, %v4860
    %4862 = vmatmul.f32.gmra.mxu0 %v4652
    %v4863 = vpop.f32.mrf.mxu0
    %v4864 = vadd.f32 0.0, %v4863
    %4865 = vmatmul.f32.gmra.mxu0 %v4655
    %v4866 = vpop.f32.mrf.mxu0
    %v4867 = vadd.f32 0.0, %v4866
    %4868 = vmatmul.f32.gmra.mxu0 %v4658
    %v4869 = vpop.f32.mrf.mxu0
    %v4870 = vadd.f32 0.0, %v4869
    %4871 = vmatmul.f32.gmra.mxu0 %v4661
    %v4872 = vpop.f32.mrf.mxu0
    %v4873 = vadd.f32 0.0, %v4872
    %4874 = vmatmul.f32.gmra.mxu0 %v4664
    %v4875 = vpop.f32.mrf.mxu0
    %v4876 = vadd.f32 0.0, %v4875
    %4877 = vmatmul.f32.gmra.mxu0 %v4667
    %v4878 = vpop.f32.mrf.mxu0
    %v4879 = vadd.f32 0.0, %v4878
    %4880 = vdwg.mxu0
    %v4881 = vadd.f32 %v4347, %v4690
    %v4882 = vadd.f32 %v4348, %v4693
    %v4883 = vadd.f32 %v4349, %v4696
    %v4884 = vadd.f32 %v4350, %v4699
    %v4885 = vadd.f32 %v4351, %v4702
    %v4886 = vadd.f32 %v4352, %v4705
    %v4887 = vadd.f32 %v4353, %v4708
    %v4888 = vadd.f32 %v4354, %v4711
    %v4889 = vadd.f32 %v4355, %v4714
    %v4890 = vadd.f32 %v4356, %v4717
    %v4891 = vadd.f32 %v4357, %v4720
    %v4892 = vadd.f32 %v4358, %v4723
    %v4893 = vadd.f32 %v4359, %v4726
    %v4894 = vadd.f32 %v4360, %v4729
    %v4895 = vadd.f32 %v4361, %v4732
    %v4896 = vadd.f32 %v4362, %v4735
    %v4897 = vadd.f32 %v4363, %v4738
    %v4898 = vadd.f32 %v4364, %v4741
    %v4899 = vadd.f32 %v4365, %v4744
    %v4900 = vadd.f32 %v4366, %v4747
    %v4901 = vadd.f32 %v4367, %v4750
    %v4902 = vadd.f32 %v4368, %v4753
    %v4903 = vadd.f32 %v4369, %v4756
    %v4904 = vadd.f32 %v4370, %v4759
    %v4905 = vadd.f32 %v4371, %v4762
    %v4906 = vadd.f32 %v4372, %v4765
    %v4907 = vadd.f32 %v4373, %v4768
    %v4908 = vadd.f32 %v4374, %v4771
    %v4909 = vadd.f32 %v4375, %v4774
    %v4910 = vadd.f32 %v4376, %v4777
    %v4911 = vadd.f32 %v4377, %v4780
    %v4912 = vadd.f32 %v4378, %v4783
    %v4913 = vadd.f32 %v4379, %v4786
    %v4914 = vadd.f32 %v4380, %v4789
    %v4915 = vadd.f32 %v4381, %v4792
    %v4916 = vadd.f32 %v4382, %v4795
    %v4917 = vadd.f32 %v4383, %v4798
    %v4918 = vadd.f32 %v4384, %v4801
    %v4919 = vadd.f32 %v4385, %v4804
    %v4920 = vadd.f32 %v4386, %v4807
    %v4921 = vadd.f32 %v4387, %v4810
    %v4922 = vadd.f32 %v4388, %v4813
    %v4923 = vadd.f32 %v4389, %v4816
    %v4924 = vadd.f32 %v4390, %v4819
    %v4925 = vadd.f32 %v4391, %v4822
    %v4926 = vadd.f32 %v4392, %v4825
    %v4927 = vadd.f32 %v4393, %v4828
    %v4928 = vadd.f32 %v4394, %v4831
    %v4929 = vadd.f32 %v4395, %v4834
    %v4930 = vadd.f32 %v4396, %v4837
    %v4931 = vadd.f32 %v4397, %v4840
    %v4932 = vadd.f32 %v4398, %v4843
    %v4933 = vadd.f32 %v4399, %v4846
    %v4934 = vadd.f32 %v4400, %v4849
    %v4935 = vadd.f32 %v4401, %v4852
    %v4936 = vadd.f32 %v4402, %v4855
    %v4937 = vadd.f32 %v4403, %v4858
    %v4938 = vadd.f32 %v4404, %v4861
    %v4939 = vadd.f32 %v4405, %v4864
    %v4940 = vadd.f32 %v4406, %v4867
    %v4941 = vadd.f32 %v4407, %v4870
    %v4942 = vadd.f32 %v4408, %v4873
    %v4943 = vadd.f32 %v4409, %v4876
    %v4944 = vadd.f32 %v4410, %v4879
    %v4945 = vld [vmem:[%s2] sm:$0x1]
    %v4947 = vperm.slane %v4945, 0
    %v4949 = vadd.f32 %v4881, %v4947
    %v4950 = vadd.f32 %v4882, %v4947
    %v4951 = vadd.f32 %v4883, %v4947
    %v4952 = vadd.f32 %v4884, %v4947
    %v4953 = vadd.f32 %v4885, %v4947
    %v4954 = vadd.f32 %v4886, %v4947
    %v4955 = vadd.f32 %v4887, %v4947
    %v4956 = vadd.f32 %v4888, %v4947
    %v4957 = vadd.f32 %v4889, %v4947
    %v4958 = vadd.f32 %v4890, %v4947
    %v4959 = vadd.f32 %v4891, %v4947
    %v4960 = vadd.f32 %v4892, %v4947
    %v4961 = vadd.f32 %v4893, %v4947
    %v4962 = vadd.f32 %v4894, %v4947
    %v4963 = vadd.f32 %v4895, %v4947
    %v4964 = vadd.f32 %v4896, %v4947
    %v4965 = vadd.f32 %v4897, %v4947
    %v4966 = vadd.f32 %v4898, %v4947
    %v4967 = vadd.f32 %v4899, %v4947
    %v4968 = vadd.f32 %v4900, %v4947
    %v4969 = vadd.f32 %v4901, %v4947
    %v4970 = vadd.f32 %v4902, %v4947
    %v4971 = vadd.f32 %v4903, %v4947
    %v4972 = vadd.f32 %v4904, %v4947
    %v4973 = vadd.f32 %v4905, %v4947
    %v4974 = vadd.f32 %v4906, %v4947
    %v4975 = vadd.f32 %v4907, %v4947
    %v4976 = vadd.f32 %v4908, %v4947
    %v4977 = vadd.f32 %v4909, %v4947
    %v4978 = vadd.f32 %v4910, %v4947
    %v4979 = vadd.f32 %v4911, %v4947
    %v4980 = vadd.f32 %v4912, %v4947
    %v4981 = vadd.f32 %v4913, %v4947
    %v4982 = vadd.f32 %v4914, %v4947
    %v4983 = vadd.f32 %v4915, %v4947
    %v4984 = vadd.f32 %v4916, %v4947
    %v4985 = vadd.f32 %v4917, %v4947
    %v4986 = vadd.f32 %v4918, %v4947
    %v4987 = vadd.f32 %v4919, %v4947
    %v4988 = vadd.f32 %v4920, %v4947
    %v4989 = vadd.f32 %v4921, %v4947
    %v4990 = vadd.f32 %v4922, %v4947
    %v4991 = vadd.f32 %v4923, %v4947
    %v4992 = vadd.f32 %v4924, %v4947
    %v4993 = vadd.f32 %v4925, %v4947
    %v4994 = vadd.f32 %v4926, %v4947
    %v4995 = vadd.f32 %v4927, %v4947
    %v4996 = vadd.f32 %v4928, %v4947
    %v4997 = vadd.f32 %v4929, %v4947
    %v4998 = vadd.f32 %v4930, %v4947
    %v4999 = vadd.f32 %v4931, %v4947
    %v5000 = vadd.f32 %v4932, %v4947
    %v5001 = vadd.f32 %v4933, %v4947
    %v5002 = vadd.f32 %v4934, %v4947
    %v5003 = vadd.f32 %v4935, %v4947
    %v5004 = vadd.f32 %v4936, %v4947
    %v5005 = vadd.f32 %v4937, %v4947
    %v5006 = vadd.f32 %v4938, %v4947
    %v5007 = vadd.f32 %v4939, %v4947
    %v5008 = vadd.f32 %v4940, %v4947
    %v5009 = vadd.f32 %v4941, %v4947
    %v5010 = vadd.f32 %v4942, %v4947
    %v5011 = vadd.f32 %v4943, %v4947
    %v5012 = vadd.f32 %v4944, %v4947
    %v5013 = vmax.f32 %v4949, 0.0
    %v5014 = vmax.f32 %v4950, 0.0
    %v5015 = vmax.f32 %v4951, 0.0
    %v5016 = vmax.f32 %v4952, 0.0
    %v5017 = vmax.f32 %v4953, 0.0
    %v5018 = vmax.f32 %v4954, 0.0
    %v5019 = vmax.f32 %v4955, 0.0
    %v5020 = vmax.f32 %v4956, 0.0
    %v5021 = vmax.f32 %v4957, 0.0
    %v5022 = vmax.f32 %v4958, 0.0
    %v5023 = vmax.f32 %v4959, 0.0
    %v5024 = vmax.f32 %v4960, 0.0
    %v5025 = vmax.f32 %v4961, 0.0
    %v5026 = vmax.f32 %v4962, 0.0
    %v5027 = vmax.f32 %v4963, 0.0
    %v5028 = vmax.f32 %v4964, 0.0
    %v5029 = vmax.f32 %v4965, 0.0
    %v5030 = vmax.f32 %v4966, 0.0
    %v5031 = vmax.f32 %v4967, 0.0
    %v5032 = vmax.f32 %v4968, 0.0
    %v5033 = vmax.f32 %v4969, 0.0
    %v5034 = vmax.f32 %v4970, 0.0
    %v5035 = vmax.f32 %v4971, 0.0
    %v5036 = vmax.f32 %v4972, 0.0
    %v5037 = vmax.f32 %v4973, 0.0
    %v5038 = vmax.f32 %v4974, 0.0
    %v5039 = vmax.f32 %v4975, 0.0
    %v5040 = vmax.f32 %v4976, 0.0
    %v5041 = vmax.f32 %v4977, 0.0
    %v5042 = vmax.f32 %v4978, 0.0
    %v5043 = vmax.f32 %v4979, 0.0
    %v5044 = vmax.f32 %v4980, 0.0
    %v5045 = vmax.f32 %v4981, 0.0
    %v5046 = vmax.f32 %v4982, 0.0
    %v5047 = vmax.f32 %v4983, 0.0
    %v5048 = vmax.f32 %v4984, 0.0
    %v5049 = vmax.f32 %v4985, 0.0
    %v5050 = vmax.f32 %v4986, 0.0
    %v5051 = vmax.f32 %v4987, 0.0
    %v5052 = vmax.f32 %v4988, 0.0
    %v5053 = vmax.f32 %v4989, 0.0
    %v5054 = vmax.f32 %v4990, 0.0
    %v5055 = vmax.f32 %v4991, 0.0
    %v5056 = vmax.f32 %v4992, 0.0
    %v5057 = vmax.f32 %v4993, 0.0
    %v5058 = vmax.f32 %v4994, 0.0
    %v5059 = vmax.f32 %v4995, 0.0
    %v5060 = vmax.f32 %v4996, 0.0
    %v5061 = vmax.f32 %v4997, 0.0
    %v5062 = vmax.f32 %v4998, 0.0
    %v5063 = vmax.f32 %v4999, 0.0
    %v5064 = vmax.f32 %v5000, 0.0
    %v5065 = vmax.f32 %v5001, 0.0
    %v5066 = vmax.f32 %v5002, 0.0
    %v5067 = vmax.f32 %v5003, 0.0
    %v5068 = vmax.f32 %v5004, 0.0
    %v5069 = vmax.f32 %v5005, 0.0
    %v5070 = vmax.f32 %v5006, 0.0
    %v5071 = vmax.f32 %v5007, 0.0
    %v5072 = vmax.f32 %v5008, 0.0
    %v5073 = vmax.f32 %v5009, 0.0
    %v5074 = vmax.f32 %v5010, 0.0
    %v5075 = vmax.f32 %v5011, 0.0
    %v5076 = vmax.f32 %v5012, 0.0
    %v5141 = vrot.slane %v5013, 2
    %v5142 = vrot.slane %v5013, 4
    %v5143 = vrot.slane %v5013, 6
    %v5144 = vrot.slane %v5014, 2
    %v5145 = vrot.slane %v5014, 4
    %v5146 = vrot.slane %v5014, 6
    %v5147 = vrot.slane %v5015, 2
    %v5148 = vrot.slane %v5015, 4
    %v5149 = vrot.slane %v5015, 6
    %v5150 = vrot.slane %v5016, 2
    %v5151 = vrot.slane %v5016, 4
    %v5152 = vrot.slane %v5016, 6
    %v5153 = vrot.slane %v5017, 2
    %v5154 = vrot.slane %v5017, 4
    %v5155 = vrot.slane %v5017, 6
    %v5156 = vrot.slane %v5018, 2
    %v5157 = vrot.slane %v5018, 4
    %v5158 = vrot.slane %v5018, 6
    %v5159 = vrot.slane %v5019, 2
    %v5160 = vrot.slane %v5019, 4
    %v5161 = vrot.slane %v5019, 6
    %v5162 = vrot.slane %v5020, 2
    %v5163 = vrot.slane %v5020, 4
    %v5164 = vrot.slane %v5020, 6
    %v5165 = vrot.slane %v5021, 2
    %v5166 = vrot.slane %v5021, 4
    %v5167 = vrot.slane %v5021, 6
    %v5168 = vrot.slane %v5022, 2
    %v5169 = vrot.slane %v5022, 4
    %v5170 = vrot.slane %v5022, 6
    %v5171 = vrot.slane %v5023, 2
    %v5172 = vrot.slane %v5023, 4
    %v5173 = vrot.slane %v5023, 6
    %v5174 = vrot.slane %v5024, 2
    %v5175 = vrot.slane %v5024, 4
    %v5176 = vrot.slane %v5024, 6
    %v5177 = vrot.slane %v5025, 2
    %v5178 = vrot.slane %v5025, 4
    %v5179 = vrot.slane %v5025, 6
    %v5180 = vrot.slane %v5026, 2
    %v5181 = vrot.slane %v5026, 4
    %v5182 = vrot.slane %v5026, 6
    %v5183 = vrot.slane %v5027, 2
    %v5184 = vrot.slane %v5027, 4
    %v5185 = vrot.slane %v5027, 6
    %v5186 = vrot.slane %v5028, 2
    %v5187 = vrot.slane %v5028, 4
    %v5188 = vrot.slane %v5028, 6
    %v5189 = vrot.slane %v5029, 2
    %v5190 = vrot.slane %v5029, 4
    %v5191 = vrot.slane %v5029, 6
    %v5192 = vrot.slane %v5030, 2
    %v5193 = vrot.slane %v5030, 4
    %v5194 = vrot.slane %v5030, 6
    %v5195 = vrot.slane %v5031, 2
    %v5196 = vrot.slane %v5031, 4
    %v5197 = vrot.slane %v5031, 6
    %v5198 = vrot.slane %v5032, 2
    %v5199 = vrot.slane %v5032, 4
    %v5200 = vrot.slane %v5032, 6
    %v5201 = vrot.slane %v5033, 2
    %v5202 = vrot.slane %v5033, 4
    %v5203 = vrot.slane %v5033, 6
    %v5204 = vrot.slane %v5034, 2
    %v5205 = vrot.slane %v5034, 4
    %v5206 = vrot.slane %v5034, 6
    %v5207 = vrot.slane %v5035, 2
    %v5208 = vrot.slane %v5035, 4
    %v5209 = vrot.slane %v5035, 6
    %v5210 = vrot.slane %v5036, 2
    %v5211 = vrot.slane %v5036, 4
    %v5212 = vrot.slane %v5036, 6
    %v5213 = vrot.slane %v5037, 2
    %v5214 = vrot.slane %v5037, 4
    %v5215 = vrot.slane %v5037, 6
    %v5216 = vrot.slane %v5038, 2
    %v5217 = vrot.slane %v5038, 4
    %v5218 = vrot.slane %v5038, 6
    %v5219 = vrot.slane %v5039, 2
    %v5220 = vrot.slane %v5039, 4
    %v5221 = vrot.slane %v5039, 6
    %v5222 = vrot.slane %v5040, 2
    %v5223 = vrot.slane %v5040, 4
    %v5224 = vrot.slane %v5040, 6
    %v5225 = vrot.slane %v5041, 2
    %v5226 = vrot.slane %v5041, 4
    %v5227 = vrot.slane %v5041, 6
    %v5228 = vrot.slane %v5042, 2
    %v5229 = vrot.slane %v5042, 4
    %v5230 = vrot.slane %v5042, 6
    %v5231 = vrot.slane %v5043, 2
    %v5232 = vrot.slane %v5043, 4
    %v5233 = vrot.slane %v5043, 6
    %v5234 = vrot.slane %v5044, 2
    %v5235 = vrot.slane %v5044, 4
    %v5236 = vrot.slane %v5044, 6
    %v5237 = vrot.slane %v5045, 2
    %v5238 = vrot.slane %v5045, 4
    %v5239 = vrot.slane %v5045, 6
    %v5240 = vrot.slane %v5046, 2
    %v5241 = vrot.slane %v5046, 4
    %v5242 = vrot.slane %v5046, 6
    %v5243 = vrot.slane %v5047, 2
    %v5244 = vrot.slane %v5047, 4
    %v5245 = vrot.slane %v5047, 6
    %v5246 = vrot.slane %v5048, 2
    %v5247 = vrot.slane %v5048, 4
    %v5248 = vrot.slane %v5048, 6
    %v5249 = vrot.slane %v5049, 2
    %v5250 = vrot.slane %v5049, 4
    %v5251 = vrot.slane %v5049, 6
    %v5252 = vrot.slane %v5050, 2
    %v5253 = vrot.slane %v5050, 4
    %v5254 = vrot.slane %v5050, 6
    %v5255 = vrot.slane %v5051, 2
    %v5256 = vrot.slane %v5051, 4
    %v5257 = vrot.slane %v5051, 6
    %v5258 = vrot.slane %v5052, 2
    %v5259 = vrot.slane %v5052, 4
    %v5260 = vrot.slane %v5052, 6
    %v5261 = vrot.slane %v5053, 2
    %v5262 = vrot.slane %v5053, 4
    %v5263 = vrot.slane %v5053, 6
    %v5264 = vrot.slane %v5054, 2
    %v5265 = vrot.slane %v5054, 4
    %v5266 = vrot.slane %v5054, 6
    %v5267 = vrot.slane %v5055, 2
    %v5268 = vrot.slane %v5055, 4
    %v5269 = vrot.slane %v5055, 6
    %v5270 = vrot.slane %v5056, 2
    %v5271 = vrot.slane %v5056, 4
    %v5272 = vrot.slane %v5056, 6
    %v5273 = vrot.slane %v5057, 2
    %v5274 = vrot.slane %v5057, 4
    %v5275 = vrot.slane %v5057, 6
    %v5276 = vrot.slane %v5058, 2
    %v5277 = vrot.slane %v5058, 4
    %v5278 = vrot.slane %v5058, 6
    %v5279 = vrot.slane %v5059, 2
    %v5280 = vrot.slane %v5059, 4
    %v5281 = vrot.slane %v5059, 6
    %v5282 = vrot.slane %v5060, 2
    %v5283 = vrot.slane %v5060, 4
    %v5284 = vrot.slane %v5060, 6
    %v5285 = vrot.slane %v5061, 2
    %v5286 = vrot.slane %v5061, 4
    %v5287 = vrot.slane %v5061, 6
    %v5288 = vrot.slane %v5062, 2
    %v5289 = vrot.slane %v5062, 4
    %v5290 = vrot.slane %v5062, 6
    %v5291 = vrot.slane %v5063, 2
    %v5292 = vrot.slane %v5063, 4
    %v5293 = vrot.slane %v5063, 6
    %v5294 = vrot.slane %v5064, 2
    %v5295 = vrot.slane %v5064, 4
    %v5296 = vrot.slane %v5064, 6
    %v5297 = vrot.slane %v5065, 2
    %v5298 = vrot.slane %v5065, 4
    %v5299 = vrot.slane %v5065, 6
    %v5300 = vrot.slane %v5066, 2
    %v5301 = vrot.slane %v5066, 4
    %v5302 = vrot.slane %v5066, 6
    %v5303 = vrot.slane %v5067, 2
    %v5304 = vrot.slane %v5067, 4
    %v5305 = vrot.slane %v5067, 6
    %v5306 = vrot.slane %v5068, 2
    %v5307 = vrot.slane %v5068, 4
    %v5308 = vrot.slane %v5068, 6
    %v5309 = vrot.slane %v5069, 2
    %v5310 = vrot.slane %v5069, 4
    %v5311 = vrot.slane %v5069, 6
    %v5312 = vrot.slane %v5070, 2
    %v5313 = vrot.slane %v5070, 4
    %v5314 = vrot.slane %v5070, 6
    %v5315 = vrot.slane %v5071, 2
    %v5316 = vrot.slane %v5071, 4
    %v5317 = vrot.slane %v5071, 6
    %v5318 = vrot.slane %v5072, 2
    %v5319 = vrot.slane %v5072, 4
    %v5320 = vrot.slane %v5072, 6
    %v5321 = vrot.slane %v5073, 2
    %v5322 = vrot.slane %v5073, 4
    %v5323 = vrot.slane %v5073, 6
    %v5324 = vrot.slane %v5074, 2
    %v5325 = vrot.slane %v5074, 4
    %v5326 = vrot.slane %v5074, 6
    %v5327 = vrot.slane %v5075, 2
    %v5328 = vrot.slane %v5075, 4
    %v5329 = vrot.slane %v5075, 6
    %v5330 = vrot.slane %v5076, 2
    %v5331 = vrot.slane %v5076, 4
    %v5332 = vrot.slane %v5076, 6
    %vm5525 = vcmask 58368
    %v5526 = vsel %vm5525, %v5013, -inf
    %v5527 = vrot.slane %v5526, 4
    %v5528 = vmax.f32 %v5526, %v5527
    %v5529 = vrot.slane %v5528, 2
    %v5530 = vmax.f32 %v5528, %v5529
    %v5531 = vrot.slane %v5530, 1
    %v5532 = vmax.f32 %v5530, %v5531
    %v5533 = vsel %vm5525, %v5141, -inf
    %v5534 = vrot.slane %v5533, 4
    %v5535 = vmax.f32 %v5533, %v5534
    %v5536 = vrot.slane %v5535, 2
    %v5537 = vmax.f32 %v5535, %v5536
    %v5538 = vrot.slane %v5537, 1
    %v5539 = vmax.f32 %v5537, %v5538
    %v5540 = vsel %vm5525, %v5142, -inf
    %v5541 = vrot.slane %v5540, 4
    %v5542 = vmax.f32 %v5540, %v5541
    %v5543 = vrot.slane %v5542, 2
    %v5544 = vmax.f32 %v5542, %v5543
    %v5545 = vrot.slane %v5544, 1
    %v5546 = vmax.f32 %v5544, %v5545
    %v5547 = vsel %vm5525, %v5143, -inf
    %v5548 = vrot.slane %v5547, 4
    %v5549 = vmax.f32 %v5547, %v5548
    %v5550 = vrot.slane %v5549, 2
    %v5551 = vmax.f32 %v5549, %v5550
    %v5552 = vrot.slane %v5551, 1
    %v5553 = vmax.f32 %v5551, %v5552
    %v5554 = vsel %vm5525, %v5014, -inf
    %v5555 = vrot.slane %v5554, 4
    %v5556 = vmax.f32 %v5554, %v5555
    %v5557 = vrot.slane %v5556, 2
    %v5558 = vmax.f32 %v5556, %v5557
    %v5559 = vrot.slane %v5558, 1
    %v5560 = vmax.f32 %v5558, %v5559
    %v5561 = vsel %vm5525, %v5144, -inf
    %v5562 = vrot.slane %v5561, 4
    %v5563 = vmax.f32 %v5561, %v5562
    %v5564 = vrot.slane %v5563, 2
    %v5565 = vmax.f32 %v5563, %v5564
    %v5566 = vrot.slane %v5565, 1
    %v5567 = vmax.f32 %v5565, %v5566
    %v5568 = vsel %vm5525, %v5145, -inf
    %v5569 = vrot.slane %v5568, 4
    %v5570 = vmax.f32 %v5568, %v5569
    %v5571 = vrot.slane %v5570, 2
    %v5572 = vmax.f32 %v5570, %v5571
    %v5573 = vrot.slane %v5572, 1
    %v5574 = vmax.f32 %v5572, %v5573
    %v5575 = vsel %vm5525, %v5146, -inf
    %v5576 = vrot.slane %v5575, 4
    %v5577 = vmax.f32 %v5575, %v5576
    %v5578 = vrot.slane %v5577, 2
    %v5579 = vmax.f32 %v5577, %v5578
    %v5580 = vrot.slane %v5579, 1
    %v5581 = vmax.f32 %v5579, %v5580
    %v5582 = vsel %vm5525, %v5015, -inf
    %v5583 = vrot.slane %v5582, 4
    %v5584 = vmax.f32 %v5582, %v5583
    %v5585 = vrot.slane %v5584, 2
    %v5586 = vmax.f32 %v5584, %v5585
    %v5587 = vrot.slane %v5586, 1
    %v5588 = vmax.f32 %v5586, %v5587
    %v5589 = vsel %vm5525, %v5147, -inf
    %v5590 = vrot.slane %v5589, 4
    %v5591 = vmax.f32 %v5589, %v5590
    %v5592 = vrot.slane %v5591, 2
    %v5593 = vmax.f32 %v5591, %v5592
    %v5594 = vrot.slane %v5593, 1
    %v5595 = vmax.f32 %v5593, %v5594
    %v5596 = vsel %vm5525, %v5148, -inf
    %v5597 = vrot.slane %v5596, 4
    %v5598 = vmax.f32 %v5596, %v5597
    %v5599 = vrot.slane %v5598, 2
    %v5600 = vmax.f32 %v5598, %v5599
    %v5601 = vrot.slane %v5600, 1
    %v5602 = vmax.f32 %v5600, %v5601
    %v5603 = vsel %vm5525, %v5149, -inf
    %v5604 = vrot.slane %v5603, 4
    %v5605 = vmax.f32 %v5603, %v5604
    %v5606 = vrot.slane %v5605, 2
    %v5607 = vmax.f32 %v5605, %v5606
    %v5608 = vrot.slane %v5607, 1
    %v5609 = vmax.f32 %v5607, %v5608
    %v5610 = vsel %vm5525, %v5016, -inf
    %v5611 = vrot.slane %v5610, 4
    %v5612 = vmax.f32 %v5610, %v5611
    %v5613 = vrot.slane %v5612, 2
    %v5614 = vmax.f32 %v5612, %v5613
    %v5615 = vrot.slane %v5614, 1
    %v5616 = vmax.f32 %v5614, %v5615
    %v5617 = vsel %vm5525, %v5150, -inf
    %v5618 = vrot.slane %v5617, 4
    %v5619 = vmax.f32 %v5617, %v5618
    %v5620 = vrot.slane %v5619, 2
    %v5621 = vmax.f32 %v5619, %v5620
    %v5622 = vrot.slane %v5621, 1
    %v5623 = vmax.f32 %v5621, %v5622
    %v5624 = vsel %vm5525, %v5151, -inf
    %v5625 = vrot.slane %v5624, 4
    %v5626 = vmax.f32 %v5624, %v5625
    %v5627 = vrot.slane %v5626, 2
    %v5628 = vmax.f32 %v5626, %v5627
    %v5629 = vrot.slane %v5628, 1
    %v5630 = vmax.f32 %v5628, %v5629
    %v5631 = vsel %vm5525, %v5152, -inf
    %v5632 = vrot.slane %v5631, 4
    %v5633 = vmax.f32 %v5631, %v5632
    %v5634 = vrot.slane %v5633, 2
    %v5635 = vmax.f32 %v5633, %v5634
    %v5636 = vrot.slane %v5635, 1
    %v5637 = vmax.f32 %v5635, %v5636
    %v5638 = vsel %vm5525, %v5017, -inf
    %v5639 = vrot.slane %v5638, 4
    %v5640 = vmax.f32 %v5638, %v5639
    %v5641 = vrot.slane %v5640, 2
    %v5642 = vmax.f32 %v5640, %v5641
    %v5643 = vrot.slane %v5642, 1
    %v5644 = vmax.f32 %v5642, %v5643
    %v5645 = vsel %vm5525, %v5153, -inf
    %v5646 = vrot.slane %v5645, 4
    %v5647 = vmax.f32 %v5645, %v5646
    %v5648 = vrot.slane %v5647, 2
    %v5649 = vmax.f32 %v5647, %v5648
    %v5650 = vrot.slane %v5649, 1
    %v5651 = vmax.f32 %v5649, %v5650
    %v5652 = vsel %vm5525, %v5154, -inf
    %v5653 = vrot.slane %v5652, 4
    %v5654 = vmax.f32 %v5652, %v5653
    %v5655 = vrot.slane %v5654, 2
    %v5656 = vmax.f32 %v5654, %v5655
    %v5657 = vrot.slane %v5656, 1
    %v5658 = vmax.f32 %v5656, %v5657
    %v5659 = vsel %vm5525, %v5155, -inf
    %v5660 = vrot.slane %v5659, 4
    %v5661 = vmax.f32 %v5659, %v5660
    %v5662 = vrot.slane %v5661, 2
    %v5663 = vmax.f32 %v5661, %v5662
    %v5664 = vrot.slane %v5663, 1
    %v5665 = vmax.f32 %v5663, %v5664
    %v5666 = vsel %vm5525, %v5018, -inf
    %v5667 = vrot.slane %v5666, 4
    %v5668 = vmax.f32 %v5666, %v5667
    %v5669 = vrot.slane %v5668, 2
    %v5670 = vmax.f32 %v5668, %v5669
    %v5671 = vrot.slane %v5670, 1
    %v5672 = vmax.f32 %v5670, %v5671
    %v5673 = vsel %vm5525, %v5156, -inf
    %v5674 = vrot.slane %v5673, 4
    %v5675 = vmax.f32 %v5673, %v5674
    %v5676 = vrot.slane %v5675, 2
    %v5677 = vmax.f32 %v5675, %v5676
    %v5678 = vrot.slane %v5677, 1
    %v5679 = vmax.f32 %v5677, %v5678
    %v5680 = vsel %vm5525, %v5157, -inf
    %v5681 = vrot.slane %v5680, 4
    %v5682 = vmax.f32 %v5680, %v5681
    %v5683 = vrot.slane %v5682, 2
    %v5684 = vmax.f32 %v5682, %v5683
    %v5685 = vrot.slane %v5684, 1
    %v5686 = vmax.f32 %v5684, %v5685
    %v5687 = vsel %vm5525, %v5158, -inf
    %v5688 = vrot.slane %v5687, 4
    %v5689 = vmax.f32 %v5687, %v5688
    %v5690 = vrot.slane %v5689, 2
    %v5691 = vmax.f32 %v5689, %v5690
    %v5692 = vrot.slane %v5691, 1
    %v5693 = vmax.f32 %v5691, %v5692
    %v5694 = vsel %vm5525, %v5019, -inf
    %v5695 = vrot.slane %v5694, 4
    %v5696 = vmax.f32 %v5694, %v5695
    %v5697 = vrot.slane %v5696, 2
    %v5698 = vmax.f32 %v5696, %v5697
    %v5699 = vrot.slane %v5698, 1
    %v5700 = vmax.f32 %v5698, %v5699
    %v5701 = vsel %vm5525, %v5159, -inf
    %v5702 = vrot.slane %v5701, 4
    %v5703 = vmax.f32 %v5701, %v5702
    %v5704 = vrot.slane %v5703, 2
    %v5705 = vmax.f32 %v5703, %v5704
    %v5706 = vrot.slane %v5705, 1
    %v5707 = vmax.f32 %v5705, %v5706
    %v5708 = vsel %vm5525, %v5160, -inf
    %v5709 = vrot.slane %v5708, 4
    %v5710 = vmax.f32 %v5708, %v5709
    %v5711 = vrot.slane %v5710, 2
    %v5712 = vmax.f32 %v5710, %v5711
    %v5713 = vrot.slane %v5712, 1
    %v5714 = vmax.f32 %v5712, %v5713
    %v5715 = vsel %vm5525, %v5161, -inf
    %v5716 = vrot.slane %v5715, 4
    %v5717 = vmax.f32 %v5715, %v5716
    %v5718 = vrot.slane %v5717, 2
    %v5719 = vmax.f32 %v5717, %v5718
    %v5720 = vrot.slane %v5719, 1
    %v5721 = vmax.f32 %v5719, %v5720
    %v5722 = vsel %vm5525, %v5020, -inf
    %v5723 = vrot.slane %v5722, 4
    %v5724 = vmax.f32 %v5722, %v5723
    %v5725 = vrot.slane %v5724, 2
    %v5726 = vmax.f32 %v5724, %v5725
    %v5727 = vrot.slane %v5726, 1
    %v5728 = vmax.f32 %v5726, %v5727
    %v5729 = vsel %vm5525, %v5162, -inf
    %v5730 = vrot.slane %v5729, 4
    %v5731 = vmax.f32 %v5729, %v5730
    %v5732 = vrot.slane %v5731, 2
    %v5733 = vmax.f32 %v5731, %v5732
    %v5734 = vrot.slane %v5733, 1
    %v5735 = vmax.f32 %v5733, %v5734
    %v5736 = vsel %vm5525, %v5163, -inf
    %v5737 = vrot.slane %v5736, 4
    %v5738 = vmax.f32 %v5736, %v5737
    %v5739 = vrot.slane %v5738, 2
    %v5740 = vmax.f32 %v5738, %v5739
    %v5741 = vrot.slane %v5740, 1
    %v5742 = vmax.f32 %v5740, %v5741
    %v5743 = vsel %vm5525, %v5164, -inf
    %v5744 = vrot.slane %v5743, 4
    %v5745 = vmax.f32 %v5743, %v5744
    %v5746 = vrot.slane %v5745, 2
    %v5747 = vmax.f32 %v5745, %v5746
    %v5748 = vrot.slane %v5747, 1
    %v5749 = vmax.f32 %v5747, %v5748
    %v5750 = vsel %vm5525, %v5021, -inf
    %v5751 = vrot.slane %v5750, 4
    %v5752 = vmax.f32 %v5750, %v5751
    %v5753 = vrot.slane %v5752, 2
    %v5754 = vmax.f32 %v5752, %v5753
    %v5755 = vrot.slane %v5754, 1
    %v5756 = vmax.f32 %v5754, %v5755
    %v5757 = vsel %vm5525, %v5165, -inf
    %v5758 = vrot.slane %v5757, 4
    %v5759 = vmax.f32 %v5757, %v5758
    %v5760 = vrot.slane %v5759, 2
    %v5761 = vmax.f32 %v5759, %v5760
    %v5762 = vrot.slane %v5761, 1
    %v5763 = vmax.f32 %v5761, %v5762
    %v5764 = vsel %vm5525, %v5166, -inf
    %v5765 = vrot.slane %v5764, 4
    %v5766 = vmax.f32 %v5764, %v5765
    %v5767 = vrot.slane %v5766, 2
    %v5768 = vmax.f32 %v5766, %v5767
    %v5769 = vrot.slane %v5768, 1
    %v5770 = vmax.f32 %v5768, %v5769
    %v5771 = vsel %vm5525, %v5167, -inf
    %v5772 = vrot.slane %v5771, 4
    %v5773 = vmax.f32 %v5771, %v5772
    %v5774 = vrot.slane %v5773, 2
    %v5775 = vmax.f32 %v5773, %v5774
    %v5776 = vrot.slane %v5775, 1
    %v5777 = vmax.f32 %v5775, %v5776
    %v5778 = vsel %vm5525, %v5022, -inf
    %v5779 = vrot.slane %v5778, 4
    %v5780 = vmax.f32 %v5778, %v5779
    %v5781 = vrot.slane %v5780, 2
    %v5782 = vmax.f32 %v5780, %v5781
    %v5783 = vrot.slane %v5782, 1
    %v5784 = vmax.f32 %v5782, %v5783
    %v5785 = vsel %vm5525, %v5168, -inf
    %v5786 = vrot.slane %v5785, 4
    %v5787 = vmax.f32 %v5785, %v5786
    %v5788 = vrot.slane %v5787, 2
    %v5789 = vmax.f32 %v5787, %v5788
    %v5790 = vrot.slane %v5789, 1
    %v5791 = vmax.f32 %v5789, %v5790
    %v5792 = vsel %vm5525, %v5169, -inf
    %v5793 = vrot.slane %v5792, 4
    %v5794 = vmax.f32 %v5792, %v5793
    %v5795 = vrot.slane %v5794, 2
    %v5796 = vmax.f32 %v5794, %v5795
    %v5797 = vrot.slane %v5796, 1
    %v5798 = vmax.f32 %v5796, %v5797
    %v5799 = vsel %vm5525, %v5170, -inf
    %v5800 = vrot.slane %v5799, 4
    %v5801 = vmax.f32 %v5799, %v5800
    %v5802 = vrot.slane %v5801, 2
    %v5803 = vmax.f32 %v5801, %v5802
    %v5804 = vrot.slane %v5803, 1
    %v5805 = vmax.f32 %v5803, %v5804
    %v5806 = vsel %vm5525, %v5023, -inf
    %v5807 = vrot.slane %v5806, 4
    %v5808 = vmax.f32 %v5806, %v5807
    %v5809 = vrot.slane %v5808, 2
    %v5810 = vmax.f32 %v5808, %v5809
    %v5811 = vrot.slane %v5810, 1
    %v5812 = vmax.f32 %v5810, %v5811
    %v5813 = vsel %vm5525, %v5171, -inf
    %v5814 = vrot.slane %v5813, 4
    %v5815 = vmax.f32 %v5813, %v5814
    %v5816 = vrot.slane %v5815, 2
    %v5817 = vmax.f32 %v5815, %v5816
    %v5818 = vrot.slane %v5817, 1
    %v5819 = vmax.f32 %v5817, %v5818
    %v5820 = vsel %vm5525, %v5172, -inf
    %v5821 = vrot.slane %v5820, 4
    %v5822 = vmax.f32 %v5820, %v5821
    %v5823 = vrot.slane %v5822, 2
    %v5824 = vmax.f32 %v5822, %v5823
    %v5825 = vrot.slane %v5824, 1
    %v5826 = vmax.f32 %v5824, %v5825
    %v5827 = vsel %vm5525, %v5173, -inf
    %v5828 = vrot.slane %v5827, 4
    %v5829 = vmax.f32 %v5827, %v5828
    %v5830 = vrot.slane %v5829, 2
    %v5831 = vmax.f32 %v5829, %v5830
    %v5832 = vrot.slane %v5831, 1
    %v5833 = vmax.f32 %v5831, %v5832
    %v5834 = vsel %vm5525, %v5024, -inf
    %v5835 = vrot.slane %v5834, 4
    %v5836 = vmax.f32 %v5834, %v5835
    %v5837 = vrot.slane %v5836, 2
    %v5838 = vmax.f32 %v5836, %v5837
    %v5839 = vrot.slane %v5838, 1
    %v5840 = vmax.f32 %v5838, %v5839
    %v5841 = vsel %vm5525, %v5174, -inf
    %v5842 = vrot.slane %v5841, 4
    %v5843 = vmax.f32 %v5841, %v5842
    %v5844 = vrot.slane %v5843, 2
    %v5845 = vmax.f32 %v5843, %v5844
    %v5846 = vrot.slane %v5845, 1
    %v5847 = vmax.f32 %v5845, %v5846
    %v5848 = vsel %vm5525, %v5175, -inf
    %v5849 = vrot.slane %v5848, 4
    %v5850 = vmax.f32 %v5848, %v5849
    %v5851 = vrot.slane %v5850, 2
    %v5852 = vmax.f32 %v5850, %v5851
    %v5853 = vrot.slane %v5852, 1
    %v5854 = vmax.f32 %v5852, %v5853
    %v5855 = vsel %vm5525, %v5176, -inf
    %v5856 = vrot.slane %v5855, 4
    %v5857 = vmax.f32 %v5855, %v5856
    %v5858 = vrot.slane %v5857, 2
    %v5859 = vmax.f32 %v5857, %v5858
    %v5860 = vrot.slane %v5859, 1
    %v5861 = vmax.f32 %v5859, %v5860
    %v5862 = vsel %vm5525, %v5025, -inf
    %v5863 = vrot.slane %v5862, 4
    %v5864 = vmax.f32 %v5862, %v5863
    %v5865 = vrot.slane %v5864, 2
    %v5866 = vmax.f32 %v5864, %v5865
    %v5867 = vrot.slane %v5866, 1
    %v5868 = vmax.f32 %v5866, %v5867
    %v5869 = vsel %vm5525, %v5177, -inf
    %v5870 = vrot.slane %v5869, 4
    %v5871 = vmax.f32 %v5869, %v5870
    %v5872 = vrot.slane %v5871, 2
    %v5873 = vmax.f32 %v5871, %v5872
    %v5874 = vrot.slane %v5873, 1
    %v5875 = vmax.f32 %v5873, %v5874
    %v5876 = vsel %vm5525, %v5178, -inf
    %v5877 = vrot.slane %v5876, 4
    %v5878 = vmax.f32 %v5876, %v5877
    %v5879 = vrot.slane %v5878, 2
    %v5880 = vmax.f32 %v5878, %v5879
    %v5881 = vrot.slane %v5880, 1
    %v5882 = vmax.f32 %v5880, %v5881
    %v5883 = vsel %vm5525, %v5179, -inf
    %v5884 = vrot.slane %v5883, 4
    %v5885 = vmax.f32 %v5883, %v5884
    %v5886 = vrot.slane %v5885, 2
    %v5887 = vmax.f32 %v5885, %v5886
    %v5888 = vrot.slane %v5887, 1
    %v5889 = vmax.f32 %v5887, %v5888
    %v5890 = vsel %vm5525, %v5026, -inf
    %v5891 = vrot.slane %v5890, 4
    %v5892 = vmax.f32 %v5890, %v5891
    %v5893 = vrot.slane %v5892, 2
    %v5894 = vmax.f32 %v5892, %v5893
    %v5895 = vrot.slane %v5894, 1
    %v5896 = vmax.f32 %v5894, %v5895
    %v5897 = vsel %vm5525, %v5180, -inf
    %v5898 = vrot.slane %v5897, 4
    %v5899 = vmax.f32 %v5897, %v5898
    %v5900 = vrot.slane %v5899, 2
    %v5901 = vmax.f32 %v5899, %v5900
    %v5902 = vrot.slane %v5901, 1
    %v5903 = vmax.f32 %v5901, %v5902
    %v5904 = vsel %vm5525, %v5181, -inf
    %v5905 = vrot.slane %v5904, 4
    %v5906 = vmax.f32 %v5904, %v5905
    %v5907 = vrot.slane %v5906, 2
    %v5908 = vmax.f32 %v5906, %v5907
    %v5909 = vrot.slane %v5908, 1
    %v5910 = vmax.f32 %v5908, %v5909
    %v5911 = vsel %vm5525, %v5182, -inf
    %v5912 = vrot.slane %v5911, 4
    %v5913 = vmax.f32 %v5911, %v5912
    %v5914 = vrot.slane %v5913, 2
    %v5915 = vmax.f32 %v5913, %v5914
    %v5916 = vrot.slane %v5915, 1
    %v5917 = vmax.f32 %v5915, %v5916
    %v5918 = vsel %vm5525, %v5027, -inf
    %v5919 = vrot.slane %v5918, 4
    %v5920 = vmax.f32 %v5918, %v5919
    %v5921 = vrot.slane %v5920, 2
    %v5922 = vmax.f32 %v5920, %v5921
    %v5923 = vrot.slane %v5922, 1
    %v5924 = vmax.f32 %v5922, %v5923
    %v5925 = vsel %vm5525, %v5183, -inf
    %v5926 = vrot.slane %v5925, 4
    %v5927 = vmax.f32 %v5925, %v5926
    %v5928 = vrot.slane %v5927, 2
    %v5929 = vmax.f32 %v5927, %v5928
    %v5930 = vrot.slane %v5929, 1
    %v5931 = vmax.f32 %v5929, %v5930
    %v5932 = vsel %vm5525, %v5184, -inf
    %v5933 = vrot.slane %v5932, 4
    %v5934 = vmax.f32 %v5932, %v5933
    %v5935 = vrot.slane %v5934, 2
    %v5936 = vmax.f32 %v5934, %v5935
    %v5937 = vrot.slane %v5936, 1
    %v5938 = vmax.f32 %v5936, %v5937
    %v5939 = vsel %vm5525, %v5185, -inf
    %v5940 = vrot.slane %v5939, 4
    %v5941 = vmax.f32 %v5939, %v5940
    %v5942 = vrot.slane %v5941, 2
    %v5943 = vmax.f32 %v5941, %v5942
    %v5944 = vrot.slane %v5943, 1
    %v5945 = vmax.f32 %v5943, %v5944
    %v5946 = vsel %vm5525, %v5028, -inf
    %v5947 = vrot.slane %v5946, 4
    %v5948 = vmax.f32 %v5946, %v5947
    %v5949 = vrot.slane %v5948, 2
    %v5950 = vmax.f32 %v5948, %v5949
    %v5951 = vrot.slane %v5950, 1
    %v5952 = vmax.f32 %v5950, %v5951
    %v5953 = vsel %vm5525, %v5186, -inf
    %v5954 = vrot.slane %v5953, 4
    %v5955 = vmax.f32 %v5953, %v5954
    %v5956 = vrot.slane %v5955, 2
    %v5957 = vmax.f32 %v5955, %v5956
    %v5958 = vrot.slane %v5957, 1
    %v5959 = vmax.f32 %v5957, %v5958
    %v5960 = vsel %vm5525, %v5187, -inf
    %v5961 = vrot.slane %v5960, 4
    %v5962 = vmax.f32 %v5960, %v5961
    %v5963 = vrot.slane %v5962, 2
    %v5964 = vmax.f32 %v5962, %v5963
    %v5965 = vrot.slane %v5964, 1
    %v5966 = vmax.f32 %v5964, %v5965
    %v5967 = vsel %vm5525, %v5188, -inf
    %v5968 = vrot.slane %v5967, 4
    %v5969 = vmax.f32 %v5967, %v5968
    %v5970 = vrot.slane %v5969, 2
    %v5971 = vmax.f32 %v5969, %v5970
    %v5972 = vrot.slane %v5971, 1
    %v5973 = vmax.f32 %v5971, %v5972
    %v5974 = vsel %vm5525, %v5029, -inf
    %v5975 = vrot.slane %v5974, 4
    %v5976 = vmax.f32 %v5974, %v5975
    %v5977 = vrot.slane %v5976, 2
    %v5978 = vmax.f32 %v5976, %v5977
    %v5979 = vrot.slane %v5978, 1
    %v5980 = vmax.f32 %v5978, %v5979
    %v5981 = vsel %vm5525, %v5189, -inf
    %v5982 = vrot.slane %v5981, 4
    %v5983 = vmax.f32 %v5981, %v5982
    %v5984 = vrot.slane %v5983, 2
    %v5985 = vmax.f32 %v5983, %v5984
    %v5986 = vrot.slane %v5985, 1
    %v5987 = vmax.f32 %v5985, %v5986
    %v5988 = vsel %vm5525, %v5190, -inf
    %v5989 = vrot.slane %v5988, 4
    %v5990 = vmax.f32 %v5988, %v5989
    %v5991 = vrot.slane %v5990, 2
    %v5992 = vmax.f32 %v5990, %v5991
    %v5993 = vrot.slane %v5992, 1
    %v5994 = vmax.f32 %v5992, %v5993
    %v5995 = vsel %vm5525, %v5191, -inf
    %v5996 = vrot.slane %v5995, 4
    %v5997 = vmax.f32 %v5995, %v5996
    %v5998 = vrot.slane %v5997, 2
    %v5999 = vmax.f32 %v5997, %v5998
    %v6000 = vrot.slane %v5999, 1
    %v6001 = vmax.f32 %v5999, %v6000
    %v6002 = vsel %vm5525, %v5030, -inf
    %v6003 = vrot.slane %v6002, 4
    %v6004 = vmax.f32 %v6002, %v6003
    %v6005 = vrot.slane %v6004, 2
    %v6006 = vmax.f32 %v6004, %v6005
    %v6007 = vrot.slane %v6006, 1
    %v6008 = vmax.f32 %v6006, %v6007
    %v6009 = vsel %vm5525, %v5192, -inf
    %v6010 = vrot.slane %v6009, 4
    %v6011 = vmax.f32 %v6009, %v6010
    %v6012 = vrot.slane %v6011, 2
    %v6013 = vmax.f32 %v6011, %v6012
    %v6014 = vrot.slane %v6013, 1
    %v6015 = vmax.f32 %v6013, %v6014
    %v6016 = vsel %vm5525, %v5193, -inf
    %v6017 = vrot.slane %v6016, 4
    %v6018 = vmax.f32 %v6016, %v6017
    %v6019 = vrot.slane %v6018, 2
    %v6020 = vmax.f32 %v6018, %v6019
    %v6021 = vrot.slane %v6020, 1
    %v6022 = vmax.f32 %v6020, %v6021
    %v6023 = vsel %vm5525, %v5194, -inf
    %v6024 = vrot.slane %v6023, 4
    %v6025 = vmax.f32 %v6023, %v6024
    %v6026 = vrot.slane %v6025, 2
    %v6027 = vmax.f32 %v6025, %v6026
    %v6028 = vrot.slane %v6027, 1
    %v6029 = vmax.f32 %v6027, %v6028
    %v6030 = vsel %vm5525, %v5031, -inf
    %v6031 = vrot.slane %v6030, 4
    %v6032 = vmax.f32 %v6030, %v6031
    %v6033 = vrot.slane %v6032, 2
    %v6034 = vmax.f32 %v6032, %v6033
    %v6035 = vrot.slane %v6034, 1
    %v6036 = vmax.f32 %v6034, %v6035
    %v6037 = vsel %vm5525, %v5195, -inf
    %v6038 = vrot.slane %v6037, 4
    %v6039 = vmax.f32 %v6037, %v6038
    %v6040 = vrot.slane %v6039, 2
    %v6041 = vmax.f32 %v6039, %v6040
    %v6042 = vrot.slane %v6041, 1
    %v6043 = vmax.f32 %v6041, %v6042
    %v6044 = vsel %vm5525, %v5196, -inf
    %v6045 = vrot.slane %v6044, 4
    %v6046 = vmax.f32 %v6044, %v6045
    %v6047 = vrot.slane %v6046, 2
    %v6048 = vmax.f32 %v6046, %v6047
    %v6049 = vrot.slane %v6048, 1
    %v6050 = vmax.f32 %v6048, %v6049
    %v6051 = vsel %vm5525, %v5197, -inf
    %v6052 = vrot.slane %v6051, 4
    %v6053 = vmax.f32 %v6051, %v6052
    %v6054 = vrot.slane %v6053, 2
    %v6055 = vmax.f32 %v6053, %v6054
    %v6056 = vrot.slane %v6055, 1
    %v6057 = vmax.f32 %v6055, %v6056
    %v6058 = vsel %vm5525, %v5032, -inf
    %v6059 = vrot.slane %v6058, 4
    %v6060 = vmax.f32 %v6058, %v6059
    %v6061 = vrot.slane %v6060, 2
    %v6062 = vmax.f32 %v6060, %v6061
    %v6063 = vrot.slane %v6062, 1
    %v6064 = vmax.f32 %v6062, %v6063
    %v6065 = vsel %vm5525, %v5198, -inf
    %v6066 = vrot.slane %v6065, 4
    %v6067 = vmax.f32 %v6065, %v6066
    %v6068 = vrot.slane %v6067, 2
    %v6069 = vmax.f32 %v6067, %v6068
    %v6070 = vrot.slane %v6069, 1
    %v6071 = vmax.f32 %v6069, %v6070
    %v6072 = vsel %vm5525, %v5199, -inf
    %v6073 = vrot.slane %v6072, 4
    %v6074 = vmax.f32 %v6072, %v6073
    %v6075 = vrot.slane %v6074, 2
    %v6076 = vmax.f32 %v6074, %v6075
    %v6077 = vrot.slane %v6076, 1
    %v6078 = vmax.f32 %v6076, %v6077
    %v6079 = vsel %vm5525, %v5200, -inf
    %v6080 = vrot.slane %v6079, 4
    %v6081 = vmax.f32 %v6079, %v6080
    %v6082 = vrot.slane %v6081, 2
    %v6083 = vmax.f32 %v6081, %v6082
    %v6084 = vrot.slane %v6083, 1
    %v6085 = vmax.f32 %v6083, %v6084
    %v6086 = vsel %vm5525, %v5033, -inf
    %v6087 = vrot.slane %v6086, 4
    %v6088 = vmax.f32 %v6086, %v6087
    %v6089 = vrot.slane %v6088, 2
    %v6090 = vmax.f32 %v6088, %v6089
    %v6091 = vrot.slane %v6090, 1
    %v6092 = vmax.f32 %v6090, %v6091
    %v6093 = vsel %vm5525, %v5201, -inf
    %v6094 = vrot.slane %v6093, 4
    %v6095 = vmax.f32 %v6093, %v6094
    %v6096 = vrot.slane %v6095, 2
    %v6097 = vmax.f32 %v6095, %v6096
    %v6098 = vrot.slane %v6097, 1
    %v6099 = vmax.f32 %v6097, %v6098
    %v6100 = vsel %vm5525, %v5202, -inf
    %v6101 = vrot.slane %v6100, 4
    %v6102 = vmax.f32 %v6100, %v6101
    %v6103 = vrot.slane %v6102, 2
    %v6104 = vmax.f32 %v6102, %v6103
    %v6105 = vrot.slane %v6104, 1
    %v6106 = vmax.f32 %v6104, %v6105
    %v6107 = vsel %vm5525, %v5203, -inf
    %v6108 = vrot.slane %v6107, 4
    %v6109 = vmax.f32 %v6107, %v6108
    %v6110 = vrot.slane %v6109, 2
    %v6111 = vmax.f32 %v6109, %v6110
    %v6112 = vrot.slane %v6111, 1
    %v6113 = vmax.f32 %v6111, %v6112
    %v6114 = vsel %vm5525, %v5034, -inf
    %v6115 = vrot.slane %v6114, 4
    %v6116 = vmax.f32 %v6114, %v6115
    %v6117 = vrot.slane %v6116, 2
    %v6118 = vmax.f32 %v6116, %v6117
    %v6119 = vrot.slane %v6118, 1
    %v6120 = vmax.f32 %v6118, %v6119
    %v6121 = vsel %vm5525, %v5204, -inf
    %v6122 = vrot.slane %v6121, 4
    %v6123 = vmax.f32 %v6121, %v6122
    %v6124 = vrot.slane %v6123, 2
    %v6125 = vmax.f32 %v6123, %v6124
    %v6126 = vrot.slane %v6125, 1
    %v6127 = vmax.f32 %v6125, %v6126
    %v6128 = vsel %vm5525, %v5205, -inf
    %v6129 = vrot.slane %v6128, 4
    %v6130 = vmax.f32 %v6128, %v6129
    %v6131 = vrot.slane %v6130, 2
    %v6132 = vmax.f32 %v6130, %v6131
    %v6133 = vrot.slane %v6132, 1
    %v6134 = vmax.f32 %v6132, %v6133
    %v6135 = vsel %vm5525, %v5206, -inf
    %v6136 = vrot.slane %v6135, 4
    %v6137 = vmax.f32 %v6135, %v6136
    %v6138 = vrot.slane %v6137, 2
    %v6139 = vmax.f32 %v6137, %v6138
    %v6140 = vrot.slane %v6139, 1
    %v6141 = vmax.f32 %v6139, %v6140
    %v6142 = vsel %vm5525, %v5035, -inf
    %v6143 = vrot.slane %v6142, 4
    %v6144 = vmax.f32 %v6142, %v6143
    %v6145 = vrot.slane %v6144, 2
    %v6146 = vmax.f32 %v6144, %v6145
    %v6147 = vrot.slane %v6146, 1
    %v6148 = vmax.f32 %v6146, %v6147
    %v6149 = vsel %vm5525, %v5207, -inf
    %v6150 = vrot.slane %v6149, 4
    %v6151 = vmax.f32 %v6149, %v6150
    %v6152 = vrot.slane %v6151, 2
    %v6153 = vmax.f32 %v6151, %v6152
    %v6154 = vrot.slane %v6153, 1
    %v6155 = vmax.f32 %v6153, %v6154
    %v6156 = vsel %vm5525, %v5208, -inf
    %v6157 = vrot.slane %v6156, 4
    %v6158 = vmax.f32 %v6156, %v6157
    %v6159 = vrot.slane %v6158, 2
    %v6160 = vmax.f32 %v6158, %v6159
    %v6161 = vrot.slane %v6160, 1
    %v6162 = vmax.f32 %v6160, %v6161
    %v6163 = vsel %vm5525, %v5209, -inf
    %v6164 = vrot.slane %v6163, 4
    %v6165 = vmax.f32 %v6163, %v6164
    %v6166 = vrot.slane %v6165, 2
    %v6167 = vmax.f32 %v6165, %v6166
    %v6168 = vrot.slane %v6167, 1
    %v6169 = vmax.f32 %v6167, %v6168
    %v6170 = vsel %vm5525, %v5036, -inf
    %v6171 = vrot.slane %v6170, 4
    %v6172 = vmax.f32 %v6170, %v6171
    %v6173 = vrot.slane %v6172, 2
    %v6174 = vmax.f32 %v6172, %v6173
    %v6175 = vrot.slane %v6174, 1
    %v6176 = vmax.f32 %v6174, %v6175
    %v6177 = vsel %vm5525, %v5210, -inf
    %v6178 = vrot.slane %v6177, 4
    %v6179 = vmax.f32 %v6177, %v6178
    %v6180 = vrot.slane %v6179, 2
    %v6181 = vmax.f32 %v6179, %v6180
    %v6182 = vrot.slane %v6181, 1
    %v6183 = vmax.f32 %v6181, %v6182
    %v6184 = vsel %vm5525, %v5211, -inf
    %v6185 = vrot.slane %v6184, 4
    %v6186 = vmax.f32 %v6184, %v6185
    %v6187 = vrot.slane %v6186, 2
    %v6188 = vmax.f32 %v6186, %v6187
    %v6189 = vrot.slane %v6188, 1
    %v6190 = vmax.f32 %v6188, %v6189
    %v6191 = vsel %vm5525, %v5212, -inf
    %v6192 = vrot.slane %v6191, 4
    %v6193 = vmax.f32 %v6191, %v6192
    %v6194 = vrot.slane %v6193, 2
    %v6195 = vmax.f32 %v6193, %v6194
    %v6196 = vrot.slane %v6195, 1
    %v6197 = vmax.f32 %v6195, %v6196
    %v6198 = vsel %vm5525, %v5037, -inf
    %v6199 = vrot.slane %v6198, 4
    %v6200 = vmax.f32 %v6198, %v6199
    %v6201 = vrot.slane %v6200, 2
    %v6202 = vmax.f32 %v6200, %v6201
    %v6203 = vrot.slane %v6202, 1
    %v6204 = vmax.f32 %v6202, %v6203
    %v6205 = vsel %vm5525, %v5213, -inf
    %v6206 = vrot.slane %v6205, 4
    %v6207 = vmax.f32 %v6205, %v6206
    %v6208 = vrot.slane %v6207, 2
    %v6209 = vmax.f32 %v6207, %v6208
    %v6210 = vrot.slane %v6209, 1
    %v6211 = vmax.f32 %v6209, %v6210
    %v6212 = vsel %vm5525, %v5214, -inf
    %v6213 = vrot.slane %v6212, 4
    %v6214 = vmax.f32 %v6212, %v6213
    %v6215 = vrot.slane %v6214, 2
    %v6216 = vmax.f32 %v6214, %v6215
    %v6217 = vrot.slane %v6216, 1
    %v6218 = vmax.f32 %v6216, %v6217
    %v6219 = vsel %vm5525, %v5215, -inf
    %v6220 = vrot.slane %v6219, 4
    %v6221 = vmax.f32 %v6219, %v6220
    %v6222 = vrot.slane %v6221, 2
    %v6223 = vmax.f32 %v6221, %v6222
    %v6224 = vrot.slane %v6223, 1
    %v6225 = vmax.f32 %v6223, %v6224
    %v6226 = vsel %vm5525, %v5038, -inf
    %v6227 = vrot.slane %v6226, 4
    %v6228 = vmax.f32 %v6226, %v6227
    %v6229 = vrot.slane %v6228, 2
    %v6230 = vmax.f32 %v6228, %v6229
    %v6231 = vrot.slane %v6230, 1
    %v6232 = vmax.f32 %v6230, %v6231
    %v6233 = vsel %vm5525, %v5216, -inf
    %v6234 = vrot.slane %v6233, 4
    %v6235 = vmax.f32 %v6233, %v6234
    %v6236 = vrot.slane %v6235, 2
    %v6237 = vmax.f32 %v6235, %v6236
    %v6238 = vrot.slane %v6237, 1
    %v6239 = vmax.f32 %v6237, %v6238
    %v6240 = vsel %vm5525, %v5217, -inf
    %v6241 = vrot.slane %v6240, 4
    %v6242 = vmax.f32 %v6240, %v6241
    %v6243 = vrot.slane %v6242, 2
    %v6244 = vmax.f32 %v6242, %v6243
    %v6245 = vrot.slane %v6244, 1
    %v6246 = vmax.f32 %v6244, %v6245
    %v6247 = vsel %vm5525, %v5218, -inf
    %v6248 = vrot.slane %v6247, 4
    %v6249 = vmax.f32 %v6247, %v6248
    %v6250 = vrot.slane %v6249, 2
    %v6251 = vmax.f32 %v6249, %v6250
    %v6252 = vrot.slane %v6251, 1
    %v6253 = vmax.f32 %v6251, %v6252
    %v6254 = vsel %vm5525, %v5039, -inf
    %v6255 = vrot.slane %v6254, 4
    %v6256 = vmax.f32 %v6254, %v6255
    %v6257 = vrot.slane %v6256, 2
    %v6258 = vmax.f32 %v6256, %v6257
    %v6259 = vrot.slane %v6258, 1
    %v6260 = vmax.f32 %v6258, %v6259
    %v6261 = vsel %vm5525, %v5219, -inf
    %v6262 = vrot.slane %v6261, 4
    %v6263 = vmax.f32 %v6261, %v6262
    %v6264 = vrot.slane %v6263, 2
    %v6265 = vmax.f32 %v6263, %v6264
    %v6266 = vrot.slane %v6265, 1
    %v6267 = vmax.f32 %v6265, %v6266
    %v6268 = vsel %vm5525, %v5220, -inf
    %v6269 = vrot.slane %v6268, 4
    %v6270 = vmax.f32 %v6268, %v6269
    %v6271 = vrot.slane %v6270, 2
    %v6272 = vmax.f32 %v6270, %v6271
    %v6273 = vrot.slane %v6272, 1
    %v6274 = vmax.f32 %v6272, %v6273
    %v6275 = vsel %vm5525, %v5221, -inf
    %v6276 = vrot.slane %v6275, 4
    %v6277 = vmax.f32 %v6275, %v6276
    %v6278 = vrot.slane %v6277, 2
    %v6279 = vmax.f32 %v6277, %v6278
    %v6280 = vrot.slane %v6279, 1
    %v6281 = vmax.f32 %v6279, %v6280
    %v6282 = vsel %vm5525, %v5040, -inf
    %v6283 = vrot.slane %v6282, 4
    %v6284 = vmax.f32 %v6282, %v6283
    %v6285 = vrot.slane %v6284, 2
    %v6286 = vmax.f32 %v6284, %v6285
    %v6287 = vrot.slane %v6286, 1
    %v6288 = vmax.f32 %v6286, %v6287
    %v6289 = vsel %vm5525, %v5222, -inf
    %v6290 = vrot.slane %v6289, 4
    %v6291 = vmax.f32 %v6289, %v6290
    %v6292 = vrot.slane %v6291, 2
    %v6293 = vmax.f32 %v6291, %v6292
    %v6294 = vrot.slane %v6293, 1
    %v6295 = vmax.f32 %v6293, %v6294
    %v6296 = vsel %vm5525, %v5223, -inf
    %v6297 = vrot.slane %v6296, 4
    %v6298 = vmax.f32 %v6296, %v6297
    %v6299 = vrot.slane %v6298, 2
    %v6300 = vmax.f32 %v6298, %v6299
    %v6301 = vrot.slane %v6300, 1
    %v6302 = vmax.f32 %v6300, %v6301
    %v6303 = vsel %vm5525, %v5224, -inf
    %v6304 = vrot.slane %v6303, 4
    %v6305 = vmax.f32 %v6303, %v6304
    %v6306 = vrot.slane %v6305, 2
    %v6307 = vmax.f32 %v6305, %v6306
    %v6308 = vrot.slane %v6307, 1
    %v6309 = vmax.f32 %v6307, %v6308
    %v6310 = vsel %vm5525, %v5041, -inf
    %v6311 = vrot.slane %v6310, 4
    %v6312 = vmax.f32 %v6310, %v6311
    %v6313 = vrot.slane %v6312, 2
    %v6314 = vmax.f32 %v6312, %v6313
    %v6315 = vrot.slane %v6314, 1
    %v6316 = vmax.f32 %v6314, %v6315
    %v6317 = vsel %vm5525, %v5225, -inf
    %v6318 = vrot.slane %v6317, 4
    %v6319 = vmax.f32 %v6317, %v6318
    %v6320 = vrot.slane %v6319, 2
    %v6321 = vmax.f32 %v6319, %v6320
    %v6322 = vrot.slane %v6321, 1
    %v6323 = vmax.f32 %v6321, %v6322
    %v6324 = vsel %vm5525, %v5226, -inf
    %v6325 = vrot.slane %v6324, 4
    %v6326 = vmax.f32 %v6324, %v6325
    %v6327 = vrot.slane %v6326, 2
    %v6328 = vmax.f32 %v6326, %v6327
    %v6329 = vrot.slane %v6328, 1
    %v6330 = vmax.f32 %v6328, %v6329
    %v6331 = vsel %vm5525, %v5227, -inf
    %v6332 = vrot.slane %v6331, 4
    %v6333 = vmax.f32 %v6331, %v6332
    %v6334 = vrot.slane %v6333, 2
    %v6335 = vmax.f32 %v6333, %v6334
    %v6336 = vrot.slane %v6335, 1
    %v6337 = vmax.f32 %v6335, %v6336
    %v6338 = vsel %vm5525, %v5042, -inf
    %v6339 = vrot.slane %v6338, 4
    %v6340 = vmax.f32 %v6338, %v6339
    %v6341 = vrot.slane %v6340, 2
    %v6342 = vmax.f32 %v6340, %v6341
    %v6343 = vrot.slane %v6342, 1
    %v6344 = vmax.f32 %v6342, %v6343
    %v6345 = vsel %vm5525, %v5228, -inf
    %v6346 = vrot.slane %v6345, 4
    %v6347 = vmax.f32 %v6345, %v6346
    %v6348 = vrot.slane %v6347, 2
    %v6349 = vmax.f32 %v6347, %v6348
    %v6350 = vrot.slane %v6349, 1
    %v6351 = vmax.f32 %v6349, %v6350
    %v6352 = vsel %vm5525, %v5229, -inf
    %v6353 = vrot.slane %v6352, 4
    %v6354 = vmax.f32 %v6352, %v6353
    %v6355 = vrot.slane %v6354, 2
    %v6356 = vmax.f32 %v6354, %v6355
    %v6357 = vrot.slane %v6356, 1
    %v6358 = vmax.f32 %v6356, %v6357
    %v6359 = vsel %vm5525, %v5230, -inf
    %v6360 = vrot.slane %v6359, 4
    %v6361 = vmax.f32 %v6359, %v6360
    %v6362 = vrot.slane %v6361, 2
    %v6363 = vmax.f32 %v6361, %v6362
    %v6364 = vrot.slane %v6363, 1
    %v6365 = vmax.f32 %v6363, %v6364
    %v6366 = vsel %vm5525, %v5043, -inf
    %v6367 = vrot.slane %v6366, 4
    %v6368 = vmax.f32 %v6366, %v6367
    %v6369 = vrot.slane %v6368, 2
    %v6370 = vmax.f32 %v6368, %v6369
    %v6371 = vrot.slane %v6370, 1
    %v6372 = vmax.f32 %v6370, %v6371
    %v6373 = vsel %vm5525, %v5231, -inf
    %v6374 = vrot.slane %v6373, 4
    %v6375 = vmax.f32 %v6373, %v6374
    %v6376 = vrot.slane %v6375, 2
    %v6377 = vmax.f32 %v6375, %v6376
    %v6378 = vrot.slane %v6377, 1
    %v6379 = vmax.f32 %v6377, %v6378
    %v6380 = vsel %vm5525, %v5232, -inf
    %v6381 = vrot.slane %v6380, 4
    %v6382 = vmax.f32 %v6380, %v6381
    %v6383 = vrot.slane %v6382, 2
    %v6384 = vmax.f32 %v6382, %v6383
    %v6385 = vrot.slane %v6384, 1
    %v6386 = vmax.f32 %v6384, %v6385
    %v6387 = vsel %vm5525, %v5233, -inf
    %v6388 = vrot.slane %v6387, 4
    %v6389 = vmax.f32 %v6387, %v6388
    %v6390 = vrot.slane %v6389, 2
    %v6391 = vmax.f32 %v6389, %v6390
    %v6392 = vrot.slane %v6391, 1
    %v6393 = vmax.f32 %v6391, %v6392
    %v6394 = vsel %vm5525, %v5044, -inf
    %v6395 = vrot.slane %v6394, 4
    %v6396 = vmax.f32 %v6394, %v6395
    %v6397 = vrot.slane %v6396, 2
    %v6398 = vmax.f32 %v6396, %v6397
    %v6399 = vrot.slane %v6398, 1
    %v6400 = vmax.f32 %v6398, %v6399
    %v6401 = vsel %vm5525, %v5234, -inf
    %v6402 = vrot.slane %v6401, 4
    %v6403 = vmax.f32 %v6401, %v6402
    %v6404 = vrot.slane %v6403, 2
    %v6405 = vmax.f32 %v6403, %v6404
    %v6406 = vrot.slane %v6405, 1
    %v6407 = vmax.f32 %v6405, %v6406
    %v6408 = vsel %vm5525, %v5235, -inf
    %v6409 = vrot.slane %v6408, 4
    %v6410 = vmax.f32 %v6408, %v6409
    %v6411 = vrot.slane %v6410, 2
    %v6412 = vmax.f32 %v6410, %v6411
    %v6413 = vrot.slane %v6412, 1
    %v6414 = vmax.f32 %v6412, %v6413
    %v6415 = vsel %vm5525, %v5236, -inf
    %v6416 = vrot.slane %v6415, 4
    %v6417 = vmax.f32 %v6415, %v6416
    %v6418 = vrot.slane %v6417, 2
    %v6419 = vmax.f32 %v6417, %v6418
    %v6420 = vrot.slane %v6419, 1
    %v6421 = vmax.f32 %v6419, %v6420
    %v6422 = vsel %vm5525, %v5045, -inf
    %v6423 = vrot.slane %v6422, 4
    %v6424 = vmax.f32 %v6422, %v6423
    %v6425 = vrot.slane %v6424, 2
    %v6426 = vmax.f32 %v6424, %v6425
    %v6427 = vrot.slane %v6426, 1
    %v6428 = vmax.f32 %v6426, %v6427
    %v6429 = vsel %vm5525, %v5237, -inf
    %v6430 = vrot.slane %v6429, 4
    %v6431 = vmax.f32 %v6429, %v6430
    %v6432 = vrot.slane %v6431, 2
    %v6433 = vmax.f32 %v6431, %v6432
    %v6434 = vrot.slane %v6433, 1
    %v6435 = vmax.f32 %v6433, %v6434
    %v6436 = vsel %vm5525, %v5238, -inf
    %v6437 = vrot.slane %v6436, 4
    %v6438 = vmax.f32 %v6436, %v6437
    %v6439 = vrot.slane %v6438, 2
    %v6440 = vmax.f32 %v6438, %v6439
    %v6441 = vrot.slane %v6440, 1
    %v6442 = vmax.f32 %v6440, %v6441
    %v6443 = vsel %vm5525, %v5239, -inf
    %v6444 = vrot.slane %v6443, 4
    %v6445 = vmax.f32 %v6443, %v6444
    %v6446 = vrot.slane %v6445, 2
    %v6447 = vmax.f32 %v6445, %v6446
    %v6448 = vrot.slane %v6447, 1
    %v6449 = vmax.f32 %v6447, %v6448
    %v6450 = vsel %vm5525, %v5046, -inf
    %v6451 = vrot.slane %v6450, 4
    %v6452 = vmax.f32 %v6450, %v6451
    %v6453 = vrot.slane %v6452, 2
    %v6454 = vmax.f32 %v6452, %v6453
    %v6455 = vrot.slane %v6454, 1
    %v6456 = vmax.f32 %v6454, %v6455
    %v6457 = vsel %vm5525, %v5240, -inf
    %v6458 = vrot.slane %v6457, 4
    %v6459 = vmax.f32 %v6457, %v6458
    %v6460 = vrot.slane %v6459, 2
    %v6461 = vmax.f32 %v6459, %v6460
    %v6462 = vrot.slane %v6461, 1
    %v6463 = vmax.f32 %v6461, %v6462
    %v6464 = vsel %vm5525, %v5241, -inf
    %v6465 = vrot.slane %v6464, 4
    %v6466 = vmax.f32 %v6464, %v6465
    %v6467 = vrot.slane %v6466, 2
    %v6468 = vmax.f32 %v6466, %v6467
    %v6469 = vrot.slane %v6468, 1
    %v6470 = vmax.f32 %v6468, %v6469
    %v6471 = vsel %vm5525, %v5242, -inf
    %v6472 = vrot.slane %v6471, 4
    %v6473 = vmax.f32 %v6471, %v6472
    %v6474 = vrot.slane %v6473, 2
    %v6475 = vmax.f32 %v6473, %v6474
    %v6476 = vrot.slane %v6475, 1
    %v6477 = vmax.f32 %v6475, %v6476
    %v6478 = vsel %vm5525, %v5047, -inf
    %v6479 = vrot.slane %v6478, 4
    %v6480 = vmax.f32 %v6478, %v6479
    %v6481 = vrot.slane %v6480, 2
    %v6482 = vmax.f32 %v6480, %v6481
    %v6483 = vrot.slane %v6482, 1
    %v6484 = vmax.f32 %v6482, %v6483
    %v6485 = vsel %vm5525, %v5243, -inf
    %v6486 = vrot.slane %v6485, 4
    %v6487 = vmax.f32 %v6485, %v6486
    %v6488 = vrot.slane %v6487, 2
    %v6489 = vmax.f32 %v6487, %v6488
    %v6490 = vrot.slane %v6489, 1
    %v6491 = vmax.f32 %v6489, %v6490
    %v6492 = vsel %vm5525, %v5244, -inf
    %v6493 = vrot.slane %v6492, 4
    %v6494 = vmax.f32 %v6492, %v6493
    %v6495 = vrot.slane %v6494, 2
    %v6496 = vmax.f32 %v6494, %v6495
    %v6497 = vrot.slane %v6496, 1
    %v6498 = vmax.f32 %v6496, %v6497
    %v6499 = vsel %vm5525, %v5245, -inf
    %v6500 = vrot.slane %v6499, 4
    %v6501 = vmax.f32 %v6499, %v6500
    %v6502 = vrot.slane %v6501, 2
    %v6503 = vmax.f32 %v6501, %v6502
    %v6504 = vrot.slane %v6503, 1
    %v6505 = vmax.f32 %v6503, %v6504
    %v6506 = vsel %vm5525, %v5048, -inf
    %v6507 = vrot.slane %v6506, 4
    %v6508 = vmax.f32 %v6506, %v6507
    %v6509 = vrot.slane %v6508, 2
    %v6510 = vmax.f32 %v6508, %v6509
    %v6511 = vrot.slane %v6510, 1
    %v6512 = vmax.f32 %v6510, %v6511
    %v6513 = vsel %vm5525, %v5246, -inf
    %v6514 = vrot.slane %v6513, 4
    %v6515 = vmax.f32 %v6513, %v6514
    %v6516 = vrot.slane %v6515, 2
    %v6517 = vmax.f32 %v6515, %v6516
    %v6518 = vrot.slane %v6517, 1
    %v6519 = vmax.f32 %v6517, %v6518
    %v6520 = vsel %vm5525, %v5247, -inf
    %v6521 = vrot.slane %v6520, 4
    %v6522 = vmax.f32 %v6520, %v6521
    %v6523 = vrot.slane %v6522, 2
    %v6524 = vmax.f32 %v6522, %v6523
    %v6525 = vrot.slane %v6524, 1
    %v6526 = vmax.f32 %v6524, %v6525
    %v6527 = vsel %vm5525, %v5248, -inf
    %v6528 = vrot.slane %v6527, 4
    %v6529 = vmax.f32 %v6527, %v6528
    %v6530 = vrot.slane %v6529, 2
    %v6531 = vmax.f32 %v6529, %v6530
    %v6532 = vrot.slane %v6531, 1
    %v6533 = vmax.f32 %v6531, %v6532
    %v6534 = vsel %vm5525, %v5049, -inf
    %v6535 = vrot.slane %v6534, 4
    %v6536 = vmax.f32 %v6534, %v6535
    %v6537 = vrot.slane %v6536, 2
    %v6538 = vmax.f32 %v6536, %v6537
    %v6539 = vrot.slane %v6538, 1
    %v6540 = vmax.f32 %v6538, %v6539
    %v6541 = vsel %vm5525, %v5249, -inf
    %v6542 = vrot.slane %v6541, 4
    %v6543 = vmax.f32 %v6541, %v6542
    %v6544 = vrot.slane %v6543, 2
    %v6545 = vmax.f32 %v6543, %v6544
    %v6546 = vrot.slane %v6545, 1
    %v6547 = vmax.f32 %v6545, %v6546
    %v6548 = vsel %vm5525, %v5250, -inf
    %v6549 = vrot.slane %v6548, 4
    %v6550 = vmax.f32 %v6548, %v6549
    %v6551 = vrot.slane %v6550, 2
    %v6552 = vmax.f32 %v6550, %v6551
    %v6553 = vrot.slane %v6552, 1
    %v6554 = vmax.f32 %v6552, %v6553
    %v6555 = vsel %vm5525, %v5251, -inf
    %v6556 = vrot.slane %v6555, 4
    %v6557 = vmax.f32 %v6555, %v6556
    %v6558 = vrot.slane %v6557, 2
    %v6559 = vmax.f32 %v6557, %v6558
    %v6560 = vrot.slane %v6559, 1
    %v6561 = vmax.f32 %v6559, %v6560
    %v6562 = vsel %vm5525, %v5050, -inf
    %v6563 = vrot.slane %v6562, 4
    %v6564 = vmax.f32 %v6562, %v6563
    %v6565 = vrot.slane %v6564, 2
    %v6566 = vmax.f32 %v6564, %v6565
    %v6567 = vrot.slane %v6566, 1
    %v6568 = vmax.f32 %v6566, %v6567
    %v6569 = vsel %vm5525, %v5252, -inf
    %v6570 = vrot.slane %v6569, 4
    %v6571 = vmax.f32 %v6569, %v6570
    %v6572 = vrot.slane %v6571, 2
    %v6573 = vmax.f32 %v6571, %v6572
    %v6574 = vrot.slane %v6573, 1
    %v6575 = vmax.f32 %v6573, %v6574
    %v6576 = vsel %vm5525, %v5253, -inf
    %v6577 = vrot.slane %v6576, 4
    %v6578 = vmax.f32 %v6576, %v6577
    %v6579 = vrot.slane %v6578, 2
    %v6580 = vmax.f32 %v6578, %v6579
    %v6581 = vrot.slane %v6580, 1
    %v6582 = vmax.f32 %v6580, %v6581
    %v6583 = vsel %vm5525, %v5254, -inf
    %v6584 = vrot.slane %v6583, 4
    %v6585 = vmax.f32 %v6583, %v6584
    %v6586 = vrot.slane %v6585, 2
    %v6587 = vmax.f32 %v6585, %v6586
    %v6588 = vrot.slane %v6587, 1
    %v6589 = vmax.f32 %v6587, %v6588
    %v6590 = vsel %vm5525, %v5051, -inf
    %v6591 = vrot.slane %v6590, 4
    %v6592 = vmax.f32 %v6590, %v6591
    %v6593 = vrot.slane %v6592, 2
    %v6594 = vmax.f32 %v6592, %v6593
    %v6595 = vrot.slane %v6594, 1
    %v6596 = vmax.f32 %v6594, %v6595
    %v6597 = vsel %vm5525, %v5255, -inf
    %v6598 = vrot.slane %v6597, 4
    %v6599 = vmax.f32 %v6597, %v6598
    %v6600 = vrot.slane %v6599, 2
    %v6601 = vmax.f32 %v6599, %v6600
    %v6602 = vrot.slane %v6601, 1
    %v6603 = vmax.f32 %v6601, %v6602
    %v6604 = vsel %vm5525, %v5256, -inf
    %v6605 = vrot.slane %v6604, 4
    %v6606 = vmax.f32 %v6604, %v6605
    %v6607 = vrot.slane %v6606, 2
    %v6608 = vmax.f32 %v6606, %v6607
    %v6609 = vrot.slane %v6608, 1
    %v6610 = vmax.f32 %v6608, %v6609
    %v6611 = vsel %vm5525, %v5257, -inf
    %v6612 = vrot.slane %v6611, 4
    %v6613 = vmax.f32 %v6611, %v6612
    %v6614 = vrot.slane %v6613, 2
    %v6615 = vmax.f32 %v6613, %v6614
    %v6616 = vrot.slane %v6615, 1
    %v6617 = vmax.f32 %v6615, %v6616
    %v6618 = vsel %vm5525, %v5052, -inf
    %v6619 = vrot.slane %v6618, 4
    %v6620 = vmax.f32 %v6618, %v6619
    %v6621 = vrot.slane %v6620, 2
    %v6622 = vmax.f32 %v6620, %v6621
    %v6623 = vrot.slane %v6622, 1
    %v6624 = vmax.f32 %v6622, %v6623
    %v6625 = vsel %vm5525, %v5258, -inf
    %v6626 = vrot.slane %v6625, 4
    %v6627 = vmax.f32 %v6625, %v6626
    %v6628 = vrot.slane %v6627, 2
    %v6629 = vmax.f32 %v6627, %v6628
    %v6630 = vrot.slane %v6629, 1
    %v6631 = vmax.f32 %v6629, %v6630
    %v6632 = vsel %vm5525, %v5259, -inf
    %v6633 = vrot.slane %v6632, 4
    %v6634 = vmax.f32 %v6632, %v6633
    %v6635 = vrot.slane %v6634, 2
    %v6636 = vmax.f32 %v6634, %v6635
    %v6637 = vrot.slane %v6636, 1
    %v6638 = vmax.f32 %v6636, %v6637
    %v6639 = vsel %vm5525, %v5260, -inf
    %v6640 = vrot.slane %v6639, 4
    %v6641 = vmax.f32 %v6639, %v6640
    %v6642 = vrot.slane %v6641, 2
    %v6643 = vmax.f32 %v6641, %v6642
    %v6644 = vrot.slane %v6643, 1
    %v6645 = vmax.f32 %v6643, %v6644
    %v6646 = vsel %vm5525, %v5053, -inf
    %v6647 = vrot.slane %v6646, 4
    %v6648 = vmax.f32 %v6646, %v6647
    %v6649 = vrot.slane %v6648, 2
    %v6650 = vmax.f32 %v6648, %v6649
    %v6651 = vrot.slane %v6650, 1
    %v6652 = vmax.f32 %v6650, %v6651
    %v6653 = vsel %vm5525, %v5261, -inf
    %v6654 = vrot.slane %v6653, 4
    %v6655 = vmax.f32 %v6653, %v6654
    %v6656 = vrot.slane %v6655, 2
    %v6657 = vmax.f32 %v6655, %v6656
    %v6658 = vrot.slane %v6657, 1
    %v6659 = vmax.f32 %v6657, %v6658
    %v6660 = vsel %vm5525, %v5262, -inf
    %v6661 = vrot.slane %v6660, 4
    %v6662 = vmax.f32 %v6660, %v6661
    %v6663 = vrot.slane %v6662, 2
    %v6664 = vmax.f32 %v6662, %v6663
    %v6665 = vrot.slane %v6664, 1
    %v6666 = vmax.f32 %v6664, %v6665
    %v6667 = vsel %vm5525, %v5263, -inf
    %v6668 = vrot.slane %v6667, 4
    %v6669 = vmax.f32 %v6667, %v6668
    %v6670 = vrot.slane %v6669, 2
    %v6671 = vmax.f32 %v6669, %v6670
    %v6672 = vrot.slane %v6671, 1
    %v6673 = vmax.f32 %v6671, %v6672
    %v6674 = vsel %vm5525, %v5054, -inf
    %v6675 = vrot.slane %v6674, 4
    %v6676 = vmax.f32 %v6674, %v6675
    %v6677 = vrot.slane %v6676, 2
    %v6678 = vmax.f32 %v6676, %v6677
    %v6679 = vrot.slane %v6678, 1
    %v6680 = vmax.f32 %v6678, %v6679
    %v6681 = vsel %vm5525, %v5264, -inf
    %v6682 = vrot.slane %v6681, 4
    %v6683 = vmax.f32 %v6681, %v6682
    %v6684 = vrot.slane %v6683, 2
    %v6685 = vmax.f32 %v6683, %v6684
    %v6686 = vrot.slane %v6685, 1
    %v6687 = vmax.f32 %v6685, %v6686
    %v6688 = vsel %vm5525, %v5265, -inf
    %v6689 = vrot.slane %v6688, 4
    %v6690 = vmax.f32 %v6688, %v6689
    %v6691 = vrot.slane %v6690, 2
    %v6692 = vmax.f32 %v6690, %v6691
    %v6693 = vrot.slane %v6692, 1
    %v6694 = vmax.f32 %v6692, %v6693
    %v6695 = vsel %vm5525, %v5266, -inf
    %v6696 = vrot.slane %v6695, 4
    %v6697 = vmax.f32 %v6695, %v6696
    %v6698 = vrot.slane %v6697, 2
    %v6699 = vmax.f32 %v6697, %v6698
    %v6700 = vrot.slane %v6699, 1
    %v6701 = vmax.f32 %v6699, %v6700
    %v6702 = vsel %vm5525, %v5055, -inf
    %v6703 = vrot.slane %v6702, 4
    %v6704 = vmax.f32 %v6702, %v6703
    %v6705 = vrot.slane %v6704, 2
    %v6706 = vmax.f32 %v6704, %v6705
    %v6707 = vrot.slane %v6706, 1
    %v6708 = vmax.f32 %v6706, %v6707
    %v6709 = vsel %vm5525, %v5267, -inf
    %v6710 = vrot.slane %v6709, 4
    %v6711 = vmax.f32 %v6709, %v6710
    %v6712 = vrot.slane %v6711, 2
    %v6713 = vmax.f32 %v6711, %v6712
    %v6714 = vrot.slane %v6713, 1
    %v6715 = vmax.f32 %v6713, %v6714
    %v6716 = vsel %vm5525, %v5268, -inf
    %v6717 = vrot.slane %v6716, 4
    %v6718 = vmax.f32 %v6716, %v6717
    %v6719 = vrot.slane %v6718, 2
    %v6720 = vmax.f32 %v6718, %v6719
    %v6721 = vrot.slane %v6720, 1
    %v6722 = vmax.f32 %v6720, %v6721
    %v6723 = vsel %vm5525, %v5269, -inf
    %v6724 = vrot.slane %v6723, 4
    %v6725 = vmax.f32 %v6723, %v6724
    %v6726 = vrot.slane %v6725, 2
    %v6727 = vmax.f32 %v6725, %v6726
    %v6728 = vrot.slane %v6727, 1
    %v6729 = vmax.f32 %v6727, %v6728
    %v6730 = vsel %vm5525, %v5056, -inf
    %v6731 = vrot.slane %v6730, 4
    %v6732 = vmax.f32 %v6730, %v6731
    %v6733 = vrot.slane %v6732, 2
    %v6734 = vmax.f32 %v6732, %v6733
    %v6735 = vrot.slane %v6734, 1
    %v6736 = vmax.f32 %v6734, %v6735
    %v6737 = vsel %vm5525, %v5270, -inf
    %v6738 = vrot.slane %v6737, 4
    %v6739 = vmax.f32 %v6737, %v6738
    %v6740 = vrot.slane %v6739, 2
    %v6741 = vmax.f32 %v6739, %v6740
    %v6742 = vrot.slane %v6741, 1
    %v6743 = vmax.f32 %v6741, %v6742
    %v6744 = vsel %vm5525, %v5271, -inf
    %v6745 = vrot.slane %v6744, 4
    %v6746 = vmax.f32 %v6744, %v6745
    %v6747 = vrot.slane %v6746, 2
    %v6748 = vmax.f32 %v6746, %v6747
    %v6749 = vrot.slane %v6748, 1
    %v6750 = vmax.f32 %v6748, %v6749
    %v6751 = vsel %vm5525, %v5272, -inf
    %v6752 = vrot.slane %v6751, 4
    %v6753 = vmax.f32 %v6751, %v6752
    %v6754 = vrot.slane %v6753, 2
    %v6755 = vmax.f32 %v6753, %v6754
    %v6756 = vrot.slane %v6755, 1
    %v6757 = vmax.f32 %v6755, %v6756
    %v6758 = vsel %vm5525, %v5057, -inf
    %v6759 = vrot.slane %v6758, 4
    %v6760 = vmax.f32 %v6758, %v6759
    %v6761 = vrot.slane %v6760, 2
    %v6762 = vmax.f32 %v6760, %v6761
    %v6763 = vrot.slane %v6762, 1
    %v6764 = vmax.f32 %v6762, %v6763
    %v6765 = vsel %vm5525, %v5273, -inf
    %v6766 = vrot.slane %v6765, 4
    %v6767 = vmax.f32 %v6765, %v6766
    %v6768 = vrot.slane %v6767, 2
    %v6769 = vmax.f32 %v6767, %v6768
    %v6770 = vrot.slane %v6769, 1
    %v6771 = vmax.f32 %v6769, %v6770
    %v6772 = vsel %vm5525, %v5274, -inf
    %v6773 = vrot.slane %v6772, 4
    %v6774 = vmax.f32 %v6772, %v6773
    %v6775 = vrot.slane %v6774, 2
    %v6776 = vmax.f32 %v6774, %v6775
    %v6777 = vrot.slane %v6776, 1
    %v6778 = vmax.f32 %v6776, %v6777
    %v6779 = vsel %vm5525, %v5275, -inf
    %v6780 = vrot.slane %v6779, 4
    %v6781 = vmax.f32 %v6779, %v6780
    %v6782 = vrot.slane %v6781, 2
    %v6783 = vmax.f32 %v6781, %v6782
    %v6784 = vrot.slane %v6783, 1
    %v6785 = vmax.f32 %v6783, %v6784
    %v6786 = vsel %vm5525, %v5058, -inf
    %v6787 = vrot.slane %v6786, 4
    %v6788 = vmax.f32 %v6786, %v6787
    %v6789 = vrot.slane %v6788, 2
    %v6790 = vmax.f32 %v6788, %v6789
    %v6791 = vrot.slane %v6790, 1
    %v6792 = vmax.f32 %v6790, %v6791
    %v6793 = vsel %vm5525, %v5276, -inf
    %v6794 = vrot.slane %v6793, 4
    %v6795 = vmax.f32 %v6793, %v6794
    %v6796 = vrot.slane %v6795, 2
    %v6797 = vmax.f32 %v6795, %v6796
    %v6798 = vrot.slane %v6797, 1
    %v6799 = vmax.f32 %v6797, %v6798
    %v6800 = vsel %vm5525, %v5277, -inf
    %v6801 = vrot.slane %v6800, 4
    %v6802 = vmax.f32 %v6800, %v6801
    %v6803 = vrot.slane %v6802, 2
    %v6804 = vmax.f32 %v6802, %v6803
    %v6805 = vrot.slane %v6804, 1
    %v6806 = vmax.f32 %v6804, %v6805
    %v6807 = vsel %vm5525, %v5278, -inf
    %v6808 = vrot.slane %v6807, 4
    %v6809 = vmax.f32 %v6807, %v6808
    %v6810 = vrot.slane %v6809, 2
    %v6811 = vmax.f32 %v6809, %v6810
    %v6812 = vrot.slane %v6811, 1
    %v6813 = vmax.f32 %v6811, %v6812
    %v6814 = vsel %vm5525, %v5059, -inf
    %v6815 = vrot.slane %v6814, 4
    %v6816 = vmax.f32 %v6814, %v6815
    %v6817 = vrot.slane %v6816, 2
    %v6818 = vmax.f32 %v6816, %v6817
    %v6819 = vrot.slane %v6818, 1
    %v6820 = vmax.f32 %v6818, %v6819
    %v6821 = vsel %vm5525, %v5279, -inf
    %v6822 = vrot.slane %v6821, 4
    %v6823 = vmax.f32 %v6821, %v6822
    %v6824 = vrot.slane %v6823, 2
    %v6825 = vmax.f32 %v6823, %v6824
    %v6826 = vrot.slane %v6825, 1
    %v6827 = vmax.f32 %v6825, %v6826
    %v6828 = vsel %vm5525, %v5280, -inf
    %v6829 = vrot.slane %v6828, 4
    %v6830 = vmax.f32 %v6828, %v6829
    %v6831 = vrot.slane %v6830, 2
    %v6832 = vmax.f32 %v6830, %v6831
    %v6833 = vrot.slane %v6832, 1
    %v6834 = vmax.f32 %v6832, %v6833
    %v6835 = vsel %vm5525, %v5281, -inf
    %v6836 = vrot.slane %v6835, 4
    %v6837 = vmax.f32 %v6835, %v6836
    %v6838 = vrot.slane %v6837, 2
    %v6839 = vmax.f32 %v6837, %v6838
    %v6840 = vrot.slane %v6839, 1
    %v6841 = vmax.f32 %v6839, %v6840
    %v6842 = vsel %vm5525, %v5060, -inf
    %v6843 = vrot.slane %v6842, 4
    %v6844 = vmax.f32 %v6842, %v6843
    %v6845 = vrot.slane %v6844, 2
    %v6846 = vmax.f32 %v6844, %v6845
    %v6847 = vrot.slane %v6846, 1
    %v6848 = vmax.f32 %v6846, %v6847
    %v6849 = vsel %vm5525, %v5282, -inf
    %v6850 = vrot.slane %v6849, 4
    %v6851 = vmax.f32 %v6849, %v6850
    %v6852 = vrot.slane %v6851, 2
    %v6853 = vmax.f32 %v6851, %v6852
    %v6854 = vrot.slane %v6853, 1
    %v6855 = vmax.f32 %v6853, %v6854
    %v6856 = vsel %vm5525, %v5283, -inf
    %v6857 = vrot.slane %v6856, 4
    %v6858 = vmax.f32 %v6856, %v6857
    %v6859 = vrot.slane %v6858, 2
    %v6860 = vmax.f32 %v6858, %v6859
    %v6861 = vrot.slane %v6860, 1
    %v6862 = vmax.f32 %v6860, %v6861
    %v6863 = vsel %vm5525, %v5284, -inf
    %v6864 = vrot.slane %v6863, 4
    %v6865 = vmax.f32 %v6863, %v6864
    %v6866 = vrot.slane %v6865, 2
    %v6867 = vmax.f32 %v6865, %v6866
    %v6868 = vrot.slane %v6867, 1
    %v6869 = vmax.f32 %v6867, %v6868
    %v6870 = vsel %vm5525, %v5061, -inf
    %v6871 = vrot.slane %v6870, 4
    %v6872 = vmax.f32 %v6870, %v6871
    %v6873 = vrot.slane %v6872, 2
    %v6874 = vmax.f32 %v6872, %v6873
    %v6875 = vrot.slane %v6874, 1
    %v6876 = vmax.f32 %v6874, %v6875
    %v6877 = vsel %vm5525, %v5285, -inf
    %v6878 = vrot.slane %v6877, 4
    %v6879 = vmax.f32 %v6877, %v6878
    %v6880 = vrot.slane %v6879, 2
    %v6881 = vmax.f32 %v6879, %v6880
    %v6882 = vrot.slane %v6881, 1
    %v6883 = vmax.f32 %v6881, %v6882
    %v6884 = vsel %vm5525, %v5286, -inf
    %v6885 = vrot.slane %v6884, 4
    %v6886 = vmax.f32 %v6884, %v6885
    %v6887 = vrot.slane %v6886, 2
    %v6888 = vmax.f32 %v6886, %v6887
    %v6889 = vrot.slane %v6888, 1
    %v6890 = vmax.f32 %v6888, %v6889
    %v6891 = vsel %vm5525, %v5287, -inf
    %v6892 = vrot.slane %v6891, 4
    %v6893 = vmax.f32 %v6891, %v6892
    %v6894 = vrot.slane %v6893, 2
    %v6895 = vmax.f32 %v6893, %v6894
    %v6896 = vrot.slane %v6895, 1
    %v6897 = vmax.f32 %v6895, %v6896
    %v6898 = vsel %vm5525, %v5062, -inf
    %v6899 = vrot.slane %v6898, 4
    %v6900 = vmax.f32 %v6898, %v6899
    %v6901 = vrot.slane %v6900, 2
    %v6902 = vmax.f32 %v6900, %v6901
    %v6903 = vrot.slane %v6902, 1
    %v6904 = vmax.f32 %v6902, %v6903
    %v6905 = vsel %vm5525, %v5288, -inf
    %v6906 = vrot.slane %v6905, 4
    %v6907 = vmax.f32 %v6905, %v6906
    %v6908 = vrot.slane %v6907, 2
    %v6909 = vmax.f32 %v6907, %v6908
    %v6910 = vrot.slane %v6909, 1
    %v6911 = vmax.f32 %v6909, %v6910
    %v6912 = vsel %vm5525, %v5289, -inf
    %v6913 = vrot.slane %v6912, 4
    %v6914 = vmax.f32 %v6912, %v6913
    %v6915 = vrot.slane %v6914, 2
    %v6916 = vmax.f32 %v6914, %v6915
    %v6917 = vrot.slane %v6916, 1
    %v6918 = vmax.f32 %v6916, %v6917
    %v6919 = vsel %vm5525, %v5290, -inf
    %v6920 = vrot.slane %v6919, 4
    %v6921 = vmax.f32 %v6919, %v6920
    %v6922 = vrot.slane %v6921, 2
    %v6923 = vmax.f32 %v6921, %v6922
    %v6924 = vrot.slane %v6923, 1
    %v6925 = vmax.f32 %v6923, %v6924
    %v6926 = vsel %vm5525, %v5063, -inf
    %v6927 = vrot.slane %v6926, 4
    %v6928 = vmax.f32 %v6926, %v6927
    %v6929 = vrot.slane %v6928, 2
    %v6930 = vmax.f32 %v6928, %v6929
    %v6931 = vrot.slane %v6930, 1
    %v6932 = vmax.f32 %v6930, %v6931
    %v6933 = vsel %vm5525, %v5291, -inf
    %v6934 = vrot.slane %v6933, 4
    %v6935 = vmax.f32 %v6933, %v6934
    %v6936 = vrot.slane %v6935, 2
    %v6937 = vmax.f32 %v6935, %v6936
    %v6938 = vrot.slane %v6937, 1
    %v6939 = vmax.f32 %v6937, %v6938
    %v6940 = vsel %vm5525, %v5292, -inf
    %v6941 = vrot.slane %v6940, 4
    %v6942 = vmax.f32 %v6940, %v6941
    %v6943 = vrot.slane %v6942, 2
    %v6944 = vmax.f32 %v6942, %v6943
    %v6945 = vrot.slane %v6944, 1
    %v6946 = vmax.f32 %v6944, %v6945
    %v6947 = vsel %vm5525, %v5293, -inf
    %v6948 = vrot.slane %v6947, 4
    %v6949 = vmax.f32 %v6947, %v6948
    %v6950 = vrot.slane %v6949, 2
    %v6951 = vmax.f32 %v6949, %v6950
    %v6952 = vrot.slane %v6951, 1
    %v6953 = vmax.f32 %v6951, %v6952
    %v6954 = vsel %vm5525, %v5064, -inf
    %v6955 = vrot.slane %v6954, 4
    %v6956 = vmax.f32 %v6954, %v6955
    %v6957 = vrot.slane %v6956, 2
    %v6958 = vmax.f32 %v6956, %v6957
    %v6959 = vrot.slane %v6958, 1
    %v6960 = vmax.f32 %v6958, %v6959
    %v6961 = vsel %vm5525, %v5294, -inf
    %v6962 = vrot.slane %v6961, 4
    %v6963 = vmax.f32 %v6961, %v6962
    %v6964 = vrot.slane %v6963, 2
    %v6965 = vmax.f32 %v6963, %v6964
    %v6966 = vrot.slane %v6965, 1
    %v6967 = vmax.f32 %v6965, %v6966
    %v6968 = vsel %vm5525, %v5295, -inf
    %v6969 = vrot.slane %v6968, 4
    %v6970 = vmax.f32 %v6968, %v6969
    %v6971 = vrot.slane %v6970, 2
    %v6972 = vmax.f32 %v6970, %v6971
    %v6973 = vrot.slane %v6972, 1
    %v6974 = vmax.f32 %v6972, %v6973
    %v6975 = vsel %vm5525, %v5296, -inf
    %v6976 = vrot.slane %v6975, 4
    %v6977 = vmax.f32 %v6975, %v6976
    %v6978 = vrot.slane %v6977, 2
    %v6979 = vmax.f32 %v6977, %v6978
    %v6980 = vrot.slane %v6979, 1
    %v6981 = vmax.f32 %v6979, %v6980
    %v6982 = vsel %vm5525, %v5065, -inf
    %v6983 = vrot.slane %v6982, 4
    %v6984 = vmax.f32 %v6982, %v6983
    %v6985 = vrot.slane %v6984, 2
    %v6986 = vmax.f32 %v6984, %v6985
    %v6987 = vrot.slane %v6986, 1
    %v6988 = vmax.f32 %v6986, %v6987
    %v6989 = vsel %vm5525, %v5297, -inf
    %v6990 = vrot.slane %v6989, 4
    %v6991 = vmax.f32 %v6989, %v6990
    %v6992 = vrot.slane %v6991, 2
    %v6993 = vmax.f32 %v6991, %v6992
    %v6994 = vrot.slane %v6993, 1
    %v6995 = vmax.f32 %v6993, %v6994
    %v6996 = vsel %vm5525, %v5298, -inf
    %v6997 = vrot.slane %v6996, 4
    %v6998 = vmax.f32 %v6996, %v6997
    %v6999 = vrot.slane %v6998, 2
    %v7000 = vmax.f32 %v6998, %v6999
    %v7001 = vrot.slane %v7000, 1
    %v7002 = vmax.f32 %v7000, %v7001
    %v7003 = vsel %vm5525, %v5299, -inf
    %v7004 = vrot.slane %v7003, 4
    %v7005 = vmax.f32 %v7003, %v7004
    %v7006 = vrot.slane %v7005, 2
    %v7007 = vmax.f32 %v7005, %v7006
    %v7008 = vrot.slane %v7007, 1
    %v7009 = vmax.f32 %v7007, %v7008
    %v7010 = vsel %vm5525, %v5066, -inf
    %v7011 = vrot.slane %v7010, 4
    %v7012 = vmax.f32 %v7010, %v7011
    %v7013 = vrot.slane %v7012, 2
    %v7014 = vmax.f32 %v7012, %v7013
    %v7015 = vrot.slane %v7014, 1
    %v7016 = vmax.f32 %v7014, %v7015
    %v7017 = vsel %vm5525, %v5300, -inf
    %v7018 = vrot.slane %v7017, 4
    %v7019 = vmax.f32 %v7017, %v7018
    %v7020 = vrot.slane %v7019, 2
    %v7021 = vmax.f32 %v7019, %v7020
    %v7022 = vrot.slane %v7021, 1
    %v7023 = vmax.f32 %v7021, %v7022
    %v7024 = vsel %vm5525, %v5301, -inf
    %v7025 = vrot.slane %v7024, 4
    %v7026 = vmax.f32 %v7024, %v7025
    %v7027 = vrot.slane %v7026, 2
    %v7028 = vmax.f32 %v7026, %v7027
    %v7029 = vrot.slane %v7028, 1
    %v7030 = vmax.f32 %v7028, %v7029
    %v7031 = vsel %vm5525, %v5302, -inf
    %v7032 = vrot.slane %v7031, 4
    %v7033 = vmax.f32 %v7031, %v7032
    %v7034 = vrot.slane %v7033, 2
    %v7035 = vmax.f32 %v7033, %v7034
    %v7036 = vrot.slane %v7035, 1
    %v7037 = vmax.f32 %v7035, %v7036
    %v7038 = vsel %vm5525, %v5067, -inf
    %v7039 = vrot.slane %v7038, 4
    %v7040 = vmax.f32 %v7038, %v7039
    %v7041 = vrot.slane %v7040, 2
    %v7042 = vmax.f32 %v7040, %v7041
    %v7043 = vrot.slane %v7042, 1
    %v7044 = vmax.f32 %v7042, %v7043
    %v7045 = vsel %vm5525, %v5303, -inf
    %v7046 = vrot.slane %v7045, 4
    %v7047 = vmax.f32 %v7045, %v7046
    %v7048 = vrot.slane %v7047, 2
    %v7049 = vmax.f32 %v7047, %v7048
    %v7050 = vrot.slane %v7049, 1
    %v7051 = vmax.f32 %v7049, %v7050
    %v7052 = vsel %vm5525, %v5304, -inf
    %v7053 = vrot.slane %v7052, 4
    %v7054 = vmax.f32 %v7052, %v7053
    %v7055 = vrot.slane %v7054, 2
    %v7056 = vmax.f32 %v7054, %v7055
    %v7057 = vrot.slane %v7056, 1
    %v7058 = vmax.f32 %v7056, %v7057
    %v7059 = vsel %vm5525, %v5305, -inf
    %v7060 = vrot.slane %v7059, 4
    %v7061 = vmax.f32 %v7059, %v7060
    %v7062 = vrot.slane %v7061, 2
    %v7063 = vmax.f32 %v7061, %v7062
    %v7064 = vrot.slane %v7063, 1
    %v7065 = vmax.f32 %v7063, %v7064
    %v7066 = vsel %vm5525, %v5068, -inf
    %v7067 = vrot.slane %v7066, 4
    %v7068 = vmax.f32 %v7066, %v7067
    %v7069 = vrot.slane %v7068, 2
    %v7070 = vmax.f32 %v7068, %v7069
    %v7071 = vrot.slane %v7070, 1
    %v7072 = vmax.f32 %v7070, %v7071
    %v7073 = vsel %vm5525, %v5306, -inf
    %v7074 = vrot.slane %v7073, 4
    %v7075 = vmax.f32 %v7073, %v7074
    %v7076 = vrot.slane %v7075, 2
    %v7077 = vmax.f32 %v7075, %v7076
    %v7078 = vrot.slane %v7077, 1
    %v7079 = vmax.f32 %v7077, %v7078
    %v7080 = vsel %vm5525, %v5307, -inf
    %v7081 = vrot.slane %v7080, 4
    %v7082 = vmax.f32 %v7080, %v7081
    %v7083 = vrot.slane %v7082, 2
    %v7084 = vmax.f32 %v7082, %v7083
    %v7085 = vrot.slane %v7084, 1
    %v7086 = vmax.f32 %v7084, %v7085
    %v7087 = vsel %vm5525, %v5308, -inf
    %v7088 = vrot.slane %v7087, 4
    %v7089 = vmax.f32 %v7087, %v7088
    %v7090 = vrot.slane %v7089, 2
    %v7091 = vmax.f32 %v7089, %v7090
    %v7092 = vrot.slane %v7091, 1
    %v7093 = vmax.f32 %v7091, %v7092
    %v7094 = vsel %vm5525, %v5069, -inf
    %v7095 = vrot.slane %v7094, 4
    %v7096 = vmax.f32 %v7094, %v7095
    %v7097 = vrot.slane %v7096, 2
    %v7098 = vmax.f32 %v7096, %v7097
    %v7099 = vrot.slane %v7098, 1
    %v7100 = vmax.f32 %v7098, %v7099
    %v7101 = vsel %vm5525, %v5309, -inf
    %v7102 = vrot.slane %v7101, 4
    %v7103 = vmax.f32 %v7101, %v7102
    %v7104 = vrot.slane %v7103, 2
    %v7105 = vmax.f32 %v7103, %v7104
    %v7106 = vrot.slane %v7105, 1
    %v7107 = vmax.f32 %v7105, %v7106
    %v7108 = vsel %vm5525, %v5310, -inf
    %v7109 = vrot.slane %v7108, 4
    %v7110 = vmax.f32 %v7108, %v7109
    %v7111 = vrot.slane %v7110, 2
    %v7112 = vmax.f32 %v7110, %v7111
    %v7113 = vrot.slane %v7112, 1
    %v7114 = vmax.f32 %v7112, %v7113
    %v7115 = vsel %vm5525, %v5311, -inf
    %v7116 = vrot.slane %v7115, 4
    %v7117 = vmax.f32 %v7115, %v7116
    %v7118 = vrot.slane %v7117, 2
    %v7119 = vmax.f32 %v7117, %v7118
    %v7120 = vrot.slane %v7119, 1
    %v7121 = vmax.f32 %v7119, %v7120
    %v7122 = vsel %vm5525, %v5070, -inf
    %v7123 = vrot.slane %v7122, 4
    %v7124 = vmax.f32 %v7122, %v7123
    %v7125 = vrot.slane %v7124, 2
    %v7126 = vmax.f32 %v7124, %v7125
    %v7127 = vrot.slane %v7126, 1
    %v7128 = vmax.f32 %v7126, %v7127
    %v7129 = vsel %vm5525, %v5312, -inf
    %v7130 = vrot.slane %v7129, 4
    %v7131 = vmax.f32 %v7129, %v7130
    %v7132 = vrot.slane %v7131, 2
    %v7133 = vmax.f32 %v7131, %v7132
    %v7134 = vrot.slane %v7133, 1
    %v7135 = vmax.f32 %v7133, %v7134
    %v7136 = vsel %vm5525, %v5313, -inf
    %v7137 = vrot.slane %v7136, 4
    %v7138 = vmax.f32 %v7136, %v7137
    %v7139 = vrot.slane %v7138, 2
    %v7140 = vmax.f32 %v7138, %v7139
    %v7141 = vrot.slane %v7140, 1
    %v7142 = vmax.f32 %v7140, %v7141
    %v7143 = vsel %vm5525, %v5314, -inf
    %v7144 = vrot.slane %v7143, 4
    %v7145 = vmax.f32 %v7143, %v7144
    %v7146 = vrot.slane %v7145, 2
    %v7147 = vmax.f32 %v7145, %v7146
    %v7148 = vrot.slane %v7147, 1
    %v7149 = vmax.f32 %v7147, %v7148
    %v7150 = vsel %vm5525, %v5071, -inf
    %v7151 = vrot.slane %v7150, 4
    %v7152 = vmax.f32 %v7150, %v7151
    %v7153 = vrot.slane %v7152, 2
    %v7154 = vmax.f32 %v7152, %v7153
    %v7155 = vrot.slane %v7154, 1
    %v7156 = vmax.f32 %v7154, %v7155
    %v7157 = vsel %vm5525, %v5315, -inf
    %v7158 = vrot.slane %v7157, 4
    %v7159 = vmax.f32 %v7157, %v7158
    %v7160 = vrot.slane %v7159, 2
    %v7161 = vmax.f32 %v7159, %v7160
    %v7162 = vrot.slane %v7161, 1
    %v7163 = vmax.f32 %v7161, %v7162
    %v7164 = vsel %vm5525, %v5316, -inf
    %v7165 = vrot.slane %v7164, 4
    %v7166 = vmax.f32 %v7164, %v7165
    %v7167 = vrot.slane %v7166, 2
    %v7168 = vmax.f32 %v7166, %v7167
    %v7169 = vrot.slane %v7168, 1
    %v7170 = vmax.f32 %v7168, %v7169
    %v7171 = vsel %vm5525, %v5317, -inf
    %v7172 = vrot.slane %v7171, 4
    %v7173 = vmax.f32 %v7171, %v7172
    %v7174 = vrot.slane %v7173, 2
    %v7175 = vmax.f32 %v7173, %v7174
    %v7176 = vrot.slane %v7175, 1
    %v7177 = vmax.f32 %v7175, %v7176
    %v7178 = vsel %vm5525, %v5072, -inf
    %v7179 = vrot.slane %v7178, 4
    %v7180 = vmax.f32 %v7178, %v7179
    %v7181 = vrot.slane %v7180, 2
    %v7182 = vmax.f32 %v7180, %v7181
    %v7183 = vrot.slane %v7182, 1
    %v7184 = vmax.f32 %v7182, %v7183
    %v7185 = vsel %vm5525, %v5318, -inf
    %v7186 = vrot.slane %v7185, 4
    %v7187 = vmax.f32 %v7185, %v7186
    %v7188 = vrot.slane %v7187, 2
    %v7189 = vmax.f32 %v7187, %v7188
    %v7190 = vrot.slane %v7189, 1
    %v7191 = vmax.f32 %v7189, %v7190
    %v7192 = vsel %vm5525, %v5319, -inf
    %v7193 = vrot.slane %v7192, 4
    %v7194 = vmax.f32 %v7192, %v7193
    %v7195 = vrot.slane %v7194, 2
    %v7196 = vmax.f32 %v7194, %v7195
    %v7197 = vrot.slane %v7196, 1
    %v7198 = vmax.f32 %v7196, %v7197
    %v7199 = vsel %vm5525, %v5320, -inf
    %v7200 = vrot.slane %v7199, 4
    %v7201 = vmax.f32 %v7199, %v7200
    %v7202 = vrot.slane %v7201, 2
    %v7203 = vmax.f32 %v7201, %v7202
    %v7204 = vrot.slane %v7203, 1
    %v7205 = vmax.f32 %v7203, %v7204
    %v7206 = vsel %vm5525, %v5073, -inf
    %v7207 = vrot.slane %v7206, 4
    %v7208 = vmax.f32 %v7206, %v7207
    %v7209 = vrot.slane %v7208, 2
    %v7210 = vmax.f32 %v7208, %v7209
    %v7211 = vrot.slane %v7210, 1
    %v7212 = vmax.f32 %v7210, %v7211
    %v7213 = vsel %vm5525, %v5321, -inf
    %v7214 = vrot.slane %v7213, 4
    %v7215 = vmax.f32 %v7213, %v7214
    %v7216 = vrot.slane %v7215, 2
    %v7217 = vmax.f32 %v7215, %v7216
    %v7218 = vrot.slane %v7217, 1
    %v7219 = vmax.f32 %v7217, %v7218
    %v7220 = vsel %vm5525, %v5322, -inf
    %v7221 = vrot.slane %v7220, 4
    %v7222 = vmax.f32 %v7220, %v7221
    %v7223 = vrot.slane %v7222, 2
    %v7224 = vmax.f32 %v7222, %v7223
    %v7225 = vrot.slane %v7224, 1
    %v7226 = vmax.f32 %v7224, %v7225
    %v7227 = vsel %vm5525, %v5323, -inf
    %v7228 = vrot.slane %v7227, 4
    %v7229 = vmax.f32 %v7227, %v7228
    %v7230 = vrot.slane %v7229, 2
    %v7231 = vmax.f32 %v7229, %v7230
    %v7232 = vrot.slane %v7231, 1
    %v7233 = vmax.f32 %v7231, %v7232
    %v7234 = vsel %vm5525, %v5074, -inf
    %v7235 = vrot.slane %v7234, 4
    %v7236 = vmax.f32 %v7234, %v7235
    %v7237 = vrot.slane %v7236, 2
    %v7238 = vmax.f32 %v7236, %v7237
    %v7239 = vrot.slane %v7238, 1
    %v7240 = vmax.f32 %v7238, %v7239
    %v7241 = vsel %vm5525, %v5324, -inf
    %v7242 = vrot.slane %v7241, 4
    %v7243 = vmax.f32 %v7241, %v7242
    %v7244 = vrot.slane %v7243, 2
    %v7245 = vmax.f32 %v7243, %v7244
    %v7246 = vrot.slane %v7245, 1
    %v7247 = vmax.f32 %v7245, %v7246
    %v7248 = vsel %vm5525, %v5325, -inf
    %v7249 = vrot.slane %v7248, 4
    %v7250 = vmax.f32 %v7248, %v7249
    %v7251 = vrot.slane %v7250, 2
    %v7252 = vmax.f32 %v7250, %v7251
    %v7253 = vrot.slane %v7252, 1
    %v7254 = vmax.f32 %v7252, %v7253
    %v7255 = vsel %vm5525, %v5326, -inf
    %v7256 = vrot.slane %v7255, 4
    %v7257 = vmax.f32 %v7255, %v7256
    %v7258 = vrot.slane %v7257, 2
    %v7259 = vmax.f32 %v7257, %v7258
    %v7260 = vrot.slane %v7259, 1
    %v7261 = vmax.f32 %v7259, %v7260
    %v7262 = vsel %vm5525, %v5075, -inf
    %v7263 = vrot.slane %v7262, 4
    %v7264 = vmax.f32 %v7262, %v7263
    %v7265 = vrot.slane %v7264, 2
    %v7266 = vmax.f32 %v7264, %v7265
    %v7267 = vrot.slane %v7266, 1
    %v7268 = vmax.f32 %v7266, %v7267
    %v7269 = vsel %vm5525, %v5327, -inf
    %v7270 = vrot.slane %v7269, 4
    %v7271 = vmax.f32 %v7269, %v7270
    %v7272 = vrot.slane %v7271, 2
    %v7273 = vmax.f32 %v7271, %v7272
    %v7274 = vrot.slane %v7273, 1
    %v7275 = vmax.f32 %v7273, %v7274
    %v7276 = vsel %vm5525, %v5328, -inf
    %v7277 = vrot.slane %v7276, 4
    %v7278 = vmax.f32 %v7276, %v7277
    %v7279 = vrot.slane %v7278, 2
    %v7280 = vmax.f32 %v7278, %v7279
    %v7281 = vrot.slane %v7280, 1
    %v7282 = vmax.f32 %v7280, %v7281
    %v7283 = vsel %vm5525, %v5329, -inf
    %v7284 = vrot.slane %v7283, 4
    %v7285 = vmax.f32 %v7283, %v7284
    %v7286 = vrot.slane %v7285, 2
    %v7287 = vmax.f32 %v7285, %v7286
    %v7288 = vrot.slane %v7287, 1
    %v7289 = vmax.f32 %v7287, %v7288
    %v7290 = vsel %vm5525, %v5076, -inf
    %v7291 = vrot.slane %v7290, 4
    %v7292 = vmax.f32 %v7290, %v7291
    %v7293 = vrot.slane %v7292, 2
    %v7294 = vmax.f32 %v7292, %v7293
    %v7295 = vrot.slane %v7294, 1
    %v7296 = vmax.f32 %v7294, %v7295
    %v7297 = vsel %vm5525, %v5330, -inf
    %v7298 = vrot.slane %v7297, 4
    %v7299 = vmax.f32 %v7297, %v7298
    %v7300 = vrot.slane %v7299, 2
    %v7301 = vmax.f32 %v7299, %v7300
    %v7302 = vrot.slane %v7301, 1
    %v7303 = vmax.f32 %v7301, %v7302
    %v7304 = vsel %vm5525, %v5331, -inf
    %v7305 = vrot.slane %v7304, 4
    %v7306 = vmax.f32 %v7304, %v7305
    %v7307 = vrot.slane %v7306, 2
    %v7308 = vmax.f32 %v7306, %v7307
    %v7309 = vrot.slane %v7308, 1
    %v7310 = vmax.f32 %v7308, %v7309
    %v7311 = vsel %vm5525, %v5332, -inf
    %v7312 = vrot.slane %v7311, 4
    %v7313 = vmax.f32 %v7311, %v7312
    %v7314 = vrot.slane %v7313, 2
    %v7315 = vmax.f32 %v7313, %v7314
    %v7316 = vrot.slane %v7315, 1
    %v7317 = vmax.f32 %v7315, %v7316
    %vm7318 = vcmask 64512
    %v7319 = vsel %vm7318, %v5532, -inf
    %v7320 = vsel %vm7318, %v5588, -inf
    %v7321 = vmax.f32 %v7319, %v7320
    %v7322 = vsel %vm7318, %v5539, -inf
    %v7323 = vsel %vm7318, %v5595, -inf
    %v7324 = vmax.f32 %v7322, %v7323
    %v7325 = vsel %vm7318, %v5546, -inf
    %v7326 = vsel %vm7318, %v5602, -inf
    %v7327 = vmax.f32 %v7325, %v7326
    %v7328 = vsel %vm7318, %v5553, -inf
    %v7329 = vsel %vm7318, %v5609, -inf
    %v7330 = vmax.f32 %v7328, %v7329
    %v7331 = vsel %vm7318, %v5560, -inf
    %v7332 = vsel %vm7318, %v5616, -inf
    %v7333 = vmax.f32 %v7331, %v7332
    %v7334 = vsel %vm7318, %v5567, -inf
    %v7335 = vsel %vm7318, %v5623, -inf
    %v7336 = vmax.f32 %v7334, %v7335
    %v7337 = vsel %vm7318, %v5574, -inf
    %v7338 = vsel %vm7318, %v5630, -inf
    %v7339 = vmax.f32 %v7337, %v7338
    %v7340 = vsel %vm7318, %v5581, -inf
    %v7341 = vsel %vm7318, %v5637, -inf
    %v7342 = vmax.f32 %v7340, %v7341
    %v7343 = vsel %vm7318, %v5644, -inf
    %v7344 = vsel %vm7318, %v5700, -inf
    %v7345 = vmax.f32 %v7343, %v7344
    %v7346 = vsel %vm7318, %v5651, -inf
    %v7347 = vsel %vm7318, %v5707, -inf
    %v7348 = vmax.f32 %v7346, %v7347
    %v7349 = vsel %vm7318, %v5658, -inf
    %v7350 = vsel %vm7318, %v5714, -inf
    %v7351 = vmax.f32 %v7349, %v7350
    %v7352 = vsel %vm7318, %v5665, -inf
    %v7353 = vsel %vm7318, %v5721, -inf
    %v7354 = vmax.f32 %v7352, %v7353
    %v7355 = vsel %vm7318, %v5672, -inf
    %v7356 = vsel %vm7318, %v5728, -inf
    %v7357 = vmax.f32 %v7355, %v7356
    %v7358 = vsel %vm7318, %v5679, -inf
    %v7359 = vsel %vm7318, %v5735, -inf
    %v7360 = vmax.f32 %v7358, %v7359
    %v7361 = vsel %vm7318, %v5686, -inf
    %v7362 = vsel %vm7318, %v5742, -inf
    %v7363 = vmax.f32 %v7361, %v7362
    %v7364 = vsel %vm7318, %v5693, -inf
    %v7365 = vsel %vm7318, %v5749, -inf
    %v7366 = vmax.f32 %v7364, %v7365
    %v7367 = vsel %vm7318, %v5756, -inf
    %v7368 = vsel %vm7318, %v5812, -inf
    %v7369 = vmax.f32 %v7367, %v7368
    %v7370 = vsel %vm7318, %v5763, -inf
    %v7371 = vsel %vm7318, %v5819, -inf
    %v7372 = vmax.f32 %v7370, %v7371
    %v7373 = vsel %vm7318, %v5770, -inf
    %v7374 = vsel %vm7318, %v5826, -inf
    %v7375 = vmax.f32 %v7373, %v7374
    %v7376 = vsel %vm7318, %v5777, -inf
    %v7377 = vsel %vm7318, %v5833, -inf
    %v7378 = vmax.f32 %v7376, %v7377
    %v7379 = vsel %vm7318, %v5784, -inf
    %v7380 = vsel %vm7318, %v5840, -inf
    %v7381 = vmax.f32 %v7379, %v7380
    %v7382 = vsel %vm7318, %v5791, -inf
    %v7383 = vsel %vm7318, %v5847, -inf
    %v7384 = vmax.f32 %v7382, %v7383
    %v7385 = vsel %vm7318, %v5798, -inf
    %v7386 = vsel %vm7318, %v5854, -inf
    %v7387 = vmax.f32 %v7385, %v7386
    %v7388 = vsel %vm7318, %v5805, -inf
    %v7389 = vsel %vm7318, %v5861, -inf
    %v7390 = vmax.f32 %v7388, %v7389
    %v7391 = vsel %vm7318, %v5868, -inf
    %v7392 = vsel %vm7318, %v5924, -inf
    %v7393 = vmax.f32 %v7391, %v7392
    %v7394 = vsel %vm7318, %v5875, -inf
    %v7395 = vsel %vm7318, %v5931, -inf
    %v7396 = vmax.f32 %v7394, %v7395
    %v7397 = vsel %vm7318, %v5882, -inf
    %v7398 = vsel %vm7318, %v5938, -inf
    %v7399 = vmax.f32 %v7397, %v7398
    %v7400 = vsel %vm7318, %v5889, -inf
    %v7401 = vsel %vm7318, %v5945, -inf
    %v7402 = vmax.f32 %v7400, %v7401
    %v7403 = vsel %vm7318, %v5896, -inf
    %v7404 = vsel %vm7318, %v5952, -inf
    %v7405 = vmax.f32 %v7403, %v7404
    %v7406 = vsel %vm7318, %v5903, -inf
    %v7407 = vsel %vm7318, %v5959, -inf
    %v7408 = vmax.f32 %v7406, %v7407
    %v7409 = vsel %vm7318, %v5910, -inf
    %v7410 = vsel %vm7318, %v5966, -inf
    %v7411 = vmax.f32 %v7409, %v7410
    %v7412 = vsel %vm7318, %v5917, -inf
    %v7413 = vsel %vm7318, %v5973, -inf
    %v7414 = vmax.f32 %v7412, %v7413
    %v7415 = vsel %vm7318, %v5980, -inf
    %v7416 = vsel %vm7318, %v6036, -inf
    %v7417 = vmax.f32 %v7415, %v7416
    %v7418 = vsel %vm7318, %v5987, -inf
    %v7419 = vsel %vm7318, %v6043, -inf
    %v7420 = vmax.f32 %v7418, %v7419
    %v7421 = vsel %vm7318, %v5994, -inf
    %v7422 = vsel %vm7318, %v6050, -inf
    %v7423 = vmax.f32 %v7421, %v7422
    %v7424 = vsel %vm7318, %v6001, -inf
    %v7425 = vsel %vm7318, %v6057, -inf
    %v7426 = vmax.f32 %v7424, %v7425
    %v7427 = vsel %vm7318, %v6008, -inf
    %v7428 = vsel %vm7318, %v6064, -inf
    %v7429 = vmax.f32 %v7427, %v7428
    %v7430 = vsel %vm7318, %v6015, -inf
    %v7431 = vsel %vm7318, %v6071, -inf
    %v7432 = vmax.f32 %v7430, %v7431
    %v7433 = vsel %vm7318, %v6022, -inf
    %v7434 = vsel %vm7318, %v6078, -inf
    %v7435 = vmax.f32 %v7433, %v7434
    %v7436 = vsel %vm7318, %v6029, -inf
    %v7437 = vsel %vm7318, %v6085, -inf
    %v7438 = vmax.f32 %v7436, %v7437
    %v7439 = vsel %vm7318, %v6092, -inf
    %v7440 = vsel %vm7318, %v6148, -inf
    %v7441 = vmax.f32 %v7439, %v7440
    %v7442 = vsel %vm7318, %v6099, -inf
    %v7443 = vsel %vm7318, %v6155, -inf
    %v7444 = vmax.f32 %v7442, %v7443
    %v7445 = vsel %vm7318, %v6106, -inf
    %v7446 = vsel %vm7318, %v6162, -inf
    %v7447 = vmax.f32 %v7445, %v7446
    %v7448 = vsel %vm7318, %v6113, -inf
    %v7449 = vsel %vm7318, %v6169, -inf
    %v7450 = vmax.f32 %v7448, %v7449
    %v7451 = vsel %vm7318, %v6120, -inf
    %v7452 = vsel %vm7318, %v6176, -inf
    %v7453 = vmax.f32 %v7451, %v7452
    %v7454 = vsel %vm7318, %v6127, -inf
    %v7455 = vsel %vm7318, %v6183, -inf
    %v7456 = vmax.f32 %v7454, %v7455
    %v7457 = vsel %vm7318, %v6134, -inf
    %v7458 = vsel %vm7318, %v6190, -inf
    %v7459 = vmax.f32 %v7457, %v7458
    %v7460 = vsel %vm7318, %v6141, -inf
    %v7461 = vsel %vm7318, %v6197, -inf
    %v7462 = vmax.f32 %v7460, %v7461
    %v7463 = vsel %vm7318, %v6204, -inf
    %v7464 = vsel %vm7318, %v6260, -inf
    %v7465 = vmax.f32 %v7463, %v7464
    %v7466 = vsel %vm7318, %v6211, -inf
    %v7467 = vsel %vm7318, %v6267, -inf
    %v7468 = vmax.f32 %v7466, %v7467
    %v7469 = vsel %vm7318, %v6218, -inf
    %v7470 = vsel %vm7318, %v6274, -inf
    %v7471 = vmax.f32 %v7469, %v7470
    %v7472 = vsel %vm7318, %v6225, -inf
    %v7473 = vsel %vm7318, %v6281, -inf
    %v7474 = vmax.f32 %v7472, %v7473
    %v7475 = vsel %vm7318, %v6232, -inf
    %v7476 = vsel %vm7318, %v6288, -inf
    %v7477 = vmax.f32 %v7475, %v7476
    %v7478 = vsel %vm7318, %v6239, -inf
    %v7479 = vsel %vm7318, %v6295, -inf
    %v7480 = vmax.f32 %v7478, %v7479
    %v7481 = vsel %vm7318, %v6246, -inf
    %v7482 = vsel %vm7318, %v6302, -inf
    %v7483 = vmax.f32 %v7481, %v7482
    %v7484 = vsel %vm7318, %v6253, -inf
    %v7485 = vsel %vm7318, %v6309, -inf
    %v7486 = vmax.f32 %v7484, %v7485
    %v7487 = vsel %vm7318, %v6316, -inf
    %v7488 = vsel %vm7318, %v6372, -inf
    %v7489 = vmax.f32 %v7487, %v7488
    %v7490 = vsel %vm7318, %v6323, -inf
    %v7491 = vsel %vm7318, %v6379, -inf
    %v7492 = vmax.f32 %v7490, %v7491
    %v7493 = vsel %vm7318, %v6330, -inf
    %v7494 = vsel %vm7318, %v6386, -inf
    %v7495 = vmax.f32 %v7493, %v7494
    %v7496 = vsel %vm7318, %v6337, -inf
    %v7497 = vsel %vm7318, %v6393, -inf
    %v7498 = vmax.f32 %v7496, %v7497
    %v7499 = vsel %vm7318, %v6344, -inf
    %v7500 = vsel %vm7318, %v6400, -inf
    %v7501 = vmax.f32 %v7499, %v7500
    %v7502 = vsel %vm7318, %v6351, -inf
    %v7503 = vsel %vm7318, %v6407, -inf
    %v7504 = vmax.f32 %v7502, %v7503
    %v7505 = vsel %vm7318, %v6358, -inf
    %v7506 = vsel %vm7318, %v6414, -inf
    %v7507 = vmax.f32 %v7505, %v7506
    %v7508 = vsel %vm7318, %v6365, -inf
    %v7509 = vsel %vm7318, %v6421, -inf
    %v7510 = vmax.f32 %v7508, %v7509
    %v7511 = vsel %vm7318, %v6428, -inf
    %v7512 = vsel %vm7318, %v6484, -inf
    %v7513 = vmax.f32 %v7511, %v7512
    %v7514 = vsel %vm7318, %v6435, -inf
    %v7515 = vsel %vm7318, %v6491, -inf
    %v7516 = vmax.f32 %v7514, %v7515
    %v7517 = vsel %vm7318, %v6442, -inf
    %v7518 = vsel %vm7318, %v6498, -inf
    %v7519 = vmax.f32 %v7517, %v7518
    %v7520 = vsel %vm7318, %v6449, -inf
    %v7521 = vsel %vm7318, %v6505, -inf
    %v7522 = vmax.f32 %v7520, %v7521
    %v7523 = vsel %vm7318, %v6456, -inf
    %v7524 = vsel %vm7318, %v6512, -inf
    %v7525 = vmax.f32 %v7523, %v7524
    %v7526 = vsel %vm7318, %v6463, -inf
    %v7527 = vsel %vm7318, %v6519, -inf
    %v7528 = vmax.f32 %v7526, %v7527
    %v7529 = vsel %vm7318, %v6470, -inf
    %v7530 = vsel %vm7318, %v6526, -inf
    %v7531 = vmax.f32 %v7529, %v7530
    %v7532 = vsel %vm7318, %v6477, -inf
    %v7533 = vsel %vm7318, %v6533, -inf
    %v7534 = vmax.f32 %v7532, %v7533
    %v7535 = vsel %vm7318, %v6540, -inf
    %v7536 = vsel %vm7318, %v6596, -inf
    %v7537 = vmax.f32 %v7535, %v7536
    %v7538 = vsel %vm7318, %v6547, -inf
    %v7539 = vsel %vm7318, %v6603, -inf
    %v7540 = vmax.f32 %v7538, %v7539
    %v7541 = vsel %vm7318, %v6554, -inf
    %v7542 = vsel %vm7318, %v6610, -inf
    %v7543 = vmax.f32 %v7541, %v7542
    %v7544 = vsel %vm7318, %v6561, -inf
    %v7545 = vsel %vm7318, %v6617, -inf
    %v7546 = vmax.f32 %v7544, %v7545
    %v7547 = vsel %vm7318, %v6568, -inf
    %v7548 = vsel %vm7318, %v6624, -inf
    %v7549 = vmax.f32 %v7547, %v7548
    %v7550 = vsel %vm7318, %v6575, -inf
    %v7551 = vsel %vm7318, %v6631, -inf
    %v7552 = vmax.f32 %v7550, %v7551
    %v7553 = vsel %vm7318, %v6582, -inf
    %v7554 = vsel %vm7318, %v6638, -inf
    %v7555 = vmax.f32 %v7553, %v7554
    %v7556 = vsel %vm7318, %v6589, -inf
    %v7557 = vsel %vm7318, %v6645, -inf
    %v7558 = vmax.f32 %v7556, %v7557
    %v7559 = vsel %vm7318, %v6652, -inf
    %v7560 = vsel %vm7318, %v6708, -inf
    %v7561 = vmax.f32 %v7559, %v7560
    %v7562 = vsel %vm7318, %v6659, -inf
    %v7563 = vsel %vm7318, %v6715, -inf
    %v7564 = vmax.f32 %v7562, %v7563
    %v7565 = vsel %vm7318, %v6666, -inf
    %v7566 = vsel %vm7318, %v6722, -inf
    %v7567 = vmax.f32 %v7565, %v7566
    %v7568 = vsel %vm7318, %v6673, -inf
    %v7569 = vsel %vm7318, %v6729, -inf
    %v7570 = vmax.f32 %v7568, %v7569
    %v7571 = vsel %vm7318, %v6680, -inf
    %v7572 = vsel %vm7318, %v6736, -inf
    %v7573 = vmax.f32 %v7571, %v7572
    %v7574 = vsel %vm7318, %v6687, -inf
    %v7575 = vsel %vm7318, %v6743, -inf
    %v7576 = vmax.f32 %v7574, %v7575
    %v7577 = vsel %vm7318, %v6694, -inf
    %v7578 = vsel %vm7318, %v6750, -inf
    %v7579 = vmax.f32 %v7577, %v7578
    %v7580 = vsel %vm7318, %v6701, -inf
    %v7581 = vsel %vm7318, %v6757, -inf
    %v7582 = vmax.f32 %v7580, %v7581
    %v7583 = vsel %vm7318, %v6764, -inf
    %v7584 = vsel %vm7318, %v6820, -inf
    %v7585 = vmax.f32 %v7583, %v7584
    %v7586 = vsel %vm7318, %v6771, -inf
    %v7587 = vsel %vm7318, %v6827, -inf
    %v7588 = vmax.f32 %v7586, %v7587
    %v7589 = vsel %vm7318, %v6778, -inf
    %v7590 = vsel %vm7318, %v6834, -inf
    %v7591 = vmax.f32 %v7589, %v7590
    %v7592 = vsel %vm7318, %v6785, -inf
    %v7593 = vsel %vm7318, %v6841, -inf
    %v7594 = vmax.f32 %v7592, %v7593
    %v7595 = vsel %vm7318, %v6792, -inf
    %v7596 = vsel %vm7318, %v6848, -inf
    %v7597 = vmax.f32 %v7595, %v7596
    %v7598 = vsel %vm7318, %v6799, -inf
    %v7599 = vsel %vm7318, %v6855, -inf
    %v7600 = vmax.f32 %v7598, %v7599
    %v7601 = vsel %vm7318, %v6806, -inf
    %v7602 = vsel %vm7318, %v6862, -inf
    %v7603 = vmax.f32 %v7601, %v7602
    %v7604 = vsel %vm7318, %v6813, -inf
    %v7605 = vsel %vm7318, %v6869, -inf
    %v7606 = vmax.f32 %v7604, %v7605
    %v7607 = vsel %vm7318, %v6876, -inf
    %v7608 = vsel %vm7318, %v6932, -inf
    %v7609 = vmax.f32 %v7607, %v7608
    %v7610 = vsel %vm7318, %v6883, -inf
    %v7611 = vsel %vm7318, %v6939, -inf
    %v7612 = vmax.f32 %v7610, %v7611
    %v7613 = vsel %vm7318, %v6890, -inf
    %v7614 = vsel %vm7318, %v6946, -inf
    %v7615 = vmax.f32 %v7613, %v7614
    %v7616 = vsel %vm7318, %v6897, -inf
    %v7617 = vsel %vm7318, %v6953, -inf
    %v7618 = vmax.f32 %v7616, %v7617
    %v7619 = vsel %vm7318, %v6904, -inf
    %v7620 = vsel %vm7318, %v6960, -inf
    %v7621 = vmax.f32 %v7619, %v7620
    %v7622 = vsel %vm7318, %v6911, -inf
    %v7623 = vsel %vm7318, %v6967, -inf
    %v7624 = vmax.f32 %v7622, %v7623
    %v7625 = vsel %vm7318, %v6918, -inf
    %v7626 = vsel %vm7318, %v6974, -inf
    %v7627 = vmax.f32 %v7625, %v7626
    %v7628 = vsel %vm7318, %v6925, -inf
    %v7629 = vsel %vm7318, %v6981, -inf
    %v7630 = vmax.f32 %v7628, %v7629
    %v7631 = vsel %vm7318, %v6988, -inf
    %v7632 = vsel %vm7318, %v7044, -inf
    %v7633 = vmax.f32 %v7631, %v7632
    %v7634 = vsel %vm7318, %v6995, -inf
    %v7635 = vsel %vm7318, %v7051, -inf
    %v7636 = vmax.f32 %v7634, %v7635
    %v7637 = vsel %vm7318, %v7002, -inf
    %v7638 = vsel %vm7318, %v7058, -inf
    %v7639 = vmax.f32 %v7637, %v7638
    %v7640 = vsel %vm7318, %v7009, -inf
    %v7641 = vsel %vm7318, %v7065, -inf
    %v7642 = vmax.f32 %v7640, %v7641
    %v7643 = vsel %vm7318, %v7016, -inf
    %v7644 = vsel %vm7318, %v7072, -inf
    %v7645 = vmax.f32 %v7643, %v7644
    %v7646 = vsel %vm7318, %v7023, -inf
    %v7647 = vsel %vm7318, %v7079, -inf
    %v7648 = vmax.f32 %v7646, %v7647
    %v7649 = vsel %vm7318, %v7030, -inf
    %v7650 = vsel %vm7318, %v7086, -inf
    %v7651 = vmax.f32 %v7649, %v7650
    %v7652 = vsel %vm7318, %v7037, -inf
    %v7653 = vsel %vm7318, %v7093, -inf
    %v7654 = vmax.f32 %v7652, %v7653
    %v7655 = vsel %vm7318, %v7100, -inf
    %v7656 = vsel %vm7318, %v7156, -inf
    %v7657 = vmax.f32 %v7655, %v7656
    %v7658 = vsel %vm7318, %v7107, -inf
    %v7659 = vsel %vm7318, %v7163, -inf
    %v7660 = vmax.f32 %v7658, %v7659
    %v7661 = vsel %vm7318, %v7114, -inf
    %v7662 = vsel %vm7318, %v7170, -inf
    %v7663 = vmax.f32 %v7661, %v7662
    %v7664 = vsel %vm7318, %v7121, -inf
    %v7665 = vsel %vm7318, %v7177, -inf
    %v7666 = vmax.f32 %v7664, %v7665
    %v7667 = vsel %vm7318, %v7128, -inf
    %v7668 = vsel %vm7318, %v7184, -inf
    %v7669 = vmax.f32 %v7667, %v7668
    %v7670 = vsel %vm7318, %v7135, -inf
    %v7671 = vsel %vm7318, %v7191, -inf
    %v7672 = vmax.f32 %v7670, %v7671
    %v7673 = vsel %vm7318, %v7142, -inf
    %v7674 = vsel %vm7318, %v7198, -inf
    %v7675 = vmax.f32 %v7673, %v7674
    %v7676 = vsel %vm7318, %v7149, -inf
    %v7677 = vsel %vm7318, %v7205, -inf
    %v7678 = vmax.f32 %v7676, %v7677
    %v7679 = vsel %vm7318, %v7212, -inf
    %v7680 = vsel %vm7318, %v7268, -inf
    %v7681 = vmax.f32 %v7679, %v7680
    %v7682 = vsel %vm7318, %v7219, -inf
    %v7683 = vsel %vm7318, %v7275, -inf
    %v7684 = vmax.f32 %v7682, %v7683
    %v7685 = vsel %vm7318, %v7226, -inf
    %v7686 = vsel %vm7318, %v7282, -inf
    %v7687 = vmax.f32 %v7685, %v7686
    %v7688 = vsel %vm7318, %v7233, -inf
    %v7689 = vsel %vm7318, %v7289, -inf
    %v7690 = vmax.f32 %v7688, %v7689
    %v7691 = vsel %vm7318, %v7240, -inf
    %v7692 = vsel %vm7318, %v7296, -inf
    %v7693 = vmax.f32 %v7691, %v7692
    %v7694 = vsel %vm7318, %v7247, -inf
    %v7695 = vsel %vm7318, %v7303, -inf
    %v7696 = vmax.f32 %v7694, %v7695
    %v7697 = vsel %vm7318, %v7254, -inf
    %v7698 = vsel %vm7318, %v7310, -inf
    %v7699 = vmax.f32 %v7697, %v7698
    %v7700 = vsel %vm7318, %v7261, -inf
    %v7701 = vsel %vm7318, %v7317, -inf
    %v7702 = vmax.f32 %v7700, %v7701
    %7703 = vst.msk [vmem:[#allocation3] sm:$0xff] %vm7318, 0.0
    %7704 = vst.msk [vmem:[#allocation3 + $0x8] sm:$0x3] %vm5525, 0.0
    %7705 = vst.msk [vmem:[#allocation3 + $0x10] sm:$0xff] %vm7318, 0.0
    %7706 = vst.msk [vmem:[#allocation3 + $0x18] sm:$0x3] %vm5525, 0.0
    %7707 = vst.msk [vmem:[#allocation3 + $0x20] sm:$0xff] %vm7318, 0.0
    %7708 = vst.msk [vmem:[#allocation3 + $0x28] sm:$0x3] %vm5525, 0.0
    %7709 = vst.msk [vmem:[#allocation3 + $0x30] sm:$0xff] %vm7318, 0.0
    %7710 = vst.msk [vmem:[#allocation3 + $0x38] sm:$0x3] %vm5525, 0.0
    %7711 = vst.msk [vmem:[#allocation3 + $0x40] sm:$0xff] %vm7318, 0.0
    %7712 = vst.msk [vmem:[#allocation3 + $0x48] sm:$0x3] %vm5525, 0.0
    %7713 = vst.msk [vmem:[#allocation3 + $0x50] sm:$0xff] %vm7318, 0.0
    %7714 = vst.msk [vmem:[#allocation3 + $0x58] sm:$0x3] %vm5525, 0.0
    %7715 = vst.msk [vmem:[#allocation3 + $0x60] sm:$0xff] %vm7318, 0.0
    %7716 = vst.msk [vmem:[#allocation3 + $0x68] sm:$0x3] %vm5525, 0.0
    %7717 = vst.msk [vmem:[#allocation3 + $0x70] sm:$0xff] %vm7318, 0.0
    %7718 = vst.msk [vmem:[#allocation3 + $0x78] sm:$0x3] %vm5525, 0.0
    %7719 = vst.msk [vmem:[#allocation3 + $0x80] sm:$0xff] %vm7318, 0.0
    %7720 = vst.msk [vmem:[#allocation3 + $0x88] sm:$0x3] %vm5525, 0.0
    %7721 = vst.msk [vmem:[#allocation3 + $0x90] sm:$0xff] %vm7318, 0.0
    %7722 = vst.msk [vmem:[#allocation3 + $0x98] sm:$0x3] %vm5525, 0.0
    %7723 = vst.msk [vmem:[#allocation3 + $0xa0] sm:$0xff] %vm7318, 0.0
    %7724 = vst.msk [vmem:[#allocation3 + $0xa8] sm:$0x3] %vm5525, 0.0
    %7725 = vst.msk [vmem:[#allocation3 + $0xb0] sm:$0xff] %vm7318, 0.0
    %7726 = vst.msk [vmem:[#allocation3 + $0xb8] sm:$0x3] %vm5525, 0.0
    %7727 = vst.msk [vmem:[#allocation3 + $0xc0] sm:$0xff] %vm7318, 0.0
    %7728 = vst.msk [vmem:[#allocation3 + $0xc8] sm:$0x3] %vm5525, 0.0
    %7729 = vst.msk [vmem:[#allocation3 + $0xd0] sm:$0xff] %vm7318, 0.0
    %7730 = vst.msk [vmem:[#allocation3 + $0xd8] sm:$0x3] %vm5525, 0.0
    %7731 = vst.msk [vmem:[#allocation3 + $0xe0] sm:$0xff] %vm7318, 0.0
    %7732 = vst.msk [vmem:[#allocation3 + $0xe8] sm:$0x3] %vm5525, 0.0
    %7733 = vst.msk [vmem:[#allocation3 + $0xf0] sm:$0xff] %vm7318, 0.0
    %7734 = vst.msk [vmem:[#allocation3 + $0xf8] sm:$0x3] %vm5525, 0.0
    %7735 = vst.msk [vmem:[#allocation3 + $0x100] sm:$0xff] %vm7318, 0.0
    %7736 = vst.msk [vmem:[#allocation3 + $0x108] sm:$0x3] %vm5525, 0.0
    %7737 = vst.msk [vmem:[#allocation3 + $0x110] sm:$0xff] %vm7318, 0.0
    %7738 = vst.msk [vmem:[#allocation3 + $0x118] sm:$0x3] %vm5525, 0.0
    %7739 = vst.msk [vmem:[#allocation3 + $0x120] sm:$0xff] %vm7318, 0.0
    %7740 = vst.msk [vmem:[#allocation3 + $0x128] sm:$0x3] %vm5525, 0.0
    %7741 = vst.msk [vmem:[#allocation3 + $0x130] sm:$0xff] %vm7318, 0.0
    %7742 = vst.msk [vmem:[#allocation3 + $0x138] sm:$0x3] %vm5525, 0.0
    %vm7871 = vcmask 1041409
    %v7872 = vsel %vm7871, %v7324, %v7321
    %vm7873 = vcmask 1042434
    %v7874 = vsel %vm7873, %v7327, %v7872
    %vm7875 = vcmask 1043459
    %v7876 = vsel %vm7875, %v7330, %v7874
    %vm7877 = vcmask 1044484
    %v7878 = vsel %vm7877, %v7333, %v7876
    %vm7879 = vcmask 1045509
    %v7880 = vsel %vm7879, %v7336, %v7878
    %vm7881 = vcmask 1046534
    %v7882 = vsel %vm7881, %v7339, %v7880
    %vm7883 = vcmask 1047559
    %v7884 = vsel %vm7883, %v7342, %v7882
    %v7885 = vsel %vm7871, %v7348, %v7345
    %v7886 = vsel %vm7873, %v7351, %v7885
    %v7887 = vsel %vm7875, %v7354, %v7886
    %v7888 = vsel %vm7877, %v7357, %v7887
    %v7889 = vsel %vm7879, %v7360, %v7888
    %v7890 = vsel %vm7881, %v7363, %v7889
    %v7891 = vsel %vm7883, %v7366, %v7890
    %v7892 = vsel %vm7871, %v7372, %v7369
    %v7893 = vsel %vm7873, %v7375, %v7892
    %v7894 = vsel %vm7875, %v7378, %v7893
    %v7895 = vsel %vm7877, %v7381, %v7894
    %v7896 = vsel %vm7879, %v7384, %v7895
    %v7897 = vsel %vm7881, %v7387, %v7896
    %v7898 = vsel %vm7883, %v7390, %v7897
    %v7899 = vsel %vm7871, %v7396, %v7393
    %v7900 = vsel %vm7873, %v7399, %v7899
    %v7901 = vsel %vm7875, %v7402, %v7900
    %v7902 = vsel %vm7877, %v7405, %v7901
    %v7903 = vsel %vm7879, %v7408, %v7902
    %v7904 = vsel %vm7881, %v7411, %v7903
    %v7905 = vsel %vm7883, %v7414, %v7904
    %v7906 = vsel %vm7871, %v7420, %v7417
    %v7907 = vsel %vm7873, %v7423, %v7906
    %v7908 = vsel %vm7875, %v7426, %v7907
    %v7909 = vsel %vm7877, %v7429, %v7908
    %v7910 = vsel %vm7879, %v7432, %v7909
    %v7911 = vsel %vm7881, %v7435, %v7910
    %v7912 = vsel %vm7883, %v7438, %v7911
    %v7913 = vsel %vm7871, %v7444, %v7441
    %v7914 = vsel %vm7873, %v7447, %v7913
    %v7915 = vsel %vm7875, %v7450, %v7914
    %v7916 = vsel %vm7877, %v7453, %v7915
    %v7917 = vsel %vm7879, %v7456, %v7916
    %v7918 = vsel %vm7881, %v7459, %v7917
    %v7919 = vsel %vm7883, %v7462, %v7918
    %v7920 = vsel %vm7871, %v7468, %v7465
    %v7921 = vsel %vm7873, %v7471, %v7920
    %v7922 = vsel %vm7875, %v7474, %v7921
    %v7923 = vsel %vm7877, %v7477, %v7922
    %v7924 = vsel %vm7879, %v7480, %v7923
    %v7925 = vsel %vm7881, %v7483, %v7924
    %v7926 = vsel %vm7883, %v7486, %v7925
    %v7927 = vsel %vm7871, %v7492, %v7489
    %v7928 = vsel %vm7873, %v7495, %v7927
    %v7929 = vsel %vm7875, %v7498, %v7928
    %v7930 = vsel %vm7877, %v7501, %v7929
    %v7931 = vsel %vm7879, %v7504, %v7930
    %v7932 = vsel %vm7881, %v7507, %v7931
    %v7933 = vsel %vm7883, %v7510, %v7932
    %v7934 = vsel %vm7871, %v7516, %v7513
    %v7935 = vsel %vm7873, %v7519, %v7934
    %v7936 = vsel %vm7875, %v7522, %v7935
    %v7937 = vsel %vm7877, %v7525, %v7936
    %v7938 = vsel %vm7879, %v7528, %v7937
    %v7939 = vsel %vm7881, %v7531, %v7938
    %v7940 = vsel %vm7883, %v7534, %v7939
    %v7941 = vsel %vm7871, %v7540, %v7537
    %v7942 = vsel %vm7873, %v7543, %v7941
    %v7943 = vsel %vm7875, %v7546, %v7942
    %v7944 = vsel %vm7877, %v7549, %v7943
    %v7945 = vsel %vm7879, %v7552, %v7944
    %v7946 = vsel %vm7881, %v7555, %v7945
    %v7947 = vsel %vm7883, %v7558, %v7946
    %v7948 = vsel %vm7871, %v7564, %v7561
    %v7949 = vsel %vm7873, %v7567, %v7948
    %v7950 = vsel %vm7875, %v7570, %v7949
    %v7951 = vsel %vm7877, %v7573, %v7950
    %v7952 = vsel %vm7879, %v7576, %v7951
    %v7953 = vsel %vm7881, %v7579, %v7952
    %v7954 = vsel %vm7883, %v7582, %v7953
    %v7955 = vsel %vm7871, %v7588, %v7585
    %v7956 = vsel %vm7873, %v7591, %v7955
    %v7957 = vsel %vm7875, %v7594, %v7956
    %v7958 = vsel %vm7877, %v7597, %v7957
    %v7959 = vsel %vm7879, %v7600, %v7958
    %v7960 = vsel %vm7881, %v7603, %v7959
    %v7961 = vsel %vm7883, %v7606, %v7960
    %v7962 = vsel %vm7871, %v7612, %v7609
    %v7963 = vsel %vm7873, %v7615, %v7962
    %v7964 = vsel %vm7875, %v7618, %v7963
    %v7965 = vsel %vm7877, %v7621, %v7964
    %v7966 = vsel %vm7879, %v7624, %v7965
    %v7967 = vsel %vm7881, %v7627, %v7966
    %v7968 = vsel %vm7883, %v7630, %v7967
    %v7969 = vsel %vm7871, %v7636, %v7633
    %v7970 = vsel %vm7873, %v7639, %v7969
    %v7971 = vsel %vm7875, %v7642, %v7970
    %v7972 = vsel %vm7877, %v7645, %v7971
    %v7973 = vsel %vm7879, %v7648, %v7972
    %v7974 = vsel %vm7881, %v7651, %v7973
    %v7975 = vsel %vm7883, %v7654, %v7974
    %v7976 = vsel %vm7871, %v7660, %v7657
    %v7977 = vsel %vm7873, %v7663, %v7976
    %v7978 = vsel %vm7875, %v7666, %v7977
    %v7979 = vsel %vm7877, %v7669, %v7978
    %v7980 = vsel %vm7879, %v7672, %v7979
    %v7981 = vsel %vm7881, %v7675, %v7980
    %v7982 = vsel %vm7883, %v7678, %v7981
    %v7983 = vsel %vm7871, %v7684, %v7681
    %v7984 = vsel %vm7873, %v7687, %v7983
    %v7985 = vsel %vm7875, %v7690, %v7984
    %v7986 = vsel %vm7877, %v7693, %v7985
    %v7987 = vsel %vm7879, %v7696, %v7986
    %v7988 = vsel %vm7881, %v7699, %v7987
    %v7989 = vsel %vm7883, %v7702, %v7988
    %s8006 = scalar_lea.vmem [#allocation3], 16
    %8007 = vst.msk [vmem:[%s8006 + $0x1] sm:$0xff] %vm7318, %v7884
    %8008 = vst.msk [vmem:[%s8006 + $0x11] sm:$0xff] %vm7318, %v7891
    %8009 = vst.msk [vmem:[%s8006 + $0x21] sm:$0xff] %vm7318, %v7898
    %8010 = vst.msk [vmem:[%s8006 + $0x31] sm:$0xff] %vm7318, %v7905
    %8011 = vst.msk [vmem:[%s8006 + $0x41] sm:$0xff] %vm7318, %v7912
    %8012 = vst.msk [vmem:[%s8006 + $0x51] sm:$0xff] %vm7318, %v7919
    %8013 = vst.msk [vmem:[%s8006 + $0x61] sm:$0xff] %vm7318, %v7926
    %8014 = vst.msk [vmem:[%s8006 + $0x71] sm:$0xff] %vm7318, %v7933
    %8015 = vst.msk [vmem:[%s8006 + $0xa1] sm:$0xff] %vm7318, %v7940
    %8016 = vst.msk [vmem:[%s8006 + $0xb1] sm:$0xff] %vm7318, %v7947
    %8017 = vst.msk [vmem:[%s8006 + $0xc1] sm:$0xff] %vm7318, %v7954
    %8018 = vst.msk [vmem:[%s8006 + $0xd1] sm:$0xff] %vm7318, %v7961
    %8019 = vst.msk [vmem:[%s8006 + $0xe1] sm:$0xff] %vm7318, %v7968
    %8020 = vst.msk [vmem:[%s8006 + $0xf1] sm:$0xff] %vm7318, %v7975
    %8021 = vst.msk [vmem:[%s8006 + $0x101] sm:$0xff] %vm7318, %v7982
    %8022 = vst.msk [vmem:[%s8006 + $0x111] sm:$0xff] %vm7318, %v7989
    %v8023 = vld [vmem:[#allocation3] sm:$0xff]
    %v8024 = vld [vmem:[#allocation3 + $0x10] sm:$0xff]
    %v8025 = vld [vmem:[#allocation3 + $0x20] sm:$0xff]
    %v8026 = vld [vmem:[#allocation3 + $0x30] sm:$0xff]
    %v8027 = vld [vmem:[#allocation3 + $0x40] sm:$0xff]
    %v8028 = vld [vmem:[#allocation3 + $0x50] sm:$0xff]
    %v8029 = vld [vmem:[#allocation3 + $0x60] sm:$0xff]
    %v8030 = vld [vmem:[#allocation3 + $0x70] sm:$0xff]
    %v8031 = vld [vmem:[#allocation3 + $0xa0] sm:$0xff]
    %v8032 = vld [vmem:[#allocation3 + $0xb0] sm:$0xff]
    %v8033 = vld [vmem:[#allocation3 + $0xc0] sm:$0xff]
    %v8034 = vld [vmem:[#allocation3 + $0xd0] sm:$0xff]
    %v8035 = vld [vmem:[#allocation3 + $0xe0] sm:$0xff]
    %v8036 = vld [vmem:[#allocation3 + $0xf0] sm:$0xff]
    %v8037 = vld [vmem:[#allocation3 + $0x100] sm:$0xff]
    %v8038 = vld [vmem:[#allocation3 + $0x110] sm:$0xff]
    %v8039 = vld [vmem:[%s3] sm:$0xff]
    %v8040 = vld [vmem:[#allocation3 + $0x1] sm:$0xff]
    %v8041 = vld [vmem:[#allocation3 + $0x11] sm:$0xff]
    %v8042 = vld [vmem:[#allocation3 + $0x21] sm:$0xff]
    %v8043 = vld [vmem:[#allocation3 + $0x31] sm:$0xff]
    %v8044 = vld [vmem:[#allocation3 + $0x41] sm:$0xff]
    %v8045 = vld [vmem:[#allocation3 + $0x51] sm:$0xff]
    %v8046 = vld [vmem:[#allocation3 + $0x61] sm:$0xff]
    %v8047 = vld [vmem:[#allocation3 + $0x71] sm:$0xff]
    %v8048 = vld [vmem:[#allocation3 + $0xa1] sm:$0xff]
    %v8049 = vld [vmem:[#allocation3 + $0xb1] sm:$0xff]
    %v8050 = vld [vmem:[#allocation3 + $0xc1] sm:$0xff]
    %v8051 = vld [vmem:[#allocation3 + $0xd1] sm:$0xff]
    %v8052 = vld [vmem:[#allocation3 + $0xe1] sm:$0xff]
    %v8053 = vld [vmem:[#allocation3 + $0xf1] sm:$0xff]
    %v8054 = vld [vmem:[#allocation3 + $0x101] sm:$0xff]
    %v8055 = vld [vmem:[#allocation3 + $0x111] sm:$0xff]
    %s8056 = scalar_lea.vmem %s3, 8
    %v8057 = vld [vmem:[%s8056] sm:$0xff]
    %v8059 = vsel %vm7318, %v8040, 0
    %v8062 = vsel %vm7318, %v8041, 0
    %v8065 = vsel %vm7318, %v8042, 0
    %v8068 = vsel %vm7318, %v8043, 0
    %v8071 = vsel %vm7318, %v8044, 0
    %v8074 = vsel %vm7318, %v8045, 0
    %v8077 = vsel %vm7318, %v8046, 0
    %v8080 = vsel %vm7318, %v8047, 0
    %v8083 = vsel %vm7318, %v8048, 0
    %v8086 = vsel %vm7318, %v8049, 0
    %v8089 = vsel %vm7318, %v8050, 0
    %v8092 = vsel %vm7318, %v8051, 0
    %v8095 = vsel %vm7318, %v8052, 0
    %v8098 = vsel %vm7318, %v8053, 0
    %v8101 = vsel %vm7318, %v8054, 0
    %v8104 = vsel %vm7318, %v8055, 0
    %8106 = vmatpush.msra.mxu0 0.0
    %8107 = vmatpush.msra.mxu0 0.0
    %8108 = vmatpush.msra.mxu0 0.0
    %8109 = vmatpush.msra.mxu0 0.0
    %8110 = vmatpush.msra.mxu0 0.0
    %8111 = vmatpush.msra.mxu0 0.0
    %8112 = vmatpush.msra.mxu0 0.0
    %8113 = vmatpush.msra.mxu0 0.0
    %8114 = vmatpush.msra.mxu0 0.0
    %8115 = vmatpush.msra.mxu0 0.0
    %8116 = vmatpush.msra.mxu0 0.0
    %8117 = vmatpush.msra.mxu0 0.0
    %8118 = vmatpush.msra.mxu0 0.0
    %8119 = vmatpush.msra.mxu0 0.0
    %8120 = vmatpush.msra.mxu0 0.0
    %8121 = vmatpush.msra.mxu0 %v8057
    %8122 = vmatmul.f32.gmra.mxu0 %v8059
    %v8123 = vpop.f32.mrf.mxu0
    %v8124 = vadd.f32 0.0, %v8123
    %8125 = vmatmul.f32.gmra.mxu0 %v8062
    %v8126 = vpop.f32.mrf.mxu0
    %v8127 = vadd.f32 0.0, %v8126
    %8128 = vmatmul.f32.gmra.mxu0 %v8065
    %v8129 = vpop.f32.mrf.mxu0
    %v8130 = vadd.f32 0.0, %v8129
    %8131 = vmatmul.f32.gmra.mxu0 %v8068
    %v8132 = vpop.f32.mrf.mxu0
    %v8133 = vadd.f32 0.0, %v8132
    %8134 = vmatmul.f32.gmra.mxu0 %v8071
    %v8135 = vpop.f32.mrf.mxu0
    %v8136 = vadd.f32 0.0, %v8135
    %8137 = vmatmul.f32.gmra.mxu0 %v8074
    %v8138 = vpop.f32.mrf.mxu0
    %v8139 = vadd.f32 0.0, %v8138
    %8140 = vmatmul.f32.gmra.mxu0 %v8077
    %v8141 = vpop.f32.mrf.mxu0
    %v8142 = vadd.f32 0.0, %v8141
    %8143 = vmatmul.f32.gmra.mxu0 %v8080
    %v8144 = vpop.f32.mrf.mxu0
    %v8145 = vadd.f32 0.0, %v8144
    %8146 = vmatmul.f32.gmra.mxu0 %v8083
    %v8147 = vpop.f32.mrf.mxu0
    %v8148 = vadd.f32 0.0, %v8147
    %8149 = vmatmul.f32.gmra.mxu0 %v8086
    %v8150 = vpop.f32.mrf.mxu0
    %v8151 = vadd.f32 0.0, %v8150
    %8152 = vmatmul.f32.gmra.mxu0 %v8089
    %v8153 = vpop.f32.mrf.mxu0
    %v8154 = vadd.f32 0.0, %v8153
    %8155 = vmatmul.f32.gmra.mxu0 %v8092
    %v8156 = vpop.f32.mrf.mxu0
    %v8157 = vadd.f32 0.0, %v8156
    %8158 = vmatmul.f32.gmra.mxu0 %v8095
    %v8159 = vpop.f32.mrf.mxu0
    %v8160 = vadd.f32 0.0, %v8159
    %8161 = vmatmul.f32.gmra.mxu0 %v8098
    %v8162 = vpop.f32.mrf.mxu0
    %v8163 = vadd.f32 0.0, %v8162
    %8164 = vmatmul.f32.gmra.mxu0 %v8101
    %v8165 = vpop.f32.mrf.mxu0
    %v8166 = vadd.f32 0.0, %v8165
    %8167 = vmatmul.f32.gmra.mxu0 %v8104
    %v8168 = vpop.f32.mrf.mxu0
    %v8169 = vadd.f32 0.0, %v8168
    %8170 = vdwg.mxu0
    %v8172 = vsel %vm7318, %v8023, 0
    %v8175 = vsel %vm7318, %v8024, 0
    %v8178 = vsel %vm7318, %v8025, 0
    %v8181 = vsel %vm7318, %v8026, 0
    %v8184 = vsel %vm7318, %v8027, 0
    %v8187 = vsel %vm7318, %v8028, 0
    %v8190 = vsel %vm7318, %v8029, 0
    %v8193 = vsel %vm7318, %v8030, 0
    %v8196 = vsel %vm7318, %v8031, 0
    %v8199 = vsel %vm7318, %v8032, 0
    %v8202 = vsel %vm7318, %v8033, 0
    %v8205 = vsel %vm7318, %v8034, 0
    %v8208 = vsel %vm7318, %v8035, 0
    %v8211 = vsel %vm7318, %v8036, 0
    %v8214 = vsel %vm7318, %v8037, 0
    %v8217 = vsel %vm7318, %v8038, 0
    %8219 = vmatpush.msra.mxu0 0.0
    %8220 = vmatpush.msra.mxu0 0.0
    %8221 = vmatpush.msra.mxu0 0.0
    %8222 = vmatpush.msra.mxu0 0.0
    %8223 = vmatpush.msra.mxu0 0.0
    %8224 = vmatpush.msra.mxu0 0.0
    %8225 = vmatpush.msra.mxu0 0.0
    %8226 = vmatpush.msra.mxu0 0.0
    %8227 = vmatpush.msra.mxu0 0.0
    %8228 = vmatpush.msra.mxu0 0.0
    %8229 = vmatpush.msra.mxu0 0.0
    %8230 = vmatpush.msra.mxu0 0.0
    %8231 = vmatpush.msra.mxu0 0.0
    %8232 = vmatpush.msra.mxu0 0.0
    %8233 = vmatpush.msra.mxu0 0.0
    %8234 = vmatpush.msra.mxu0 %v8039
    %8235 = vmatmul.f32.gmra.mxu0 %v8172
    %v8236 = vpop.f32.mrf.mxu0
    %v8237 = vadd.f32 %v8124, %v8236
    %8238 = vmatmul.f32.gmra.mxu0 %v8175
    %v8239 = vpop.f32.mrf.mxu0
    %v8240 = vadd.f32 %v8127, %v8239
    %8241 = vmatmul.f32.gmra.mxu0 %v8178
    %v8242 = vpop.f32.mrf.mxu0
    %v8243 = vadd.f32 %v8130, %v8242
    %8244 = vmatmul.f32.gmra.mxu0 %v8181
    %v8245 = vpop.f32.mrf.mxu0
    %v8246 = vadd.f32 %v8133, %v8245
    %8247 = vmatmul.f32.gmra.mxu0 %v8184
    %v8248 = vpop.f32.mrf.mxu0
    %v8249 = vadd.f32 %v8136, %v8248
    %8250 = vmatmul.f32.gmra.mxu0 %v8187
    %v8251 = vpop.f32.mrf.mxu0
    %v8252 = vadd.f32 %v8139, %v8251
    %8253 = vmatmul.f32.gmra.mxu0 %v8190
    %v8254 = vpop.f32.mrf.mxu0
    %v8255 = vadd.f32 %v8142, %v8254
    %8256 = vmatmul.f32.gmra.mxu0 %v8193
    %v8257 = vpop.f32.mrf.mxu0
    %v8258 = vadd.f32 %v8145, %v8257
    %8259 = vmatmul.f32.gmra.mxu0 %v8196
    %v8260 = vpop.f32.mrf.mxu0
    %v8261 = vadd.f32 %v8148, %v8260
    %8262 = vmatmul.f32.gmra.mxu0 %v8199
    %v8263 = vpop.f32.mrf.mxu0
    %v8264 = vadd.f32 %v8151, %v8263
    %8265 = vmatmul.f32.gmra.mxu0 %v8202
    %v8266 = vpop.f32.mrf.mxu0
    %v8267 = vadd.f32 %v8154, %v8266
    %8268 = vmatmul.f32.gmra.mxu0 %v8205
    %v8269 = vpop.f32.mrf.mxu0
    %v8270 = vadd.f32 %v8157, %v8269
    %8271 = vmatmul.f32.gmra.mxu0 %v8208
    %v8272 = vpop.f32.mrf.mxu0
    %v8273 = vadd.f32 %v8160, %v8272
    %8274 = vmatmul.f32.gmra.mxu0 %v8211
    %v8275 = vpop.f32.mrf.mxu0
    %v8276 = vadd.f32 %v8163, %v8275
    %8277 = vmatmul.f32.gmra.mxu0 %v8214
    %v8278 = vpop.f32.mrf.mxu0
    %v8279 = vadd.f32 %v8166, %v8278
    %8280 = vmatmul.f32.gmra.mxu0 %v8217
    %v8281 = vpop.f32.mrf.mxu0
    %v8282 = vadd.f32 %v8169, %v8281
    %8283 = vdwg.mxu0
    %v8284 = vld [vmem:[#allocation3 + $0x2] sm:$0xff]
    %v8285 = vld [vmem:[#allocation3 + $0x12] sm:$0xff]
    %v8286 = vld [vmem:[#allocation3 + $0x22] sm:$0xff]
    %v8287 = vld [vmem:[#allocation3 + $0x32] sm:$0xff]
    %v8288 = vld [vmem:[#allocation3 + $0x42] sm:$0xff]
    %v8289 = vld [vmem:[#allocation3 + $0x52] sm:$0xff]
    %v8290 = vld [vmem:[#allocation3 + $0x62] sm:$0xff]
    %v8291 = vld [vmem:[#allocation3 + $0x72] sm:$0xff]
    %v8292 = vld [vmem:[#allocation3 + $0xa2] sm:$0xff]
    %v8293 = vld [vmem:[#allocation3 + $0xb2] sm:$0xff]
    %v8294 = vld [vmem:[#allocation3 + $0xc2] sm:$0xff]
    %v8295 = vld [vmem:[#allocation3 + $0xd2] sm:$0xff]
    %v8296 = vld [vmem:[#allocation3 + $0xe2] sm:$0xff]
    %v8297 = vld [vmem:[#allocation3 + $0xf2] sm:$0xff]
    %v8298 = vld [vmem:[#allocation3 + $0x102] sm:$0xff]
    %v8299 = vld [vmem:[#allocation3 + $0x112] sm:$0xff]
    %s8300 = scalar_lea.vmem %s3, 16
    %v8301 = vld [vmem:[%s8300] sm:$0xff]
    %v8303 = vsel %vm7318, %v8284, 0
    %v8306 = vsel %vm7318, %v8285, 0
    %v8309 = vsel %vm7318, %v8286, 0
    %v8312 = vsel %vm7318, %v8287, 0
    %v8315 = vsel %vm7318, %v8288, 0
    %v8318 = vsel %vm7318, %v8289, 0
    %v8321 = vsel %vm7318, %v8290, 0
    %v8324 = vsel %vm7318, %v8291, 0
    %v8327 = vsel %vm7318, %v8292, 0
    %v8330 = vsel %vm7318, %v8293, 0
    %v8333 = vsel %vm7318, %v8294, 0
    %v8336 = vsel %vm7318, %v8295, 0
    %v8339 = vsel %vm7318, %v8296, 0
    %v8342 = vsel %vm7318, %v8297, 0
    %v8345 = vsel %vm7318, %v8298, 0
    %v8348 = vsel %vm7318, %v8299, 0
    %8350 = vmatpush.msra.mxu0 0.0
    %8351 = vmatpush.msra.mxu0 0.0
    %8352 = vmatpush.msra.mxu0 0.0
    %8353 = vmatpush.msra.mxu0 0.0
    %8354 = vmatpush.msra.mxu0 0.0
    %8355 = vmatpush.msra.mxu0 0.0
    %8356 = vmatpush.msra.mxu0 0.0
    %8357 = vmatpush.msra.mxu0 0.0
    %8358 = vmatpush.msra.mxu0 0.0
    %8359 = vmatpush.msra.mxu0 0.0
    %8360 = vmatpush.msra.mxu0 0.0
    %8361 = vmatpush.msra.mxu0 0.0
    %8362 = vmatpush.msra.mxu0 0.0
    %8363 = vmatpush.msra.mxu0 0.0
    %8364 = vmatpush.msra.mxu0 0.0
    %8365 = vmatpush.msra.mxu0 %v8301
    %8366 = vmatmul.f32.gmra.mxu0 %v8303
    %v8367 = vpop.f32.mrf.mxu0
    %v8368 = vadd.f32 0.0, %v8367
    %8369 = vmatmul.f32.gmra.mxu0 %v8306
    %v8370 = vpop.f32.mrf.mxu0
    %v8371 = vadd.f32 0.0, %v8370
    %8372 = vmatmul.f32.gmra.mxu0 %v8309
    %v8373 = vpop.f32.mrf.mxu0
    %v8374 = vadd.f32 0.0, %v8373
    %8375 = vmatmul.f32.gmra.mxu0 %v8312
    %v8376 = vpop.f32.mrf.mxu0
    %v8377 = vadd.f32 0.0, %v8376
    %8378 = vmatmul.f32.gmra.mxu0 %v8315
    %v8379 = vpop.f32.mrf.mxu0
    %v8380 = vadd.f32 0.0, %v8379
    %8381 = vmatmul.f32.gmra.mxu0 %v8318
    %v8382 = vpop.f32.mrf.mxu0
    %v8383 = vadd.f32 0.0, %v8382
    %8384 = vmatmul.f32.gmra.mxu0 %v8321
    %v8385 = vpop.f32.mrf.mxu0
    %v8386 = vadd.f32 0.0, %v8385
    %8387 = vmatmul.f32.gmra.mxu0 %v8324
    %v8388 = vpop.f32.mrf.mxu0
    %v8389 = vadd.f32 0.0, %v8388
    %8390 = vmatmul.f32.gmra.mxu0 %v8327
    %v8391 = vpop.f32.mrf.mxu0
    %v8392 = vadd.f32 0.0, %v8391
    %8393 = vmatmul.f32.gmra.mxu0 %v8330
    %v8394 = vpop.f32.mrf.mxu0
    %v8395 = vadd.f32 0.0, %v8394
    %8396 = vmatmul.f32.gmra.mxu0 %v8333
    %v8397 = vpop.f32.mrf.mxu0
    %v8398 = vadd.f32 0.0, %v8397
    %8399 = vmatmul.f32.gmra.mxu0 %v8336
    %v8400 = vpop.f32.mrf.mxu0
    %v8401 = vadd.f32 0.0, %v8400
    %8402 = vmatmul.f32.gmra.mxu0 %v8339
    %v8403 = vpop.f32.mrf.mxu0
    %v8404 = vadd.f32 0.0, %v8403
    %8405 = vmatmul.f32.gmra.mxu0 %v8342
    %v8406 = vpop.f32.mrf.mxu0
    %v8407 = vadd.f32 0.0, %v8406
    %8408 = vmatmul.f32.gmra.mxu0 %v8345
    %v8409 = vpop.f32.mrf.mxu0
    %v8410 = vadd.f32 0.0, %v8409
    %8411 = vmatmul.f32.gmra.mxu0 %v8348
    %v8412 = vpop.f32.mrf.mxu0
    %v8413 = vadd.f32 0.0, %v8412
    %8414 = vdwg.mxu0
    %v8415 = vadd.f32 %v8237, %v8368
    %v8416 = vadd.f32 %v8240, %v8371
    %v8417 = vadd.f32 %v8243, %v8374
    %v8418 = vadd.f32 %v8246, %v8377
    %v8419 = vadd.f32 %v8249, %v8380
    %v8420 = vadd.f32 %v8252, %v8383
    %v8421 = vadd.f32 %v8255, %v8386
    %v8422 = vadd.f32 %v8258, %v8389
    %v8423 = vadd.f32 %v8261, %v8392
    %v8424 = vadd.f32 %v8264, %v8395
    %v8425 = vadd.f32 %v8267, %v8398
    %v8426 = vadd.f32 %v8270, %v8401
    %v8427 = vadd.f32 %v8273, %v8404
    %v8428 = vadd.f32 %v8276, %v8407
    %v8429 = vadd.f32 %v8279, %v8410
    %v8430 = vadd.f32 %v8282, %v8413
    %v8431 = vld [vmem:[%s8006] sm:$0xff]
    %v8432 = vld [vmem:[%s8006 + $0x10] sm:$0xff]
    %v8433 = vld [vmem:[%s8006 + $0x20] sm:$0xff]
    %v8434 = vld [vmem:[%s8006 + $0x30] sm:$0xff]
    %v8435 = vld [vmem:[%s8006 + $0x40] sm:$0xff]
    %v8436 = vld [vmem:[%s8006 + $0x50] sm:$0xff]
    %v8437 = vld [vmem:[%s8006 + $0x60] sm:$0xff]
    %v8438 = vld [vmem:[%s8006 + $0x70] sm:$0xff]
    %v8439 = vld [vmem:[%s8006 + $0xa0] sm:$0xff]
    %v8440 = vld [vmem:[%s8006 + $0xb0] sm:$0xff]
    %v8441 = vld [vmem:[%s8006 + $0xc0] sm:$0xff]
    %v8442 = vld [vmem:[%s8006 + $0xd0] sm:$0xff]
    %v8443 = vld [vmem:[%s8006 + $0xe0] sm:$0xff]
    %v8444 = vld [vmem:[%s8006 + $0xf0] sm:$0xff]
    %v8445 = vld [vmem:[%s8006 + $0x100] sm:$0xff]
    %v8446 = vld [vmem:[%s8006 + $0x110] sm:$0xff]
    %s8447 = scalar_lea.vmem %s3, 24
    %v8448 = vld [vmem:[%s8447] sm:$0xff]
    %v8450 = vsel %vm7318, %v8431, 0
    %v8453 = vsel %vm7318, %v8432, 0
    %v8456 = vsel %vm7318, %v8433, 0
    %v8459 = vsel %vm7318, %v8434, 0
    %v8462 = vsel %vm7318, %v8435, 0
    %v8465 = vsel %vm7318, %v8436, 0
    %v8468 = vsel %vm7318, %v8437, 0
    %v8471 = vsel %vm7318, %v8438, 0
    %v8474 = vsel %vm7318, %v8439, 0
    %v8477 = vsel %vm7318, %v8440, 0
    %v8480 = vsel %vm7318, %v8441, 0
    %v8483 = vsel %vm7318, %v8442, 0
    %v8486 = vsel %vm7318, %v8443, 0
    %v8489 = vsel %vm7318, %v8444, 0
    %v8492 = vsel %vm7318, %v8445, 0
    %v8495 = vsel %vm7318, %v8446, 0
    %8497 = vmatpush.msra.mxu0 0.0
    %8498 = vmatpush.msra.mxu0 0.0
    %8499 = vmatpush.msra.mxu0 0.0
    %8500 = vmatpush.msra.mxu0 0.0
    %8501 = vmatpush.msra.mxu0 0.0
    %8502 = vmatpush.msra.mxu0 0.0
    %8503 = vmatpush.msra.mxu0 0.0
    %8504 = vmatpush.msra.mxu0 0.0
    %8505 = vmatpush.msra.mxu0 0.0
    %8506 = vmatpush.msra.mxu0 0.0
    %8507 = vmatpush.msra.mxu0 0.0
    %8508 = vmatpush.msra.mxu0 0.0
    %8509 = vmatpush.msra.mxu0 0.0
    %8510 = vmatpush.msra.mxu0 0.0
    %8511 = vmatpush.msra.mxu0 0.0
    %8512 = vmatpush.msra.mxu0 %v8448
    %8513 = vmatmul.f32.gmra.mxu0 %v8450
    %v8514 = vpop.f32.mrf.mxu0
    %v8515 = vadd.f32 0.0, %v8514
    %8516 = vmatmul.f32.gmra.mxu0 %v8453
    %v8517 = vpop.f32.mrf.mxu0
    %v8518 = vadd.f32 0.0, %v8517
    %8519 = vmatmul.f32.gmra.mxu0 %v8456
    %v8520 = vpop.f32.mrf.mxu0
    %v8521 = vadd.f32 0.0, %v8520
    %8522 = vmatmul.f32.gmra.mxu0 %v8459
    %v8523 = vpop.f32.mrf.mxu0
    %v8524 = vadd.f32 0.0, %v8523
    %8525 = vmatmul.f32.gmra.mxu0 %v8462
    %v8526 = vpop.f32.mrf.mxu0
    %v8527 = vadd.f32 0.0, %v8526
    %8528 = vmatmul.f32.gmra.mxu0 %v8465
    %v8529 = vpop.f32.mrf.mxu0
    %v8530 = vadd.f32 0.0, %v8529
    %8531 = vmatmul.f32.gmra.mxu0 %v8468
    %v8532 = vpop.f32.mrf.mxu0
    %v8533 = vadd.f32 0.0, %v8532
    %8534 = vmatmul.f32.gmra.mxu0 %v8471
    %v8535 = vpop.f32.mrf.mxu0
    %v8536 = vadd.f32 0.0, %v8535
    %8537 = vmatmul.f32.gmra.mxu0 %v8474
    %v8538 = vpop.f32.mrf.mxu0
    %v8539 = vadd.f32 0.0, %v8538
    %8540 = vmatmul.f32.gmra.mxu0 %v8477
    %v8541 = vpop.f32.mrf.mxu0
    %v8542 = vadd.f32 0.0, %v8541
    %8543 = vmatmul.f32.gmra.mxu0 %v8480
    %v8544 = vpop.f32.mrf.mxu0
    %v8545 = vadd.f32 0.0, %v8544
    %8546 = vmatmul.f32.gmra.mxu0 %v8483
    %v8547 = vpop.f32.mrf.mxu0
    %v8548 = vadd.f32 0.0, %v8547
    %8549 = vmatmul.f32.gmra.mxu0 %v8486
    %v8550 = vpop.f32.mrf.mxu0
    %v8551 = vadd.f32 0.0, %v8550
    %8552 = vmatmul.f32.gmra.mxu0 %v8489
    %v8553 = vpop.f32.mrf.mxu0
    %v8554 = vadd.f32 0.0, %v8553
    %8555 = vmatmul.f32.gmra.mxu0 %v8492
    %v8556 = vpop.f32.mrf.mxu0
    %v8557 = vadd.f32 0.0, %v8556
    %8558 = vmatmul.f32.gmra.mxu0 %v8495
    %v8559 = vpop.f32.mrf.mxu0
    %v8560 = vadd.f32 0.0, %v8559
    %8561 = vdwg.mxu0
    %v8562 = vadd.f32 %v8415, %v8515
    %v8563 = vadd.f32 %v8416, %v8518
    %v8564 = vadd.f32 %v8417, %v8521
    %v8565 = vadd.f32 %v8418, %v8524
    %v8566 = vadd.f32 %v8419, %v8527
    %v8567 = vadd.f32 %v8420, %v8530
    %v8568 = vadd.f32 %v8421, %v8533
    %v8569 = vadd.f32 %v8422, %v8536
    %v8570 = vadd.f32 %v8423, %v8539
    %v8571 = vadd.f32 %v8424, %v8542
    %v8572 = vadd.f32 %v8425, %v8545
    %v8573 = vadd.f32 %v8426, %v8548
    %v8574 = vadd.f32 %v8427, %v8551
    %v8575 = vadd.f32 %v8428, %v8554
    %v8576 = vadd.f32 %v8429, %v8557
    %v8577 = vadd.f32 %v8430, %v8560
    %v8578 = vld [vmem:[%s8006 + $0x1] sm:$0xff]
    %v8579 = vld [vmem:[%s8006 + $0x11] sm:$0xff]
    %v8580 = vld [vmem:[%s8006 + $0x21] sm:$0xff]
    %v8581 = vld [vmem:[%s8006 + $0x31] sm:$0xff]
    %v8582 = vld [vmem:[%s8006 + $0x41] sm:$0xff]
    %v8583 = vld [vmem:[%s8006 + $0x51] sm:$0xff]
    %v8584 = vld [vmem:[%s8006 + $0x61] sm:$0xff]
    %v8585 = vld [vmem:[%s8006 + $0x71] sm:$0xff]
    %v8586 = vld [vmem:[%s8006 + $0xa1] sm:$0xff]
    %v8587 = vld [vmem:[%s8006 + $0xb1] sm:$0xff]
    %v8588 = vld [vmem:[%s8006 + $0xc1] sm:$0xff]
    %v8589 = vld [vmem:[%s8006 + $0xd1] sm:$0xff]
    %v8590 = vld [vmem:[%s8006 + $0xe1] sm:$0xff]
    %v8591 = vld [vmem:[%s8006 + $0xf1] sm:$0xff]
    %v8592 = vld [vmem:[%s8006 + $0x101] sm:$0xff]
    %v8593 = vld [vmem:[%s8006 + $0x111] sm:$0xff]
    %s8594 = scalar_lea.vmem %s3, 32
    %v8595 = vld [vmem:[%s8594] sm:$0xff]
    %v8597 = vsel %vm7318, %v8578, 0
    %v8600 = vsel %vm7318, %v8579, 0
    %v8603 = vsel %vm7318, %v8580, 0
    %v8606 = vsel %vm7318, %v8581, 0
    %v8609 = vsel %vm7318, %v8582, 0
    %v8612 = vsel %vm7318, %v8583, 0
    %v8615 = vsel %vm7318, %v8584, 0
    %v8618 = vsel %vm7318, %v8585, 0
    %v8621 = vsel %vm7318, %v8586, 0
    %v8624 = vsel %vm7318, %v8587, 0
    %v8627 = vsel %vm7318, %v8588, 0
    %v8630 = vsel %vm7318, %v8589, 0
    %v8633 = vsel %vm7318, %v8590, 0
    %v8636 = vsel %vm7318, %v8591, 0
    %v8639 = vsel %vm7318, %v8592, 0
    %v8642 = vsel %vm7318, %v8593, 0
    %8644 = vmatpush.msra.mxu0 0.0
    %8645 = vmatpush.msra.mxu0 0.0
    %8646 = vmatpush.msra.mxu0 0.0
    %8647 = vmatpush.msra.mxu0 0.0
    %8648 = vmatpush.msra.mxu0 0.0
    %8649 = vmatpush.msra.mxu0 0.0
    %8650 = vmatpush.msra.mxu0 0.0
    %8651 = vmatpush.msra.mxu0 0.0
    %8652 = vmatpush.msra.mxu0 0.0
    %8653 = vmatpush.msra.mxu0 0.0
    %8654 = vmatpush.msra.mxu0 0.0
    %8655 = vmatpush.msra.mxu0 0.0
    %8656 = vmatpush.msra.mxu0 0.0
    %8657 = vmatpush.msra.mxu0 0.0
    %8658 = vmatpush.msra.mxu0 0.0
    %8659 = vmatpush.msra.mxu0 %v8595
    %8660 = vmatmul.f32.gmra.mxu0 %v8597
    %v8661 = vpop.f32.mrf.mxu0
    %v8662 = vadd.f32 0.0, %v8661
    %8663 = vmatmul.f32.gmra.mxu0 %v8600
    %v8664 = vpop.f32.mrf.mxu0
    %v8665 = vadd.f32 0.0, %v8664
    %8666 = vmatmul.f32.gmra.mxu0 %v8603
    %v8667 = vpop.f32.mrf.mxu0
    %v8668 = vadd.f32 0.0, %v8667
    %8669 = vmatmul.f32.gmra.mxu0 %v8606
    %v8670 = vpop.f32.mrf.mxu0
    %v8671 = vadd.f32 0.0, %v8670
    %8672 = vmatmul.f32.gmra.mxu0 %v8609
    %v8673 = vpop.f32.mrf.mxu0
    %v8674 = vadd.f32 0.0, %v8673
    %8675 = vmatmul.f32.gmra.mxu0 %v8612
    %v8676 = vpop.f32.mrf.mxu0
    %v8677 = vadd.f32 0.0, %v8676
    %8678 = vmatmul.f32.gmra.mxu0 %v8615
    %v8679 = vpop.f32.mrf.mxu0
    %v8680 = vadd.f32 0.0, %v8679
    %8681 = vmatmul.f32.gmra.mxu0 %v8618
    %v8682 = vpop.f32.mrf.mxu0
    %v8683 = vadd.f32 0.0, %v8682
    %8684 = vmatmul.f32.gmra.mxu0 %v8621
    %v8685 = vpop.f32.mrf.mxu0
    %v8686 = vadd.f32 0.0, %v8685
    %8687 = vmatmul.f32.gmra.mxu0 %v8624
    %v8688 = vpop.f32.mrf.mxu0
    %v8689 = vadd.f32 0.0, %v8688
    %8690 = vmatmul.f32.gmra.mxu0 %v8627
    %v8691 = vpop.f32.mrf.mxu0
    %v8692 = vadd.f32 0.0, %v8691
    %8693 = vmatmul.f32.gmra.mxu0 %v8630
    %v8694 = vpop.f32.mrf.mxu0
    %v8695 = vadd.f32 0.0, %v8694
    %8696 = vmatmul.f32.gmra.mxu0 %v8633
    %v8697 = vpop.f32.mrf.mxu0
    %v8698 = vadd.f32 0.0, %v8697
    %8699 = vmatmul.f32.gmra.mxu0 %v8636
    %v8700 = vpop.f32.mrf.mxu0
    %v8701 = vadd.f32 0.0, %v8700
    %8702 = vmatmul.f32.gmra.mxu0 %v8639
    %v8703 = vpop.f32.mrf.mxu0
    %v8704 = vadd.f32 0.0, %v8703
    %8705 = vmatmul.f32.gmra.mxu0 %v8642
    %v8706 = vpop.f32.mrf.mxu0
    %v8707 = vadd.f32 0.0, %v8706
    %8708 = vdwg.mxu0
    %v8709 = vadd.f32 %v8562, %v8662
    %v8710 = vadd.f32 %v8563, %v8665
    %v8711 = vadd.f32 %v8564, %v8668
    %v8712 = vadd.f32 %v8565, %v8671
    %v8713 = vadd.f32 %v8566, %v8674
    %v8714 = vadd.f32 %v8567, %v8677
    %v8715 = vadd.f32 %v8568, %v8680
    %v8716 = vadd.f32 %v8569, %v8683
    %v8717 = vadd.f32 %v8570, %v8686
    %v8718 = vadd.f32 %v8571, %v8689
    %v8719 = vadd.f32 %v8572, %v8692
    %v8720 = vadd.f32 %v8573, %v8695
    %v8721 = vadd.f32 %v8574, %v8698
    %v8722 = vadd.f32 %v8575, %v8701
    %v8723 = vadd.f32 %v8576, %v8704
    %v8724 = vadd.f32 %v8577, %v8707
    %v8725 = vld [vmem:[%s8006 + $0x2] sm:$0xff]
    %v8726 = vld [vmem:[%s8006 + $0x12] sm:$0xff]
    %v8727 = vld [vmem:[%s8006 + $0x22] sm:$0xff]
    %v8728 = vld [vmem:[%s8006 + $0x32] sm:$0xff]
    %v8729 = vld [vmem:[%s8006 + $0x42] sm:$0xff]
    %v8730 = vld [vmem:[%s8006 + $0x52] sm:$0xff]
    %v8731 = vld [vmem:[%s8006 + $0x62] sm:$0xff]
    %v8732 = vld [vmem:[%s8006 + $0x72] sm:$0xff]
    %v8733 = vld [vmem:[%s8006 + $0xa2] sm:$0xff]
    %v8734 = vld [vmem:[%s8006 + $0xb2] sm:$0xff]
    %v8735 = vld [vmem:[%s8006 + $0xc2] sm:$0xff]
    %v8736 = vld [vmem:[%s8006 + $0xd2] sm:$0xff]
    %v8737 = vld [vmem:[%s8006 + $0xe2] sm:$0xff]
    %v8738 = vld [vmem:[%s8006 + $0xf2] sm:$0xff]
    %v8739 = vld [vmem:[%s8006 + $0x102] sm:$0xff]
    %v8740 = vld [vmem:[%s8006 + $0x112] sm:$0xff]
    %s8741 = scalar_lea.vmem %s3, 40
    %v8742 = vld [vmem:[%s8741] sm:$0xff]
    %v8744 = vsel %vm7318, %v8725, 0
    %v8747 = vsel %vm7318, %v8726, 0
    %v8750 = vsel %vm7318, %v8727, 0
    %v8753 = vsel %vm7318, %v8728, 0
    %v8756 = vsel %vm7318, %v8729, 0
    %v8759 = vsel %vm7318, %v8730, 0
    %v8762 = vsel %vm7318, %v8731, 0
    %v8765 = vsel %vm7318, %v8732, 0
    %v8768 = vsel %vm7318, %v8733, 0
    %v8771 = vsel %vm7318, %v8734, 0
    %v8774 = vsel %vm7318, %v8735, 0
    %v8777 = vsel %vm7318, %v8736, 0
    %v8780 = vsel %vm7318, %v8737, 0
    %v8783 = vsel %vm7318, %v8738, 0
    %v8786 = vsel %vm7318, %v8739, 0
    %v8789 = vsel %vm7318, %v8740, 0
    %8791 = vmatpush.msra.mxu0 0.0
    %8792 = vmatpush.msra.mxu0 0.0
    %8793 = vmatpush.msra.mxu0 0.0
    %8794 = vmatpush.msra.mxu0 0.0
    %8795 = vmatpush.msra.mxu0 0.0
    %8796 = vmatpush.msra.mxu0 0.0
    %8797 = vmatpush.msra.mxu0 0.0
    %8798 = vmatpush.msra.mxu0 0.0
    %8799 = vmatpush.msra.mxu0 0.0
    %8800 = vmatpush.msra.mxu0 0.0
    %8801 = vmatpush.msra.mxu0 0.0
    %8802 = vmatpush.msra.mxu0 0.0
    %8803 = vmatpush.msra.mxu0 0.0
    %8804 = vmatpush.msra.mxu0 0.0
    %8805 = vmatpush.msra.mxu0 0.0
    %8806 = vmatpush.msra.mxu0 %v8742
    %8807 = vmatmul.f32.gmra.mxu0 %v8744
    %v8808 = vpop.f32.mrf.mxu0
    %v8809 = vadd.f32 0.0, %v8808
    %8810 = vmatmul.f32.gmra.mxu0 %v8747
    %v8811 = vpop.f32.mrf.mxu0
    %v8812 = vadd.f32 0.0, %v8811
    %8813 = vmatmul.f32.gmra.mxu0 %v8750
    %v8814 = vpop.f32.mrf.mxu0
    %v8815 = vadd.f32 0.0, %v8814
    %8816 = vmatmul.f32.gmra.mxu0 %v8753
    %v8817 = vpop.f32.mrf.mxu0
    %v8818 = vadd.f32 0.0, %v8817
    %8819 = vmatmul.f32.gmra.mxu0 %v8756
    %v8820 = vpop.f32.mrf.mxu0
    %v8821 = vadd.f32 0.0, %v8820
    %8822 = vmatmul.f32.gmra.mxu0 %v8759
    %v8823 = vpop.f32.mrf.mxu0
    %v8824 = vadd.f32 0.0, %v8823
    %8825 = vmatmul.f32.gmra.mxu0 %v8762
    %v8826 = vpop.f32.mrf.mxu0
    %v8827 = vadd.f32 0.0, %v8826
    %8828 = vmatmul.f32.gmra.mxu0 %v8765
    %v8829 = vpop.f32.mrf.mxu0
    %v8830 = vadd.f32 0.0, %v8829
    %8831 = vmatmul.f32.gmra.mxu0 %v8768
    %v8832 = vpop.f32.mrf.mxu0
    %v8833 = vadd.f32 0.0, %v8832
    %8834 = vmatmul.f32.gmra.mxu0 %v8771
    %v8835 = vpop.f32.mrf.mxu0
    %v8836 = vadd.f32 0.0, %v8835
    %8837 = vmatmul.f32.gmra.mxu0 %v8774
    %v8838 = vpop.f32.mrf.mxu0
    %v8839 = vadd.f32 0.0, %v8838
    %8840 = vmatmul.f32.gmra.mxu0 %v8777
    %v8841 = vpop.f32.mrf.mxu0
    %v8842 = vadd.f32 0.0, %v8841
    %8843 = vmatmul.f32.gmra.mxu0 %v8780
    %v8844 = vpop.f32.mrf.mxu0
    %v8845 = vadd.f32 0.0, %v8844
    %8846 = vmatmul.f32.gmra.mxu0 %v8783
    %v8847 = vpop.f32.mrf.mxu0
    %v8848 = vadd.f32 0.0, %v8847
    %8849 = vmatmul.f32.gmra.mxu0 %v8786
    %v8850 = vpop.f32.mrf.mxu0
    %v8851 = vadd.f32 0.0, %v8850
    %8852 = vmatmul.f32.gmra.mxu0 %v8789
    %v8853 = vpop.f32.mrf.mxu0
    %v8854 = vadd.f32 0.0, %v8853
    %8855 = vdwg.mxu0
    %v8856 = vadd.f32 %v8709, %v8809
    %v8857 = vadd.f32 %v8710, %v8812
    %v8858 = vadd.f32 %v8711, %v8815
    %v8859 = vadd.f32 %v8712, %v8818
    %v8860 = vadd.f32 %v8713, %v8821
    %v8861 = vadd.f32 %v8714, %v8824
    %v8862 = vadd.f32 %v8715, %v8827
    %v8863 = vadd.f32 %v8716, %v8830
    %v8864 = vadd.f32 %v8717, %v8833
    %v8865 = vadd.f32 %v8718, %v8836
    %v8866 = vadd.f32 %v8719, %v8839
    %v8867 = vadd.f32 %v8720, %v8842
    %v8868 = vadd.f32 %v8721, %v8845
    %v8869 = vadd.f32 %v8722, %v8848
    %v8870 = vadd.f32 %v8723, %v8851
    %v8871 = vadd.f32 %v8724, %v8854
    %s8872 = scalar_lea.vmem [#allocation3], 32
    %v8873 = vld [vmem:[%s8872] sm:$0xff]
    %v8874 = vld [vmem:[%s8872 + $0x10] sm:$0xff]
    %v8875 = vld [vmem:[%s8872 + $0x20] sm:$0xff]
    %v8876 = vld [vmem:[%s8872 + $0x30] sm:$0xff]
    %v8877 = vld [vmem:[%s8872 + $0x40] sm:$0xff]
    %v8878 = vld [vmem:[%s8872 + $0x50] sm:$0xff]
    %v8879 = vld [vmem:[%s8872 + $0x60] sm:$0xff]
    %v8880 = vld [vmem:[%s8872 + $0x70] sm:$0xff]
    %v8881 = vld [vmem:[%s8872 + $0xa0] sm:$0xff]
    %v8882 = vld [vmem:[%s8872 + $0xb0] sm:$0xff]
    %v8883 = vld [vmem:[%s8872 + $0xc0] sm:$0xff]
    %v8884 = vld [vmem:[%s8872 + $0xd0] sm:$0xff]
    %v8885 = vld [vmem:[%s8872 + $0xe0] sm:$0xff]
    %v8886 = vld [vmem:[%s8872 + $0xf0] sm:$0xff]
    %v8887 = vld [vmem:[%s8872 + $0x100] sm:$0xff]
    %v8888 = vld [vmem:[%s8872 + $0x110] sm:$0xff]
    %s8889 = scalar_lea.vmem %s3, 48
    %v8890 = vld [vmem:[%s8889] sm:$0xff]
    %v8892 = vsel %vm7318, %v8873, 0
    %v8895 = vsel %vm7318, %v8874, 0
    %v8898 = vsel %vm7318, %v8875, 0
    %v8901 = vsel %vm7318, %v8876, 0
    %v8904 = vsel %vm7318, %v8877, 0
    %v8907 = vsel %vm7318, %v8878, 0
    %v8910 = vsel %vm7318, %v8879, 0
    %v8913 = vsel %vm7318, %v8880, 0
    %v8916 = vsel %vm7318, %v8881, 0
    %v8919 = vsel %vm7318, %v8882, 0
    %v8922 = vsel %vm7318, %v8883, 0
    %v8925 = vsel %vm7318, %v8884, 0
    %v8928 = vsel %vm7318, %v8885, 0
    %v8931 = vsel %vm7318, %v8886, 0
    %v8934 = vsel %vm7318, %v8887, 0
    %v8937 = vsel %vm7318, %v8888, 0
    %8939 = vmatpush.msra.mxu0 0.0
    %8940 = vmatpush.msra.mxu0 0.0
    %8941 = vmatpush.msra.mxu0 0.0
    %8942 = vmatpush.msra.mxu0 0.0
    %8943 = vmatpush.msra.mxu0 0.0
    %8944 = vmatpush.msra.mxu0 0.0
    %8945 = vmatpush.msra.mxu0 0.0
    %8946 = vmatpush.msra.mxu0 0.0
    %8947 = vmatpush.msra.mxu0 0.0
    %8948 = vmatpush.msra.mxu0 0.0
    %8949 = vmatpush.msra.mxu0 0.0
    %8950 = vmatpush.msra.mxu0 0.0
    %8951 = vmatpush.msra.mxu0 0.0
    %8952 = vmatpush.msra.mxu0 0.0
    %8953 = vmatpush.msra.mxu0 0.0
    %8954 = vmatpush.msra.mxu0 %v8890
    %8955 = vmatmul.f32.gmra.mxu0 %v8892
    %v8956 = vpop.f32.mrf.mxu0
    %v8957 = vadd.f32 0.0, %v8956
    %8958 = vmatmul.f32.gmra.mxu0 %v8895
    %v8959 = vpop.f32.mrf.mxu0
    %v8960 = vadd.f32 0.0, %v8959
    %8961 = vmatmul.f32.gmra.mxu0 %v8898
    %v8962 = vpop.f32.mrf.mxu0
    %v8963 = vadd.f32 0.0, %v8962
    %8964 = vmatmul.f32.gmra.mxu0 %v8901
    %v8965 = vpop.f32.mrf.mxu0
    %v8966 = vadd.f32 0.0, %v8965
    %8967 = vmatmul.f32.gmra.mxu0 %v8904
    %v8968 = vpop.f32.mrf.mxu0
    %v8969 = vadd.f32 0.0, %v8968
    %8970 = vmatmul.f32.gmra.mxu0 %v8907
    %v8971 = vpop.f32.mrf.mxu0
    %v8972 = vadd.f32 0.0, %v8971
    %8973 = vmatmul.f32.gmra.mxu0 %v8910
    %v8974 = vpop.f32.mrf.mxu0
    %v8975 = vadd.f32 0.0, %v8974
    %8976 = vmatmul.f32.gmra.mxu0 %v8913
    %v8977 = vpop.f32.mrf.mxu0
    %v8978 = vadd.f32 0.0, %v8977
    %8979 = vmatmul.f32.gmra.mxu0 %v8916
    %v8980 = vpop.f32.mrf.mxu0
    %v8981 = vadd.f32 0.0, %v8980
    %8982 = vmatmul.f32.gmra.mxu0 %v8919
    %v8983 = vpop.f32.mrf.mxu0
    %v8984 = vadd.f32 0.0, %v8983
    %8985 = vmatmul.f32.gmra.mxu0 %v8922
    %v8986 = vpop.f32.mrf.mxu0
    %v8987 = vadd.f32 0.0, %v8986
    %8988 = vmatmul.f32.gmra.mxu0 %v8925
    %v8989 = vpop.f32.mrf.mxu0
    %v8990 = vadd.f32 0.0, %v8989
    %8991 = vmatmul.f32.gmra.mxu0 %v8928
    %v8992 = vpop.f32.mrf.mxu0
    %v8993 = vadd.f32 0.0, %v8992
    %8994 = vmatmul.f32.gmra.mxu0 %v8931
    %v8995 = vpop.f32.mrf.mxu0
    %v8996 = vadd.f32 0.0, %v8995
    %8997 = vmatmul.f32.gmra.mxu0 %v8934
    %v8998 = vpop.f32.mrf.mxu0
    %v8999 = vadd.f32 0.0, %v8998
    %9000 = vmatmul.f32.gmra.mxu0 %v8937
    %v9001 = vpop.f32.mrf.mxu0
    %v9002 = vadd.f32 0.0, %v9001
    %9003 = vdwg.mxu0
    %v9004 = vadd.f32 %v8856, %v8957
    %v9005 = vadd.f32 %v8857, %v8960
    %v9006 = vadd.f32 %v8858, %v8963
    %v9007 = vadd.f32 %v8859, %v8966
    %v9008 = vadd.f32 %v8860, %v8969
    %v9009 = vadd.f32 %v8861, %v8972
    %v9010 = vadd.f32 %v8862, %v8975
    %v9011 = vadd.f32 %v8863, %v8978
    %v9012 = vadd.f32 %v8864, %v8981
    %v9013 = vadd.f32 %v8865, %v8984
    %v9014 = vadd.f32 %v8866, %v8987
    %v9015 = vadd.f32 %v8867, %v8990
    %v9016 = vadd.f32 %v8868, %v8993
    %v9017 = vadd.f32 %v8869, %v8996
    %v9018 = vadd.f32 %v8870, %v8999
    %v9019 = vadd.f32 %v8871, %v9002
    %v9020 = vld [vmem:[%s8872 + $0x1] sm:$0xff]
    %v9021 = vld [vmem:[%s8872 + $0x11] sm:$0xff]
    %v9022 = vld [vmem:[%s8872 + $0x21] sm:$0xff]
    %v9023 = vld [vmem:[%s8872 + $0x31] sm:$0xff]
    %v9024 = vld [vmem:[%s8872 + $0x41] sm:$0xff]
    %v9025 = vld [vmem:[%s8872 + $0x51] sm:$0xff]
    %v9026 = vld [vmem:[%s8872 + $0x61] sm:$0xff]
    %v9027 = vld [vmem:[%s8872 + $0x71] sm:$0xff]
    %v9028 = vld [vmem:[%s8872 + $0xa1] sm:$0xff]
    %v9029 = vld [vmem:[%s8872 + $0xb1] sm:$0xff]
    %v9030 = vld [vmem:[%s8872 + $0xc1] sm:$0xff]
    %v9031 = vld [vmem:[%s8872 + $0xd1] sm:$0xff]
    %v9032 = vld [vmem:[%s8872 + $0xe1] sm:$0xff]
    %v9033 = vld [vmem:[%s8872 + $0xf1] sm:$0xff]
    %v9034 = vld [vmem:[%s8872 + $0x101] sm:$0xff]
    %v9035 = vld [vmem:[%s8872 + $0x111] sm:$0xff]
    %s9036 = scalar_lea.vmem %s3, 56
    %v9037 = vld [vmem:[%s9036] sm:$0xff]
    %v9039 = vsel %vm7318, %v9020, 0
    %v9042 = vsel %vm7318, %v9021, 0
    %v9045 = vsel %vm7318, %v9022, 0
    %v9048 = vsel %vm7318, %v9023, 0
    %v9051 = vsel %vm7318, %v9024, 0
    %v9054 = vsel %vm7318, %v9025, 0
    %v9057 = vsel %vm7318, %v9026, 0
    %v9060 = vsel %vm7318, %v9027, 0
    %v9063 = vsel %vm7318, %v9028, 0
    %v9066 = vsel %vm7318, %v9029, 0
    %v9069 = vsel %vm7318, %v9030, 0
    %v9072 = vsel %vm7318, %v9031, 0
    %v9075 = vsel %vm7318, %v9032, 0
    %v9078 = vsel %vm7318, %v9033, 0
    %v9081 = vsel %vm7318, %v9034, 0
    %v9084 = vsel %vm7318, %v9035, 0
    %9086 = vmatpush.msra.mxu0 0.0
    %9087 = vmatpush.msra.mxu0 0.0
    %9088 = vmatpush.msra.mxu0 0.0
    %9089 = vmatpush.msra.mxu0 0.0
    %9090 = vmatpush.msra.mxu0 0.0
    %9091 = vmatpush.msra.mxu0 0.0
    %9092 = vmatpush.msra.mxu0 0.0
    %9093 = vmatpush.msra.mxu0 0.0
    %9094 = vmatpush.msra.mxu0 0.0
    %9095 = vmatpush.msra.mxu0 0.0
    %9096 = vmatpush.msra.mxu0 0.0
    %9097 = vmatpush.msra.mxu0 0.0
    %9098 = vmatpush.msra.mxu0 0.0
    %9099 = vmatpush.msra.mxu0 0.0
    %9100 = vmatpush.msra.mxu0 0.0
    %9101 = vmatpush.msra.mxu0 %v9037
    %9102 = vmatmul.f32.gmra.mxu0 %v9039
    %v9103 = vpop.f32.mrf.mxu0
    %v9104 = vadd.f32 0.0, %v9103
    %9105 = vmatmul.f32.gmra.mxu0 %v9042
    %v9106 = vpop.f32.mrf.mxu0
    %v9107 = vadd.f32 0.0, %v9106
    %9108 = vmatmul.f32.gmra.mxu0 %v9045
    %v9109 = vpop.f32.mrf.mxu0
    %v9110 = vadd.f32 0.0, %v9109
    %9111 = vmatmul.f32.gmra.mxu0 %v9048
    %v9112 = vpop.f32.mrf.mxu0
    %v9113 = vadd.f32 0.0, %v9112
    %9114 = vmatmul.f32.gmra.mxu0 %v9051
    %v9115 = vpop.f32.mrf.mxu0
    %v9116 = vadd.f32 0.0, %v9115
    %9117 = vmatmul.f32.gmra.mxu0 %v9054
    %v9118 = vpop.f32.mrf.mxu0
    %v9119 = vadd.f32 0.0, %v9118
    %9120 = vmatmul.f32.gmra.mxu0 %v9057
    %v9121 = vpop.f32.mrf.mxu0
    %v9122 = vadd.f32 0.0, %v9121
    %9123 = vmatmul.f32.gmra.mxu0 %v9060
    %v9124 = vpop.f32.mrf.mxu0
    %v9125 = vadd.f32 0.0, %v9124
    %9126 = vmatmul.f32.gmra.mxu0 %v9063
    %v9127 = vpop.f32.mrf.mxu0
    %v9128 = vadd.f32 0.0, %v9127
    %9129 = vmatmul.f32.gmra.mxu0 %v9066
    %v9130 = vpop.f32.mrf.mxu0
    %v9131 = vadd.f32 0.0, %v9130
    %9132 = vmatmul.f32.gmra.mxu0 %v9069
    %v9133 = vpop.f32.mrf.mxu0
    %v9134 = vadd.f32 0.0, %v9133
    %9135 = vmatmul.f32.gmra.mxu0 %v9072
    %v9136 = vpop.f32.mrf.mxu0
    %v9137 = vadd.f32 0.0, %v9136
    %9138 = vmatmul.f32.gmra.mxu0 %v9075
    %v9139 = vpop.f32.mrf.mxu0
    %v9140 = vadd.f32 0.0, %v9139
    %9141 = vmatmul.f32.gmra.mxu0 %v9078
    %v9142 = vpop.f32.mrf.mxu0
    %v9143 = vadd.f32 0.0, %v9142
    %9144 = vmatmul.f32.gmra.mxu0 %v9081
    %v9145 = vpop.f32.mrf.mxu0
    %v9146 = vadd.f32 0.0, %v9145
    %9147 = vmatmul.f32.gmra.mxu0 %v9084
    %v9148 = vpop.f32.mrf.mxu0
    %v9149 = vadd.f32 0.0, %v9148
    %9150 = vdwg.mxu0
    %v9151 = vadd.f32 %v9004, %v9104
    %v9152 = vadd.f32 %v9005, %v9107
    %v9153 = vadd.f32 %v9006, %v9110
    %v9154 = vadd.f32 %v9007, %v9113
    %v9155 = vadd.f32 %v9008, %v9116
    %v9156 = vadd.f32 %v9009, %v9119
    %v9157 = vadd.f32 %v9010, %v9122
    %v9158 = vadd.f32 %v9011, %v9125
    %v9159 = vadd.f32 %v9012, %v9128
    %v9160 = vadd.f32 %v9013, %v9131
    %v9161 = vadd.f32 %v9014, %v9134
    %v9162 = vadd.f32 %v9015, %v9137
    %v9163 = vadd.f32 %v9016, %v9140
    %v9164 = vadd.f32 %v9017, %v9143
    %v9165 = vadd.f32 %v9018, %v9146
    %v9166 = vadd.f32 %v9019, %v9149
    %v9167 = vld [vmem:[%s8872 + $0x2] sm:$0xff]
    %v9168 = vld [vmem:[%s8872 + $0x12] sm:$0xff]
    %v9169 = vld [vmem:[%s8872 + $0x22] sm:$0xff]
    %v9170 = vld [vmem:[%s8872 + $0x32] sm:$0xff]
    %v9171 = vld [vmem:[%s8872 + $0x42] sm:$0xff]
    %v9172 = vld [vmem:[%s8872 + $0x52] sm:$0xff]
    %v9173 = vld [vmem:[%s8872 + $0x62] sm:$0xff]
    %v9174 = vld [vmem:[%s8872 + $0x72] sm:$0xff]
    %v9175 = vld [vmem:[%s8872 + $0xa2] sm:$0xff]
    %v9176 = vld [vmem:[%s8872 + $0xb2] sm:$0xff]
    %v9177 = vld [vmem:[%s8872 + $0xc2] sm:$0xff]
    %v9178 = vld [vmem:[%s8872 + $0xd2] sm:$0xff]
    %v9179 = vld [vmem:[%s8872 + $0xe2] sm:$0xff]
    %v9180 = vld [vmem:[%s8872 + $0xf2] sm:$0xff]
    %v9181 = vld [vmem:[%s8872 + $0x102] sm:$0xff]
    %v9182 = vld [vmem:[%s8872 + $0x112] sm:$0xff]
    %s9183 = scalar_lea.vmem %s3, 64
    %v9184 = vld [vmem:[%s9183] sm:$0xff]
    %v9186 = vsel %vm7318, %v9167, 0
    %v9189 = vsel %vm7318, %v9168, 0
    %v9192 = vsel %vm7318, %v9169, 0
    %v9195 = vsel %vm7318, %v9170, 0
    %v9198 = vsel %vm7318, %v9171, 0
    %v9201 = vsel %vm7318, %v9172, 0
    %v9204 = vsel %vm7318, %v9173, 0
    %v9207 = vsel %vm7318, %v9174, 0
    %v9210 = vsel %vm7318, %v9175, 0
    %v9213 = vsel %vm7318, %v9176, 0
    %v9216 = vsel %vm7318, %v9177, 0
    %v9219 = vsel %vm7318, %v9178, 0
    %v9222 = vsel %vm7318, %v9179, 0
    %v9225 = vsel %vm7318, %v9180, 0
    %v9228 = vsel %vm7318, %v9181, 0
    %v9231 = vsel %vm7318, %v9182, 0
    %9233 = vmatpush.msra.mxu0 0.0
    %9234 = vmatpush.msra.mxu0 0.0
    %9235 = vmatpush.msra.mxu0 0.0
    %9236 = vmatpush.msra.mxu0 0.0
    %9237 = vmatpush.msra.mxu0 0.0
    %9238 = vmatpush.msra.mxu0 0.0
    %9239 = vmatpush.msra.mxu0 0.0
    %9240 = vmatpush.msra.mxu0 0.0
    %9241 = vmatpush.msra.mxu0 0.0
    %9242 = vmatpush.msra.mxu0 0.0
    %9243 = vmatpush.msra.mxu0 0.0
    %9244 = vmatpush.msra.mxu0 0.0
    %9245 = vmatpush.msra.mxu0 0.0
    %9246 = vmatpush.msra.mxu0 0.0
    %9247 = vmatpush.msra.mxu0 0.0
    %9248 = vmatpush.msra.mxu0 %v9184
    %9249 = vmatmul.f32.gmra.mxu0 %v9186
    %v9250 = vpop.f32.mrf.mxu0
    %v9251 = vadd.f32 0.0, %v9250
    %9252 = vmatmul.f32.gmra.mxu0 %v9189
    %v9253 = vpop.f32.mrf.mxu0
    %v9254 = vadd.f32 0.0, %v9253
    %9255 = vmatmul.f32.gmra.mxu0 %v9192
    %v9256 = vpop.f32.mrf.mxu0
    %v9257 = vadd.f32 0.0, %v9256
    %9258 = vmatmul.f32.gmra.mxu0 %v9195
    %v9259 = vpop.f32.mrf.mxu0
    %v9260 = vadd.f32 0.0, %v9259
    %9261 = vmatmul.f32.gmra.mxu0 %v9198
    %v9262 = vpop.f32.mrf.mxu0
    %v9263 = vadd.f32 0.0, %v9262
    %9264 = vmatmul.f32.gmra.mxu0 %v9201
    %v9265 = vpop.f32.mrf.mxu0
    %v9266 = vadd.f32 0.0, %v9265
    %9267 = vmatmul.f32.gmra.mxu0 %v9204
    %v9268 = vpop.f32.mrf.mxu0
    %v9269 = vadd.f32 0.0, %v9268
    %9270 = vmatmul.f32.gmra.mxu0 %v9207
    %v9271 = vpop.f32.mrf.mxu0
    %v9272 = vadd.f32 0.0, %v9271
    %9273 = vmatmul.f32.gmra.mxu0 %v9210
    %v9274 = vpop.f32.mrf.mxu0
    %v9275 = vadd.f32 0.0, %v9274
    %9276 = vmatmul.f32.gmra.mxu0 %v9213
    %v9277 = vpop.f32.mrf.mxu0
    %v9278 = vadd.f32 0.0, %v9277
    %9279 = vmatmul.f32.gmra.mxu0 %v9216
    %v9280 = vpop.f32.mrf.mxu0
    %v9281 = vadd.f32 0.0, %v9280
    %9282 = vmatmul.f32.gmra.mxu0 %v9219
    %v9283 = vpop.f32.mrf.mxu0
    %v9284 = vadd.f32 0.0, %v9283
    %9285 = vmatmul.f32.gmra.mxu0 %v9222
    %v9286 = vpop.f32.mrf.mxu0
    %v9287 = vadd.f32 0.0, %v9286
    %9288 = vmatmul.f32.gmra.mxu0 %v9225
    %v9289 = vpop.f32.mrf.mxu0
    %v9290 = vadd.f32 0.0, %v9289
    %9291 = vmatmul.f32.gmra.mxu0 %v9228
    %v9292 = vpop.f32.mrf.mxu0
    %v9293 = vadd.f32 0.0, %v9292
    %9294 = vmatmul.f32.gmra.mxu0 %v9231
    %v9295 = vpop.f32.mrf.mxu0
    %v9296 = vadd.f32 0.0, %v9295
    %9297 = vdwg.mxu0
    %v9298 = vadd.f32 %v9151, %v9251
    %v9299 = vadd.f32 %v9152, %v9254
    %v9300 = vadd.f32 %v9153, %v9257
    %v9301 = vadd.f32 %v9154, %v9260
    %v9302 = vadd.f32 %v9155, %v9263
    %v9303 = vadd.f32 %v9156, %v9266
    %v9304 = vadd.f32 %v9157, %v9269
    %v9305 = vadd.f32 %v9158, %v9272
    %v9306 = vadd.f32 %v9159, %v9275
    %v9307 = vadd.f32 %v9160, %v9278
    %v9308 = vadd.f32 %v9161, %v9281
    %v9309 = vadd.f32 %v9162, %v9284
    %v9310 = vadd.f32 %v9163, %v9287
    %v9311 = vadd.f32 %v9164, %v9290
    %v9312 = vadd.f32 %v9165, %v9293
    %v9313 = vadd.f32 %v9166, %v9296
    %v9314 = vld [vmem:[%s4] sm:$0x1]
    %v9316 = vperm.slane %v9314, 0
    %v9318 = vadd.f32 %v9298, %v9316
    %v9319 = vadd.f32 %v9299, %v9316
    %v9320 = vadd.f32 %v9300, %v9316
    %v9321 = vadd.f32 %v9301, %v9316
    %v9322 = vadd.f32 %v9302, %v9316
    %v9323 = vadd.f32 %v9303, %v9316
    %v9324 = vadd.f32 %v9304, %v9316
    %v9325 = vadd.f32 %v9305, %v9316
    %v9326 = vadd.f32 %v9306, %v9316
    %v9327 = vadd.f32 %v9307, %v9316
    %v9328 = vadd.f32 %v9308, %v9316
    %v9329 = vadd.f32 %v9309, %v9316
    %v9330 = vadd.f32 %v9310, %v9316
    %v9331 = vadd.f32 %v9311, %v9316
    %v9332 = vadd.f32 %v9312, %v9316
    %v9333 = vadd.f32 %v9313, %v9316
    %vm9334 = vcmp.ge.f32.partialorder %v9318, 0.0
    %vm9335 = vcmp.ge.f32.partialorder %v9319, 0.0
    %vm9336 = vcmp.ge.f32.partialorder %v9320, 0.0
    %vm9337 = vcmp.ge.f32.partialorder %v9321, 0.0
    %vm9338 = vcmp.ge.f32.partialorder %v9322, 0.0
    %vm9339 = vcmp.ge.f32.partialorder %v9323, 0.0
    %vm9340 = vcmp.ge.f32.partialorder %v9324, 0.0
    %vm9341 = vcmp.ge.f32.partialorder %v9325, 0.0
    %vm9342 = vcmp.ge.f32.partialorder %v9326, 0.0
    %vm9343 = vcmp.ge.f32.partialorder %v9327, 0.0
    %vm9344 = vcmp.ge.f32.partialorder %v9328, 0.0
    %vm9345 = vcmp.ge.f32.partialorder %v9329, 0.0
    %vm9346 = vcmp.ge.f32.partialorder %v9330, 0.0
    %vm9347 = vcmp.ge.f32.partialorder %v9331, 0.0
    %vm9348 = vcmp.ge.f32.partialorder %v9332, 0.0
    %vm9349 = vcmp.ge.f32.partialorder %v9333, 0.0
    %v9350 = vmul.f32 %v9318, 0.2
    %v9351 = vmul.f32 %v9319, 0.2
    %v9352 = vmul.f32 %v9320, 0.2
    %v9353 = vmul.f32 %v9321, 0.2
    %v9354 = vmul.f32 %v9322, 0.2
    %v9355 = vmul.f32 %v9323, 0.2
    %v9356 = vmul.f32 %v9324, 0.2
    %v9357 = vmul.f32 %v9325, 0.2
    %v9358 = vmul.f32 %v9326, 0.2
    %v9359 = vmul.f32 %v9327, 0.2
    %v9360 = vmul.f32 %v9328, 0.2
    %v9361 = vmul.f32 %v9329, 0.2
    %v9362 = vmul.f32 %v9330, 0.2
    %v9363 = vmul.f32 %v9331, 0.2
    %v9364 = vmul.f32 %v9332, 0.2
    %v9365 = vmul.f32 %v9333, 0.2
    %v9366 = vsel %vm9334, %v9318, %v9350
    %v9367 = vsel %vm9335, %v9319, %v9351
    %v9368 = vsel %vm9336, %v9320, %v9352
    %v9369 = vsel %vm9337, %v9321, %v9353
    %v9370 = vsel %vm9338, %v9322, %v9354
    %v9371 = vsel %vm9339, %v9323, %v9355
    %v9372 = vsel %vm9340, %v9324, %v9356
    %v9373 = vsel %vm9341, %v9325, %v9357
    %v9374 = vsel %vm9342, %v9326, %v9358
    %v9375 = vsel %vm9343, %v9327, %v9359
    %v9376 = vsel %vm9344, %v9328, %v9360
    %v9377 = vsel %vm9345, %v9329, %v9361
    %v9378 = vsel %vm9346, %v9330, %v9362
    %v9379 = vsel %vm9347, %v9331, %v9363
    %v9380 = vsel %vm9348, %v9332, %v9364
    %v9381 = vsel %vm9349, %v9333, %v9365
    %v9398 = vrot.slane %v9366, 2
    %v9399 = vrot.slane %v9366, 4
    %v9400 = vrot.slane %v9366, 6
    %v9401 = vrot.slane %v9367, 2
    %v9402 = vrot.slane %v9367, 4
    %v9403 = vrot.slane %v9367, 6
    %v9404 = vrot.slane %v9368, 2
    %v9405 = vrot.slane %v9368, 4
    %v9406 = vrot.slane %v9368, 6
    %v9407 = vrot.slane %v9369, 2
    %v9408 = vrot.slane %v9369, 4
    %v9409 = vrot.slane %v9369, 6
    %v9410 = vrot.slane %v9370, 2
    %v9411 = vrot.slane %v9370, 4
    %v9412 = vrot.slane %v9370, 6
    %v9413 = vrot.slane %v9371, 2
    %v9414 = vrot.slane %v9371, 4
    %v9415 = vrot.slane %v9371, 6
    %v9416 = vrot.slane %v9372, 2
    %v9417 = vrot.slane %v9372, 4
    %v9418 = vrot.slane %v9372, 6
    %v9419 = vrot.slane %v9373, 2
    %v9420 = vrot.slane %v9373, 4
    %v9421 = vrot.slane %v9373, 6
    %v9422 = vrot.slane %v9374, 2
    %v9423 = vrot.slane %v9374, 4
    %v9424 = vrot.slane %v9374, 6
    %v9425 = vrot.slane %v9375, 2
    %v9426 = vrot.slane %v9375, 4
    %v9427 = vrot.slane %v9375, 6
    %v9428 = vrot.slane %v9376, 2
    %v9429 = vrot.slane %v9376, 4
    %v9430 = vrot.slane %v9376, 6
    %v9431 = vrot.slane %v9377, 2
    %v9432 = vrot.slane %v9377, 4
    %v9433 = vrot.slane %v9377, 6
    %v9434 = vrot.slane %v9378, 2
    %v9435 = vrot.slane %v9378, 4
    %v9436 = vrot.slane %v9378, 6
    %v9437 = vrot.slane %v9379, 2
    %v9438 = vrot.slane %v9379, 4
    %v9439 = vrot.slane %v9379, 6
    %v9440 = vrot.slane %v9380, 2
    %v9441 = vrot.slane %v9380, 4
    %v9442 = vrot.slane %v9380, 6
    %v9443 = vrot.slane %v9381, 2
    %v9444 = vrot.slane %v9381, 4
    %v9445 = vrot.slane %v9381, 6
    %vm9494 = vcmask 123904
    %v9495 = vsel %vm9494, %v9366, -inf
    %v9496 = vrot.slane %v9495, 4
    %v9497 = vmax.f32 %v9495, %v9496
    %v9498 = vrot.slane %v9497, 2
    %v9499 = vmax.f32 %v9497, %v9498
    %v9500 = vrot.slane %v9499, 1
    %v9501 = vmax.f32 %v9499, %v9500
    %v9502 = vsel %vm9494, %v9398, -inf
    %v9503 = vrot.slane %v9502, 4
    %v9504 = vmax.f32 %v9502, %v9503
    %v9505 = vrot.slane %v9504, 2
    %v9506 = vmax.f32 %v9504, %v9505
    %v9507 = vrot.slane %v9506, 1
    %v9508 = vmax.f32 %v9506, %v9507
    %v9509 = vsel %vm9494, %v9399, -inf
    %v9510 = vrot.slane %v9509, 4
    %v9511 = vmax.f32 %v9509, %v9510
    %v9512 = vrot.slane %v9511, 2
    %v9513 = vmax.f32 %v9511, %v9512
    %v9514 = vrot.slane %v9513, 1
    %v9515 = vmax.f32 %v9513, %v9514
    %v9516 = vsel %vm9494, %v9400, -inf
    %v9517 = vrot.slane %v9516, 4
    %v9518 = vmax.f32 %v9516, %v9517
    %v9519 = vrot.slane %v9518, 2
    %v9520 = vmax.f32 %v9518, %v9519
    %v9521 = vrot.slane %v9520, 1
    %v9522 = vmax.f32 %v9520, %v9521
    %v9523 = vsel %vm9494, %v9367, -inf
    %v9524 = vrot.slane %v9523, 4
    %v9525 = vmax.f32 %v9523, %v9524
    %v9526 = vrot.slane %v9525, 2
    %v9527 = vmax.f32 %v9525, %v9526
    %v9528 = vrot.slane %v9527, 1
    %v9529 = vmax.f32 %v9527, %v9528
    %v9530 = vsel %vm9494, %v9401, -inf
    %v9531 = vrot.slane %v9530, 4
    %v9532 = vmax.f32 %v9530, %v9531
    %v9533 = vrot.slane %v9532, 2
    %v9534 = vmax.f32 %v9532, %v9533
    %v9535 = vrot.slane %v9534, 1
    %v9536 = vmax.f32 %v9534, %v9535
    %v9537 = vsel %vm9494, %v9402, -inf
    %v9538 = vrot.slane %v9537, 4
    %v9539 = vmax.f32 %v9537, %v9538
    %v9540 = vrot.slane %v9539, 2
    %v9541 = vmax.f32 %v9539, %v9540
    %v9542 = vrot.slane %v9541, 1
    %v9543 = vmax.f32 %v9541, %v9542
    %v9544 = vsel %vm9494, %v9403, -inf
    %v9545 = vrot.slane %v9544, 4
    %v9546 = vmax.f32 %v9544, %v9545
    %v9547 = vrot.slane %v9546, 2
    %v9548 = vmax.f32 %v9546, %v9547
    %v9549 = vrot.slane %v9548, 1
    %v9550 = vmax.f32 %v9548, %v9549
    %v9551 = vsel %vm9494, %v9368, -inf
    %v9552 = vrot.slane %v9551, 4
    %v9553 = vmax.f32 %v9551, %v9552
    %v9554 = vrot.slane %v9553, 2
    %v9555 = vmax.f32 %v9553, %v9554
    %v9556 = vrot.slane %v9555, 1
    %v9557 = vmax.f32 %v9555, %v9556
    %v9558 = vsel %vm9494, %v9404, -inf
    %v9559 = vrot.slane %v9558, 4
    %v9560 = vmax.f32 %v9558, %v9559
    %v9561 = vrot.slane %v9560, 2
    %v9562 = vmax.f32 %v9560, %v9561
    %v9563 = vrot.slane %v9562, 1
    %v9564 = vmax.f32 %v9562, %v9563
    %v9565 = vsel %vm9494, %v9405, -inf
    %v9566 = vrot.slane %v9565, 4
    %v9567 = vmax.f32 %v9565, %v9566
    %v9568 = vrot.slane %v9567, 2
    %v9569 = vmax.f32 %v9567, %v9568
    %v9570 = vrot.slane %v9569, 1
    %v9571 = vmax.f32 %v9569, %v9570
    %v9572 = vsel %vm9494, %v9406, -inf
    %v9573 = vrot.slane %v9572, 4
    %v9574 = vmax.f32 %v9572, %v9573
    %v9575 = vrot.slane %v9574, 2
    %v9576 = vmax.f32 %v9574, %v9575
    %v9577 = vrot.slane %v9576, 1
    %v9578 = vmax.f32 %v9576, %v9577
    %v9579 = vsel %vm9494, %v9369, -inf
    %v9580 = vrot.slane %v9579, 4
    %v9581 = vmax.f32 %v9579, %v9580
    %v9582 = vrot.slane %v9581, 2
    %v9583 = vmax.f32 %v9581, %v9582
    %v9584 = vrot.slane %v9583, 1
    %v9585 = vmax.f32 %v9583, %v9584
    %v9586 = vsel %vm9494, %v9407, -inf
    %v9587 = vrot.slane %v9586, 4
    %v9588 = vmax.f32 %v9586, %v9587
    %v9589 = vrot.slane %v9588, 2
    %v9590 = vmax.f32 %v9588, %v9589
    %v9591 = vrot.slane %v9590, 1
    %v9592 = vmax.f32 %v9590, %v9591
    %v9593 = vsel %vm9494, %v9408, -inf
    %v9594 = vrot.slane %v9593, 4
    %v9595 = vmax.f32 %v9593, %v9594
    %v9596 = vrot.slane %v9595, 2
    %v9597 = vmax.f32 %v9595, %v9596
    %v9598 = vrot.slane %v9597, 1
    %v9599 = vmax.f32 %v9597, %v9598
    %v9600 = vsel %vm9494, %v9409, -inf
    %v9601 = vrot.slane %v9600, 4
    %v9602 = vmax.f32 %v9600, %v9601
    %v9603 = vrot.slane %v9602, 2
    %v9604 = vmax.f32 %v9602, %v9603
    %v9605 = vrot.slane %v9604, 1
    %v9606 = vmax.f32 %v9604, %v9605
    %v9607 = vsel %vm9494, %v9370, -inf
    %v9608 = vrot.slane %v9607, 4
    %v9609 = vmax.f32 %v9607, %v9608
    %v9610 = vrot.slane %v9609, 2
    %v9611 = vmax.f32 %v9609, %v9610
    %v9612 = vrot.slane %v9611, 1
    %v9613 = vmax.f32 %v9611, %v9612
    %v9614 = vsel %vm9494, %v9410, -inf
    %v9615 = vrot.slane %v9614, 4
    %v9616 = vmax.f32 %v9614, %v9615
    %v9617 = vrot.slane %v9616, 2
    %v9618 = vmax.f32 %v9616, %v9617
    %v9619 = vrot.slane %v9618, 1
    %v9620 = vmax.f32 %v9618, %v9619
    %v9621 = vsel %vm9494, %v9411, -inf
    %v9622 = vrot.slane %v9621, 4
    %v9623 = vmax.f32 %v9621, %v9622
    %v9624 = vrot.slane %v9623, 2
    %v9625 = vmax.f32 %v9623, %v9624
    %v9626 = vrot.slane %v9625, 1
    %v9627 = vmax.f32 %v9625, %v9626
    %v9628 = vsel %vm9494, %v9412, -inf
    %v9629 = vrot.slane %v9628, 4
    %v9630 = vmax.f32 %v9628, %v9629
    %v9631 = vrot.slane %v9630, 2
    %v9632 = vmax.f32 %v9630, %v9631
    %v9633 = vrot.slane %v9632, 1
    %v9634 = vmax.f32 %v9632, %v9633
    %v9635 = vsel %vm9494, %v9371, -inf
    %v9636 = vrot.slane %v9635, 4
    %v9637 = vmax.f32 %v9635, %v9636
    %v9638 = vrot.slane %v9637, 2
    %v9639 = vmax.f32 %v9637, %v9638
    %v9640 = vrot.slane %v9639, 1
    %v9641 = vmax.f32 %v9639, %v9640
    %v9642 = vsel %vm9494, %v9413, -inf
    %v9643 = vrot.slane %v9642, 4
    %v9644 = vmax.f32 %v9642, %v9643
    %v9645 = vrot.slane %v9644, 2
    %v9646 = vmax.f32 %v9644, %v9645
    %v9647 = vrot.slane %v9646, 1
    %v9648 = vmax.f32 %v9646, %v9647
    %v9649 = vsel %vm9494, %v9414, -inf
    %v9650 = vrot.slane %v9649, 4
    %v9651 = vmax.f32 %v9649, %v9650
    %v9652 = vrot.slane %v9651, 2
    %v9653 = vmax.f32 %v9651, %v9652
    %v9654 = vrot.slane %v9653, 1
    %v9655 = vmax.f32 %v9653, %v9654
    %v9656 = vsel %vm9494, %v9415, -inf
    %v9657 = vrot.slane %v9656, 4
    %v9658 = vmax.f32 %v9656, %v9657
    %v9659 = vrot.slane %v9658, 2
    %v9660 = vmax.f32 %v9658, %v9659
    %v9661 = vrot.slane %v9660, 1
    %v9662 = vmax.f32 %v9660, %v9661
    %v9663 = vsel %vm9494, %v9372, -inf
    %v9664 = vrot.slane %v9663, 4
    %v9665 = vmax.f32 %v9663, %v9664
    %v9666 = vrot.slane %v9665, 2
    %v9667 = vmax.f32 %v9665, %v9666
    %v9668 = vrot.slane %v9667, 1
    %v9669 = vmax.f32 %v9667, %v9668
    %v9670 = vsel %vm9494, %v9416, -inf
    %v9671 = vrot.slane %v9670, 4
    %v9672 = vmax.f32 %v9670, %v9671
    %v9673 = vrot.slane %v9672, 2
    %v9674 = vmax.f32 %v9672, %v9673
    %v9675 = vrot.slane %v9674, 1
    %v9676 = vmax.f32 %v9674, %v9675
    %v9677 = vsel %vm9494, %v9417, -inf
    %v9678 = vrot.slane %v9677, 4
    %v9679 = vmax.f32 %v9677, %v9678
    %v9680 = vrot.slane %v9679, 2
    %v9681 = vmax.f32 %v9679, %v9680
    %v9682 = vrot.slane %v9681, 1
    %v9683 = vmax.f32 %v9681, %v9682
    %v9684 = vsel %vm9494, %v9418, -inf
    %v9685 = vrot.slane %v9684, 4
    %v9686 = vmax.f32 %v9684, %v9685
    %v9687 = vrot.slane %v9686, 2
    %v9688 = vmax.f32 %v9686, %v9687
    %v9689 = vrot.slane %v9688, 1
    %v9690 = vmax.f32 %v9688, %v9689
    %v9691 = vsel %vm9494, %v9373, -inf
    %v9692 = vrot.slane %v9691, 4
    %v9693 = vmax.f32 %v9691, %v9692
    %v9694 = vrot.slane %v9693, 2
    %v9695 = vmax.f32 %v9693, %v9694
    %v9696 = vrot.slane %v9695, 1
    %v9697 = vmax.f32 %v9695, %v9696
    %v9698 = vsel %vm9494, %v9419, -inf
    %v9699 = vrot.slane %v9698, 4
    %v9700 = vmax.f32 %v9698, %v9699
    %v9701 = vrot.slane %v9700, 2
    %v9702 = vmax.f32 %v9700, %v9701
    %v9703 = vrot.slane %v9702, 1
    %v9704 = vmax.f32 %v9702, %v9703
    %v9705 = vsel %vm9494, %v9420, -inf
    %v9706 = vrot.slane %v9705, 4
    %v9707 = vmax.f32 %v9705, %v9706
    %v9708 = vrot.slane %v9707, 2
    %v9709 = vmax.f32 %v9707, %v9708
    %v9710 = vrot.slane %v9709, 1
    %v9711 = vmax.f32 %v9709, %v9710
    %v9712 = vsel %vm9494, %v9421, -inf
    %v9713 = vrot.slane %v9712, 4
    %v9714 = vmax.f32 %v9712, %v9713
    %v9715 = vrot.slane %v9714, 2
    %v9716 = vmax.f32 %v9714, %v9715
    %v9717 = vrot.slane %v9716, 1
    %v9718 = vmax.f32 %v9716, %v9717
    %v9719 = vsel %vm9494, %v9374, -inf
    %v9720 = vrot.slane %v9719, 4
    %v9721 = vmax.f32 %v9719, %v9720
    %v9722 = vrot.slane %v9721, 2
    %v9723 = vmax.f32 %v9721, %v9722
    %v9724 = vrot.slane %v9723, 1
    %v9725 = vmax.f32 %v9723, %v9724
    %v9726 = vsel %vm9494, %v9422, -inf
    %v9727 = vrot.slane %v9726, 4
    %v9728 = vmax.f32 %v9726, %v9727
    %v9729 = vrot.slane %v9728, 2
    %v9730 = vmax.f32 %v9728, %v9729
    %v9731 = vrot.slane %v9730, 1
    %v9732 = vmax.f32 %v9730, %v9731
    %v9733 = vsel %vm9494, %v9423, -inf
    %v9734 = vrot.slane %v9733, 4
    %v9735 = vmax.f32 %v9733, %v9734
    %v9736 = vrot.slane %v9735, 2
    %v9737 = vmax.f32 %v9735, %v9736
    %v9738 = vrot.slane %v9737, 1
    %v9739 = vmax.f32 %v9737, %v9738
    %v9740 = vsel %vm9494, %v9424, -inf
    %v9741 = vrot.slane %v9740, 4
    %v9742 = vmax.f32 %v9740, %v9741
    %v9743 = vrot.slane %v9742, 2
    %v9744 = vmax.f32 %v9742, %v9743
    %v9745 = vrot.slane %v9744, 1
    %v9746 = vmax.f32 %v9744, %v9745
    %v9747 = vsel %vm9494, %v9375, -inf
    %v9748 = vrot.slane %v9747, 4
    %v9749 = vmax.f32 %v9747, %v9748
    %v9750 = vrot.slane %v9749, 2
    %v9751 = vmax.f32 %v9749, %v9750
    %v9752 = vrot.slane %v9751, 1
    %v9753 = vmax.f32 %v9751, %v9752
    %v9754 = vsel %vm9494, %v9425, -inf
    %v9755 = vrot.slane %v9754, 4
    %v9756 = vmax.f32 %v9754, %v9755
    %v9757 = vrot.slane %v9756, 2
    %v9758 = vmax.f32 %v9756, %v9757
    %v9759 = vrot.slane %v9758, 1
    %v9760 = vmax.f32 %v9758, %v9759
    %v9761 = vsel %vm9494, %v9426, -inf
    %v9762 = vrot.slane %v9761, 4
    %v9763 = vmax.f32 %v9761, %v9762
    %v9764 = vrot.slane %v9763, 2
    %v9765 = vmax.f32 %v9763, %v9764
    %v9766 = vrot.slane %v9765, 1
    %v9767 = vmax.f32 %v9765, %v9766
    %v9768 = vsel %vm9494, %v9427, -inf
    %v9769 = vrot.slane %v9768, 4
    %v9770 = vmax.f32 %v9768, %v9769
    %v9771 = vrot.slane %v9770, 2
    %v9772 = vmax.f32 %v9770, %v9771
    %v9773 = vrot.slane %v9772, 1
    %v9774 = vmax.f32 %v9772, %v9773
    %v9775 = vsel %vm9494, %v9376, -inf
    %v9776 = vrot.slane %v9775, 4
    %v9777 = vmax.f32 %v9775, %v9776
    %v9778 = vrot.slane %v9777, 2
    %v9779 = vmax.f32 %v9777, %v9778
    %v9780 = vrot.slane %v9779, 1
    %v9781 = vmax.f32 %v9779, %v9780
    %v9782 = vsel %vm9494, %v9428, -inf
    %v9783 = vrot.slane %v9782, 4
    %v9784 = vmax.f32 %v9782, %v9783
    %v9785 = vrot.slane %v9784, 2
    %v9786 = vmax.f32 %v9784, %v9785
    %v9787 = vrot.slane %v9786, 1
    %v9788 = vmax.f32 %v9786, %v9787
    %v9789 = vsel %vm9494, %v9429, -inf
    %v9790 = vrot.slane %v9789, 4
    %v9791 = vmax.f32 %v9789, %v9790
    %v9792 = vrot.slane %v9791, 2
    %v9793 = vmax.f32 %v9791, %v9792
    %v9794 = vrot.slane %v9793, 1
    %v9795 = vmax.f32 %v9793, %v9794
    %v9796 = vsel %vm9494, %v9430, -inf
    %v9797 = vrot.slane %v9796, 4
    %v9798 = vmax.f32 %v9796, %v9797
    %v9799 = vrot.slane %v9798, 2
    %v9800 = vmax.f32 %v9798, %v9799
    %v9801 = vrot.slane %v9800, 1
    %v9802 = vmax.f32 %v9800, %v9801
    %v9803 = vsel %vm9494, %v9377, -inf
    %v9804 = vrot.slane %v9803, 4
    %v9805 = vmax.f32 %v9803, %v9804
    %v9806 = vrot.slane %v9805, 2
    %v9807 = vmax.f32 %v9805, %v9806
    %v9808 = vrot.slane %v9807, 1
    %v9809 = vmax.f32 %v9807, %v9808
    %v9810 = vsel %vm9494, %v9431, -inf
    %v9811 = vrot.slane %v9810, 4
    %v9812 = vmax.f32 %v9810, %v9811
    %v9813 = vrot.slane %v9812, 2
    %v9814 = vmax.f32 %v9812, %v9813
    %v9815 = vrot.slane %v9814, 1
    %v9816 = vmax.f32 %v9814, %v9815
    %v9817 = vsel %vm9494, %v9432, -inf
    %v9818 = vrot.slane %v9817, 4
    %v9819 = vmax.f32 %v9817, %v9818
    %v9820 = vrot.slane %v9819, 2
    %v9821 = vmax.f32 %v9819, %v9820
    %v9822 = vrot.slane %v9821, 1
    %v9823 = vmax.f32 %v9821, %v9822
    %v9824 = vsel %vm9494, %v9433, -inf
    %v9825 = vrot.slane %v9824, 4
    %v9826 = vmax.f32 %v9824, %v9825
    %v9827 = vrot.slane %v9826, 2
    %v9828 = vmax.f32 %v9826, %v9827
    %v9829 = vrot.slane %v9828, 1
    %v9830 = vmax.f32 %v9828, %v9829
    %v9831 = vsel %vm9494, %v9378, -inf
    %v9832 = vrot.slane %v9831, 4
    %v9833 = vmax.f32 %v9831, %v9832
    %v9834 = vrot.slane %v9833, 2
    %v9835 = vmax.f32 %v9833, %v9834
    %v9836 = vrot.slane %v9835, 1
    %v9837 = vmax.f32 %v9835, %v9836
    %v9838 = vsel %vm9494, %v9434, -inf
    %v9839 = vrot.slane %v9838, 4
    %v9840 = vmax.f32 %v9838, %v9839
    %v9841 = vrot.slane %v9840, 2
    %v9842 = vmax.f32 %v9840, %v9841
    %v9843 = vrot.slane %v9842, 1
    %v9844 = vmax.f32 %v9842, %v9843
    %v9845 = vsel %vm9494, %v9435, -inf
    %v9846 = vrot.slane %v9845, 4
    %v9847 = vmax.f32 %v9845, %v9846
    %v9848 = vrot.slane %v9847, 2
    %v9849 = vmax.f32 %v9847, %v9848
    %v9850 = vrot.slane %v9849, 1
    %v9851 = vmax.f32 %v9849, %v9850
    %v9852 = vsel %vm9494, %v9436, -inf
    %v9853 = vrot.slane %v9852, 4
    %v9854 = vmax.f32 %v9852, %v9853
    %v9855 = vrot.slane %v9854, 2
    %v9856 = vmax.f32 %v9854, %v9855
    %v9857 = vrot.slane %v9856, 1
    %v9858 = vmax.f32 %v9856, %v9857
    %v9859 = vsel %vm9494, %v9379, -inf
    %v9860 = vrot.slane %v9859, 4
    %v9861 = vmax.f32 %v9859, %v9860
    %v9862 = vrot.slane %v9861, 2
    %v9863 = vmax.f32 %v9861, %v9862
    %v9864 = vrot.slane %v9863, 1
    %v9865 = vmax.f32 %v9863, %v9864
    %v9866 = vsel %vm9494, %v9437, -inf
    %v9867 = vrot.slane %v9866, 4
    %v9868 = vmax.f32 %v9866, %v9867
    %v9869 = vrot.slane %v9868, 2
    %v9870 = vmax.f32 %v9868, %v9869
    %v9871 = vrot.slane %v9870, 1
    %v9872 = vmax.f32 %v9870, %v9871
    %v9873 = vsel %vm9494, %v9438, -inf
    %v9874 = vrot.slane %v9873, 4
    %v9875 = vmax.f32 %v9873, %v9874
    %v9876 = vrot.slane %v9875, 2
    %v9877 = vmax.f32 %v9875, %v9876
    %v9878 = vrot.slane %v9877, 1
    %v9879 = vmax.f32 %v9877, %v9878
    %v9880 = vsel %vm9494, %v9439, -inf
    %v9881 = vrot.slane %v9880, 4
    %v9882 = vmax.f32 %v9880, %v9881
    %v9883 = vrot.slane %v9882, 2
    %v9884 = vmax.f32 %v9882, %v9883
    %v9885 = vrot.slane %v9884, 1
    %v9886 = vmax.f32 %v9884, %v9885
    %v9887 = vsel %vm9494, %v9380, -inf
    %v9888 = vrot.slane %v9887, 4
    %v9889 = vmax.f32 %v9887, %v9888
    %v9890 = vrot.slane %v9889, 2
    %v9891 = vmax.f32 %v9889, %v9890
    %v9892 = vrot.slane %v9891, 1
    %v9893 = vmax.f32 %v9891, %v9892
    %v9894 = vsel %vm9494, %v9440, -inf
    %v9895 = vrot.slane %v9894, 4
    %v9896 = vmax.f32 %v9894, %v9895
    %v9897 = vrot.slane %v9896, 2
    %v9898 = vmax.f32 %v9896, %v9897
    %v9899 = vrot.slane %v9898, 1
    %v9900 = vmax.f32 %v9898, %v9899
    %v9901 = vsel %vm9494, %v9441, -inf
    %v9902 = vrot.slane %v9901, 4
    %v9903 = vmax.f32 %v9901, %v9902
    %v9904 = vrot.slane %v9903, 2
    %v9905 = vmax.f32 %v9903, %v9904
    %v9906 = vrot.slane %v9905, 1
    %v9907 = vmax.f32 %v9905, %v9906
    %v9908 = vsel %vm9494, %v9442, -inf
    %v9909 = vrot.slane %v9908, 4
    %v9910 = vmax.f32 %v9908, %v9909
    %v9911 = vrot.slane %v9910, 2
    %v9912 = vmax.f32 %v9910, %v9911
    %v9913 = vrot.slane %v9912, 1
    %v9914 = vmax.f32 %v9912, %v9913
    %v9915 = vsel %vm9494, %v9381, -inf
    %v9916 = vrot.slane %v9915, 4
    %v9917 = vmax.f32 %v9915, %v9916
    %v9918 = vrot.slane %v9917, 2
    %v9919 = vmax.f32 %v9917, %v9918
    %v9920 = vrot.slane %v9919, 1
    %v9921 = vmax.f32 %v9919, %v9920
    %v9922 = vsel %vm9494, %v9443, -inf
    %v9923 = vrot.slane %v9922, 4
    %v9924 = vmax.f32 %v9922, %v9923
    %v9925 = vrot.slane %v9924, 2
    %v9926 = vmax.f32 %v9924, %v9925
    %v9927 = vrot.slane %v9926, 1
    %v9928 = vmax.f32 %v9926, %v9927
    %v9929 = vsel %vm9494, %v9444, -inf
    %v9930 = vrot.slane %v9929, 4
    %v9931 = vmax.f32 %v9929, %v9930
    %v9932 = vrot.slane %v9931, 2
    %v9933 = vmax.f32 %v9931, %v9932
    %v9934 = vrot.slane %v9933, 1
    %v9935 = vmax.f32 %v9933, %v9934
    %v9936 = vsel %vm9494, %v9445, -inf
    %v9937 = vrot.slane %v9936, 4
    %v9938 = vmax.f32 %v9936, %v9937
    %v9939 = vrot.slane %v9938, 2
    %v9940 = vmax.f32 %v9938, %v9939
    %v9941 = vrot.slane %v9940, 1
    %v9942 = vmax.f32 %v9940, %v9941
    %vm9943 = vcmask 130048
    %v9944 = vsel %vm9943, %v9501, -inf
    %v9945 = vsel %vm9943, %v9529, -inf
    %v9946 = vmax.f32 %v9944, %v9945
    %v9947 = vsel %vm9943, %v9508, -inf
    %v9948 = vsel %vm9943, %v9536, -inf
    %v9949 = vmax.f32 %v9947, %v9948
    %v9950 = vsel %vm9943, %v9515, -inf
    %v9951 = vsel %vm9943, %v9543, -inf
    %v9952 = vmax.f32 %v9950, %v9951
    %v9953 = vsel %vm9943, %v9522, -inf
    %v9954 = vsel %vm9943, %v9550, -inf
    %v9955 = vmax.f32 %v9953, %v9954
    %v9956 = vsel %vm9943, %v9557, -inf
    %v9957 = vsel %vm9943, %v9585, -inf
    %v9958 = vmax.f32 %v9956, %v9957
    %v9959 = vsel %vm9943, %v9564, -inf
    %v9960 = vsel %vm9943, %v9592, -inf
    %v9961 = vmax.f32 %v9959, %v9960
    %v9962 = vsel %vm9943, %v9571, -inf
    %v9963 = vsel %vm9943, %v9599, -inf
    %v9964 = vmax.f32 %v9962, %v9963
    %v9965 = vsel %vm9943, %v9578, -inf
    %v9966 = vsel %vm9943, %v9606, -inf
    %v9967 = vmax.f32 %v9965, %v9966
    %v9968 = vsel %vm9943, %v9613, -inf
    %v9969 = vsel %vm9943, %v9641, -inf
    %v9970 = vmax.f32 %v9968, %v9969
    %v9971 = vsel %vm9943, %v9620, -inf
    %v9972 = vsel %vm9943, %v9648, -inf
    %v9973 = vmax.f32 %v9971, %v9972
    %v9974 = vsel %vm9943, %v9627, -inf
    %v9975 = vsel %vm9943, %v9655, -inf
    %v9976 = vmax.f32 %v9974, %v9975
    %v9977 = vsel %vm9943, %v9634, -inf
    %v9978 = vsel %vm9943, %v9662, -inf
    %v9979 = vmax.f32 %v9977, %v9978
    %v9980 = vsel %vm9943, %v9669, -inf
    %v9981 = vsel %vm9943, %v9697, -inf
    %v9982 = vmax.f32 %v9980, %v9981
    %v9983 = vsel %vm9943, %v9676, -inf
    %v9984 = vsel %vm9943, %v9704, -inf
    %v9985 = vmax.f32 %v9983, %v9984
    %v9986 = vsel %vm9943, %v9683, -inf
    %v9987 = vsel %vm9943, %v9711, -inf
    %v9988 = vmax.f32 %v9986, %v9987
    %v9989 = vsel %vm9943, %v9690, -inf
    %v9990 = vsel %vm9943, %v9718, -inf
    %v9991 = vmax.f32 %v9989, %v9990
    %v9992 = vsel %vm9943, %v9725, -inf
    %v9993 = vsel %vm9943, %v9753, -inf
    %v9994 = vmax.f32 %v9992, %v9993
    %v9995 = vsel %vm9943, %v9732, -inf
    %v9996 = vsel %vm9943, %v9760, -inf
    %v9997 = vmax.f32 %v9995, %v9996
    %v9998 = vsel %vm9943, %v9739, -inf
    %v9999 = vsel %vm9943, %v9767, -inf
    %v10000 = vmax.f32 %v9998, %v9999
    %v10001 = vsel %vm9943, %v9746, -inf
    %v10002 = vsel %vm9943, %v9774, -inf
    %v10003 = vmax.f32 %v10001, %v10002
    %v10004 = vsel %vm9943, %v9781, -inf
    %v10005 = vsel %vm9943, %v9809, -inf
    %v10006 = vmax.f32 %v10004, %v10005
    %v10007 = vsel %vm9943, %v9788, -inf
    %v10008 = vsel %vm9943, %v9816, -inf
    %v10009 = vmax.f32 %v10007, %v10008
    %v10010 = vsel %vm9943, %v9795, -inf
    %v10011 = vsel %vm9943, %v9823, -inf
    %v10012 = vmax.f32 %v10010, %v10011
    %v10013 = vsel %vm9943, %v9802, -inf
    %v10014 = vsel %vm9943, %v9830, -inf
    %v10015 = vmax.f32 %v10013, %v10014
    %v10016 = vsel %vm9943, %v9837, -inf
    %v10017 = vsel %vm9943, %v9865, -inf
    %v10018 = vmax.f32 %v10016, %v10017
    %v10019 = vsel %vm9943, %v9844, -inf
    %v10020 = vsel %vm9943, %v9872, -inf
    %v10021 = vmax.f32 %v10019, %v10020
    %v10022 = vsel %vm9943, %v9851, -inf
    %v10023 = vsel %vm9943, %v9879, -inf
    %v10024 = vmax.f32 %v10022, %v10023
    %v10025 = vsel %vm9943, %v9858, -inf
    %v10026 = vsel %vm9943, %v9886, -inf
    %v10027 = vmax.f32 %v10025, %v10026
    %v10028 = vsel %vm9943, %v9893, -inf
    %v10029 = vsel %vm9943, %v9921, -inf
    %v10030 = vmax.f32 %v10028, %v10029
    %v10031 = vsel %vm9943, %v9900, -inf
    %v10032 = vsel %vm9943, %v9928, -inf
    %v10033 = vmax.f32 %v10031, %v10032
    %v10034 = vsel %vm9943, %v9907, -inf
    %v10035 = vsel %vm9943, %v9935, -inf
    %v10036 = vmax.f32 %v10034, %v10035
    %v10037 = vsel %vm9943, %v9914, -inf
    %v10038 = vsel %vm9943, %v9942, -inf
    %v10039 = vmax.f32 %v10037, %v10038
    %v10042 = vsel %vm7877, %v9946, %v9946
    %v10043 = vsel %vm7881, %v9946, %v10042
    %v10044 = vrot.slane %v9994, 7
    %v10045 = vsel %vm7871, %v10044, %v10043
    %v10046 = vsel %vm7875, %v10044, %v10045
    %v10047 = vsel %vm7879, %v10044, %v10046
    %v10048 = vsel %vm7883, %v10044, %v10047
    %10050 = vst.msk [vmem:[#allocation4] sm:$0x3] %vm9494, %v10048
    %v10053 = vsel %vm7877, %v9949, %v9949
    %v10054 = vsel %vm7881, %v9949, %v10053
    %v10055 = vrot.slane %v9997, 7
    %v10056 = vsel %vm7871, %v10055, %v10054
    %v10057 = vsel %vm7875, %v10055, %v10056
    %v10058 = vsel %vm7879, %v10055, %v10057
    %v10059 = vsel %vm7883, %v10055, %v10058
    %10060 = vrot.lane.b32.xlu0 %v10059, 16
    %v10061 = vpop.permute.xlu0 %10060
    %vm10063 = vcmask 255104
    %10064 = vst.msk [vmem:[#allocation4] sm:$0x3] %vm10063, %v10061
    %v10067 = vsel %vm7877, %v9952, %v9952
    %v10068 = vsel %vm7881, %v9952, %v10067
    %v10069 = vrot.slane %v10000, 7
    %v10070 = vsel %vm7871, %v10069, %v10068
    %v10071 = vsel %vm7875, %v10069, %v10070
    %v10072 = vsel %vm7879, %v10069, %v10071
    %v10073 = vsel %vm7883, %v10069, %v10072
    %10074 = vrot.lane.b32.xlu0 %v10073, 32
    %v10075 = vpop.permute.xlu0 %10074
    %vm10077 = vcmask 386304
    %10078 = vst.msk [vmem:[#allocation4] sm:$0x3] %vm10077, %v10075
    %v10081 = vsel %vm7877, %v9955, %v9955
    %v10082 = vsel %vm7881, %v9955, %v10081
    %v10083 = vrot.slane %v10003, 7
    %v10084 = vsel %vm7871, %v10083, %v10082
    %v10085 = vsel %vm7875, %v10083, %v10084
    %v10086 = vsel %vm7879, %v10083, %v10085
    %v10087 = vsel %vm7883, %v10083, %v10086
    %10088 = vrot.lane.b32.xlu0 %v10087, 48
    %v10089 = vpop.permute.xlu0 %10088
    %vm10091 = vcmask 517504
    %10092 = vst.msk [vmem:[#allocation4] sm:$0x3] %vm10091, %v10089
    %v10095 = vsel %vm7877, %v9958, %v9958
    %v10096 = vsel %vm7881, %v9958, %v10095
    %v10097 = vrot.slane %v10006, 7
    %v10098 = vsel %vm7871, %v10097, %v10096
    %v10099 = vsel %vm7875, %v10097, %v10098
    %v10100 = vsel %vm7879, %v10097, %v10099
    %v10101 = vsel %vm7883, %v10097, %v10100
    %10102 = vrot.lane.b32.xlu0 %v10101, 64
    %v10103 = vpop.permute.xlu0 %10102
    %vm10105 = vcmask 648704
    %10106 = vst.msk [vmem:[#allocation4] sm:$0x3] %vm10105, %v10103
    %v10109 = vsel %vm7877, %v9961, %v9961
    %v10110 = vsel %vm7881, %v9961, %v10109
    %v10111 = vrot.slane %v10009, 7
    %v10112 = vsel %vm7871, %v10111, %v10110
    %v10113 = vsel %vm7875, %v10111, %v10112
    %v10114 = vsel %vm7879, %v10111, %v10113
    %v10115 = vsel %vm7883, %v10111, %v10114
    %10116 = vrot.lane.b32.xlu0 %v10115, 80
    %v10117 = vpop.permute.xlu0 %10116
    %vm10119 = vcmask 779904
    %10120 = vst.msk [vmem:[#allocation4] sm:$0x3] %vm10119, %v10117
    %v10123 = vsel %vm7877, %v9964, %v9964
    %v10124 = vsel %vm7881, %v9964, %v10123
    %v10125 = vrot.slane %v10012, 7
    %v10126 = vsel %vm7871, %v10125, %v10124
    %v10127 = vsel %vm7875, %v10125, %v10126
    %v10128 = vsel %vm7879, %v10125, %v10127
    %v10129 = vsel %vm7883, %v10125, %v10128
    %10130 = vrot.lane.b32.xlu0 %v10129, 96
    %v10131 = vpop.permute.xlu0 %10130
    %vm10133 = vcmask 911104
    %10134 = vst.msk [vmem:[#allocation4] sm:$0x3] %vm10133, %v10131
    %v10137 = vsel %vm7877, %v9967, %v9967
    %v10138 = vsel %vm7881, %v9967, %v10137
    %v10139 = vrot.slane %v10015, 7
    %v10140 = vsel %vm7871, %v10139, %v10138
    %v10141 = vsel %vm7875, %v10139, %v10140
    %v10142 = vsel %vm7879, %v10139, %v10141
    %v10143 = vsel %vm7883, %v10139, %v10142
    %10144 = vrot.lane.b32.xlu0 %v10143, 112
    %v10145 = vpop.permute.xlu0 %10144
    %vm10147 = vcmask 1042304
    %10148 = vst.msk [vmem:[#allocation4] sm:$0x3] %vm10147, %v10145
    %v10151 = vsel %vm7877, %v9970, %v9970
    %v10152 = vsel %vm7881, %v9970, %v10151
    %v10153 = vrot.slane %v10018, 7
    %v10154 = vsel %vm7871, %v10153, %v10152
    %v10155 = vsel %vm7875, %v10153, %v10154
    %v10156 = vsel %vm7879, %v10153, %v10155
    %v10157 = vsel %vm7883, %v10153, %v10156
    %10159 = vst.msk [vmem:[#allocation4 + $0x2] sm:$0x3] %vm9494, %v10157
    %v10162 = vsel %vm7877, %v9973, %v9973
    %v10163 = vsel %vm7881, %v9973, %v10162
    %v10164 = vrot.slane %v10021, 7
    %v10165 = vsel %vm7871, %v10164, %v10163
    %v10166 = vsel %vm7875, %v10164, %v10165
    %v10167 = vsel %vm7879, %v10164, %v10166
    %v10168 = vsel %vm7883, %v10164, %v10167
    %10169 = vrot.lane.b32.xlu0 %v10168, 16
    %v10170 = vpop.permute.xlu0 %10169
    %10172 = vst.msk [vmem:[#allocation4 + $0x2] sm:$0x3] %vm10063, %v10170
    %v10175 = vsel %vm7877, %v9976, %v9976
    %v10176 = vsel %vm7881, %v9976, %v10175
    %v10177 = vrot.slane %v10024, 7
    %v10178 = vsel %vm7871, %v10177, %v10176
    %v10179 = vsel %vm7875, %v10177, %v10178
    %v10180 = vsel %vm7879, %v10177, %v10179
    %v10181 = vsel %vm7883, %v10177, %v10180
    %10182 = vrot.lane.b32.xlu0 %v10181, 32
    %v10183 = vpop.permute.xlu0 %10182
    %10185 = vst.msk [vmem:[#allocation4 + $0x2] sm:$0x3] %vm10077, %v10183
    %v10188 = vsel %vm7877, %v9979, %v9979
    %v10189 = vsel %vm7881, %v9979, %v10188
    %v10190 = vrot.slane %v10027, 7
    %v10191 = vsel %vm7871, %v10190, %v10189
    %v10192 = vsel %vm7875, %v10190, %v10191
    %v10193 = vsel %vm7879, %v10190, %v10192
    %v10194 = vsel %vm7883, %v10190, %v10193
    %10195 = vrot.lane.b32.xlu0 %v10194, 48
    %v10196 = vpop.permute.xlu0 %10195
    %10198 = vst.msk [vmem:[#allocation4 + $0x2] sm:$0x3] %vm10091, %v10196
    %v10201 = vsel %vm7877, %v9982, %v9982
    %v10202 = vsel %vm7881, %v9982, %v10201
    %v10203 = vrot.slane %v10030, 7
    %v10204 = vsel %vm7871, %v10203, %v10202
    %v10205 = vsel %vm7875, %v10203, %v10204
    %v10206 = vsel %vm7879, %v10203, %v10205
    %v10207 = vsel %vm7883, %v10203, %v10206
    %10208 = vrot.lane.b32.xlu0 %v10207, 64
    %v10209 = vpop.permute.xlu0 %10208
    %10211 = vst.msk [vmem:[#allocation4 + $0x2] sm:$0x3] %vm10105, %v10209
    %v10214 = vsel %vm7877, %v9985, %v9985
    %v10215 = vsel %vm7881, %v9985, %v10214
    %v10216 = vrot.slane %v10033, 7
    %v10217 = vsel %vm7871, %v10216, %v10215
    %v10218 = vsel %vm7875, %v10216, %v10217
    %v10219 = vsel %vm7879, %v10216, %v10218
    %v10220 = vsel %vm7883, %v10216, %v10219
    %10221 = vrot.lane.b32.xlu0 %v10220, 80
    %v10222 = vpop.permute.xlu0 %10221
    %10224 = vst.msk [vmem:[#allocation4 + $0x2] sm:$0x3] %vm10119, %v10222
    %v10227 = vsel %vm7877, %v9988, %v9988
    %v10228 = vsel %vm7881, %v9988, %v10227
    %v10229 = vrot.slane %v10036, 7
    %v10230 = vsel %vm7871, %v10229, %v10228
    %v10231 = vsel %vm7875, %v10229, %v10230
    %v10232 = vsel %vm7879, %v10229, %v10231
    %v10233 = vsel %vm7883, %v10229, %v10232
    %10234 = vrot.lane.b32.xlu0 %v10233, 96
    %v10235 = vpop.permute.xlu0 %10234
    %10237 = vst.msk [vmem:[#allocation4 + $0x2] sm:$0x3] %vm10133, %v10235
    %v10240 = vsel %vm7877, %v9991, %v9991
    %v10241 = vsel %vm7881, %v9991, %v10240
    %v10242 = vrot.slane %v10039, 7
    %v10243 = vsel %vm7871, %v10242, %v10241
    %v10244 = vsel %vm7875, %v10242, %v10243
    %v10245 = vsel %vm7879, %v10242, %v10244
    %v10246 = vsel %vm7883, %v10242, %v10245
    %10247 = vrot.lane.b32.xlu0 %v10246, 112
    %v10248 = vpop.permute.xlu0 %10247
    %10250 = vst.msk [vmem:[#allocation4 + $0x2] sm:$0x3] %vm10147, %v10248
    %v10251 = vld [vmem:[#allocation4] sm:$0xf]
    %v10252 = vld [vmem:[%s5] sm:$0xff]
    %v10253 = vld [vmem:[%s5 + $0x8] sm:$0xff]
    %v10254 = vld [vmem:[%s5 + $0x10] sm:$0xff]
    %v10255 = vld [vmem:[%s5 + $0x18] sm:$0xff]
    %v10256 = vld [vmem:[%s5 + $0x20] sm:$0xff]
    %v10257 = vld [vmem:[%s5 + $0x28] sm:$0xff]
    %v10258 = vld [vmem:[%s5 + $0x30] sm:$0xff]
    %v10259 = vld [vmem:[%s5 + $0x38] sm:$0xff]
    %v10260 = vld [vmem:[%s5 + $0x40] sm:$0xff]
    %v10261 = vld [vmem:[%s5 + $0x48] sm:$0xff]
    %v10262 = vld [vmem:[%s5 + $0x50] sm:$0xff]
    %v10263 = vld [vmem:[%s5 + $0x58] sm:$0xff]
    %v10264 = vld [vmem:[%s5 + $0x60] sm:$0xff]
    %v10265 = vld [vmem:[%s5 + $0x68] sm:$0xff]
    %v10266 = vld [vmem:[%s5 + $0x70] sm:$0xff]
    %v10267 = vld [vmem:[%s5 + $0x78] sm:$0xff]
    %v10268 = vld [vmem:[%s5 + $0x80] sm:$0xff]
    %v10269 = vld [vmem:[%s5 + $0x88] sm:$0xff]
    %v10270 = vld [vmem:[%s5 + $0x90] sm:$0xff]
    %v10271 = vld [vmem:[%s5 + $0x98] sm:$0xff]
    %v10272 = vld [vmem:[%s5 + $0xa0] sm:$0xff]
    %v10273 = vld [vmem:[%s5 + $0xa8] sm:$0xff]
    %v10274 = vld [vmem:[%s5 + $0xb0] sm:$0xff]
    %v10275 = vld [vmem:[%s5 + $0xb8] sm:$0xff]
    %v10276 = vld [vmem:[%s5 + $0xc0] sm:$0xff]
    %v10277 = vld [vmem:[%s5 + $0xc8] sm:$0xff]
    %v10278 = vld [vmem:[%s5 + $0xd0] sm:$0xff]
    %v10279 = vld [vmem:[%s5 + $0xd8] sm:$0xff]
    %v10280 = vld [vmem:[%s5 + $0xe0] sm:$0xff]
    %v10281 = vld [vmem:[%s5 + $0xe8] sm:$0xff]
    %v10282 = vld [vmem:[%s5 + $0xf0] sm:$0xff]
    %v10283 = vld [vmem:[%s5 + $0xf8] sm:$0xff]
    %v10284 = vld [vmem:[%s6] sm:$0x1]
    %v10286 = vperm.slane %v10284, 0
    %10289 = vst [vmem:[#allocation1] ss:$4 sm:$0xff] %v10251
    %v10290 = vld.sshfl [vmem:[#allocation1] sm:$0xff pattern:$0x73625140]
    %v10291 = vld.sshfl [vmem:[#allocation1 + $0x8] sm:$0xff pattern:$0x73625140]
    %10294 = vmatpush.msra.mxu0 %v10267
    %10295 = vmatpush.msra.mxu0 %v10266
    %10296 = vmatpush.msra.mxu0 %v10265
    %10297 = vmatpush.msra.mxu0 %v10264
    %10298 = vmatpush.msra.mxu0 %v10263
    %10299 = vmatpush.msra.mxu0 %v10262
    %10300 = vmatpush.msra.mxu0 %v10261
    %10301 = vmatpush.msra.mxu0 %v10260
    %10302 = vmatpush.msra.mxu0 %v10259
    %10303 = vmatpush.msra.mxu0 %v10258
    %10304 = vmatpush.msra.mxu0 %v10257
    %10305 = vmatpush.msra.mxu0 %v10256
    %10306 = vmatpush.msra.mxu0 %v10255
    %10307 = vmatpush.msra.mxu0 %v10254
    %10308 = vmatpush.msra.mxu0 %v10253
    %10309 = vmatpush.msra.mxu0 %v10252
    %10310 = vmatmul.f32.gmra.mxu0 %v10290
    %v10311 = vpop.f32.mrf.mxu0
    %v10312 = vadd.f32 %v10286, %v10311
    %10313 = vdwg.mxu0
    %10314 = vmatpush.msra.mxu0 %v10283
    %10315 = vmatpush.msra.mxu0 %v10282
    %10316 = vmatpush.msra.mxu0 %v10281
    %10317 = vmatpush.msra.mxu0 %v10280
    %10318 = vmatpush.msra.mxu0 %v10279
    %10319 = vmatpush.msra.mxu0 %v10278
    %10320 = vmatpush.msra.mxu0 %v10277
    %10321 = vmatpush.msra.mxu0 %v10276
    %10322 = vmatpush.msra.mxu0 %v10275
    %10323 = vmatpush.msra.mxu0 %v10274
    %10324 = vmatpush.msra.mxu0 %v10273
    %10325 = vmatpush.msra.mxu0 %v10272
    %10326 = vmatpush.msra.mxu0 %v10271
    %10327 = vmatpush.msra.mxu0 %v10270
    %10328 = vmatpush.msra.mxu0 %v10269
    %10329 = vmatpush.msra.mxu0 %v10268
    %10330 = vmatmul.f32.gmra.mxu0 %v10291
    %v10331 = vpop.f32.mrf.mxu0
    %v10332 = vadd.f32 %v10312, %v10331
    %10333 = vdwg.mxu0
    %v10334 = vsub.f32 0.0, %v10332
    %v10335 = vmul.f32 %v10334, 1.442695
    %v10336 = vpow.pop %v10335
    %v10337 = vadd.f32 %v10336, 1.0
    %v10338 = vrcp.pop %v10337
    %v10339 = vmul.f32 %v10337, %v10338
    %v10340 = vsub.f32 1.0, %v10339
    %v10341 = vmul.f32 %v10338, %v10340
    %v10342 = vadd.f32 %v10338, %v10341
    %vm10343 = vweird.f32 %v10337
    %vm10344 = vweird.f32 %v10338
    %vm10345 = vmor %vm10343, %vm10344
    %v10346 = vsel %vm10345, %v10338, %v10342
    %v10347 = vand.u32 2147483647, %v10337
    %vm10348 = vcmp.eq.f32.partialorder %v10347, 8.507059e+37
    %v10349 = vand.u32 %v10337, 2147483648
    %v10350 = vor.u32 1.1754944e-38, %v10349
    %v10351 = vsel %vm10348, %v10350, %v10346
    %v10352 = vmul.f32 1.0, %v10351
    %vm10353 = vcmask 74752
    %10354 = vst.msk [vmem:[#allocation5] sm:$0x3] %vm10353, %v10352
    // Predicated region
    $region30: #{network_forward.1} parent=1 // pred_check
      _
    $region31: #{network_forward.1} parent=1 // pred_check_branch
      %10356 = sbr.rel (0) target = $region33
    $region32: #{network_forward.1} parent=1 // pred_region
      %10358 = vsyncadd [#allocation6], 0
      %s10360 = sshll.u32 [#allocation5], 4
      %s10361 = int_to_ptr.vmem [resolvable:$true] %s10360
      %s10362 = sshll.u32 %s7, 4
      %s10363 = int_to_ptr.hbm [resolvable:$true] %s10362
      %10365 = dma.vmem_to_hbm [thread:$0]  %s10361, 32, %s10363, [#allocation6]
    $region33: #{network_forward.1} parent=1 // pred_fallthru
      _
    // Predicated region
    $region34: #{network_forward.1} parent=1 // pred_check
      _
    $region35: #{network_forward.1} parent=1 // pred_check_branch
      %10367 = sbr.rel (0) target = $region37
    $region36: #{network_forward.1} parent=1 // pred_region
      %10369 = dma.done [#allocation6], 32
    $region37: #{network_forward.1} parent=1 // pred_fallthru
      _
    %10370 = vsyncpa [#allocation6], 1

</llo_original>
